<compile_context>
chip_gen: v7x
topology: tpu7x:2x2x1
jax: 0.10.0
libtpu: 0.0.40
codegen_flags: <defaults>
</compile_context>

<pallas_src>
import functools

import jax
import jax.numpy as jnp
from jax.experimental import pallas as pl
from jax.experimental.pallas import tpu as pltpu


def _gnn_kernel(a_ref, h_ref, w1_ref, w2_ref, wh_ref,
                c1_ref, c2_ref, b0_ref, bhn_ref, out_ref,
                *, n_nodes, hp, step, matmul_dtype):
    """One batch tile (bt graphs); all `step` propagation steps run resident."""
    n = n_nodes
    Hp = hp
    bt = h_ref.shape[0]
    M = bt * n

    # Loads: adjacency + weights stay resident across the step loop.
    A = a_ref[...]                           # (bt, 2n, n)  matmul dtype
    W1 = w1_ref[...]                         # (Hp, 3Hp)    matmul dtype
    W2 = w2_ref[...]
    Wh = wh_ref[...]

    # Row-dependent gi bias, built ONCE per tile (A constant across steps):
    #   bias_gi = b0 + rowsum(A_in) * c1 + rowsum(A_out) * c2
    # This is the bias-folding term of the W_edge @ W_i pre-composition.
    rs = jnp.sum(A.astype(jnp.float32), axis=-1, keepdims=True)        # (bt, 2n, 1)
    c1 = c1_ref[...].reshape(1, 1, 3 * Hp)
    c2 = c2_ref[...].reshape(1, 1, 3 * Hp)
    b0 = b0_ref[...].reshape(1, 1, 3 * Hp)
    bias_gi = (b0 + rs[:, :n, :] * c1 + rs[:, n:, :] * c2).reshape(M, 3 * Hp)
    bias_hn = jnp.broadcast_to(bhn_ref[...], (M, Hp))   # hoisted out of step loop

    h = h_ref[...].astype(jnp.float32)       # (bt, n, Hp) f32 state (padded lanes = 0)

    def cell(h3):
        h_md = h3.astype(matmul_dtype)
        # ONE batched adjacency contraction per graph: (2n, n) @ (n, Hp).
        # TODO(synk): for n <= ~32 a VPU broadcast-FMA j-loop could replace this.
        Ah = jnp.einsum('bij,bjh->bih', A, h_md,
                        preferred_element_type=jnp.float32)            # (bt, 2n, Hp)
        # n is a multiple of 8 at these shapes -> sublane-aligned splits.
        Ah_in = Ah[:, :n, :].reshape(M, Hp).astype(matmul_dtype)
        Ah_out = Ah[:, n:, :].reshape(M, Hp).astype(matmul_dtype)

        # gi with pre-composed weights (edge matmuls eliminated).
        gi = (jnp.dot(Ah_in, W1, preferred_element_type=jnp.float32)
              + jnp.dot(Ah_out, W2, preferred_element_type=jnp.float32)
              + bias_gi)                                               # (M, 3Hp)
        gh = jnp.dot(h_md.reshape(M, Hp), Wh,
                     preferred_element_type=jnp.float32)               # (M, 3Hp)

        # 128-aligned gate splits (each gate segment is Hp lanes wide).
        i_r, i_i, i_n = gi[:, :Hp], gi[:, Hp:2 * Hp], gi[:, 2 * Hp:]
        h_r, h_i = gh[:, :Hp], gh[:, Hp:2 * Hp]
        h_n = gh[:, 2 * Hp:] + bias_hn       # n-gate bias of linear_h (not foldable)

        resetgate = jax.nn.sigmoid(i_r + h_r)        # f32 gate math on all gens
        inputgate = jax.nn.sigmoid(i_i + h_i)
        newgate = jnp.tanh(i_n + resetgate * h_n)
        hf = h3.reshape(M, Hp)
        hy = newgate + inputgate * (hf - newgate)
        return hy.reshape(bt, n, Hp)

    if step <= 2:
        for _ in range(step):                # typical SR-GNN: step == 1
            h = cell(h)
    else:
        h = jax.lax.fori_loop(0, step, lambda _, hh: cell(hh), h, unroll=True)

    out_ref[...] = h.astype(out_ref.dtype)   # lane-dense (Hp-wide) store


def _gate_pad_cols(x, H, Hp):
    """(K, 3H) -> (K, 3*Hp): each H-wide gate block starts at a 128-aligned lane."""
    out = jnp.zeros((x.shape[0], 3 * Hp), x.dtype)
    for g in range(3):
        out = out.at[:, g * Hp:g * Hp + H].set(x[:, g * H:(g + 1) * H])
    return out


def gnn_forward(A, hidden, params, step=1, batch_tile=None,
                matmul_dtype=jnp.float32, vmem_tile_budget_mb=6):
    """Full GNN forward (all propagation steps inside one pallas_call)."""
    B, n, two_n = A.shape
    assert two_n == 2 * n, "A must be (B, n, 2n)"
    H = hidden.shape[-1]
    Hp = max(128, ((H + 127) // 128) * 128)      # 128-aligned gate segment width
    f32 = jnp.float32

    # ---- algebraic pre-composition (done once, by XLA, outside the kernel) ----
    #   gi = (A_in@h)@(We_in@Wt) + (A_out@h)@(We_out@Wb)
    #        + rowsum(A_in)*(b_ein@Wt) + rowsum(A_out)*(b_eout@Wb)
    #        + (b_iah@Wt + b_oah@Wb + b_i)  [+ r/i segments of b_h folded in]
    Wt = params["w_i"][:H].astype(f32)                  # acts on input_in
    Wb = params["w_i"][H:].astype(f32)                  # acts on input_out
    W1 = params["w_edge_in"].astype(f32) @ Wt           # (H, 3H)
    W2 = params["w_edge_out"].astype(f32) @ Wb
    c1 = params["b_edge_in"].astype(f32) @ Wt           # (1, 3H)
    c2 = params["b_edge_out"].astype(f32) @ Wb
    b_h = params["b_h"].astype(f32)
    # r/i segments of b_h fold into the gi bias (gates only see gi+gh sums);
    # the n segment stays with gh because it is scaled by the reset gate.
    b0 = (params["b_iah"].astype(f32) @ Wt + params["b_oah"].astype(f32) @ Wb
          + params["b_i"].astype(f32)
          + jnp.concatenate([b_h[:, :2 * H], jnp.zeros((1, H), f32)], axis=1))
    bhn = b_h[:, 2 * H:3 * H]

    pad_cols = lambda x: _gate_pad_cols(x, H, Hp)
    pad_rows = lambda x: jnp.pad(x, ((0, Hp - H), (0, 0)))
    W1_p = pad_rows(pad_cols(W1)).astype(matmul_dtype)        # (Hp, 3Hp)
    W2_p = pad_rows(pad_cols(W2)).astype(matmul_dtype)
    Wh_p = pad_rows(pad_cols(params["w_h"].astype(f32))).astype(matmul_dtype)
    c1_p = pad_cols(c1)                                       # (1, 3Hp) f32
    c2_p = pad_cols(c2)
    b0_p = pad_cols(b0)
    bhn_p = jnp.pad(bhn, ((0, 0), (0, Hp - H)))               # (1, Hp) f32

    # A_in / A_out stacked on the ROW axis -> one batched contraction in-kernel;
    # cast to the matmul dtype in HBM (halves A's DMA traffic in bf16 mode).
    A_cat = jnp.concatenate([A[:, :, :n], A[:, :, n:2 * n]], axis=1)
    A_cat = A_cat.astype(matmul_dtype)                        # (B, 2n, n)
    # Hidden padded to Hp lanes: lane-dense 128-wide loads/stores, f32 state.
    hidden_p = jnp.pad(hidden.astype(f32), ((0, 0), (0, 0), (0, Hp - H)))

    # ---- batch tile sized by VMEM budget (per-graph bytes), not target rows ----
    a_bytes = jnp.dtype(matmul_dtype).itemsize
    per_graph = (2 * (2 * n * n * a_bytes + 2 * n * Hp * 4)           # dbl-buffered blocks
                 + (2 * n * Hp + 3 * n * 3 * Hp + 4 * n * Hp) * 4)    # f32 intermediates
    if batch_tile is None:
        bt = max(1, int(vmem_tile_budget_mb * 1024 * 1024) // max(per_graph, 1))
        bt = min(bt, B)
        if B >= 2:                        # >= 2 grid tiles so both v7x TCs get work
            bt = min(bt, -(-B // 2))
    else:
        bt = max(1, min(batch_tile, B))
    n_tiles = -(-B // bt)                 # ceil division
    B_pad = n_tiles * bt
    if B_pad != B:
        pad = B_pad - B
        A_cat = jnp.pad(A_cat, ((0, pad), (0, 0), (0, 0)))
        hidden_p = jnp.pad(hidden_p, ((0, pad), (0, 0), (0, 0)))

    kernel = functools.partial(_gnn_kernel, n_nodes=n, hp=Hp, step=step,
                               matmul_dtype=matmul_dtype)

    def call(single_buffer_weights):
        def const_spec(shape):
            imap = lambda b: (0,) * len(shape)
            if single_buffer_weights:
                # Constant across the grid -> a single VMEM buffer is enough.
                return pl.BlockSpec(shape, imap, pipeline_mode=pl.Buffered(1))
            return pl.BlockSpec(shape, imap)

        grid_spec = pltpu.PrefetchScalarGridSpec(
            num_scalar_prefetch=0,
            grid=(n_tiles,),
            in_specs=[
                pl.BlockSpec((bt, 2 * n, n), lambda b: (b, 0, 0)),    # A_cat
                pl.BlockSpec((bt, n, Hp), lambda b: (b, 0, 0)),       # hidden
                const_spec((Hp, 3 * Hp)),                             # W1
                const_spec((Hp, 3 * Hp)),                             # W2
                const_spec((Hp, 3 * Hp)),                             # W_h
                const_spec((1, 3 * Hp)),                              # c1
                const_spec((1, 3 * Hp)),                              # c2
                const_spec((1, 3 * Hp)),                              # b0
                const_spec((1, Hp)),                                  # b_h (n gate)
            ],
            out_specs=pl.BlockSpec((bt, n, Hp), lambda b: (b, 0, 0)),
        )
        return pl.pallas_call(
            kernel,
            out_shape=jax.ShapeDtypeStruct((B_pad, n, Hp), f32),
            grid_spec=grid_spec,
            compiler_params=pltpu.CompilerParams(
                dimension_semantics=("parallel",),
                vmem_limit_bytes=32 * 1024 * 1024),
        )(A_cat, hidden_p, W1_p, W2_p, Wh_p, c1_p, c2_p, b0_p, bhn_p)

    try:
        out = call(True)
    except Exception:      # pipeline_mode / Buffered(1) unsupported -> default bufs
        out = call(False)

    return out[:B, :, :H].astype(hidden.dtype)


# ----- pure-JAX reference (mirrors the PyTorch module exactly) -----
def gnn_cell_ref(A, hidden, params):
    n = A.shape[1]
    edge_in = hidden @ params["w_edge_in"] + params["b_edge_in"]
    edge_out = hidden @ params["w_edge_out"] + params["b_edge_out"]
    input_in = jnp.matmul(A[:, :, :n], edge_in) + params["b_iah"]
    input_out = jnp.matmul(A[:, :, n:2 * n], edge_out) + params["b_oah"]
    inputs = jnp.concatenate([input_in, input_out], axis=2)
    gi = inputs @ params["w_i"] + params["b_i"]
    gh = hidden @ params["w_h"] + params["b_h"]
    H = hidden.shape[-1]
    i_r, i_i, i_n = gi[..., :H], gi[..., H:2 * H], gi[..., 2 * H:]
    h_r, h_i, h_n = gh[..., :H], gh[..., H:2 * H], gh[..., 2 * H:]
    resetgate = jax.nn.sigmoid(i_r + h_r)
    inputgate = jax.nn.sigmoid(i_i + h_i)
    newgate = jnp.tanh(i_n + resetgate * h_n)
    return newgate + inputgate * (hidden - newgate)


def gnn_forward_ref(A, hidden, params, step=1):
    for _ in range(step):
        hidden = gnn_cell_ref(A, hidden, params)
    return hidden


def init_params(key, hidden_size):
    """Deterministic synthetic init (nn.Linear weights pre-transposed to (in,out))."""
    H = hidden_size
    ks = jax.random.split(key, 10)
    u = lambda k, shape, scale: jax.random.uniform(
        k, shape, jnp.float32, minval=-scale, maxval=scale)
    stdv = 1.0 / jnp.sqrt(H)
    return {
        "w_edge_in": u(ks[0], (H, H), stdv),        # linear_edge_in
        "b_edge_in": u(ks[1], (1, H), stdv),
        "w_edge_out": u(ks[2], (H, H), stdv),       # linear_edge_out
        "b_edge_out": u(ks[3], (1, H), stdv),
        "b_iah": u(ks[4], (1, H), stdv),
        "b_oah": u(ks[5], (1, H), stdv),
        "w_i": u(ks[6], (2 * H, 3 * H), stdv),      # linear_i
        "b_i": u(ks[7], (1, 3 * H), stdv),
        "w_h": u(ks[8], (H, 3 * H), stdv),          # linear_h
        "b_h": u(ks[9], (1, 3 * H), stdv),
    }


if __name__ == "__main__":
    key = jax.random.PRNGKey(0)
    B, N, H = 16, 8, 32            # batch, n_nodes, hidden_size

    k_a, k_h, k_p = jax.random.split(key, 3)
    A = jax.random.uniform(k_a, (B, N, 2 * N), jnp.float32)
    hidden = jax.random.normal(k_h, (B, N, H), jnp.float32)
    params = init_params(k_p, H)

    # High-precision references (TPU default matmul precision is bf16-based,
    # and the kernel uses an algebraic weight pre-composition).
    with jax.default_matmul_precision("highest"):
        ref = gnn_forward_ref(A, hidden, params, step=2)
        ref2 = gnn_forward_ref(A[:6], hidden[:6], params, step=1)
        ref3 = gnn_forward_ref(A, hidden, params, step=1)

    # 1) f32 path, 2 propagation steps resident in the kernel, VMEM-sized tiles.
    out = jax.block_until_ready(gnn_forward(A, hidden, params, step=2))
    assert out.shape == (B, N, H)
    assert jnp.allclose(out, ref, atol=2e-3, rtol=2e-3), "f32 mismatch vs reference"

    # 2) uneven batch + explicit small tile -> exercises padding and a >1 grid.
    out2 = jax.block_until_ready(
        gnn_forward(A[:6], hidden[:6], params, step=1, batch_tile=4))
    assert jnp.allclose(out2, ref2, atol=2e-3, rtol=2e-3), "padded-batch mismatch"

    # 3) bf16 MXU operands (f32 accumulation, f32 gate math) -> loose tolerance.
    out3 = jax.block_until_ready(
        gnn_forward(A, hidden, params, step=1, matmul_dtype=jnp.bfloat16))
    assert jnp.allclose(out3, ref3, atol=1e-1, rtol=1e-1), "bf16 mismatch"

    print("KERNEL_OK")
</pallas_src>

<mosaic_0001>
module attributes {stable_mosaic.version = 11 : i64} {
  func.func @_gnn_kernel(%arg0: i32, %arg1: memref<8x16x8xf32, #tpu.memory_space<vmem>>, %arg2: memref<8x8x128xf32, #tpu.memory_space<vmem>>, %arg3: memref<128x384xf32, #tpu.memory_space<vmem>>, %arg4: memref<128x384xf32, #tpu.memory_space<vmem>>, %arg5: memref<128x384xf32, #tpu.memory_space<vmem>>, %arg6: memref<1x384xf32, #tpu.memory_space<vmem>>, %arg7: memref<1x384xf32, #tpu.memory_space<vmem>>, %arg8: memref<1x384xf32, #tpu.memory_space<vmem>>, %arg9: memref<1x128xf32, #tpu.memory_space<vmem>>, %arg10: memref<8x8x128xf32, #tpu.memory_space<vmem>>) attributes {dimension_semantics = [#tpu.dimension_semantics<parallel>], iteration_bounds = array<i64: 2>, scalar_prefetch = 0 : i64, scratch_operands = 0 : i64, tpu.core_type = #tpu.core_type<tc>, window_params = [{transform_indices = @transform_0, window_bounds = array<i64: 8, 16, 8>}, {transform_indices = @transform_1, window_bounds = array<i64: 8, 8, 128>}, {pipeline_mode = #tpu.pipeline_mode<synchronous>, transform_indices = @transform_2, window_bounds = array<i64: 128, 384>}, {pipeline_mode = #tpu.pipeline_mode<synchronous>, transform_indices = @transform_3, window_bounds = array<i64: 128, 384>}, {pipeline_mode = #tpu.pipeline_mode<synchronous>, transform_indices = @transform_4, window_bounds = array<i64: 128, 384>}, {pipeline_mode = #tpu.pipeline_mode<synchronous>, transform_indices = @transform_5, window_bounds = array<i64: 1, 384>}, {pipeline_mode = #tpu.pipeline_mode<synchronous>, transform_indices = @transform_6, window_bounds = array<i64: 1, 384>}, {pipeline_mode = #tpu.pipeline_mode<synchronous>, transform_indices = @transform_7, window_bounds = array<i64: 1, 384>}, {pipeline_mode = #tpu.pipeline_mode<synchronous>, transform_indices = @transform_8, window_bounds = array<i64: 1, 128>}, {transform_indices = @transform_9, window_bounds = array<i64: 8, 8, 128>}]} {
    %c0 = arith.constant 0 : index
    %c0_0 = arith.constant 0 : index
    %c0_1 = arith.constant 0 : index
    %0 = vector.load %arg1[%c0, %c0_0, %c0_1] : memref<8x16x8xf32, #tpu.memory_space<vmem>>, vector<8x16x8xf32>
    %c0_2 = arith.constant 0 : index
    %c0_3 = arith.constant 0 : index
    %1 = vector.load %arg3[%c0_2, %c0_3] : memref<128x384xf32, #tpu.memory_space<vmem>>, vector<128x384xf32>
    %c0_4 = arith.constant 0 : index
    %c0_5 = arith.constant 0 : index
    %2 = vector.load %arg4[%c0_4, %c0_5] : memref<128x384xf32, #tpu.memory_space<vmem>>, vector<128x384xf32>
    %c0_6 = arith.constant 0 : index
    %c0_7 = arith.constant 0 : index
    %3 = vector.load %arg5[%c0_6, %c0_7] : memref<128x384xf32, #tpu.memory_space<vmem>>, vector<128x384xf32>
    %cst = arith.constant dense<0.000000e+00> : vector<8x16xf32>
    %4 = vector.multi_reduction <add>, %0, %cst [2] : vector<8x16x8xf32> to vector<8x16xf32>
    %5 = vector.shape_cast %4 : vector<8x16xf32> to vector<8x16x1xf32>
    %c0_8 = arith.constant 0 : index
    %c0_9 = arith.constant 0 : index
    %6 = vector.load %arg6[%c0_8, %c0_9] : memref<1x384xf32, #tpu.memory_space<vmem>>, vector<1x384xf32>
    %7 = vector.shape_cast %6 : vector<1x384xf32> to vector<1x1x384xf32>
    %c0_10 = arith.constant 0 : index
    %c0_11 = arith.constant 0 : index
    %8 = vector.load %arg7[%c0_10, %c0_11] : memref<1x384xf32, #tpu.memory_space<vmem>>, vector<1x384xf32>
    %9 = vector.shape_cast %8 : vector<1x384xf32> to vector<1x1x384xf32>
    %c0_12 = arith.constant 0 : index
    %c0_13 = arith.constant 0 : index
    %10 = vector.load %arg8[%c0_12, %c0_13] : memref<1x384xf32, #tpu.memory_space<vmem>>, vector<1x384xf32>
    %11 = vector.shape_cast %10 : vector<1x384xf32> to vector<1x1x384xf32>
    %12 = vector.extract_strided_slice %5 {offsets = [0, 0, 0], sizes = [8, 8, 1], strides = [1, 1, 1]} : vector<8x16x1xf32> to vector<8x8x1xf32>
    %13 = vector.broadcast %12 : vector<8x8x1xf32> to vector<8x8x384xf32>
    %14 = vector.broadcast %7 : vector<1x1x384xf32> to vector<8x8x384xf32>
    %15 = arith.mulf %13, %14 : vector<8x8x384xf32>
    %16 = vector.broadcast %11 : vector<1x1x384xf32> to vector<8x8x384xf32>
    %17 = arith.addf %16, %15 : vector<8x8x384xf32>
    %18 = vector.extract_strided_slice %5 {offsets = [0, 8, 0], sizes = [8, 8, 1], strides = [1, 1, 1]} : vector<8x16x1xf32> to vector<8x8x1xf32>
    %19 = vector.broadcast %18 : vector<8x8x1xf32> to vector<8x8x384xf32>
    %20 = vector.broadcast %9 : vector<1x1x384xf32> to vector<8x8x384xf32>
    %21 = arith.mulf %19, %20 : vector<8x8x384xf32>
    %22 = arith.addf %17, %21 : vector<8x8x384xf32>
    %23 = vector.shape_cast %22 : vector<8x8x384xf32> to vector<64x384xf32>
    %c0_14 = arith.constant 0 : index
    %c0_15 = arith.constant 0 : index
    %24 = vector.load %arg9[%c0_14, %c0_15] : memref<1x128xf32, #tpu.memory_space<vmem>>, vector<1x128xf32>
    %25 = vector.shape_cast %24 : vector<1x128xf32> to vector<1x128xf32>
    %26 = vector.broadcast %25 : vector<1x128xf32> to vector<64x128xf32>
    %c0_16 = arith.constant 0 : index
    %c0_17 = arith.constant 0 : index
    %c0_18 = arith.constant 0 : index
    %27 = vector.load %arg2[%c0_16, %c0_17, %c0_18] : memref<8x8x128xf32, #tpu.memory_space<vmem>>, vector<8x8x128xf32>
    "tpu.trace_start"() <{level = 10 : i32, message = "bij,bjh->bih"}> : () -> ()
    %cst_19 = arith.constant dense<0.000000e+00> : vector<8x16x128xf32>
    %28 = tpu.matmul %0, %27, %cst_19 {dimension_numbers = #tpu.dot_dimension_numbers<[2], [1], [1], [2], [0, 0, 0, 1, 1, 2], [0], [0]>} : vector<8x16x8xf32>, vector<8x8x128xf32>, vector<8x16x128xf32> -> vector<8x16x128xf32>
    "tpu.trace_stop"() : () -> ()
    %29 = vector.extract_strided_slice %28 {offsets = [0, 0, 0], sizes = [8, 8, 128], strides = [1, 1, 1]} : vector<8x16x128xf32> to vector<8x8x128xf32>
    %30 = vector.shape_cast %29 : vector<8x8x128xf32> to vector<64x128xf32>
    %31 = vector.extract_strided_slice %28 {offsets = [0, 8, 0], sizes = [8, 8, 128], strides = [1, 1, 1]} : vector<8x16x128xf32> to vector<8x8x128xf32>
    %32 = vector.shape_cast %31 : vector<8x8x128xf32> to vector<64x128xf32>
    %cst_20 = arith.constant dense<0.000000e+00> : vector<64x384xf32>
    %33 = tpu.matmul %30, %1, %cst_20 {dimension_numbers = #tpu.dot_dimension_numbers<[1], [0], [0], [1], [0, 0, 1, 1], [], []>} : vector<64x128xf32>, vector<128x384xf32>, vector<64x384xf32> -> vector<64x384xf32>
    %cst_21 = arith.constant dense<0.000000e+00> : vector<64x384xf32>
    %34 = tpu.matmul %32, %2, %cst_21 {dimension_numbers = #tpu.dot_dimension_numbers<[1], [0], [0], [1], [0, 0, 1, 1], [], []>} : vector<64x128xf32>, vector<128x384xf32>, vector<64x384xf32> -> vector<64x384xf32>
    %35 = arith.addf %33, %34 : vector<64x384xf32>
    %36 = arith.addf %35, %23 : vector<64x384xf32>
    %37 = vector.shape_cast %27 : vector<8x8x128xf32> to vector<64x128xf32>
    %cst_22 = arith.constant dense<0.000000e+00> : vector<64x384xf32>
    %38 = tpu.matmul %37, %3, %cst_22 {dimension_numbers = #tpu.dot_dimension_numbers<[1], [0], [0], [1], [0, 0, 1, 1], [], []>} : vector<64x128xf32>, vector<128x384xf32>, vector<64x384xf32> -> vector<64x384xf32>
    %39 = vector.extract_strided_slice %36 {offsets = [0, 0], sizes = [64, 128], strides = [1, 1]} : vector<64x384xf32> to vector<64x128xf32>
    %40 = vector.extract_strided_slice %36 {offsets = [0, 128], sizes = [64, 128], strides = [1, 1]} : vector<64x384xf32> to vector<64x128xf32>
    %41 = vector.extract_strided_slice %36 {offsets = [0, 256], sizes = [64, 128], strides = [1, 1]} : vector<64x384xf32> to vector<64x128xf32>
    %42 = vector.extract_strided_slice %38 {offsets = [0, 0], sizes = [64, 128], strides = [1, 1]} : vector<64x384xf32> to vector<64x128xf32>
    %43 = vector.extract_strided_slice %38 {offsets = [0, 128], sizes = [64, 128], strides = [1, 1]} : vector<64x384xf32> to vector<64x128xf32>
    %44 = vector.extract_strided_slice %38 {offsets = [0, 256], sizes = [64, 128], strides = [1, 1]} : vector<64x384xf32> to vector<64x128xf32>
    %45 = arith.addf %44, %26 : vector<64x128xf32>
    %46 = arith.addf %39, %42 : vector<64x128xf32>
    %47 = arith.negf %46 : vector<64x128xf32>
    %48 = math.exp %47 : vector<64x128xf32>
    %cst_23 = arith.constant 1.000000e+00 : f32
    %49 = vector.broadcast %cst_23 : f32 to vector<64x128xf32>
    %50 = arith.addf %49, %48 : vector<64x128xf32>
    %51 = arith.divf %49, %50 : vector<64x128xf32>
    %52 = arith.addf %40, %43 : vector<64x128xf32>
    %53 = arith.negf %52 : vector<64x128xf32>
    %54 = math.exp %53 : vector<64x128xf32>
    %cst_24 = arith.constant 1.000000e+00 : f32
    %55 = vector.broadcast %cst_24 : f32 to vector<64x128xf32>
    %56 = arith.addf %55, %54 : vector<64x128xf32>
    %57 = arith.divf %55, %56 : vector<64x128xf32>
    %58 = arith.mulf %51, %45 : vector<64x128xf32>
    %59 = arith.addf %41, %58 : vector<64x128xf32>
    %60 = math.tanh %59 : vector<64x128xf32>
    %61 = vector.shape_cast %27 : vector<8x8x128xf32> to vector<64x128xf32>
    %62 = arith.subf %61, %60 : vector<64x128xf32>
    %63 = arith.mulf %57, %62 : vector<64x128xf32>
    %64 = arith.addf %60, %63 : vector<64x128xf32>
    %65 = vector.shape_cast %64 : vector<64x128xf32> to vector<8x8x128xf32>
    "tpu.trace_start"() <{level = 10 : i32, message = "bij,bjh->bih"}> : () -> ()
    %cst_25 = arith.constant dense<0.000000e+00> : vector<8x16x128xf32>
    %66 = tpu.matmul %0, %65, %cst_25 {dimension_numbers = #tpu.dot_dimension_numbers<[2], [1], [1], [2], [0, 0, 0, 1, 1, 2], [0], [0]>} : vector<8x16x8xf32>, vector<8x8x128xf32>, vector<8x16x128xf32> -> vector<8x16x128xf32>
    "tpu.trace_stop"() : () -> ()
    %67 = vector.extract_strided_slice %66 {offsets = [0, 0, 0], sizes = [8, 8, 128], strides = [1, 1, 1]} : vector<8x16x128xf32> to vector<8x8x128xf32>
    %68 = vector.shape_cast %67 : vector<8x8x128xf32> to vector<64x128xf32>
    %69 = vector.extract_strided_slice %66 {offsets = [0, 8, 0], sizes = [8, 8, 128], strides = [1, 1, 1]} : vector<8x16x128xf32> to vector<8x8x128xf32>
    %70 = vector.shape_cast %69 : vector<8x8x128xf32> to vector<64x128xf32>
    %cst_26 = arith.constant dense<0.000000e+00> : vector<64x384xf32>
    %71 = tpu.matmul %68, %1, %cst_26 {dimension_numbers = #tpu.dot_dimension_numbers<[1], [0], [0], [1], [0, 0, 1, 1], [], []>} : vector<64x128xf32>, vector<128x384xf32>, vector<64x384xf32> -> vector<64x384xf32>
    %cst_27 = arith.constant dense<0.000000e+00> : vector<64x384xf32>
    %72 = tpu.matmul %70, %2, %cst_27 {dimension_numbers = #tpu.dot_dimension_numbers<[1], [0], [0], [1], [0, 0, 1, 1], [], []>} : vector<64x128xf32>, vector<128x384xf32>, vector<64x384xf32> -> vector<64x384xf32>
    %73 = arith.addf %71, %72 : vector<64x384xf32>
    %74 = arith.addf %73, %23 : vector<64x384xf32>
    %75 = vector.shape_cast %65 : vector<8x8x128xf32> to vector<64x128xf32>
    %cst_28 = arith.constant dense<0.000000e+00> : vector<64x384xf32>
    %76 = tpu.matmul %75, %3, %cst_28 {dimension_numbers = #tpu.dot_dimension_numbers<[1], [0], [0], [1], [0, 0, 1, 1], [], []>} : vector<64x128xf32>, vector<128x384xf32>, vector<64x384xf32> -> vector<64x384xf32>
    %77 = vector.extract_strided_slice %74 {offsets = [0, 0], sizes = [64, 128], strides = [1, 1]} : vector<64x384xf32> to vector<64x128xf32>
    %78 = vector.extract_strided_slice %74 {offsets = [0, 128], sizes = [64, 128], strides = [1, 1]} : vector<64x384xf32> to vector<64x128xf32>
    %79 = vector.extract_strided_slice %74 {offsets = [0, 256], sizes = [64, 128], strides = [1, 1]} : vector<64x384xf32> to vector<64x128xf32>
    %80 = vector.extract_strided_slice %76 {offsets = [0, 0], sizes = [64, 128], strides = [1, 1]} : vector<64x384xf32> to vector<64x128xf32>
    %81 = vector.extract_strided_slice %76 {offsets = [0, 128], sizes = [64, 128], strides = [1, 1]} : vector<64x384xf32> to vector<64x128xf32>
    %82 = vector.extract_strided_slice %76 {offsets = [0, 256], sizes = [64, 128], strides = [1, 1]} : vector<64x384xf32> to vector<64x128xf32>
    %83 = arith.addf %82, %26 : vector<64x128xf32>
    %84 = arith.addf %77, %80 : vector<64x128xf32>
    %85 = arith.negf %84 : vector<64x128xf32>
    %86 = math.exp %85 : vector<64x128xf32>
    %cst_29 = arith.constant 1.000000e+00 : f32
    %87 = vector.broadcast %cst_29 : f32 to vector<64x128xf32>
    %88 = arith.addf %87, %86 : vector<64x128xf32>
    %89 = arith.divf %87, %88 : vector<64x128xf32>
    %90 = arith.addf %78, %81 : vector<64x128xf32>
    %91 = arith.negf %90 : vector<64x128xf32>
    %92 = math.exp %91 : vector<64x128xf32>
    %cst_30 = arith.constant 1.000000e+00 : f32
    %93 = vector.broadcast %cst_30 : f32 to vector<64x128xf32>
    %94 = arith.addf %93, %92 : vector<64x128xf32>
    %95 = arith.divf %93, %94 : vector<64x128xf32>
    %96 = arith.mulf %89, %83 : vector<64x128xf32>
    %97 = arith.addf %79, %96 : vector<64x128xf32>
    %98 = math.tanh %97 : vector<64x128xf32>
    %99 = vector.shape_cast %65 : vector<8x8x128xf32> to vector<64x128xf32>
    %100 = arith.subf %99, %98 : vector<64x128xf32>
    %101 = arith.mulf %95, %100 : vector<64x128xf32>
    %102 = arith.addf %98, %101 : vector<64x128xf32>
    %103 = vector.shape_cast %102 : vector<64x128xf32> to vector<8x8x128xf32>
    %c0_31 = arith.constant 0 : index
    %c0_32 = arith.constant 0 : index
    %c0_33 = arith.constant 0 : index
    %104 = vector.load %arg10[%c0_31, %c0_32, %c0_33] : memref<8x8x128xf32, #tpu.memory_space<vmem>>, vector<8x8x128xf32>
    tpu.vector_store %arg10[%c0_31, %c0_32, %c0_33], %103 {strides = array<i32>} : memref<8x8x128xf32, #tpu.memory_space<vmem>>, vector<8x8x128xf32>,
    return
  }
  func.func @transform_0(%arg0: i32) -> (i32, i32, i32) {
    %c0_i32 = arith.constant 0 : i32
    %c0_i32_0 = arith.constant 0 : i32
    %c0_i32_1 = arith.constant 0 : i32
    return %arg0, %c0_i32, %c0_i32_0 : i32, i32, i32
  }
  func.func @transform_1(%arg0: i32) -> (i32, i32, i32) {
    %c0_i32 = arith.constant 0 : i32
    %c0_i32_0 = arith.constant 0 : i32
    %c0_i32_1 = arith.constant 0 : i32
    return %arg0, %c0_i32, %c0_i32_0 : i32, i32, i32
  }
  func.func @transform_2(%arg0: i32) -> (i32, i32) {
    %c0_i32 = arith.constant 0 : i32
    %c0_i32_0 = arith.constant 0 : i32
    %c0_i32_1 = arith.constant 0 : i32
    return %c0_i32, %c0_i32_0 : i32, i32
  }
  func.func @transform_3(%arg0: i32) -> (i32, i32) {
    %c0_i32 = arith.constant 0 : i32
    %c0_i32_0 = arith.constant 0 : i32
    %c0_i32_1 = arith.constant 0 : i32
    return %c0_i32, %c0_i32_0 : i32, i32
  }
  func.func @transform_4(%arg0: i32) -> (i32, i32) {
    %c0_i32 = arith.constant 0 : i32
    %c0_i32_0 = arith.constant 0 : i32
    %c0_i32_1 = arith.constant 0 : i32
    return %c0_i32, %c0_i32_0 : i32, i32
  }
  func.func @transform_5(%arg0: i32) -> (i32, i32) {
    %c0_i32 = arith.constant 0 : i32
    %c0_i32_0 = arith.constant 0 : i32
    %c0_i32_1 = arith.constant 0 : i32
    return %c0_i32, %c0_i32_0 : i32, i32
  }
  func.func @transform_6(%arg0: i32) -> (i32, i32) {
    %c0_i32 = arith.constant 0 : i32
    %c0_i32_0 = arith.constant 0 : i32
    %c0_i32_1 = arith.constant 0 : i32
    return %c0_i32, %c0_i32_0 : i32, i32
  }
  func.func @transform_7(%arg0: i32) -> (i32, i32) {
    %c0_i32 = arith.constant 0 : i32
    %c0_i32_0 = arith.constant 0 : i32
    %c0_i32_1 = arith.constant 0 : i32
    return %c0_i32, %c0_i32_0 : i32, i32
  }
  func.func @transform_8(%arg0: i32) -> (i32, i32) {
    %c0_i32 = arith.constant 0 : i32
    %c0_i32_0 = arith.constant 0 : i32
    %c0_i32_1 = arith.constant 0 : i32
    return %c0_i32, %c0_i32_0 : i32, i32
  }
  func.func @transform_9(%arg0: i32) -> (i32, i32, i32) {
    %c0_i32 = arith.constant 0 : i32
    %c0_i32_0 = arith.constant 0 : i32
    %c0_i32_1 = arith.constant 0 : i32
    return %arg0, %c0_i32, %c0_i32_0 : i32, i32, i32
  }
}

module attributes {stable_mosaic.version = 11 : i64} {
  func.func @_gnn_kernel(%arg0: i32, %arg1: memref<8x16x8xf32, #tpu.memory_space<vmem>>, %arg2: memref<8x8x128xf32, #tpu.memory_space<vmem>>, %arg3: memref<128x384xf32, #tpu.memory_space<vmem>>, %arg4: memref<128x384xf32, #tpu.memory_space<vmem>>, %arg5: memref<128x384xf32, #tpu.memory_space<vmem>>, %arg6: memref<1x384xf32, #tpu.memory_space<vmem>>, %arg7: memref<1x384xf32, #tpu.memory_space<vmem>>, %arg8: memref<1x384xf32, #tpu.memory_space<vmem>>, %arg9: memref<1x128xf32, #tpu.memory_space<vmem>>, %arg10: memref<8x8x128xf32, #tpu.memory_space<vmem>>) attributes {dimension_semantics = [#tpu.dimension_semantics<parallel>], iteration_bounds = array<i64: 2>, scalar_prefetch = 0 : i64, scratch_operands = 0 : i64, tpu.core_type = #tpu.core_type<tc>, window_params = [{transform_indices = @transform_0, window_bounds = array<i64: 8, 16, 8>}, {transform_indices = @transform_1, window_bounds = array<i64: 8, 8, 128>}, {pipeline_mode = #tpu.pipeline_mode<synchronous>, transform_indices = @transform_2, window_bounds = array<i64: 128, 384>}, {pipeline_mode = #tpu.pipeline_mode<synchronous>, transform_indices = @transform_3, window_bounds = array<i64: 128, 384>}, {pipeline_mode = #tpu.pipeline_mode<synchronous>, transform_indices = @transform_4, window_bounds = array<i64: 128, 384>}, {pipeline_mode = #tpu.pipeline_mode<synchronous>, transform_indices = @transform_5, window_bounds = array<i64: 1, 384>}, {pipeline_mode = #tpu.pipeline_mode<synchronous>, transform_indices = @transform_6, window_bounds = array<i64: 1, 384>}, {pipeline_mode = #tpu.pipeline_mode<synchronous>, transform_indices = @transform_7, window_bounds = array<i64: 1, 384>}, {pipeline_mode = #tpu.pipeline_mode<synchronous>, transform_indices = @transform_8, window_bounds = array<i64: 1, 128>}, {transform_indices = @transform_9, window_bounds = array<i64: 8, 8, 128>}]} {
    %c0 = arith.constant 0 : index
    %c0_0 = arith.constant 0 : index
    %c0_1 = arith.constant 0 : index
    %0 = vector.load %arg1[%c0, %c0_0, %c0_1] : memref<8x16x8xf32, #tpu.memory_space<vmem>>, vector<8x16x8xf32>
    %c0_2 = arith.constant 0 : index
    %c0_3 = arith.constant 0 : index
    %1 = vector.load %arg3[%c0_2, %c0_3] : memref<128x384xf32, #tpu.memory_space<vmem>>, vector<128x384xf32>
    %c0_4 = arith.constant 0 : index
    %c0_5 = arith.constant 0 : index
    %2 = vector.load %arg4[%c0_4, %c0_5] : memref<128x384xf32, #tpu.memory_space<vmem>>, vector<128x384xf32>
    %c0_6 = arith.constant 0 : index
    %c0_7 = arith.constant 0 : index
    %3 = vector.load %arg5[%c0_6, %c0_7] : memref<128x384xf32, #tpu.memory_space<vmem>>, vector<128x384xf32>
    %cst = arith.constant dense<0.000000e+00> : vector<8x16xf32>
    %4 = vector.multi_reduction <add>, %0, %cst [2] : vector<8x16x8xf32> to vector<8x16xf32>
    %5 = vector.shape_cast %4 : vector<8x16xf32> to vector<8x16x1xf32>
    %c0_8 = arith.constant 0 : index
    %c0_9 = arith.constant 0 : index
    %6 = vector.load %arg6[%c0_8, %c0_9] : memref<1x384xf32, #tpu.memory_space<vmem>>, vector<1x384xf32>
    %7 = vector.shape_cast %6 : vector<1x384xf32> to vector<1x1x384xf32>
    %c0_10 = arith.constant 0 : index
    %c0_11 = arith.constant 0 : index
    %8 = vector.load %arg7[%c0_10, %c0_11] : memref<1x384xf32, #tpu.memory_space<vmem>>, vector<1x384xf32>
    %9 = vector.shape_cast %8 : vector<1x384xf32> to vector<1x1x384xf32>
    %c0_12 = arith.constant 0 : index
    %c0_13 = arith.constant 0 : index
    %10 = vector.load %arg8[%c0_12, %c0_13] : memref<1x384xf32, #tpu.memory_space<vmem>>, vector<1x384xf32>
    %11 = vector.shape_cast %10 : vector<1x384xf32> to vector<1x1x384xf32>
    %12 = vector.extract_strided_slice %5 {offsets = [0, 0, 0], sizes = [8, 8, 1], strides = [1, 1, 1]} : vector<8x16x1xf32> to vector<8x8x1xf32>
    %13 = vector.broadcast %12 : vector<8x8x1xf32> to vector<8x8x384xf32>
    %14 = vector.broadcast %7 : vector<1x1x384xf32> to vector<8x8x384xf32>
    %15 = arith.mulf %13, %14 : vector<8x8x384xf32>
    %16 = vector.broadcast %11 : vector<1x1x384xf32> to vector<8x8x384xf32>
    %17 = arith.addf %16, %15 : vector<8x8x384xf32>
    %18 = vector.extract_strided_slice %5 {offsets = [0, 8, 0], sizes = [8, 8, 1], strides = [1, 1, 1]} : vector<8x16x1xf32> to vector<8x8x1xf32>
    %19 = vector.broadcast %18 : vector<8x8x1xf32> to vector<8x8x384xf32>
    %20 = vector.broadcast %9 : vector<1x1x384xf32> to vector<8x8x384xf32>
    %21 = arith.mulf %19, %20 : vector<8x8x384xf32>
    %22 = arith.addf %17, %21 : vector<8x8x384xf32>
    %23 = vector.shape_cast %22 : vector<8x8x384xf32> to vector<64x384xf32>
    %c0_14 = arith.constant 0 : index
    %c0_15 = arith.constant 0 : index
    %24 = vector.load %arg9[%c0_14, %c0_15] : memref<1x128xf32, #tpu.memory_space<vmem>>, vector<1x128xf32>
    %25 = vector.shape_cast %24 : vector<1x128xf32> to vector<1x128xf32>
    %26 = vector.broadcast %25 : vector<1x128xf32> to vector<64x128xf32>
    %c0_16 = arith.constant 0 : index
    %c0_17 = arith.constant 0 : index
    %c0_18 = arith.constant 0 : index
    %27 = vector.load %arg2[%c0_16, %c0_17, %c0_18] : memref<8x8x128xf32, #tpu.memory_space<vmem>>, vector<8x8x128xf32>
    "tpu.trace_start"() <{level = 10 : i32, message = "bij,bjh->bih"}> : () -> ()
    %cst_19 = arith.constant dense<0.000000e+00> : vector<8x16x128xf32>
    %28 = tpu.matmul %0, %27, %cst_19 {dimension_numbers = #tpu.dot_dimension_numbers<[2], [1], [1], [2], [0, 0, 0, 1, 1, 2], [0], [0]>} : vector<8x16x8xf32>, vector<8x8x128xf32>, vector<8x16x128xf32> -> vector<8x16x128xf32>
    "tpu.trace_stop"() : () -> ()
    %29 = vector.extract_strided_slice %28 {offsets = [0, 0, 0], sizes = [8, 8, 128], strides = [1, 1, 1]} : vector<8x16x128xf32> to vector<8x8x128xf32>
    %30 = vector.shape_cast %29 : vector<8x8x128xf32> to vector<64x128xf32>
    %31 = vector.extract_strided_slice %28 {offsets = [0, 8, 0], sizes = [8, 8, 128], strides = [1, 1, 1]} : vector<8x16x128xf32> to vector<8x8x128xf32>
    %32 = vector.shape_cast %31 : vector<8x8x128xf32> to vector<64x128xf32>
    %cst_20 = arith.constant dense<0.000000e+00> : vector<64x384xf32>
    %33 = tpu.matmul %30, %1, %cst_20 {dimension_numbers = #tpu.dot_dimension_numbers<[1], [0], [0], [1], [0, 0, 1, 1], [], []>} : vector<64x128xf32>, vector<128x384xf32>, vector<64x384xf32> -> vector<64x384xf32>
    %cst_21 = arith.constant dense<0.000000e+00> : vector<64x384xf32>
    %34 = tpu.matmul %32, %2, %cst_21 {dimension_numbers = #tpu.dot_dimension_numbers<[1], [0], [0], [1], [0, 0, 1, 1], [], []>} : vector<64x128xf32>, vector<128x384xf32>, vector<64x384xf32> -> vector<64x384xf32>
    %35 = arith.addf %33, %34 : vector<64x384xf32>
    %36 = arith.addf %35, %23 : vector<64x384xf32>
    %37 = vector.shape_cast %27 : vector<8x8x128xf32> to vector<64x128xf32>
    %cst_22 = arith.constant dense<0.000000e+00> : vector<64x384xf32>
    %38 = tpu.matmul %37, %3, %cst_22 {dimension_numbers = #tpu.dot_dimension_numbers<[1], [0], [0], [1], [0, 0, 1, 1], [], []>} : vector<64x128xf32>, vector<128x384xf32>, vector<64x384xf32> -> vector<64x384xf32>
    %39 = vector.extract_strided_slice %36 {offsets = [0, 0], sizes = [64, 128], strides = [1, 1]} : vector<64x384xf32> to vector<64x128xf32>
    %40 = vector.extract_strided_slice %36 {offsets = [0, 128], sizes = [64, 128], strides = [1, 1]} : vector<64x384xf32> to vector<64x128xf32>
    %41 = vector.extract_strided_slice %36 {offsets = [0, 256], sizes = [64, 128], strides = [1, 1]} : vector<64x384xf32> to vector<64x128xf32>
    %42 = vector.extract_strided_slice %38 {offsets = [0, 0], sizes = [64, 128], strides = [1, 1]} : vector<64x384xf32> to vector<64x128xf32>
    %43 = vector.extract_strided_slice %38 {offsets = [0, 128], sizes = [64, 128], strides = [1, 1]} : vector<64x384xf32> to vector<64x128xf32>
    %44 = vector.extract_strided_slice %38 {offsets = [0, 256], sizes = [64, 128], strides = [1, 1]} : vector<64x384xf32> to vector<64x128xf32>
    %45 = arith.addf %44, %26 : vector<64x128xf32>
    %46 = arith.addf %39, %42 : vector<64x128xf32>
    %47 = arith.negf %46 : vector<64x128xf32>
    %48 = math.exp %47 : vector<64x128xf32>
    %cst_23 = arith.constant 1.000000e+00 : f32
    %49 = vector.broadcast %cst_23 : f32 to vector<64x128xf32>
    %50 = arith.addf %49, %48 : vector<64x128xf32>
    %51 = arith.divf %49, %50 : vector<64x128xf32>
    %52 = arith.addf %40, %43 : vector<64x128xf32>
    %53 = arith.negf %52 : vector<64x128xf32>
    %54 = math.exp %53 : vector<64x128xf32>
    %cst_24 = arith.constant 1.000000e+00 : f32
    %55 = vector.broadcast %cst_24 : f32 to vector<64x128xf32>
    %56 = arith.addf %55, %54 : vector<64x128xf32>
    %57 = arith.divf %55, %56 : vector<64x128xf32>
    %58 = arith.mulf %51, %45 : vector<64x128xf32>
    %59 = arith.addf %41, %58 : vector<64x128xf32>
    %60 = math.tanh %59 : vector<64x128xf32>
    %61 = vector.shape_cast %27 : vector<8x8x128xf32> to vector<64x128xf32>
    %62 = arith.subf %61, %60 : vector<64x128xf32>
    %63 = arith.mulf %57, %62 : vector<64x128xf32>
    %64 = arith.addf %60, %63 : vector<64x128xf32>
    %65 = vector.shape_cast %64 : vector<64x128xf32> to vector<8x8x128xf32>
    "tpu.trace_start"() <{level = 10 : i32, message = "bij,bjh->bih"}> : () -> ()
    %cst_25 = arith.constant dense<0.000000e+00> : vector<8x16x128xf32>
    %66 = tpu.matmul %0, %65, %cst_25 {dimension_numbers = #tpu.dot_dimension_numbers<[2], [1], [1], [2], [0, 0, 0, 1, 1, 2], [0], [0]>} : vector<8x16x8xf32>, vector<8x8x128xf32>, vector<8x16x128xf32> -> vector<8x16x128xf32>
    "tpu.trace_stop"() : () -> ()
    %67 = vector.extract_strided_slice %66 {offsets = [0, 0, 0], sizes = [8, 8, 128], strides = [1, 1, 1]} : vector<8x16x128xf32> to vector<8x8x128xf32>
    %68 = vector.shape_cast %67 : vector<8x8x128xf32> to vector<64x128xf32>
    %69 = vector.extract_strided_slice %66 {offsets = [0, 8, 0], sizes = [8, 8, 128], strides = [1, 1, 1]} : vector<8x16x128xf32> to vector<8x8x128xf32>
    %70 = vector.shape_cast %69 : vector<8x8x128xf32> to vector<64x128xf32>
    %cst_26 = arith.constant dense<0.000000e+00> : vector<64x384xf32>
    %71 = tpu.matmul %68, %1, %cst_26 {dimension_numbers = #tpu.dot_dimension_numbers<[1], [0], [0], [1], [0, 0, 1, 1], [], []>} : vector<64x128xf32>, vector<128x384xf32>, vector<64x384xf32> -> vector<64x384xf32>
    %cst_27 = arith.constant dense<0.000000e+00> : vector<64x384xf32>
    %72 = tpu.matmul %70, %2, %cst_27 {dimension_numbers = #tpu.dot_dimension_numbers<[1], [0], [0], [1], [0, 0, 1, 1], [], []>} : vector<64x128xf32>, vector<128x384xf32>, vector<64x384xf32> -> vector<64x384xf32>
    %73 = arith.addf %71, %72 : vector<64x384xf32>
    %74 = arith.addf %73, %23 : vector<64x384xf32>
    %75 = vector.shape_cast %65 : vector<8x8x128xf32> to vector<64x128xf32>
    %cst_28 = arith.constant dense<0.000000e+00> : vector<64x384xf32>
    %76 = tpu.matmul %75, %3, %cst_28 {dimension_numbers = #tpu.dot_dimension_numbers<[1], [0], [0], [1], [0, 0, 1, 1], [], []>} : vector<64x128xf32>, vector<128x384xf32>, vector<64x384xf32> -> vector<64x384xf32>
    %77 = vector.extract_strided_slice %74 {offsets = [0, 0], sizes = [64, 128], strides = [1, 1]} : vector<64x384xf32> to vector<64x128xf32>
    %78 = vector.extract_strided_slice %74 {offsets = [0, 128], sizes = [64, 128], strides = [1, 1]} : vector<64x384xf32> to vector<64x128xf32>
    %79 = vector.extract_strided_slice %74 {offsets = [0, 256], sizes = [64, 128], strides = [1, 1]} : vector<64x384xf32> to vector<64x128xf32>
    %80 = vector.extract_strided_slice %76 {offsets = [0, 0], sizes = [64, 128], strides = [1, 1]} : vector<64x384xf32> to vector<64x128xf32>
    %81 = vector.extract_strided_slice %76 {offsets = [0, 128], sizes = [64, 128], strides = [1, 1]} : vector<64x384xf32> to vector<64x128xf32>
    %82 = vector.extract_strided_slice %76 {offsets = [0, 256], sizes = [64, 128], strides = [1, 1]} : vector<64x384xf32> to vector<64x128xf32>
    %83 = arith.addf %82, %26 : vector<64x128xf32>
    %84 = arith.addf %77, %80 : vector<64x128xf32>
    %85 = arith.negf %84 : vector<64x128xf32>
    %86 = math.exp %85 : vector<64x128xf32>
    %cst_29 = arith.constant 1.000000e+00 : f32
    %87 = vector.broadcast %cst_29 : f32 to vector<64x128xf32>
    %88 = arith.addf %87, %86 : vector<64x128xf32>
    %89 = arith.divf %87, %88 : vector<64x128xf32>
    %90 = arith.addf %78, %81 : vector<64x128xf32>
    %91 = arith.negf %90 : vector<64x128xf32>
    %92 = math.exp %91 : vector<64x128xf32>
    %cst_30 = arith.constant 1.000000e+00 : f32
    %93 = vector.broadcast %cst_30 : f32 to vector<64x128xf32>
    %94 = arith.addf %93, %92 : vector<64x128xf32>
    %95 = arith.divf %93, %94 : vector<64x128xf32>
    %96 = arith.mulf %89, %83 : vector<64x128xf32>
    %97 = arith.addf %79, %96 : vector<64x128xf32>
    %98 = math.tanh %97 : vector<64x128xf32>
    %99 = vector.shape_cast %65 : vector<8x8x128xf32> to vector<64x128xf32>
    %100 = arith.subf %99, %98 : vector<64x128xf32>
    %101 = arith.mulf %95, %100 : vector<64x128xf32>
    %102 = arith.addf %98, %101 : vector<64x128xf32>
    %103 = vector.shape_cast %102 : vector<64x128xf32> to vector<8x8x128xf32>
    %c0_31 = arith.constant 0 : index
    %c0_32 = arith.constant 0 : index
    %c0_33 = arith.constant 0 : index
    %104 = vector.load %arg10[%c0_31, %c0_32, %c0_33] : memref<8x8x128xf32, #tpu.memory_space<vmem>>, vector<8x8x128xf32>
    tpu.vector_store %arg10[%c0_31, %c0_32, %c0_33], %103 {strides = array<i32>} : memref<8x8x128xf32, #tpu.memory_space<vmem>>, vector<8x8x128xf32>,
    return
  }
  func.func @transform_0(%arg0: i32) -> (i32, i32, i32) {
    %c0_i32 = arith.constant 0 : i32
    %c0_i32_0 = arith.constant 0 : i32
    %c0_i32_1 = arith.constant 0 : i32
    return %arg0, %c0_i32, %c0_i32_0 : i32, i32, i32
  }
  func.func @transform_1(%arg0: i32) -> (i32, i32, i32) {
    %c0_i32 = arith.constant 0 : i32
    %c0_i32_0 = arith.constant 0 : i32
    %c0_i32_1 = arith.constant 0 : i32
    return %arg0, %c0_i32, %c0_i32_0 : i32, i32, i32
  }
  func.func @transform_2(%arg0: i32) -> (i32, i32) {
    %c0_i32 = arith.constant 0 : i32
    %c0_i32_0 = arith.constant 0 : i32
    %c0_i32_1 = arith.constant 0 : i32
    return %c0_i32, %c0_i32_0 : i32, i32
  }
  func.func @transform_3(%arg0: i32) -> (i32, i32) {
    %c0_i32 = arith.constant 0 : i32
    %c0_i32_0 = arith.constant 0 : i32
    %c0_i32_1 = arith.constant 0 : i32
    return %c0_i32, %c0_i32_0 : i32, i32
  }
  func.func @transform_4(%arg0: i32) -> (i32, i32) {
    %c0_i32 = arith.constant 0 : i32
    %c0_i32_0 = arith.constant 0 : i32
    %c0_i32_1 = arith.constant 0 : i32
    return %c0_i32, %c0_i32_0 : i32, i32
  }
  func.func @transform_5(%arg0: i32) -> (i32, i32) {
    %c0_i32 = arith.constant 0 : i32
    %c0_i32_0 = arith.constant 0 : i32
    %c0_i32_1 = arith.constant 0 : i32
    return %c0_i32, %c0_i32_0 : i32, i32
  }
  func.func @transform_6(%arg0: i32) -> (i32, i32) {
    %c0_i32 = arith.constant 0 : i32
    %c0_i32_0 = arith.constant 0 : i32
    %c0_i32_1 = arith.constant 0 : i32
    return %c0_i32, %c0_i32_0 : i32, i32
  }
  func.func @transform_7(%arg0: i32) -> (i32, i32) {
    %c0_i32 = arith.constant 0 : i32
    %c0_i32_0 = arith.constant 0 : i32
    %c0_i32_1 = arith.constant 0 : i32
    return %c0_i32, %c0_i32_0 : i32, i32
  }
  func.func @transform_8(%arg0: i32) -> (i32, i32) {
    %c0_i32 = arith.constant 0 : i32
    %c0_i32_0 = arith.constant 0 : i32
    %c0_i32_1 = arith.constant 0 : i32
    return %c0_i32, %c0_i32_0 : i32, i32
  }
  func.func @transform_9(%arg0: i32) -> (i32, i32, i32) {
    %c0_i32 = arith.constant 0 : i32
    %c0_i32_0 = arith.constant 0 : i32
    %c0_i32_1 = arith.constant 0 : i32
    return %arg0, %c0_i32, %c0_i32_0 : i32, i32, i32
  }
}

</mosaic_0001>

<llo_original>
// kernel: tpu_custom_call.1
$region0: #{tpu_custom_call.1}
  #allocation0 [shape = 'u32[]', space=smem, size = 0x4, offset = 0x4, fixed_abs, tag = 'smem constant byte address 0x4 - core index']
  #allocation1 [shape = 'u32[144,128]{1,0:T(1,128)}', space=vmem, size = 0x12000, scoped, tag = 'internal scratch']
  %s0 = inlined_call_operand.vmem [shape: f32[16,16,8], index: 0, kind: input, shape index: {}]
  %s1 = inlined_call_operand.hbm [shape: f32[16,8,128], index: 1, kind: input, shape index: {}]
  %s2 = inlined_call_operand.vmem [shape: f32[128,384], index: 2, kind: input, shape index: {}]
  %s3 = inlined_call_operand.hbm [shape: f32[128,384], index: 3, kind: input, shape index: {}]
  %s4 = inlined_call_operand.hbm [shape: f32[128,384], index: 4, kind: input, shape index: {}]
  %s5 = inlined_call_operand.vmem [shape: f32[1,384], index: 5, kind: input, shape index: {}]
  %s6 = inlined_call_operand.vmem [shape: f32[1,384], index: 6, kind: input, shape index: {}]
  %s7 = inlined_call_operand.vmem [shape: f32[1,384], index: 7, kind: input, shape index: {}]
  %s8 = inlined_call_operand.vmem [shape: f32[1,128], index: 8, kind: input, shape index: {}]
  %s9 = inlined_call_operand.hbm [shape: f32[16,8,128], index: 9, kind: output, shape index: {}]
  %s10 = sld [smem:[#allocation0]]
  $region81: #{tpu_custom_call.1} parent=0
    _
  %s12 = ssub.s32 1, %s10
  %s13 = scalar_select 0, %s12, %s10
  $region1: #{tpu_custom_call.1} parent=0
    #allocation2 [shape = 'u8[65536]{0}', space=vmem, size = 0x10000, scoped, tag = 'input window, operand 1']
    #allocation3 [shape = 's32[2]{0}', space=sflag, size = 0x8, scoped, tag = 'scoped memory for tpu_custom_call.1']
    #allocation4 [shape = 's32[2]{0}', space=sflag, size = 0x8, scoped, tag = 'scoped memory for tpu_custom_call.1']
    #allocation5 [shape = 'u8[196608]{0}', space=vmem, size = 0x30000, scoped, tag = 'input window, operand 3, single buffered']
    #allocation6 [shape = 's32[1]{0}', space=sflag, size = 0x4, scoped, tag = 'scoped memory for tpu_custom_call.1']
    #allocation7 [shape = 'u8[196608]{0}', space=vmem, size = 0x30000, scoped, tag = 'input window, operand 4, single buffered']
    #allocation8 [shape = 'u8[65536]{0}', space=vmem, size = 0x10000, scoped, tag = 'output window, operand 0']
    %14 = vsyncpa [#allocation3], 0
    %s15 = scalar_lea.sflag [#allocation3], 1
    %16 = vsyncpa %s15, 0
    %17 = vsyncpa [#allocation6], 0
    %18 = vsyncpa [#allocation4], 0
    %s19 = scalar_lea.sflag [#allocation4], 1
    %20 = vsyncpa %s19, 0
    loop: start=0, step=1, limit=4
    $region2: #{tpu_custom_call.1} parent=1 // loop_pre_header
      _
    $region3: #{tpu_custom_call.1} parent=1 // loop_header
      %s22 = sphi 0, %s26
      %p23 = scmp.ge.s32.totalorder %s22, 4
      %s32 = sphi 0, %s34
      %s35 = sphi 0, %s32
      %s36 = sphi 0, %s35
      %s52 = sphi 0, %s36
      %s58 = sphi 0, %s60
      %s61 = sphi 0, %s58
      %s62 = sphi 0, %s61
      %s78 = sphi 0, %s62
      %s82 = sphi 0, %s82
      %s84 = sphi 0, %s82
      %s85 = sphi 0, %s84
      %s99 = sphi 0, %s85
      %s103 = sphi 0, %s103
      %s105 = sphi 0, %s103
      %s106 = sphi 0, %s105
      %s120 = sphi 0, %s106
      %s124 = sphi 0, %s124
      %s126 = sphi 0, %s124
      %s127 = sphi 0, %s126
      %s141 = sphi 0, %s127
      %s145 = sphi 0, %s145
      %s147 = sphi 0, %s145
      %s148 = sphi 0, %s147
      %s162 = sphi 0, %s148
      %s166 = sphi 0, %s166
      %s168 = sphi 0, %s166
      %s169 = sphi 0, %s168
      %s183 = sphi 0, %s169
      %s187 = sphi 0, %s187
      %s189 = sphi 0, %s187
      %s190 = sphi 0, %s189
      %s204 = sphi 0, %s190
      %s208 = sphi 0, %s208
      %s210 = sphi 0, %s208
      %s211 = sphi 0, %s210
      %s225 = sphi 0, %s211
      %s231 = sphi 0, %s233
      %s234 = sphi 0, %s231
      %s235 = sphi 0, %s234
      %s251 = sphi 0, %s235
    $region4: #{tpu_custom_call.1} parent=1 // loop_header_branch
      %25 = sbr.rel (%p23) target = $region8
    $region5: #{tpu_custom_call.1} parent=1 // loop_body
      %s27 = ssub.s32 %s22, 1
      %s28 = ssub.s32 %s22, 2
      %s29 = sadd.s32 %s22, 1
      %s30 = ssub.s32 %s22, %s29
      %p31 = scmp.eq.s32.totalorder %s30, 0
      %s33 = sadd.s32 %s32, 1
      %s34 = scalar_select %p31, %s32, %s33
      %p37 = pneg %p31
      %p38 = scmp.eq.s32.totalorder %s22, 1
      %p39 = por %p37, %p38
      %p40 = scmp.ne.s32.totalorder %s32, %s35
      %p41 = scmp.eq.s32.totalorder %s22, 0
      %p42 = por %p40, %p41
      %p43 = scmp.ne.s32.totalorder %s32, %s35
      %p44 = scmp.eq.s32.totalorder %s27, 1
      %p45 = por %p43, %p44
      %p46 = scmp.ne.s32.totalorder %s35, %s36
      %p47 = scmp.eq.s32.totalorder %s27, 0
      %p48 = por %p46, %p47
      %p49 = scmp.ne.s32.totalorder %s35, %s36
      %p50 = scmp.eq.s32.totalorder %s28, 1
      %p51 = por %p49, %p50
      %p53 = scmp.ne.s32.totalorder %s36, %s52
      %p54 = scmp.eq.s32.totalorder %s28, 0
      %p55 = por %p53, %p54
      %s56 = ssub.s32 %s22, %s29
      %p57 = scmp.eq.s32.totalorder %s56, 0
      %s59 = sadd.s32 %s58, 1
      %s60 = scalar_select %p57, %s58, %s59
      %p63 = pneg %p57
      %p64 = scmp.eq.s32.totalorder %s22, 1
      %p65 = por %p63, %p64
      %p66 = scmp.ne.s32.totalorder %s58, %s61
      %p67 = scmp.eq.s32.totalorder %s22, 0
      %p68 = por %p66, %p67
      %p69 = scmp.ne.s32.totalorder %s58, %s61
      %p70 = scmp.eq.s32.totalorder %s27, 1
      %p71 = por %p69, %p70
      %p72 = scmp.ne.s32.totalorder %s61, %s62
      %p73 = scmp.eq.s32.totalorder %s27, 0
      %p74 = por %p72, %p73
      %p75 = scmp.ne.s32.totalorder %s61, %s62
      %p76 = scmp.eq.s32.totalorder %s28, 1
      %p77 = por %p75, %p76
      %p79 = scmp.ne.s32.totalorder %s62, %s78
      %p80 = scmp.eq.s32.totalorder %s28, 0
      %p81 = por %p79, %p80
      %s83 = sadd.s32 %s82, 1
      %p86 = scmp.eq.s32.totalorder %s22, 1
      %p87 = scmp.ne.s32.totalorder %s82, %s84
      %p88 = scmp.eq.s32.totalorder %s22, 0
      %p89 = por %p87, %p88
      %p90 = scmp.ne.s32.totalorder %s82, %s84
      %p91 = scmp.eq.s32.totalorder %s27, 1
      %p92 = por %p90, %p91
      %p93 = scmp.ne.s32.totalorder %s84, %s85
      %p94 = scmp.eq.s32.totalorder %s27, 0
      %p95 = por %p93, %p94
      %p96 = scmp.ne.s32.totalorder %s84, %s85
      %p97 = scmp.eq.s32.totalorder %s28, 1
      %p98 = por %p96, %p97
      %p100 = scmp.ne.s32.totalorder %s85, %s99
      %p101 = scmp.eq.s32.totalorder %s28, 0
      %p102 = por %p100, %p101
      %s104 = sadd.s32 %s103, 1
      %p107 = scmp.eq.s32.totalorder %s22, 1
      %p108 = scmp.ne.s32.totalorder %s103, %s105
      %p109 = scmp.eq.s32.totalorder %s22, 0
      %p110 = por %p108, %p109
      %p111 = scmp.ne.s32.totalorder %s103, %s105
      %p112 = scmp.eq.s32.totalorder %s27, 1
      %p113 = por %p111, %p112
      %p114 = scmp.ne.s32.totalorder %s105, %s106
      %p115 = scmp.eq.s32.totalorder %s27, 0
      %p116 = por %p114, %p115
      %p117 = scmp.ne.s32.totalorder %s105, %s106
      %p118 = scmp.eq.s32.totalorder %s28, 1
      %p119 = por %p117, %p118
      %p121 = scmp.ne.s32.totalorder %s106, %s120
      %p122 = scmp.eq.s32.totalorder %s28, 0
      %p123 = por %p121, %p122
      %s125 = sadd.s32 %s124, 1
      %p128 = scmp.eq.s32.totalorder %s22, 1
      %p129 = scmp.ne.s32.totalorder %s124, %s126
      %p130 = scmp.eq.s32.totalorder %s22, 0
      %p131 = por %p129, %p130
      %p132 = scmp.ne.s32.totalorder %s124, %s126
      %p133 = scmp.eq.s32.totalorder %s27, 1
      %p134 = por %p132, %p133
      %p135 = scmp.ne.s32.totalorder %s126, %s127
      %p136 = scmp.eq.s32.totalorder %s27, 0
      %p137 = por %p135, %p136
      %p138 = scmp.ne.s32.totalorder %s126, %s127
      %p139 = scmp.eq.s32.totalorder %s28, 1
      %p140 = por %p138, %p139
      %p142 = scmp.ne.s32.totalorder %s127, %s141
      %p143 = scmp.eq.s32.totalorder %s28, 0
      %p144 = por %p142, %p143
      %s146 = sadd.s32 %s145, 1
      %p149 = scmp.eq.s32.totalorder %s22, 1
      %p150 = scmp.ne.s32.totalorder %s145, %s147
      %p151 = scmp.eq.s32.totalorder %s22, 0
      %p152 = por %p150, %p151
      %p153 = scmp.ne.s32.totalorder %s145, %s147
      %p154 = scmp.eq.s32.totalorder %s27, 1
      %p155 = por %p153, %p154
      %p156 = scmp.ne.s32.totalorder %s147, %s148
      %p157 = scmp.eq.s32.totalorder %s27, 0
      %p158 = por %p156, %p157
      %p159 = scmp.ne.s32.totalorder %s147, %s148
      %p160 = scmp.eq.s32.totalorder %s28, 1
      %p161 = por %p159, %p160
      %p163 = scmp.ne.s32.totalorder %s148, %s162
      %p164 = scmp.eq.s32.totalorder %s28, 0
      %p165 = por %p163, %p164
      %s167 = sadd.s32 %s166, 1
      %p170 = scmp.eq.s32.totalorder %s22, 1
      %p171 = scmp.ne.s32.totalorder %s166, %s168
      %p172 = scmp.eq.s32.totalorder %s22, 0
      %p173 = por %p171, %p172
      %p174 = scmp.ne.s32.totalorder %s166, %s168
      %p175 = scmp.eq.s32.totalorder %s27, 1
      %p176 = por %p174, %p175
      %p177 = scmp.ne.s32.totalorder %s168, %s169
      %p178 = scmp.eq.s32.totalorder %s27, 0
      %p179 = por %p177, %p178
      %p180 = scmp.ne.s32.totalorder %s168, %s169
      %p181 = scmp.eq.s32.totalorder %s28, 1
      %p182 = por %p180, %p181
      %p184 = scmp.ne.s32.totalorder %s169, %s183
      %p185 = scmp.eq.s32.totalorder %s28, 0
      %p186 = por %p184, %p185
      %s188 = sadd.s32 %s187, 1
      %p191 = scmp.eq.s32.totalorder %s22, 1
      %p192 = scmp.ne.s32.totalorder %s187, %s189
      %p193 = scmp.eq.s32.totalorder %s22, 0
      %p194 = por %p192, %p193
      %p195 = scmp.ne.s32.totalorder %s187, %s189
      %p196 = scmp.eq.s32.totalorder %s27, 1
      %p197 = por %p195, %p196
      %p198 = scmp.ne.s32.totalorder %s189, %s190
      %p199 = scmp.eq.s32.totalorder %s27, 0
      %p200 = por %p198, %p199
      %p201 = scmp.ne.s32.totalorder %s189, %s190
      %p202 = scmp.eq.s32.totalorder %s28, 1
      %p203 = por %p201, %p202
      %p205 = scmp.ne.s32.totalorder %s190, %s204
      %p206 = scmp.eq.s32.totalorder %s28, 0
      %p207 = por %p205, %p206
      %s209 = sadd.s32 %s208, 1
      %p212 = scmp.eq.s32.totalorder %s22, 1
      %p213 = scmp.ne.s32.totalorder %s208, %s210
      %p214 = scmp.eq.s32.totalorder %s22, 0
      %p215 = por %p213, %p214
      %p216 = scmp.ne.s32.totalorder %s208, %s210
      %p217 = scmp.eq.s32.totalorder %s27, 1
      %p218 = por %p216, %p217
      %p219 = scmp.ne.s32.totalorder %s210, %s211
      %p220 = scmp.eq.s32.totalorder %s27, 0
      %p221 = por %p219, %p220
      %p222 = scmp.ne.s32.totalorder %s210, %s211
      %p223 = scmp.eq.s32.totalorder %s28, 1
      %p224 = por %p222, %p223
      %p226 = scmp.ne.s32.totalorder %s211, %s225
      %p227 = scmp.eq.s32.totalorder %s28, 0
      %p228 = por %p226, %p227
      %s229 = ssub.s32 %s22, %s29
      %p230 = scmp.eq.s32.totalorder %s229, 0
      %s232 = sadd.s32 %s231, 1
      %s233 = scalar_select %p230, %s231, %s232
      %p236 = pneg %p230
      %p237 = scmp.eq.s32.totalorder %s22, 1
      %p238 = por %p236, %p237
      %p239 = scmp.ne.s32.totalorder %s231, %s234
      %p240 = scmp.eq.s32.totalorder %s22, 0
      %p241 = por %p239, %p240
      %p242 = scmp.ne.s32.totalorder %s231, %s234
      %p243 = scmp.eq.s32.totalorder %s27, 1
      %p244 = por %p242, %p243
      %p245 = scmp.ne.s32.totalorder %s234, %s235
      %p246 = scmp.eq.s32.totalorder %s27, 0
      %p247 = por %p245, %p246
      %p248 = scmp.ne.s32.totalorder %s234, %s235
      %p249 = scmp.eq.s32.totalorder %s28, 1
      %p250 = por %p248, %p249
      %p252 = scmp.ne.s32.totalorder %s235, %s251
      %p253 = scmp.eq.s32.totalorder %s28, 0
      %p254 = por %p252, %p253
      %p255 = scmp.le.s32.totalorder 1, %s22
      %p256 = scmp.lt.s32.totalorder %s22, 3
      %p257 = pnand %p255, %p256
      %p258 = pneg %p257
      // Predicated region
      $region9: #{tpu_custom_call.1} parent=5 // pred_check
        _
      $region10: #{tpu_custom_call.1} parent=5 // pred_check_branch
        %260 = sbr.rel (%p257) target = $region12
      $region11: #{tpu_custom_call.1} parent=5 // pred_region
        %s261 = ssub.s32 %s22, 1
        // Predicated region
        $region13: #{tpu_custom_call.1} parent=11 // pred_check
          %p262 = pneg %p95
        $region14: #{tpu_custom_call.1} parent=11 // pred_check_branch
          %264 = sbr.rel (%p262) target = $region16
        $region15: #{tpu_custom_call.1} parent=11 // pred_region
          _
        $region16: #{tpu_custom_call.1} parent=11 // pred_fallthru
          _
        // Predicated region
        $region17: #{tpu_custom_call.1} parent=11 // pred_check
          %p265 = pneg %p116
        $region18: #{tpu_custom_call.1} parent=11 // pred_check_branch
          %267 = sbr.rel (%p265) target = $region20
        $region19: #{tpu_custom_call.1} parent=11 // pred_region
          %s269 = ssub.s32 6144, 6144
          %270 = vsyncadd [#allocation6], %s269
          %s271 = sshll.u32 [#allocation5], 4
          %s272 = int_to_ptr.vmem [resolvable:$true] %s271
          %277 = dma.hbm_to_vmem [thread:$0]  %s3, 6144, %s272, [#allocation6], 384, 384, 24
        $region20: #{tpu_custom_call.1} parent=11 // pred_fallthru
          _
        // Predicated region
        $region21: #{tpu_custom_call.1} parent=11 // pred_check
          %p278 = pneg %p137
        $region22: #{tpu_custom_call.1} parent=11 // pred_check_branch
          %280 = sbr.rel (%p278) target = $region24
        $region23: #{tpu_custom_call.1} parent=11 // pred_region
          %s282 = ssub.s32 6144, 6144
          %283 = vsyncadd [#allocation6], %s282
          %s284 = sshll.u32 [#allocation7], 4
          %s285 = int_to_ptr.vmem [resolvable:$true] %s284
          %290 = dma.hbm_to_vmem [thread:$0]  %s4, 6144, %s285, [#allocation6], 384, 384, 24
        $region24: #{tpu_custom_call.1} parent=11 // pred_fallthru
          _
        // Predicated region
        $region25: #{tpu_custom_call.1} parent=11 // pred_check
          %p291 = pneg %p158
        $region26: #{tpu_custom_call.1} parent=11 // pred_check_branch
          %293 = sbr.rel (%p291) target = $region28
        $region27: #{tpu_custom_call.1} parent=11 // pred_region
          _
        $region28: #{tpu_custom_call.1} parent=11 // pred_fallthru
          _
        // Predicated region
        $region29: #{tpu_custom_call.1} parent=11 // pred_check
          %p294 = pneg %p179
        $region30: #{tpu_custom_call.1} parent=11 // pred_check_branch
          %296 = sbr.rel (%p294) target = $region32
        $region31: #{tpu_custom_call.1} parent=11 // pred_region
          _
        $region32: #{tpu_custom_call.1} parent=11 // pred_fallthru
          _
        // Predicated region
        $region33: #{tpu_custom_call.1} parent=11 // pred_check
          %p297 = pneg %p200
        $region34: #{tpu_custom_call.1} parent=11 // pred_check_branch
          %299 = sbr.rel (%p297) target = $region36
        $region35: #{tpu_custom_call.1} parent=11 // pred_region
          _
        $region36: #{tpu_custom_call.1} parent=11 // pred_fallthru
          _
        // Predicated region
        $region37: #{tpu_custom_call.1} parent=11 // pred_check
          %p300 = pneg %p221
        $region38: #{tpu_custom_call.1} parent=11 // pred_check_branch
          %302 = sbr.rel (%p300) target = $region40
        $region39: #{tpu_custom_call.1} parent=11 // pred_region
          _
        $region40: #{tpu_custom_call.1} parent=11 // pred_fallthru
          _
      $region12: #{tpu_custom_call.1} parent=5 // pred_fallthru
        _
      %p303 = scmp.lt.s32.totalorder %s22, 2
      // Predicated region
      $region41: #{tpu_custom_call.1} parent=5 // pred_check
        %p304 = pneg %p303
      $region42: #{tpu_custom_call.1} parent=5 // pred_check_branch
        %306 = sbr.rel (%p304) target = $region44
      $region43: #{tpu_custom_call.1} parent=5 // pred_region
        // Predicated region
        $region45: #{tpu_custom_call.1} parent=43 // pred_check
          %p307 = pneg %p42
        $region46: #{tpu_custom_call.1} parent=43 // pred_check_branch
          %309 = sbr.rel (%p307) target = $region48
        $region47: #{tpu_custom_call.1} parent=43 // pred_region
          %s310 = smul.u32 8, %s22
          %p311 = scmp.lt.s32.totalorder %s310, 15
          %s312 = scalar_select %p311, %s310, 15
          %s313 = smul.addr %s312, 2
          %s314 = smul.addr %s313, 8
          %s315 = scalar_lea.vmem %s0, %s314
          %s316 = smul.u32 8, %s22
        $region48: #{tpu_custom_call.1} parent=43 // pred_fallthru
          _
        // Predicated region
        $region49: #{tpu_custom_call.1} parent=43 // pred_check
          %p317 = pneg %p68
        $region50: #{tpu_custom_call.1} parent=43 // pred_check_branch
          %319 = sbr.rel (%p317) target = $region52
        $region51: #{tpu_custom_call.1} parent=43 // pred_region
          %s320 = sand.u32 %s58, 1
          %s321 = scalar_lea.sflag [#allocation3], %s320
          %s322 = sand.u32 %s58, 1
          %s323 = smul.addr %s322, 64
          %s324 = scalar_lea.vmem [#allocation2], %s323
          %s325 = smul.u32 8, %s22
          %s327 = ssub.s32 1024, 1024
          %328 = vsyncadd %s321, %s327
          %s329 = smul.addr %s325, 128
          %s330 = scalar_lea.hbm %s1, %s329
          %s331 = sshll.u32 %s324, 4
          %s332 = int_to_ptr.vmem [resolvable:$true] %s331
          %337 = dma.hbm_to_vmem [thread:$0]  %s330, 1024, %s332, %s321, 128, 128, 8
        $region52: #{tpu_custom_call.1} parent=43 // pred_fallthru
          _
      $region44: #{tpu_custom_call.1} parent=5 // pred_fallthru
        _
      %p338 = scmp.le.s32.totalorder 1, %s22
      %p339 = scmp.lt.s32.totalorder %s22, 3
      %p340 = pnand %p338, %p339
      %p341 = pneg %p340
      // Predicated region
      $region53: #{tpu_custom_call.1} parent=5 // pred_check
        _
      $region54: #{tpu_custom_call.1} parent=5 // pred_check_branch
        %343 = sbr.rel (%p340) target = $region56
      $region55: #{tpu_custom_call.1} parent=5 // pred_region
        %s344 = ssub.s32 %s22, 1
        %s345 = sand.u32 %s61, 1
        %s346 = scalar_lea.sflag [#allocation3], %s345
        %s347 = sand.u32 %s61, 1
        %s348 = smul.addr %s347, 64
        %s349 = scalar_lea.vmem [#allocation2], %s348
        // Predicated region
        $region57: #{tpu_custom_call.1} parent=55 // pred_check
          %p350 = pneg %p74
        $region58: #{tpu_custom_call.1} parent=55 // pred_check_branch
          %352 = sbr.rel (%p350) target = $region60
        $region59: #{tpu_custom_call.1} parent=55 // pred_region
          %353 = dma.done %s346, 1024
        $region60: #{tpu_custom_call.1} parent=55 // pred_fallthru
          _
        // Predicated region
        $region61: #{tpu_custom_call.1} parent=55 // pred_check
          %p354 = pneg %p116
        $region62: #{tpu_custom_call.1} parent=55 // pred_check_branch
          %356 = sbr.rel (%p354) target = $region64
        $region63: #{tpu_custom_call.1} parent=55 // pred_region
          %357 = dma.done [#allocation6], 6144
        $region64: #{tpu_custom_call.1} parent=55 // pred_fallthru
          _
        // Predicated region
        $region65: #{tpu_custom_call.1} parent=55 // pred_check
          %p358 = pneg %p137
        $region66: #{tpu_custom_call.1} parent=55 // pred_check_branch
          %360 = sbr.rel (%p358) target = $region68
        $region67: #{tpu_custom_call.1} parent=55 // pred_region
          %361 = dma.done [#allocation6], 6144
        $region68: #{tpu_custom_call.1} parent=55 // pred_fallthru
          _
        %s362 = smul.u32 8, %s27
        %p363 = scmp.lt.s32.totalorder %s362, 15
        %s364 = scalar_select %p363, %s362, 15
        %s365 = smul.addr %s364, 2
        %s366 = smul.addr %s365, 8
        %s367 = scalar_lea.vmem %s0, %s366
        %p368 = pneg %p48
        %p369 = pneg %p45
        %s370 = sand.u32 %s61, 1
        %s371 = scalar_lea.sflag [#allocation3], %s370
        %s372 = sand.u32 %s61, 1
        %s373 = smul.addr %s372, 64
        %s374 = scalar_lea.vmem [#allocation2], %s373
        %p375 = pneg %p74
        %p376 = pneg %p71
        %p377 = pneg %p95
        %p378 = pneg %p92
        %p379 = pneg %p116
        %p380 = pneg %p113
        %p381 = pneg %p137
        %p382 = pneg %p134
        %p383 = pneg %p158
        %p384 = pneg %p155
        %p385 = pneg %p179
        %p386 = pneg %p176
        %p387 = pneg %p200
        %p388 = pneg %p197
        %p389 = pneg %p221
        %p390 = pneg %p218
        %p391 = pneg %p247
        %p392 = pneg %p244
        %s393 = sand.u32 %s234, 1
        %s394 = scalar_lea.sflag [#allocation4], %s393
        %s395 = sand.u32 %s234, 1
        %s396 = smul.addr %s395, 64
        %s397 = scalar_lea.vmem [#allocation8], %s396
        %s398 = smul.u32 8, %s27
        %p399 = scmp.lt.s32.totalorder %s398, 15
        %s400 = scalar_select %p399, %s398, 15
        %s401 = smul.addr %s400, 2
        %s402 = smul.addr %s401, 8
        %s403 = scalar_lea.vmem %s0, %s402
        %s404 = smul.u32 8, %s27
        %s405 = smul.u32 8, %s27
        %s406 = smul.u32 8, %s27
        %v407 = vld [vmem:[%s403] sm:$0xff]
        %v408 = vld [vmem:[%s403 + $0x8] sm:$0xff]
        %v409 = vld [vmem:[%s403 + $0x10] sm:$0xff]
        %v410 = vld [vmem:[%s403 + $0x18] sm:$0xff]
        %v411 = vld [vmem:[%s403 + $0x20] sm:$0xff]
        %v412 = vld [vmem:[%s403 + $0x28] sm:$0xff]
        %v413 = vld [vmem:[%s403 + $0x30] sm:$0xff]
        %v414 = vld [vmem:[%s403 + $0x38] sm:$0xff]
        %v415 = vld [vmem:[%s403 + $0x40] sm:$0xff]
        %v416 = vld [vmem:[%s403 + $0x48] sm:$0xff]
        %v417 = vld [vmem:[%s403 + $0x50] sm:$0xff]
        %v418 = vld [vmem:[%s403 + $0x58] sm:$0xff]
        %v419 = vld [vmem:[%s403 + $0x60] sm:$0xff]
        %v420 = vld [vmem:[%s403 + $0x68] sm:$0xff]
        %v421 = vld [vmem:[%s403 + $0x70] sm:$0xff]
        %v422 = vld [vmem:[%s403 + $0x78] sm:$0xff]
        %v423 = vld [vmem:[%s2] sm:$0xff]
        %v424 = vld [vmem:[%s2 + $0x8] sm:$0xff]
        %v425 = vld [vmem:[%s2 + $0x10] sm:$0xff]
        %v426 = vld [vmem:[%s2 + $0x18] sm:$0xff]
        %v427 = vld [vmem:[%s2 + $0x20] sm:$0xff]
        %v428 = vld [vmem:[%s2 + $0x28] sm:$0xff]
        %v429 = vld [vmem:[%s2 + $0x30] sm:$0xff]
        %v430 = vld [vmem:[%s2 + $0x38] sm:$0xff]
        %v431 = vld [vmem:[%s2 + $0x40] sm:$0xff]
        %v432 = vld [vmem:[%s2 + $0x48] sm:$0xff]
        %v433 = vld [vmem:[%s2 + $0x50] sm:$0xff]
        %v434 = vld [vmem:[%s2 + $0x58] sm:$0xff]
        %v435 = vld [vmem:[%s2 + $0x60] sm:$0xff]
        %v436 = vld [vmem:[%s2 + $0x68] sm:$0xff]
        %v437 = vld [vmem:[%s2 + $0x70] sm:$0xff]
        %v438 = vld [vmem:[%s2 + $0x78] sm:$0xff]
        %v439 = vld [vmem:[%s2 + $0x80] sm:$0xff]
        %v440 = vld [vmem:[%s2 + $0x88] sm:$0xff]
        %v441 = vld [vmem:[%s2 + $0x90] sm:$0xff]
        %v442 = vld [vmem:[%s2 + $0x98] sm:$0xff]
        %v443 = vld [vmem:[%s2 + $0xa0] sm:$0xff]
        %v444 = vld [vmem:[%s2 + $0xa8] sm:$0xff]
        %v445 = vld [vmem:[%s2 + $0xb0] sm:$0xff]
        %v446 = vld [vmem:[%s2 + $0xb8] sm:$0xff]
        %v447 = vld [vmem:[%s2 + $0xc0] sm:$0xff]
        %v448 = vld [vmem:[%s2 + $0xc8] sm:$0xff]
        %v449 = vld [vmem:[%s2 + $0xd0] sm:$0xff]
        %v450 = vld [vmem:[%s2 + $0xd8] sm:$0xff]
        %v451 = vld [vmem:[%s2 + $0xe0] sm:$0xff]
        %v452 = vld [vmem:[%s2 + $0xe8] sm:$0xff]
        %v453 = vld [vmem:[%s2 + $0xf0] sm:$0xff]
        %v454 = vld [vmem:[%s2 + $0xf8] sm:$0xff]
        %v455 = vld [vmem:[%s2 + $0x100] sm:$0xff]
        %v456 = vld [vmem:[%s2 + $0x108] sm:$0xff]
        %v457 = vld [vmem:[%s2 + $0x110] sm:$0xff]
        %v458 = vld [vmem:[%s2 + $0x118] sm:$0xff]
        %v459 = vld [vmem:[%s2 + $0x120] sm:$0xff]
        %v460 = vld [vmem:[%s2 + $0x128] sm:$0xff]
        %v461 = vld [vmem:[%s2 + $0x130] sm:$0xff]
        %v462 = vld [vmem:[%s2 + $0x138] sm:$0xff]
        %v463 = vld [vmem:[%s2 + $0x140] sm:$0xff]
        %v464 = vld [vmem:[%s2 + $0x148] sm:$0xff]
        %v465 = vld [vmem:[%s2 + $0x150] sm:$0xff]
        %v466 = vld [vmem:[%s2 + $0x158] sm:$0xff]
        %v467 = vld [vmem:[%s2 + $0x160] sm:$0xff]
        %v468 = vld [vmem:[%s2 + $0x168] sm:$0xff]
        %v469 = vld [vmem:[%s2 + $0x170] sm:$0xff]
        %v470 = vld [vmem:[%s2 + $0x178] sm:$0xff]
        %v471 = vld [vmem:[#allocation5] sm:$0xff]
        %v472 = vld [vmem:[#allocation5 + $0x8] sm:$0xff]
        %v473 = vld [vmem:[#allocation5 + $0x10] sm:$0xff]
        %v474 = vld [vmem:[#allocation5 + $0x18] sm:$0xff]
        %v475 = vld [vmem:[#allocation5 + $0x20] sm:$0xff]
        %v476 = vld [vmem:[#allocation5 + $0x28] sm:$0xff]
        %v477 = vld [vmem:[#allocation5 + $0x30] sm:$0xff]
        %v478 = vld [vmem:[#allocation5 + $0x38] sm:$0xff]
        %v479 = vld [vmem:[#allocation5 + $0x40] sm:$0xff]
        %v480 = vld [vmem:[#allocation5 + $0x48] sm:$0xff]
        %v481 = vld [vmem:[#allocation5 + $0x50] sm:$0xff]
        %v482 = vld [vmem:[#allocation5 + $0x58] sm:$0xff]
        %v483 = vld [vmem:[#allocation5 + $0x60] sm:$0xff]
        %v484 = vld [vmem:[#allocation5 + $0x68] sm:$0xff]
        %v485 = vld [vmem:[#allocation5 + $0x70] sm:$0xff]
        %v486 = vld [vmem:[#allocation5 + $0x78] sm:$0xff]
        %v487 = vld [vmem:[#allocation5 + $0x80] sm:$0xff]
        %v488 = vld [vmem:[#allocation5 + $0x88] sm:$0xff]
        %v489 = vld [vmem:[#allocation5 + $0x90] sm:$0xff]
        %v490 = vld [vmem:[#allocation5 + $0x98] sm:$0xff]
        %v491 = vld [vmem:[#allocation5 + $0xa0] sm:$0xff]
        %v492 = vld [vmem:[#allocation5 + $0xa8] sm:$0xff]
        %v493 = vld [vmem:[#allocation5 + $0xb0] sm:$0xff]
        %v494 = vld [vmem:[#allocation5 + $0xb8] sm:$0xff]
        %v495 = vld [vmem:[#allocation5 + $0xc0] sm:$0xff]
        %v496 = vld [vmem:[#allocation5 + $0xc8] sm:$0xff]
        %v497 = vld [vmem:[#allocation5 + $0xd0] sm:$0xff]
        %v498 = vld [vmem:[#allocation5 + $0xd8] sm:$0xff]
        %v499 = vld [vmem:[#allocation5 + $0xe0] sm:$0xff]
        %v500 = vld [vmem:[#allocation5 + $0xe8] sm:$0xff]
        %v501 = vld [vmem:[#allocation5 + $0xf0] sm:$0xff]
        %v502 = vld [vmem:[#allocation5 + $0xf8] sm:$0xff]
        %v503 = vld [vmem:[#allocation5 + $0x100] sm:$0xff]
        %v504 = vld [vmem:[#allocation5 + $0x108] sm:$0xff]
        %v505 = vld [vmem:[#allocation5 + $0x110] sm:$0xff]
        %v506 = vld [vmem:[#allocation5 + $0x118] sm:$0xff]
        %v507 = vld [vmem:[#allocation5 + $0x120] sm:$0xff]
        %v508 = vld [vmem:[#allocation5 + $0x128] sm:$0xff]
        %v509 = vld [vmem:[#allocation5 + $0x130] sm:$0xff]
        %v510 = vld [vmem:[#allocation5 + $0x138] sm:$0xff]
        %v511 = vld [vmem:[#allocation5 + $0x140] sm:$0xff]
        %v512 = vld [vmem:[#allocation5 + $0x148] sm:$0xff]
        %v513 = vld [vmem:[#allocation5 + $0x150] sm:$0xff]
        %v514 = vld [vmem:[#allocation5 + $0x158] sm:$0xff]
        %v515 = vld [vmem:[#allocation5 + $0x160] sm:$0xff]
        %v516 = vld [vmem:[#allocation5 + $0x168] sm:$0xff]
        %v517 = vld [vmem:[#allocation5 + $0x170] sm:$0xff]
        %v518 = vld [vmem:[#allocation5 + $0x178] sm:$0xff]
        %v519 = vld [vmem:[#allocation7] sm:$0xff]
        %v520 = vld [vmem:[#allocation7 + $0x8] sm:$0xff]
        %v521 = vld [vmem:[#allocation7 + $0x10] sm:$0xff]
        %v522 = vld [vmem:[#allocation7 + $0x18] sm:$0xff]
        %v523 = vld [vmem:[#allocation7 + $0x20] sm:$0xff]
        %v524 = vld [vmem:[#allocation7 + $0x28] sm:$0xff]
        %v525 = vld [vmem:[#allocation7 + $0x30] sm:$0xff]
        %v526 = vld [vmem:[#allocation7 + $0x38] sm:$0xff]
        %v527 = vld [vmem:[#allocation7 + $0x40] sm:$0xff]
        %v528 = vld [vmem:[#allocation7 + $0x48] sm:$0xff]
        %v529 = vld [vmem:[#allocation7 + $0x50] sm:$0xff]
        %v530 = vld [vmem:[#allocation7 + $0x58] sm:$0xff]
        %v531 = vld [vmem:[#allocation7 + $0x60] sm:$0xff]
        %v532 = vld [vmem:[#allocation7 + $0x68] sm:$0xff]
        %v533 = vld [vmem:[#allocation7 + $0x70] sm:$0xff]
        %v534 = vld [vmem:[#allocation7 + $0x78] sm:$0xff]
        %v535 = vld [vmem:[#allocation7 + $0x80] sm:$0xff]
        %v536 = vld [vmem:[#allocation7 + $0x88] sm:$0xff]
        %v537 = vld [vmem:[#allocation7 + $0x90] sm:$0xff]
        %v538 = vld [vmem:[#allocation7 + $0x98] sm:$0xff]
        %v539 = vld [vmem:[#allocation7 + $0xa0] sm:$0xff]
        %v540 = vld [vmem:[#allocation7 + $0xa8] sm:$0xff]
        %v541 = vld [vmem:[#allocation7 + $0xb0] sm:$0xff]
        %v542 = vld [vmem:[#allocation7 + $0xb8] sm:$0xff]
        %v543 = vld [vmem:[#allocation7 + $0xc0] sm:$0xff]
        %v544 = vld [vmem:[#allocation7 + $0xc8] sm:$0xff]
        %v545 = vld [vmem:[#allocation7 + $0xd0] sm:$0xff]
        %v546 = vld [vmem:[#allocation7 + $0xd8] sm:$0xff]
        %v547 = vld [vmem:[#allocation7 + $0xe0] sm:$0xff]
        %v548 = vld [vmem:[#allocation7 + $0xe8] sm:$0xff]
        %v549 = vld [vmem:[#allocation7 + $0xf0] sm:$0xff]
        %v550 = vld [vmem:[#allocation7 + $0xf8] sm:$0xff]
        %v551 = vld [vmem:[#allocation7 + $0x100] sm:$0xff]
        %v552 = vld [vmem:[#allocation7 + $0x108] sm:$0xff]
        %v553 = vld [vmem:[#allocation7 + $0x110] sm:$0xff]
        %v554 = vld [vmem:[#allocation7 + $0x118] sm:$0xff]
        %v555 = vld [vmem:[#allocation7 + $0x120] sm:$0xff]
        %v556 = vld [vmem:[#allocation7 + $0x128] sm:$0xff]
        %v557 = vld [vmem:[#allocation7 + $0x130] sm:$0xff]
        %v558 = vld [vmem:[#allocation7 + $0x138] sm:$0xff]
        %v559 = vld [vmem:[#allocation7 + $0x140] sm:$0xff]
        %v560 = vld [vmem:[#allocation7 + $0x148] sm:$0xff]
        %v561 = vld [vmem:[#allocation7 + $0x150] sm:$0xff]
        %v562 = vld [vmem:[#allocation7 + $0x158] sm:$0xff]
        %v563 = vld [vmem:[#allocation7 + $0x160] sm:$0xff]
        %v564 = vld [vmem:[#allocation7 + $0x168] sm:$0xff]
        %v565 = vld [vmem:[#allocation7 + $0x170] sm:$0xff]
        %v566 = vld [vmem:[#allocation7 + $0x178] sm:$0xff]
        %vm567 = vcmask 64512
        %v568 = vsel %vm567, %v407, 0.0
        %569 = vadd.xlane.f32.xlu0 %v568
        %v570 = vpop.xlane.xlu0 %569
        %v571 = vsel %vm567, %v408, 0.0
        %572 = vadd.xlane.f32.xlu0 %v571
        %v573 = vpop.xlane.xlu0 %572
        %v574 = vsel %vm567, %v409, 0.0
        %575 = vadd.xlane.f32.xlu0 %v574
        %v576 = vpop.xlane.xlu0 %575
        %v577 = vsel %vm567, %v410, 0.0
        %578 = vadd.xlane.f32.xlu0 %v577
        %v579 = vpop.xlane.xlu0 %578
        %v580 = vsel %vm567, %v411, 0.0
        %581 = vadd.xlane.f32.xlu0 %v580
        %v582 = vpop.xlane.xlu0 %581
        %v583 = vsel %vm567, %v412, 0.0
        %584 = vadd.xlane.f32.xlu0 %v583
        %v585 = vpop.xlane.xlu0 %584
        %v586 = vsel %vm567, %v413, 0.0
        %587 = vadd.xlane.f32.xlu0 %v586
        %v588 = vpop.xlane.xlu0 %587
        %v589 = vsel %vm567, %v414, 0.0
        %590 = vadd.xlane.f32.xlu0 %v589
        %v591 = vpop.xlane.xlu0 %590
        %v592 = vsel %vm567, %v415, 0.0
        %593 = vadd.xlane.f32.xlu0 %v592
        %v594 = vpop.xlane.xlu0 %593
        %v595 = vsel %vm567, %v416, 0.0
        %596 = vadd.xlane.f32.xlu0 %v595
        %v597 = vpop.xlane.xlu0 %596
        %v598 = vsel %vm567, %v417, 0.0
        %599 = vadd.xlane.f32.xlu0 %v598
        %v600 = vpop.xlane.xlu0 %599
        %v601 = vsel %vm567, %v418, 0.0
        %602 = vadd.xlane.f32.xlu0 %v601
        %v603 = vpop.xlane.xlu0 %602
        %v604 = vsel %vm567, %v419, 0.0
        %605 = vadd.xlane.f32.xlu0 %v604
        %v606 = vpop.xlane.xlu0 %605
        %v607 = vsel %vm567, %v420, 0.0
        %608 = vadd.xlane.f32.xlu0 %v607
        %v609 = vpop.xlane.xlu0 %608
        %v610 = vsel %vm567, %v421, 0.0
        %611 = vadd.xlane.f32.xlu0 %v610
        %v612 = vpop.xlane.xlu0 %611
        %v613 = vsel %vm567, %v422, 0.0
        %614 = vadd.xlane.f32.xlu0 %v613
        %v615 = vpop.xlane.xlu0 %614
        %v616 = vld [vmem:[%s5] sm:$0x7]
        %v617 = vld [vmem:[%s6] sm:$0x7]
        %v618 = vld [vmem:[%s7] sm:$0x7]
        %v620 = vlaneseq
        %v621 = vshrl.u32 %v620, 7
        %v622 = vsub.s32 0, %v621
        %v623 = vrot.slane %v616, %v622
        %v624 = vlaneseq
        %v625 = vshrl.u32 %v624, 7
        %v626 = vsub.s32 1, %v625
        %v627 = vrot.slane %v616, %v626
        %v628 = vlaneseq
        %v629 = vshrl.u32 %v628, 7
        %v630 = vsub.s32 2, %v629
        %v631 = vrot.slane %v616, %v630
        %v635 = vmul.f32 %v570, %v623
        %v636 = vmul.f32 %v570, %v627
        %v637 = vmul.f32 %v570, %v631
        %v638 = vmul.f32 %v576, %v623
        %v639 = vmul.f32 %v576, %v627
        %v640 = vmul.f32 %v576, %v631
        %v641 = vmul.f32 %v582, %v623
        %v642 = vmul.f32 %v582, %v627
        %v643 = vmul.f32 %v582, %v631
        %v644 = vmul.f32 %v588, %v623
        %v645 = vmul.f32 %v588, %v627
        %v646 = vmul.f32 %v588, %v631
        %v647 = vmul.f32 %v594, %v623
        %v648 = vmul.f32 %v594, %v627
        %v649 = vmul.f32 %v594, %v631
        %v650 = vmul.f32 %v600, %v623
        %v651 = vmul.f32 %v600, %v627
        %v652 = vmul.f32 %v600, %v631
        %v653 = vmul.f32 %v606, %v623
        %v654 = vmul.f32 %v606, %v627
        %v655 = vmul.f32 %v606, %v631
        %v656 = vmul.f32 %v612, %v623
        %v657 = vmul.f32 %v612, %v627
        %v658 = vmul.f32 %v612, %v631
        %v660 = vlaneseq
        %v661 = vshrl.u32 %v660, 7
        %v662 = vsub.s32 0, %v661
        %v663 = vrot.slane %v618, %v662
        %v664 = vlaneseq
        %v665 = vshrl.u32 %v664, 7
        %v666 = vsub.s32 1, %v665
        %v667 = vrot.slane %v618, %v666
        %v668 = vlaneseq
        %v669 = vshrl.u32 %v668, 7
        %v670 = vsub.s32 2, %v669
        %v671 = vrot.slane %v618, %v670
        %v675 = vadd.f32 %v663, %v635
        %v676 = vadd.f32 %v667, %v636
        %v677 = vadd.f32 %v671, %v637
        %v678 = vadd.f32 %v663, %v638
        %v679 = vadd.f32 %v667, %v639
        %v680 = vadd.f32 %v671, %v640
        %v681 = vadd.f32 %v663, %v641
        %v682 = vadd.f32 %v667, %v642
        %v683 = vadd.f32 %v671, %v643
        %v684 = vadd.f32 %v663, %v644
        %v685 = vadd.f32 %v667, %v645
        %v686 = vadd.f32 %v671, %v646
        %v687 = vadd.f32 %v663, %v647
        %v688 = vadd.f32 %v667, %v648
        %v689 = vadd.f32 %v671, %v649
        %v690 = vadd.f32 %v663, %v650
        %v691 = vadd.f32 %v667, %v651
        %v692 = vadd.f32 %v671, %v652
        %v693 = vadd.f32 %v663, %v653
        %v694 = vadd.f32 %v667, %v654
        %v695 = vadd.f32 %v671, %v655
        %v696 = vadd.f32 %v663, %v656
        %v697 = vadd.f32 %v667, %v657
        %v698 = vadd.f32 %v671, %v658
        %v700 = vlaneseq
        %v701 = vshrl.u32 %v700, 7
        %v702 = vsub.s32 0, %v701
        %v703 = vrot.slane %v617, %v702
        %v704 = vlaneseq
        %v705 = vshrl.u32 %v704, 7
        %v706 = vsub.s32 1, %v705
        %v707 = vrot.slane %v617, %v706
        %v708 = vlaneseq
        %v709 = vshrl.u32 %v708, 7
        %v710 = vsub.s32 2, %v709
        %v711 = vrot.slane %v617, %v710
        %v715 = vmul.f32 %v573, %v703
        %v716 = vmul.f32 %v573, %v707
        %v717 = vmul.f32 %v573, %v711
        %v718 = vmul.f32 %v579, %v703
        %v719 = vmul.f32 %v579, %v707
        %v720 = vmul.f32 %v579, %v711
        %v721 = vmul.f32 %v585, %v703
        %v722 = vmul.f32 %v585, %v707
        %v723 = vmul.f32 %v585, %v711
        %v724 = vmul.f32 %v591, %v703
        %v725 = vmul.f32 %v591, %v707
        %v726 = vmul.f32 %v591, %v711
        %v727 = vmul.f32 %v597, %v703
        %v728 = vmul.f32 %v597, %v707
        %v729 = vmul.f32 %v597, %v711
        %v730 = vmul.f32 %v603, %v703
        %v731 = vmul.f32 %v603, %v707
        %v732 = vmul.f32 %v603, %v711
        %v733 = vmul.f32 %v609, %v703
        %v734 = vmul.f32 %v609, %v707
        %v735 = vmul.f32 %v609, %v711
        %v736 = vmul.f32 %v615, %v703
        %v737 = vmul.f32 %v615, %v707
        %v738 = vmul.f32 %v615, %v711
        %v739 = vadd.f32 %v675, %v715
        %v740 = vadd.f32 %v676, %v716
        %v741 = vadd.f32 %v677, %v717
        %v742 = vadd.f32 %v678, %v718
        %v743 = vadd.f32 %v679, %v719
        %v744 = vadd.f32 %v680, %v720
        %v745 = vadd.f32 %v681, %v721
        %v746 = vadd.f32 %v682, %v722
        %v747 = vadd.f32 %v683, %v723
        %v748 = vadd.f32 %v684, %v724
        %v749 = vadd.f32 %v685, %v725
        %v750 = vadd.f32 %v686, %v726
        %v751 = vadd.f32 %v687, %v727
        %v752 = vadd.f32 %v688, %v728
        %v753 = vadd.f32 %v689, %v729
        %v754 = vadd.f32 %v690, %v730
        %v755 = vadd.f32 %v691, %v731
        %v756 = vadd.f32 %v692, %v732
        %v757 = vadd.f32 %v693, %v733
        %v758 = vadd.f32 %v694, %v734
        %v759 = vadd.f32 %v695, %v735
        %v760 = vadd.f32 %v696, %v736
        %v761 = vadd.f32 %v697, %v737
        %v762 = vadd.f32 %v698, %v738
        %v763 = vld [vmem:[%s8] sm:$0x1]
        %v765 = vlaneseq
        %v766 = vshrl.u32 %v765, 7
        %v767 = vsub.s32 0, %v766
        %v768 = vrot.slane %v763, %v767
        %v770 = vld [vmem:[%s349] sm:$0xff]
        %v771 = vld [vmem:[%s349 + $0x8] sm:$0xff]
        %v772 = vld [vmem:[%s349 + $0x10] sm:$0xff]
        %v773 = vld [vmem:[%s349 + $0x18] sm:$0xff]
        %v774 = vld [vmem:[%s349 + $0x20] sm:$0xff]
        %v775 = vld [vmem:[%s349 + $0x28] sm:$0xff]
        %v776 = vld [vmem:[%s349 + $0x30] sm:$0xff]
        %v777 = vld [vmem:[%s349 + $0x38] sm:$0xff]
        %v779 = vsel %vm567, %v407, 0
        %v782 = vsel %vm567, %v408, 0
        %784 = vmatprep.subr.mxu0 0.0
        %785 = vmatpush1.msra.mxu0 %v770
        %786 = vmatprep.subr.mxu0 0.0
        %787 = vmatpush1.msra.mxu0 0.0
        %788 = vmatprep.subr.mxu0 0.0
        %789 = vmatpush1.msra.mxu0 0.0
        %790 = vmatprep.subr.mxu0 0.0
        %791 = vmatpush1.msra.mxu0 0.0
        %792 = vmatprep.subr.mxu0 0.0
        %793 = vmatpush1.msra.mxu0 0.0
        %794 = vmatprep.subr.mxu0 0.0
        %795 = vmatpush1.msra.mxu0 0.0
        %796 = vmatprep.subr.mxu0 0.0
        %797 = vmatpush1.msra.mxu0 0.0
        %798 = vmatprep.subr.mxu0 0.0
        %799 = vmatpush1.msra.mxu0 0.0
        %800 = vmatprep.subr.mxu0 0.0
        %801 = vmatpush1.msra.mxu0 0.0
        %802 = vmatprep.subr.mxu0 0.0
        %803 = vmatpush1.msra.mxu0 0.0
        %804 = vmatprep.subr.mxu0 0.0
        %805 = vmatpush1.msra.mxu0 0.0
        %806 = vmatprep.subr.mxu0 0.0
        %807 = vmatpush1.msra.mxu0 0.0
        %808 = vmatprep.subr.mxu0 0.0
        %809 = vmatpush1.msra.mxu0 0.0
        %810 = vmatprep.subr.mxu0 0.0
        %811 = vmatpush1.msra.mxu0 0.0
        %812 = vmatprep.subr.mxu0 0.0
        %813 = vmatpush1.msra.mxu0 0.0
        %814 = vmatprep.subr.mxu0 0.0
        %815 = vmatpush1.msra.mxu0 0.0
        %816 = vmatprep.subr.mxu0 0.0
        %817 = vmatpush1.msra.mxu0 0.0
        %818 = vmatprep.subr.mxu0 0.0
        %819 = vmatpush1.msra.mxu0 0.0
        %820 = vmatprep.subr.mxu0 0.0
        %821 = vmatpush1.msra.mxu0 0.0
        %822 = vmatprep.subr.mxu0 0.0
        %823 = vmatpush1.msra.mxu0 0.0
        %824 = vmatprep.subr.mxu0 0.0
        %825 = vmatpush1.msra.mxu0 0.0
        %826 = vmatprep.subr.mxu0 0.0
        %827 = vmatpush1.msra.mxu0 0.0
        %828 = vmatprep.subr.mxu0 0.0
        %829 = vmatpush1.msra.mxu0 0.0
        %830 = vmatprep.subr.mxu0 0.0
        %831 = vmatpush1.msra.mxu0 0.0
        %832 = vmatprep.subr.mxu0 0.0
        %833 = vmatpush1.msra.mxu0 0.0
        %834 = vmatprep.subr.mxu0 0.0
        %835 = vmatpush1.msra.mxu0 0.0
        %836 = vmatprep.subr.mxu0 0.0
        %837 = vmatpush1.msra.mxu0 0.0
        %838 = vmatprep.subr.mxu0 0.0
        %839 = vmatpush1.msra.mxu0 0.0
        %840 = vmatprep.subr.mxu0 0.0
        %841 = vmatpush1.msra.mxu0 0.0
        %842 = vmatprep.subr.mxu0 0.0
        %843 = vmatpush1.msra.mxu0 0.0
        %844 = vmatprep.subr.mxu0 0.0
        %845 = vmatpush1.msra.mxu0 0.0
        %846 = vmatprep.subr.mxu0 0.0
        %847 = vmatpush1.msra.mxu0 0.0
        %848 = vmatprep.mubr.f32.mxu0 0.0
        %849 = vmatmul.mubr.f32.gmra.mrb[0].mxu0 %v779
        %v850 = vpop.f32.mrb[0].mxu0
        %v851 = vadd.f32 0.0, %v850
        %v852 = vpop.f32.mrb[0].mxu0
        %853 = vmatprep.mubr.f32.mxu0 0.0
        %854 = vmatmul.mubr.f32.gmra.mrb[0].mxu0 %v782
        %v855 = vpop.f32.mrb[0].mxu0
        %v856 = vadd.f32 0.0, %v855
        %v857 = vpop.f32.mrb[0].mxu0
        %858 = vdwg.mxu0
        %v860 = vsel %vm567, %v409, 0
        %v863 = vsel %vm567, %v410, 0
        %865 = vmatprep.subr.mxu0 0.0
        %866 = vmatpush1.msra.mxu0 %v771
        %867 = vmatprep.subr.mxu0 0.0
        %868 = vmatpush1.msra.mxu0 0.0
        %869 = vmatprep.subr.mxu0 0.0
        %870 = vmatpush1.msra.mxu0 0.0
        %871 = vmatprep.subr.mxu0 0.0
        %872 = vmatpush1.msra.mxu0 0.0
        %873 = vmatprep.subr.mxu0 0.0
        %874 = vmatpush1.msra.mxu0 0.0
        %875 = vmatprep.subr.mxu0 0.0
        %876 = vmatpush1.msra.mxu0 0.0
        %877 = vmatprep.subr.mxu0 0.0
        %878 = vmatpush1.msra.mxu0 0.0
        %879 = vmatprep.subr.mxu0 0.0
        %880 = vmatpush1.msra.mxu0 0.0
        %881 = vmatprep.subr.mxu0 0.0
        %882 = vmatpush1.msra.mxu0 0.0
        %883 = vmatprep.subr.mxu0 0.0
        %884 = vmatpush1.msra.mxu0 0.0
        %885 = vmatprep.subr.mxu0 0.0
        %886 = vmatpush1.msra.mxu0 0.0
        %887 = vmatprep.subr.mxu0 0.0
        %888 = vmatpush1.msra.mxu0 0.0
        %889 = vmatprep.subr.mxu0 0.0
        %890 = vmatpush1.msra.mxu0 0.0
        %891 = vmatprep.subr.mxu0 0.0
        %892 = vmatpush1.msra.mxu0 0.0
        %893 = vmatprep.subr.mxu0 0.0
        %894 = vmatpush1.msra.mxu0 0.0
        %895 = vmatprep.subr.mxu0 0.0
        %896 = vmatpush1.msra.mxu0 0.0
        %897 = vmatprep.subr.mxu0 0.0
        %898 = vmatpush1.msra.mxu0 0.0
        %899 = vmatprep.subr.mxu0 0.0
        %900 = vmatpush1.msra.mxu0 0.0
        %901 = vmatprep.subr.mxu0 0.0
        %902 = vmatpush1.msra.mxu0 0.0
        %903 = vmatprep.subr.mxu0 0.0
        %904 = vmatpush1.msra.mxu0 0.0
        %905 = vmatprep.subr.mxu0 0.0
        %906 = vmatpush1.msra.mxu0 0.0
        %907 = vmatprep.subr.mxu0 0.0
        %908 = vmatpush1.msra.mxu0 0.0
        %909 = vmatprep.subr.mxu0 0.0
        %910 = vmatpush1.msra.mxu0 0.0
        %911 = vmatprep.subr.mxu0 0.0
        %912 = vmatpush1.msra.mxu0 0.0
        %913 = vmatprep.subr.mxu0 0.0
        %914 = vmatpush1.msra.mxu0 0.0
        %915 = vmatprep.subr.mxu0 0.0
        %916 = vmatpush1.msra.mxu0 0.0
        %917 = vmatprep.subr.mxu0 0.0
        %918 = vmatpush1.msra.mxu0 0.0
        %919 = vmatprep.subr.mxu0 0.0
        %920 = vmatpush1.msra.mxu0 0.0
        %921 = vmatprep.subr.mxu0 0.0
        %922 = vmatpush1.msra.mxu0 0.0
        %923 = vmatprep.subr.mxu0 0.0
        %924 = vmatpush1.msra.mxu0 0.0
        %925 = vmatprep.subr.mxu0 0.0
        %926 = vmatpush1.msra.mxu0 0.0
        %927 = vmatprep.subr.mxu0 0.0
        %928 = vmatpush1.msra.mxu0 0.0
        %929 = vmatprep.mubr.f32.mxu0 0.0
        %930 = vmatmul.mubr.f32.gmra.mrb[0].mxu0 %v860
        %v931 = vpop.f32.mrb[0].mxu0
        %v932 = vadd.f32 0.0, %v931
        %v933 = vpop.f32.mrb[0].mxu0
        %934 = vmatprep.mubr.f32.mxu0 0.0
        %935 = vmatmul.mubr.f32.gmra.mrb[0].mxu0 %v863
        %v936 = vpop.f32.mrb[0].mxu0
        %v937 = vadd.f32 0.0, %v936
        %v938 = vpop.f32.mrb[0].mxu0
        %939 = vdwg.mxu0
        %v941 = vsel %vm567, %v411, 0
        %v944 = vsel %vm567, %v412, 0
        %946 = vmatprep.subr.mxu0 0.0
        %947 = vmatpush1.msra.mxu0 %v772
        %948 = vmatprep.subr.mxu0 0.0
        %949 = vmatpush1.msra.mxu0 0.0
        %950 = vmatprep.subr.mxu0 0.0
        %951 = vmatpush1.msra.mxu0 0.0
        %952 = vmatprep.subr.mxu0 0.0
        %953 = vmatpush1.msra.mxu0 0.0
        %954 = vmatprep.subr.mxu0 0.0
        %955 = vmatpush1.msra.mxu0 0.0
        %956 = vmatprep.subr.mxu0 0.0
        %957 = vmatpush1.msra.mxu0 0.0
        %958 = vmatprep.subr.mxu0 0.0
        %959 = vmatpush1.msra.mxu0 0.0
        %960 = vmatprep.subr.mxu0 0.0
        %961 = vmatpush1.msra.mxu0 0.0
        %962 = vmatprep.subr.mxu0 0.0
        %963 = vmatpush1.msra.mxu0 0.0
        %964 = vmatprep.subr.mxu0 0.0
        %965 = vmatpush1.msra.mxu0 0.0
        %966 = vmatprep.subr.mxu0 0.0
        %967 = vmatpush1.msra.mxu0 0.0
        %968 = vmatprep.subr.mxu0 0.0
        %969 = vmatpush1.msra.mxu0 0.0
        %970 = vmatprep.subr.mxu0 0.0
        %971 = vmatpush1.msra.mxu0 0.0
        %972 = vmatprep.subr.mxu0 0.0
        %973 = vmatpush1.msra.mxu0 0.0
        %974 = vmatprep.subr.mxu0 0.0
        %975 = vmatpush1.msra.mxu0 0.0
        %976 = vmatprep.subr.mxu0 0.0
        %977 = vmatpush1.msra.mxu0 0.0
        %978 = vmatprep.subr.mxu0 0.0
        %979 = vmatpush1.msra.mxu0 0.0
        %980 = vmatprep.subr.mxu0 0.0
        %981 = vmatpush1.msra.mxu0 0.0
        %982 = vmatprep.subr.mxu0 0.0
        %983 = vmatpush1.msra.mxu0 0.0
        %984 = vmatprep.subr.mxu0 0.0
        %985 = vmatpush1.msra.mxu0 0.0
        %986 = vmatprep.subr.mxu0 0.0
        %987 = vmatpush1.msra.mxu0 0.0
        %988 = vmatprep.subr.mxu0 0.0
        %989 = vmatpush1.msra.mxu0 0.0
        %990 = vmatprep.subr.mxu0 0.0
        %991 = vmatpush1.msra.mxu0 0.0
        %992 = vmatprep.subr.mxu0 0.0
        %993 = vmatpush1.msra.mxu0 0.0
        %994 = vmatprep.subr.mxu0 0.0
        %995 = vmatpush1.msra.mxu0 0.0
        %996 = vmatprep.subr.mxu0 0.0
        %997 = vmatpush1.msra.mxu0 0.0
        %998 = vmatprep.subr.mxu0 0.0
        %999 = vmatpush1.msra.mxu0 0.0
        %1000 = vmatprep.subr.mxu0 0.0
        %1001 = vmatpush1.msra.mxu0 0.0
        %1002 = vmatprep.subr.mxu0 0.0
        %1003 = vmatpush1.msra.mxu0 0.0
        %1004 = vmatprep.subr.mxu0 0.0
        %1005 = vmatpush1.msra.mxu0 0.0
        %1006 = vmatprep.subr.mxu0 0.0
        %1007 = vmatpush1.msra.mxu0 0.0
        %1008 = vmatprep.subr.mxu0 0.0
        %1009 = vmatpush1.msra.mxu0 0.0
        %1010 = vmatprep.mubr.f32.mxu0 0.0
        %1011 = vmatmul.mubr.f32.gmra.mrb[0].mxu0 %v941
        %v1012 = vpop.f32.mrb[0].mxu0
        %v1013 = vadd.f32 0.0, %v1012
        %v1014 = vpop.f32.mrb[0].mxu0
        %1015 = vmatprep.mubr.f32.mxu0 0.0
        %1016 = vmatmul.mubr.f32.gmra.mrb[0].mxu0 %v944
        %v1017 = vpop.f32.mrb[0].mxu0
        %v1018 = vadd.f32 0.0, %v1017
        %v1019 = vpop.f32.mrb[0].mxu0
        %1020 = vdwg.mxu0
        %v1022 = vsel %vm567, %v413, 0
        %v1025 = vsel %vm567, %v414, 0
        %1027 = vmatprep.subr.mxu0 0.0
        %1028 = vmatpush1.msra.mxu0 %v773
        %1029 = vmatprep.subr.mxu0 0.0
        %1030 = vmatpush1.msra.mxu0 0.0
        %1031 = vmatprep.subr.mxu0 0.0
        %1032 = vmatpush1.msra.mxu0 0.0
        %1033 = vmatprep.subr.mxu0 0.0
        %1034 = vmatpush1.msra.mxu0 0.0
        %1035 = vmatprep.subr.mxu0 0.0
        %1036 = vmatpush1.msra.mxu0 0.0
        %1037 = vmatprep.subr.mxu0 0.0
        %1038 = vmatpush1.msra.mxu0 0.0
        %1039 = vmatprep.subr.mxu0 0.0
        %1040 = vmatpush1.msra.mxu0 0.0
        %1041 = vmatprep.subr.mxu0 0.0
        %1042 = vmatpush1.msra.mxu0 0.0
        %1043 = vmatprep.subr.mxu0 0.0
        %1044 = vmatpush1.msra.mxu0 0.0
        %1045 = vmatprep.subr.mxu0 0.0
        %1046 = vmatpush1.msra.mxu0 0.0
        %1047 = vmatprep.subr.mxu0 0.0
        %1048 = vmatpush1.msra.mxu0 0.0
        %1049 = vmatprep.subr.mxu0 0.0
        %1050 = vmatpush1.msra.mxu0 0.0
        %1051 = vmatprep.subr.mxu0 0.0
        %1052 = vmatpush1.msra.mxu0 0.0
        %1053 = vmatprep.subr.mxu0 0.0
        %1054 = vmatpush1.msra.mxu0 0.0
        %1055 = vmatprep.subr.mxu0 0.0
        %1056 = vmatpush1.msra.mxu0 0.0
        %1057 = vmatprep.subr.mxu0 0.0
        %1058 = vmatpush1.msra.mxu0 0.0
        %1059 = vmatprep.subr.mxu0 0.0
        %1060 = vmatpush1.msra.mxu0 0.0
        %1061 = vmatprep.subr.mxu0 0.0
        %1062 = vmatpush1.msra.mxu0 0.0
        %1063 = vmatprep.subr.mxu0 0.0
        %1064 = vmatpush1.msra.mxu0 0.0
        %1065 = vmatprep.subr.mxu0 0.0
        %1066 = vmatpush1.msra.mxu0 0.0
        %1067 = vmatprep.subr.mxu0 0.0
        %1068 = vmatpush1.msra.mxu0 0.0
        %1069 = vmatprep.subr.mxu0 0.0
        %1070 = vmatpush1.msra.mxu0 0.0
        %1071 = vmatprep.subr.mxu0 0.0
        %1072 = vmatpush1.msra.mxu0 0.0
        %1073 = vmatprep.subr.mxu0 0.0
        %1074 = vmatpush1.msra.mxu0 0.0
        %1075 = vmatprep.subr.mxu0 0.0
        %1076 = vmatpush1.msra.mxu0 0.0
        %1077 = vmatprep.subr.mxu0 0.0
        %1078 = vmatpush1.msra.mxu0 0.0
        %1079 = vmatprep.subr.mxu0 0.0
        %1080 = vmatpush1.msra.mxu0 0.0
        %1081 = vmatprep.subr.mxu0 0.0
        %1082 = vmatpush1.msra.mxu0 0.0
        %1083 = vmatprep.subr.mxu0 0.0
        %1084 = vmatpush1.msra.mxu0 0.0
        %1085 = vmatprep.subr.mxu0 0.0
        %1086 = vmatpush1.msra.mxu0 0.0
        %1087 = vmatprep.subr.mxu0 0.0
        %1088 = vmatpush1.msra.mxu0 0.0
        %1089 = vmatprep.subr.mxu0 0.0
        %1090 = vmatpush1.msra.mxu0 0.0
        %1091 = vmatprep.mubr.f32.mxu0 0.0
        %1092 = vmatmul.mubr.f32.gmra.mrb[0].mxu0 %v1022
        %v1093 = vpop.f32.mrb[0].mxu0
        %v1094 = vadd.f32 0.0, %v1093
        %v1095 = vpop.f32.mrb[0].mxu0
        %1096 = vmatprep.mubr.f32.mxu0 0.0
        %1097 = vmatmul.mubr.f32.gmra.mrb[0].mxu0 %v1025
        %v1098 = vpop.f32.mrb[0].mxu0
        %v1099 = vadd.f32 0.0, %v1098
        %v1100 = vpop.f32.mrb[0].mxu0
        %1101 = vdwg.mxu0
        %v1103 = vsel %vm567, %v415, 0
        %v1106 = vsel %vm567, %v416, 0
        %1108 = vmatprep.subr.mxu0 0.0
        %1109 = vmatpush1.msra.mxu0 %v774
        %1110 = vmatprep.subr.mxu0 0.0
        %1111 = vmatpush1.msra.mxu0 0.0
        %1112 = vmatprep.subr.mxu0 0.0
        %1113 = vmatpush1.msra.mxu0 0.0
        %1114 = vmatprep.subr.mxu0 0.0
        %1115 = vmatpush1.msra.mxu0 0.0
        %1116 = vmatprep.subr.mxu0 0.0
        %1117 = vmatpush1.msra.mxu0 0.0
        %1118 = vmatprep.subr.mxu0 0.0
        %1119 = vmatpush1.msra.mxu0 0.0
        %1120 = vmatprep.subr.mxu0 0.0
        %1121 = vmatpush1.msra.mxu0 0.0
        %1122 = vmatprep.subr.mxu0 0.0
        %1123 = vmatpush1.msra.mxu0 0.0
        %1124 = vmatprep.subr.mxu0 0.0
        %1125 = vmatpush1.msra.mxu0 0.0
        %1126 = vmatprep.subr.mxu0 0.0
        %1127 = vmatpush1.msra.mxu0 0.0
        %1128 = vmatprep.subr.mxu0 0.0
        %1129 = vmatpush1.msra.mxu0 0.0
        %1130 = vmatprep.subr.mxu0 0.0
        %1131 = vmatpush1.msra.mxu0 0.0
        %1132 = vmatprep.subr.mxu0 0.0
        %1133 = vmatpush1.msra.mxu0 0.0
        %1134 = vmatprep.subr.mxu0 0.0
        %1135 = vmatpush1.msra.mxu0 0.0
        %1136 = vmatprep.subr.mxu0 0.0
        %1137 = vmatpush1.msra.mxu0 0.0
        %1138 = vmatprep.subr.mxu0 0.0
        %1139 = vmatpush1.msra.mxu0 0.0
        %1140 = vmatprep.subr.mxu0 0.0
        %1141 = vmatpush1.msra.mxu0 0.0
        %1142 = vmatprep.subr.mxu0 0.0
        %1143 = vmatpush1.msra.mxu0 0.0
        %1144 = vmatprep.subr.mxu0 0.0
        %1145 = vmatpush1.msra.mxu0 0.0
        %1146 = vmatprep.subr.mxu0 0.0
        %1147 = vmatpush1.msra.mxu0 0.0
        %1148 = vmatprep.subr.mxu0 0.0
        %1149 = vmatpush1.msra.mxu0 0.0
        %1150 = vmatprep.subr.mxu0 0.0
        %1151 = vmatpush1.msra.mxu0 0.0
        %1152 = vmatprep.subr.mxu0 0.0
        %1153 = vmatpush1.msra.mxu0 0.0
        %1154 = vmatprep.subr.mxu0 0.0
        %1155 = vmatpush1.msra.mxu0 0.0
        %1156 = vmatprep.subr.mxu0 0.0
        %1157 = vmatpush1.msra.mxu0 0.0
        %1158 = vmatprep.subr.mxu0 0.0
        %1159 = vmatpush1.msra.mxu0 0.0
        %1160 = vmatprep.subr.mxu0 0.0
        %1161 = vmatpush1.msra.mxu0 0.0
        %1162 = vmatprep.subr.mxu0 0.0
        %1163 = vmatpush1.msra.mxu0 0.0
        %1164 = vmatprep.subr.mxu0 0.0
        %1165 = vmatpush1.msra.mxu0 0.0
        %1166 = vmatprep.subr.mxu0 0.0
        %1167 = vmatpush1.msra.mxu0 0.0
        %1168 = vmatprep.subr.mxu0 0.0
        %1169 = vmatpush1.msra.mxu0 0.0
        %1170 = vmatprep.subr.mxu0 0.0
        %1171 = vmatpush1.msra.mxu0 0.0
        %1172 = vmatprep.mubr.f32.mxu0 0.0
        %1173 = vmatmul.mubr.f32.gmra.mrb[0].mxu0 %v1103
        %v1174 = vpop.f32.mrb[0].mxu0
        %v1175 = vadd.f32 0.0, %v1174
        %v1176 = vpop.f32.mrb[0].mxu0
        %1177 = vmatprep.mubr.f32.mxu0 0.0
        %1178 = vmatmul.mubr.f32.gmra.mrb[0].mxu0 %v1106
        %v1179 = vpop.f32.mrb[0].mxu0
        %v1180 = vadd.f32 0.0, %v1179
        %v1181 = vpop.f32.mrb[0].mxu0
        %1182 = vdwg.mxu0
        %v1184 = vsel %vm567, %v417, 0
        %v1187 = vsel %vm567, %v418, 0
        %1189 = vmatprep.subr.mxu0 0.0
        %1190 = vmatpush1.msra.mxu0 %v775
        %1191 = vmatprep.subr.mxu0 0.0
        %1192 = vmatpush1.msra.mxu0 0.0
        %1193 = vmatprep.subr.mxu0 0.0
        %1194 = vmatpush1.msra.mxu0 0.0
        %1195 = vmatprep.subr.mxu0 0.0
        %1196 = vmatpush1.msra.mxu0 0.0
        %1197 = vmatprep.subr.mxu0 0.0
        %1198 = vmatpush1.msra.mxu0 0.0
        %1199 = vmatprep.subr.mxu0 0.0
        %1200 = vmatpush1.msra.mxu0 0.0
        %1201 = vmatprep.subr.mxu0 0.0
        %1202 = vmatpush1.msra.mxu0 0.0
        %1203 = vmatprep.subr.mxu0 0.0
        %1204 = vmatpush1.msra.mxu0 0.0
        %1205 = vmatprep.subr.mxu0 0.0
        %1206 = vmatpush1.msra.mxu0 0.0
        %1207 = vmatprep.subr.mxu0 0.0
        %1208 = vmatpush1.msra.mxu0 0.0
        %1209 = vmatprep.subr.mxu0 0.0
        %1210 = vmatpush1.msra.mxu0 0.0
        %1211 = vmatprep.subr.mxu0 0.0
        %1212 = vmatpush1.msra.mxu0 0.0
        %1213 = vmatprep.subr.mxu0 0.0
        %1214 = vmatpush1.msra.mxu0 0.0
        %1215 = vmatprep.subr.mxu0 0.0
        %1216 = vmatpush1.msra.mxu0 0.0
        %1217 = vmatprep.subr.mxu0 0.0
        %1218 = vmatpush1.msra.mxu0 0.0
        %1219 = vmatprep.subr.mxu0 0.0
        %1220 = vmatpush1.msra.mxu0 0.0
        %1221 = vmatprep.subr.mxu0 0.0
        %1222 = vmatpush1.msra.mxu0 0.0
        %1223 = vmatprep.subr.mxu0 0.0
        %1224 = vmatpush1.msra.mxu0 0.0
        %1225 = vmatprep.subr.mxu0 0.0
        %1226 = vmatpush1.msra.mxu0 0.0
        %1227 = vmatprep.subr.mxu0 0.0
        %1228 = vmatpush1.msra.mxu0 0.0
        %1229 = vmatprep.subr.mxu0 0.0
        %1230 = vmatpush1.msra.mxu0 0.0
        %1231 = vmatprep.subr.mxu0 0.0
        %1232 = vmatpush1.msra.mxu0 0.0
        %1233 = vmatprep.subr.mxu0 0.0
        %1234 = vmatpush1.msra.mxu0 0.0
        %1235 = vmatprep.subr.mxu0 0.0
        %1236 = vmatpush1.msra.mxu0 0.0
        %1237 = vmatprep.subr.mxu0 0.0
        %1238 = vmatpush1.msra.mxu0 0.0
        %1239 = vmatprep.subr.mxu0 0.0
        %1240 = vmatpush1.msra.mxu0 0.0
        %1241 = vmatprep.subr.mxu0 0.0
        %1242 = vmatpush1.msra.mxu0 0.0
        %1243 = vmatprep.subr.mxu0 0.0
        %1244 = vmatpush1.msra.mxu0 0.0
        %1245 = vmatprep.subr.mxu0 0.0
        %1246 = vmatpush1.msra.mxu0 0.0
        %1247 = vmatprep.subr.mxu0 0.0
        %1248 = vmatpush1.msra.mxu0 0.0
        %1249 = vmatprep.subr.mxu0 0.0
        %1250 = vmatpush1.msra.mxu0 0.0
        %1251 = vmatprep.subr.mxu0 0.0
        %1252 = vmatpush1.msra.mxu0 0.0
        %1253 = vmatprep.mubr.f32.mxu0 0.0
        %1254 = vmatmul.mubr.f32.gmra.mrb[0].mxu0 %v1184
        %v1255 = vpop.f32.mrb[0].mxu0
        %v1256 = vadd.f32 0.0, %v1255
        %v1257 = vpop.f32.mrb[0].mxu0
        %1258 = vmatprep.mubr.f32.mxu0 0.0
        %1259 = vmatmul.mubr.f32.gmra.mrb[0].mxu0 %v1187
        %v1260 = vpop.f32.mrb[0].mxu0
        %v1261 = vadd.f32 0.0, %v1260
        %v1262 = vpop.f32.mrb[0].mxu0
        %1263 = vdwg.mxu0
        %v1265 = vsel %vm567, %v419, 0
        %v1268 = vsel %vm567, %v420, 0
        %1270 = vmatprep.subr.mxu0 0.0
        %1271 = vmatpush1.msra.mxu0 %v776
        %1272 = vmatprep.subr.mxu0 0.0
        %1273 = vmatpush1.msra.mxu0 0.0
        %1274 = vmatprep.subr.mxu0 0.0
        %1275 = vmatpush1.msra.mxu0 0.0
        %1276 = vmatprep.subr.mxu0 0.0
        %1277 = vmatpush1.msra.mxu0 0.0
        %1278 = vmatprep.subr.mxu0 0.0
        %1279 = vmatpush1.msra.mxu0 0.0
        %1280 = vmatprep.subr.mxu0 0.0
        %1281 = vmatpush1.msra.mxu0 0.0
        %1282 = vmatprep.subr.mxu0 0.0
        %1283 = vmatpush1.msra.mxu0 0.0
        %1284 = vmatprep.subr.mxu0 0.0
        %1285 = vmatpush1.msra.mxu0 0.0
        %1286 = vmatprep.subr.mxu0 0.0
        %1287 = vmatpush1.msra.mxu0 0.0
        %1288 = vmatprep.subr.mxu0 0.0
        %1289 = vmatpush1.msra.mxu0 0.0
        %1290 = vmatprep.subr.mxu0 0.0
        %1291 = vmatpush1.msra.mxu0 0.0
        %1292 = vmatprep.subr.mxu0 0.0
        %1293 = vmatpush1.msra.mxu0 0.0
        %1294 = vmatprep.subr.mxu0 0.0
        %1295 = vmatpush1.msra.mxu0 0.0
        %1296 = vmatprep.subr.mxu0 0.0
        %1297 = vmatpush1.msra.mxu0 0.0
        %1298 = vmatprep.subr.mxu0 0.0
        %1299 = vmatpush1.msra.mxu0 0.0
        %1300 = vmatprep.subr.mxu0 0.0
        %1301 = vmatpush1.msra.mxu0 0.0
        %1302 = vmatprep.subr.mxu0 0.0
        %1303 = vmatpush1.msra.mxu0 0.0
        %1304 = vmatprep.subr.mxu0 0.0
        %1305 = vmatpush1.msra.mxu0 0.0
        %1306 = vmatprep.subr.mxu0 0.0
        %1307 = vmatpush1.msra.mxu0 0.0
        %1308 = vmatprep.subr.mxu0 0.0
        %1309 = vmatpush1.msra.mxu0 0.0
        %1310 = vmatprep.subr.mxu0 0.0
        %1311 = vmatpush1.msra.mxu0 0.0
        %1312 = vmatprep.subr.mxu0 0.0
        %1313 = vmatpush1.msra.mxu0 0.0
        %1314 = vmatprep.subr.mxu0 0.0
        %1315 = vmatpush1.msra.mxu0 0.0
        %1316 = vmatprep.subr.mxu0 0.0
        %1317 = vmatpush1.msra.mxu0 0.0
        %1318 = vmatprep.subr.mxu0 0.0
        %1319 = vmatpush1.msra.mxu0 0.0
        %1320 = vmatprep.subr.mxu0 0.0
        %1321 = vmatpush1.msra.mxu0 0.0
        %1322 = vmatprep.subr.mxu0 0.0
        %1323 = vmatpush1.msra.mxu0 0.0
        %1324 = vmatprep.subr.mxu0 0.0
        %1325 = vmatpush1.msra.mxu0 0.0
        %1326 = vmatprep.subr.mxu0 0.0
        %1327 = vmatpush1.msra.mxu0 0.0
        %1328 = vmatprep.subr.mxu0 0.0
        %1329 = vmatpush1.msra.mxu0 0.0
        %1330 = vmatprep.subr.mxu0 0.0
        %1331 = vmatpush1.msra.mxu0 0.0
        %1332 = vmatprep.subr.mxu0 0.0
        %1333 = vmatpush1.msra.mxu0 0.0
        %1334 = vmatprep.mubr.f32.mxu0 0.0
        %1335 = vmatmul.mubr.f32.gmra.mrb[0].mxu0 %v1265
        %v1336 = vpop.f32.mrb[0].mxu0
        %v1337 = vadd.f32 0.0, %v1336
        %v1338 = vpop.f32.mrb[0].mxu0
        %1339 = vmatprep.mubr.f32.mxu0 0.0
        %1340 = vmatmul.mubr.f32.gmra.mrb[0].mxu0 %v1268
        %v1341 = vpop.f32.mrb[0].mxu0
        %v1342 = vadd.f32 0.0, %v1341
        %v1343 = vpop.f32.mrb[0].mxu0
        %1344 = vdwg.mxu0
        %v1346 = vsel %vm567, %v421, 0
        %v1349 = vsel %vm567, %v422, 0
        %1351 = vmatprep.subr.mxu0 0.0
        %1352 = vmatpush1.msra.mxu0 %v777
        %1353 = vmatprep.subr.mxu0 0.0
        %1354 = vmatpush1.msra.mxu0 0.0
        %1355 = vmatprep.subr.mxu0 0.0
        %1356 = vmatpush1.msra.mxu0 0.0
        %1357 = vmatprep.subr.mxu0 0.0
        %1358 = vmatpush1.msra.mxu0 0.0
        %1359 = vmatprep.subr.mxu0 0.0
        %1360 = vmatpush1.msra.mxu0 0.0
        %1361 = vmatprep.subr.mxu0 0.0
        %1362 = vmatpush1.msra.mxu0 0.0
        %1363 = vmatprep.subr.mxu0 0.0
        %1364 = vmatpush1.msra.mxu0 0.0
        %1365 = vmatprep.subr.mxu0 0.0
        %1366 = vmatpush1.msra.mxu0 0.0
        %1367 = vmatprep.subr.mxu0 0.0
        %1368 = vmatpush1.msra.mxu0 0.0
        %1369 = vmatprep.subr.mxu0 0.0
        %1370 = vmatpush1.msra.mxu0 0.0
        %1371 = vmatprep.subr.mxu0 0.0
        %1372 = vmatpush1.msra.mxu0 0.0
        %1373 = vmatprep.subr.mxu0 0.0
        %1374 = vmatpush1.msra.mxu0 0.0
        %1375 = vmatprep.subr.mxu0 0.0
        %1376 = vmatpush1.msra.mxu0 0.0
        %1377 = vmatprep.subr.mxu0 0.0
        %1378 = vmatpush1.msra.mxu0 0.0
        %1379 = vmatprep.subr.mxu0 0.0
        %1380 = vmatpush1.msra.mxu0 0.0
        %1381 = vmatprep.subr.mxu0 0.0
        %1382 = vmatpush1.msra.mxu0 0.0
        %1383 = vmatprep.subr.mxu0 0.0
        %1384 = vmatpush1.msra.mxu0 0.0
        %1385 = vmatprep.subr.mxu0 0.0
        %1386 = vmatpush1.msra.mxu0 0.0
        %1387 = vmatprep.subr.mxu0 0.0
        %1388 = vmatpush1.msra.mxu0 0.0
        %1389 = vmatprep.subr.mxu0 0.0
        %1390 = vmatpush1.msra.mxu0 0.0
        %1391 = vmatprep.subr.mxu0 0.0
        %1392 = vmatpush1.msra.mxu0 0.0
        %1393 = vmatprep.subr.mxu0 0.0
        %1394 = vmatpush1.msra.mxu0 0.0
        %1395 = vmatprep.subr.mxu0 0.0
        %1396 = vmatpush1.msra.mxu0 0.0
        %1397 = vmatprep.subr.mxu0 0.0
        %1398 = vmatpush1.msra.mxu0 0.0
        %1399 = vmatprep.subr.mxu0 0.0
        %1400 = vmatpush1.msra.mxu0 0.0
        %1401 = vmatprep.subr.mxu0 0.0
        %1402 = vmatpush1.msra.mxu0 0.0
        %1403 = vmatprep.subr.mxu0 0.0
        %1404 = vmatpush1.msra.mxu0 0.0
        %1405 = vmatprep.subr.mxu0 0.0
        %1406 = vmatpush1.msra.mxu0 0.0
        %1407 = vmatprep.subr.mxu0 0.0
        %1408 = vmatpush1.msra.mxu0 0.0
        %1409 = vmatprep.subr.mxu0 0.0
        %1410 = vmatpush1.msra.mxu0 0.0
        %1411 = vmatprep.subr.mxu0 0.0
        %1412 = vmatpush1.msra.mxu0 0.0
        %1413 = vmatprep.subr.mxu0 0.0
        %1414 = vmatpush1.msra.mxu0 0.0
        %1415 = vmatprep.mubr.f32.mxu0 0.0
        %1416 = vmatmul.mubr.f32.gmra.mrb[0].mxu0 %v1346
        %v1417 = vpop.f32.mrb[0].mxu0
        %v1418 = vadd.f32 0.0, %v1417
        %v1419 = vpop.f32.mrb[0].mxu0
        %1420 = vmatprep.mubr.f32.mxu0 0.0
        %1421 = vmatmul.mubr.f32.gmra.mrb[0].mxu0 %v1349
        %v1422 = vpop.f32.mrb[0].mxu0
        %v1423 = vadd.f32 0.0, %v1422
        %v1424 = vpop.f32.mrb[0].mxu0
        %1425 = vdwg.mxu0
        %1426 = vmatprep.subr.mxu0 %v472
        %1427 = vmatpush1.msra.mxu0 %v471
        %1428 = vmatprep.subr.mxu0 %v475
        %1429 = vmatpush1.msra.mxu0 %v474
        %1430 = vmatprep.subr.mxu0 %v478
        %1431 = vmatpush1.msra.mxu0 %v477
        %1432 = vmatprep.subr.mxu0 %v481
        %1433 = vmatpush1.msra.mxu0 %v480
        %1434 = vmatprep.subr.mxu0 %v484
        %1435 = vmatpush1.msra.mxu0 %v483
        %1436 = vmatprep.subr.mxu0 %v487
        %1437 = vmatpush1.msra.mxu0 %v486
        %1438 = vmatprep.subr.mxu0 %v490
        %1439 = vmatpush1.msra.mxu0 %v489
        %1440 = vmatprep.subr.mxu0 %v493
        %1441 = vmatpush1.msra.mxu0 %v492
        %1442 = vmatprep.subr.mxu0 %v496
        %1443 = vmatpush1.msra.mxu0 %v495
        %1444 = vmatprep.subr.mxu0 %v499
        %1445 = vmatpush1.msra.mxu0 %v498
        %1446 = vmatprep.subr.mxu0 %v502
        %1447 = vmatpush1.msra.mxu0 %v501
        %1448 = vmatprep.subr.mxu0 %v505
        %1449 = vmatpush1.msra.mxu0 %v504
        %1450 = vmatprep.subr.mxu0 %v508
        %1451 = vmatpush1.msra.mxu0 %v507
        %1452 = vmatprep.subr.mxu0 %v511
        %1453 = vmatpush1.msra.mxu0 %v510
        %1454 = vmatprep.subr.mxu0 %v514
        %1455 = vmatpush1.msra.mxu0 %v513
        %1456 = vmatprep.subr.mxu0 %v517
        %1457 = vmatpush1.msra.mxu0 %v516
        %1458 = vmatprep.subr.mxu0 0.0
        %1459 = vmatpush1.msra.mxu0 0.0
        %1460 = vmatprep.subr.mxu0 0.0
        %1461 = vmatpush1.msra.mxu0 0.0
        %1462 = vmatprep.subr.mxu0 0.0
        %1463 = vmatpush1.msra.mxu0 0.0
        %1464 = vmatprep.subr.mxu0 0.0
        %1465 = vmatpush1.msra.mxu0 0.0
        %1466 = vmatprep.subr.mxu0 0.0
        %1467 = vmatpush1.msra.mxu0 0.0
        %1468 = vmatprep.subr.mxu0 0.0
        %1469 = vmatpush1.msra.mxu0 0.0
        %1470 = vmatprep.subr.mxu0 0.0
        %1471 = vmatpush1.msra.mxu0 0.0
        %1472 = vmatprep.subr.mxu0 0.0
        %1473 = vmatpush1.msra.mxu0 0.0
        %1474 = vmatprep.subr.mxu0 0.0
        %1475 = vmatpush1.msra.mxu0 0.0
        %1476 = vmatprep.subr.mxu0 0.0
        %1477 = vmatpush1.msra.mxu0 0.0
        %1478 = vmatprep.subr.mxu0 0.0
        %1479 = vmatpush1.msra.mxu0 0.0
        %1480 = vmatprep.subr.mxu0 0.0
        %1481 = vmatpush1.msra.mxu0 0.0
        %1482 = vmatprep.subr.mxu0 0.0
        %1483 = vmatpush1.msra.mxu0 0.0
        %1484 = vmatprep.subr.mxu0 0.0
        %1485 = vmatpush1.msra.mxu0 0.0
        %1486 = vmatprep.subr.mxu0 0.0
        %1487 = vmatpush1.msra.mxu0 0.0
        %1488 = vmatprep.subr.mxu0 0.0
        %1489 = vmatpush1.msra.mxu0 0.0
        %1490 = vmatprep.mubr.f32.mxu0 0.0
        %1491 = vmatmul.mubr.f32.gmra.mrb[0].mxu0 %v856
        %v1492 = vpop.f32.mrb[0].mxu0
        %v1493 = vadd.f32 0.0, %v1492
        %v1494 = vpop.f32.mrb[0].mxu0
        %v1495 = vadd.f32 0.0, %v1494
        %1496 = vmatprep.mubr.f32.mxu0 0.0
        %1497 = vmatmul.mubr.f32.gmra.mrb[0].mxu0 %v937
        %v1498 = vpop.f32.mrb[0].mxu0
        %v1499 = vadd.f32 0.0, %v1498
        %v1500 = vpop.f32.mrb[0].mxu0
        %v1501 = vadd.f32 0.0, %v1500
        %1502 = vmatprep.mubr.f32.mxu0 0.0
        %1503 = vmatmul.mubr.f32.gmra.mrb[0].mxu0 %v1018
        %v1504 = vpop.f32.mrb[0].mxu0
        %v1505 = vadd.f32 0.0, %v1504
        %v1506 = vpop.f32.mrb[0].mxu0
        %v1507 = vadd.f32 0.0, %v1506
        %1508 = vmatprep.mubr.f32.mxu0 0.0
        %1509 = vmatmul.mubr.f32.gmra.mrb[0].mxu0 %v1099
        %v1510 = vpop.f32.mrb[0].mxu0
        %v1511 = vadd.f32 0.0, %v1510
        %v1512 = vpop.f32.mrb[0].mxu0
        %v1513 = vadd.f32 0.0, %v1512
        %1514 = vmatprep.mubr.f32.mxu0 0.0
        %1515 = vmatmul.mubr.f32.gmra.mrb[0].mxu0 %v1180
        %v1516 = vpop.f32.mrb[0].mxu0
        %v1517 = vadd.f32 0.0, %v1516
        %v1518 = vpop.f32.mrb[0].mxu0
        %v1519 = vadd.f32 0.0, %v1518
        %1520 = vmatprep.mubr.f32.mxu0 0.0
        %1521 = vmatmul.mubr.f32.gmra.mrb[0].mxu0 %v1261
        %v1522 = vpop.f32.mrb[0].mxu0
        %v1523 = vadd.f32 0.0, %v1522
        %v1524 = vpop.f32.mrb[0].mxu0
        %v1525 = vadd.f32 0.0, %v1524
        %1526 = vmatprep.mubr.f32.mxu0 0.0
        %1527 = vmatmul.mubr.f32.gmra.mrb[0].mxu0 %v1342
        %v1528 = vpop.f32.mrb[0].mxu0
        %v1529 = vadd.f32 0.0, %v1528
        %v1530 = vpop.f32.mrb[0].mxu0
        %v1531 = vadd.f32 0.0, %v1530
        %1532 = vmatprep.mubr.f32.mxu0 0.0
        %1533 = vmatmul.mubr.f32.gmra.mrb[0].mxu0 %v1423
        %v1534 = vpop.f32.mrb[0].mxu0
        %v1535 = vadd.f32 0.0, %v1534
        %v1536 = vpop.f32.mrb[0].mxu0
        %v1537 = vadd.f32 0.0, %v1536
        %1538 = vdwg.mxu0
        %1539 = vmatprep.subr.mxu0 0.0
        %1540 = vmatpush1.msra.mxu0 %v473
        %1541 = vmatprep.subr.mxu0 0.0
        %1542 = vmatpush1.msra.mxu0 %v476
        %1543 = vmatprep.subr.mxu0 0.0
        %1544 = vmatpush1.msra.mxu0 %v479
        %1545 = vmatprep.subr.mxu0 0.0
        %1546 = vmatpush1.msra.mxu0 %v482
        %1547 = vmatprep.subr.mxu0 0.0
        %1548 = vmatpush1.msra.mxu0 %v485
        %1549 = vmatprep.subr.mxu0 0.0
        %1550 = vmatpush1.msra.mxu0 %v488
        %1551 = vmatprep.subr.mxu0 0.0
        %1552 = vmatpush1.msra.mxu0 %v491
        %1553 = vmatprep.subr.mxu0 0.0
        %1554 = vmatpush1.msra.mxu0 %v494
        %1555 = vmatprep.subr.mxu0 0.0
        %1556 = vmatpush1.msra.mxu0 %v497
        %1557 = vmatprep.subr.mxu0 0.0
        %1558 = vmatpush1.msra.mxu0 %v500
        %1559 = vmatprep.subr.mxu0 0.0
        %1560 = vmatpush1.msra.mxu0 %v503
        %1561 = vmatprep.subr.mxu0 0.0
        %1562 = vmatpush1.msra.mxu0 %v506
        %1563 = vmatprep.subr.mxu0 0.0
        %1564 = vmatpush1.msra.mxu0 %v509
        %1565 = vmatprep.subr.mxu0 0.0
        %1566 = vmatpush1.msra.mxu0 %v512
        %1567 = vmatprep.subr.mxu0 0.0
        %1568 = vmatpush1.msra.mxu0 %v515
        %1569 = vmatprep.subr.mxu0 0.0
        %1570 = vmatpush1.msra.mxu0 %v518
        %1571 = vmatprep.subr.mxu0 0.0
        %1572 = vmatpush1.msra.mxu0 0.0
        %1573 = vmatprep.subr.mxu0 0.0
        %1574 = vmatpush1.msra.mxu0 0.0
        %1575 = vmatprep.subr.mxu0 0.0
        %1576 = vmatpush1.msra.mxu0 0.0
        %1577 = vmatprep.subr.mxu0 0.0
        %1578 = vmatpush1.msra.mxu0 0.0
        %1579 = vmatprep.subr.mxu0 0.0
        %1580 = vmatpush1.msra.mxu0 0.0
        %1581 = vmatprep.subr.mxu0 0.0
        %1582 = vmatpush1.msra.mxu0 0.0
        %1583 = vmatprep.subr.mxu0 0.0
        %1584 = vmatpush1.msra.mxu0 0.0
        %1585 = vmatprep.subr.mxu0 0.0
        %1586 = vmatpush1.msra.mxu0 0.0
        %1587 = vmatprep.subr.mxu0 0.0
        %1588 = vmatpush1.msra.mxu0 0.0
        %1589 = vmatprep.subr.mxu0 0.0
        %1590 = vmatpush1.msra.mxu0 0.0
        %1591 = vmatprep.subr.mxu0 0.0
        %1592 = vmatpush1.msra.mxu0 0.0
        %1593 = vmatprep.subr.mxu0 0.0
        %1594 = vmatpush1.msra.mxu0 0.0
        %1595 = vmatprep.subr.mxu0 0.0
        %1596 = vmatpush1.msra.mxu0 0.0
        %1597 = vmatprep.subr.mxu0 0.0
        %1598 = vmatpush1.msra.mxu0 0.0
        %1599 = vmatprep.subr.mxu0 0.0
        %1600 = vmatpush1.msra.mxu0 0.0
        %1601 = vmatprep.subr.mxu0 0.0
        %1602 = vmatpush1.msra.mxu0 0.0
        %1603 = vmatprep.mubr.f32.mxu0 0.0
        %1604 = vmatmul.mubr.f32.gmra.mrb[0].mxu0 %v856
        %v1605 = vpop.f32.mrb[0].mxu0
        %v1606 = vadd.f32 0.0, %v1605
        %v1607 = vpop.f32.mrb[0].mxu0
        %1608 = vmatprep.mubr.f32.mxu0 0.0
        %1609 = vmatmul.mubr.f32.gmra.mrb[0].mxu0 %v937
        %v1610 = vpop.f32.mrb[0].mxu0
        %v1611 = vadd.f32 0.0, %v1610
        %v1612 = vpop.f32.mrb[0].mxu0
        %1613 = vmatprep.mubr.f32.mxu0 0.0
        %1614 = vmatmul.mubr.f32.gmra.mrb[0].mxu0 %v1018
        %v1615 = vpop.f32.mrb[0].mxu0
        %v1616 = vadd.f32 0.0, %v1615
        %v1617 = vpop.f32.mrb[0].mxu0
        %1618 = vmatprep.mubr.f32.mxu0 0.0
        %1619 = vmatmul.mubr.f32.gmra.mrb[0].mxu0 %v1099
        %v1620 = vpop.f32.mrb[0].mxu0
        %v1621 = vadd.f32 0.0, %v1620
        %v1622 = vpop.f32.mrb[0].mxu0
        %1623 = vmatprep.mubr.f32.mxu0 0.0
        %1624 = vmatmul.mubr.f32.gmra.mrb[0].mxu0 %v1180
        %v1625 = vpop.f32.mrb[0].mxu0
        %v1626 = vadd.f32 0.0, %v1625
        %v1627 = vpop.f32.mrb[0].mxu0
        %1628 = vmatprep.mubr.f32.mxu0 0.0
        %1629 = vmatmul.mubr.f32.gmra.mrb[0].mxu0 %v1261
        %v1630 = vpop.f32.mrb[0].mxu0
        %v1631 = vadd.f32 0.0, %v1630
        %v1632 = vpop.f32.mrb[0].mxu0
        %1633 = vmatprep.mubr.f32.mxu0 0.0
        %1634 = vmatmul.mubr.f32.gmra.mrb[0].mxu0 %v1342
        %v1635 = vpop.f32.mrb[0].mxu0
        %v1636 = vadd.f32 0.0, %v1635
        %v1637 = vpop.f32.mrb[0].mxu0
        %1638 = vmatprep.mubr.f32.mxu0 0.0
        %1639 = vmatmul.mubr.f32.gmra.mrb[0].mxu0 %v1423
        %v1640 = vpop.f32.mrb[0].mxu0
        %v1641 = vadd.f32 0.0, %v1640
        %v1642 = vpop.f32.mrb[0].mxu0
        %1643 = vdwg.mxu0
        %1644 = vmatprep.subr.mxu0 %v424
        %1645 = vmatpush1.msra.mxu0 %v423
        %1646 = vmatprep.subr.mxu0 %v427
        %1647 = vmatpush1.msra.mxu0 %v426
        %1648 = vmatprep.subr.mxu0 %v430
        %1649 = vmatpush1.msra.mxu0 %v429
        %1650 = vmatprep.subr.mxu0 %v433
        %1651 = vmatpush1.msra.mxu0 %v432
        %1652 = vmatprep.subr.mxu0 %v436
        %1653 = vmatpush1.msra.mxu0 %v435
        %1654 = vmatprep.subr.mxu0 %v439
        %1655 = vmatpush1.msra.mxu0 %v438
        %1656 = vmatprep.subr.mxu0 %v442
        %1657 = vmatpush1.msra.mxu0 %v441
        %1658 = vmatprep.subr.mxu0 %v445
        %1659 = vmatpush1.msra.mxu0 %v444
        %1660 = vmatprep.subr.mxu0 %v448
        %1661 = vmatpush1.msra.mxu0 %v447
        %1662 = vmatprep.subr.mxu0 %v451
        %1663 = vmatpush1.msra.mxu0 %v450
        %1664 = vmatprep.subr.mxu0 %v454
        %1665 = vmatpush1.msra.mxu0 %v453
        %1666 = vmatprep.subr.mxu0 %v457
        %1667 = vmatpush1.msra.mxu0 %v456
        %1668 = vmatprep.subr.mxu0 %v460
        %1669 = vmatpush1.msra.mxu0 %v459
        %1670 = vmatprep.subr.mxu0 %v463
        %1671 = vmatpush1.msra.mxu0 %v462
        %1672 = vmatprep.subr.mxu0 %v466
        %1673 = vmatpush1.msra.mxu0 %v465
        %1674 = vmatprep.subr.mxu0 %v469
        %1675 = vmatpush1.msra.mxu0 %v468
        %1676 = vmatprep.subr.mxu0 0.0
        %1677 = vmatpush1.msra.mxu0 0.0
        %1678 = vmatprep.subr.mxu0 0.0
        %1679 = vmatpush1.msra.mxu0 0.0
        %1680 = vmatprep.subr.mxu0 0.0
        %1681 = vmatpush1.msra.mxu0 0.0
        %1682 = vmatprep.subr.mxu0 0.0
        %1683 = vmatpush1.msra.mxu0 0.0
        %1684 = vmatprep.subr.mxu0 0.0
        %1685 = vmatpush1.msra.mxu0 0.0
        %1686 = vmatprep.subr.mxu0 0.0
        %1687 = vmatpush1.msra.mxu0 0.0
        %1688 = vmatprep.subr.mxu0 0.0
        %1689 = vmatpush1.msra.mxu0 0.0
        %1690 = vmatprep.subr.mxu0 0.0
        %1691 = vmatpush1.msra.mxu0 0.0
        %1692 = vmatprep.subr.mxu0 0.0
        %1693 = vmatpush1.msra.mxu0 0.0
        %1694 = vmatprep.subr.mxu0 0.0
        %1695 = vmatpush1.msra.mxu0 0.0
        %1696 = vmatprep.subr.mxu0 0.0
        %1697 = vmatpush1.msra.mxu0 0.0
        %1698 = vmatprep.subr.mxu0 0.0
        %1699 = vmatpush1.msra.mxu0 0.0
        %1700 = vmatprep.subr.mxu0 0.0
        %1701 = vmatpush1.msra.mxu0 0.0
        %1702 = vmatprep.subr.mxu0 0.0
        %1703 = vmatpush1.msra.mxu0 0.0
        %1704 = vmatprep.subr.mxu0 0.0
        %1705 = vmatpush1.msra.mxu0 0.0
        %1706 = vmatprep.subr.mxu0 0.0
        %1707 = vmatpush1.msra.mxu0 0.0
        %1708 = vmatprep.mubr.f32.mxu0 0.0
        %1709 = vmatmul.mubr.f32.gmra.mrb[0].mxu0 %v851
        %v1710 = vpop.f32.mrb[0].mxu0
        %v1711 = vadd.f32 %v1493, %v1710
        %v1712 = vpop.f32.mrb[0].mxu0
        %v1713 = vadd.f32 %v1495, %v1712
        %1714 = vmatprep.mubr.f32.mxu0 0.0
        %1715 = vmatmul.mubr.f32.gmra.mrb[0].mxu0 %v932
        %v1716 = vpop.f32.mrb[0].mxu0
        %v1717 = vadd.f32 %v1499, %v1716
        %v1718 = vpop.f32.mrb[0].mxu0
        %v1719 = vadd.f32 %v1501, %v1718
        %1720 = vmatprep.mubr.f32.mxu0 0.0
        %1721 = vmatmul.mubr.f32.gmra.mrb[0].mxu0 %v1013
        %v1722 = vpop.f32.mrb[0].mxu0
        %v1723 = vadd.f32 %v1505, %v1722
        %v1724 = vpop.f32.mrb[0].mxu0
        %v1725 = vadd.f32 %v1507, %v1724
        %1726 = vmatprep.mubr.f32.mxu0 0.0
        %1727 = vmatmul.mubr.f32.gmra.mrb[0].mxu0 %v1094
        %v1728 = vpop.f32.mrb[0].mxu0
        %v1729 = vadd.f32 %v1511, %v1728
        %v1730 = vpop.f32.mrb[0].mxu0
        %v1731 = vadd.f32 %v1513, %v1730
        %1732 = vmatprep.mubr.f32.mxu0 0.0
        %1733 = vmatmul.mubr.f32.gmra.mrb[0].mxu0 %v1175
        %v1734 = vpop.f32.mrb[0].mxu0
        %v1735 = vadd.f32 %v1517, %v1734
        %v1736 = vpop.f32.mrb[0].mxu0
        %v1737 = vadd.f32 %v1519, %v1736
        %1738 = vmatprep.mubr.f32.mxu0 0.0
        %1739 = vmatmul.mubr.f32.gmra.mrb[0].mxu0 %v1256
        %v1740 = vpop.f32.mrb[0].mxu0
        %v1741 = vadd.f32 %v1523, %v1740
        %v1742 = vpop.f32.mrb[0].mxu0
        %v1743 = vadd.f32 %v1525, %v1742
        %1744 = vmatprep.mubr.f32.mxu0 0.0
        %1745 = vmatmul.mubr.f32.gmra.mrb[0].mxu0 %v1337
        %v1746 = vpop.f32.mrb[0].mxu0
        %v1747 = vadd.f32 %v1529, %v1746
        %v1748 = vpop.f32.mrb[0].mxu0
        %v1749 = vadd.f32 %v1531, %v1748
        %1750 = vmatprep.mubr.f32.mxu0 0.0
        %1751 = vmatmul.mubr.f32.gmra.mrb[0].mxu0 %v1418
        %v1752 = vpop.f32.mrb[0].mxu0
        %v1753 = vadd.f32 %v1535, %v1752
        %v1754 = vpop.f32.mrb[0].mxu0
        %v1755 = vadd.f32 %v1537, %v1754
        %1756 = vdwg.mxu0
        %1757 = vmatprep.subr.mxu0 0.0
        %1758 = vmatpush1.msra.mxu0 %v425
        %1759 = vmatprep.subr.mxu0 0.0
        %1760 = vmatpush1.msra.mxu0 %v428
        %1761 = vmatprep.subr.mxu0 0.0
        %1762 = vmatpush1.msra.mxu0 %v431
        %1763 = vmatprep.subr.mxu0 0.0
        %1764 = vmatpush1.msra.mxu0 %v434
        %1765 = vmatprep.subr.mxu0 0.0
        %1766 = vmatpush1.msra.mxu0 %v437
        %1767 = vmatprep.subr.mxu0 0.0
        %1768 = vmatpush1.msra.mxu0 %v440
        %1769 = vmatprep.subr.mxu0 0.0
        %1770 = vmatpush1.msra.mxu0 %v443
        %1771 = vmatprep.subr.mxu0 0.0
        %1772 = vmatpush1.msra.mxu0 %v446
        %1773 = vmatprep.subr.mxu0 0.0
        %1774 = vmatpush1.msra.mxu0 %v449
        %1775 = vmatprep.subr.mxu0 0.0
        %1776 = vmatpush1.msra.mxu0 %v452
        %1777 = vmatprep.subr.mxu0 0.0
        %1778 = vmatpush1.msra.mxu0 %v455
        %1779 = vmatprep.subr.mxu0 0.0
        %1780 = vmatpush1.msra.mxu0 %v458
        %1781 = vmatprep.subr.mxu0 0.0
        %1782 = vmatpush1.msra.mxu0 %v461
        %1783 = vmatprep.subr.mxu0 0.0
        %1784 = vmatpush1.msra.mxu0 %v464
        %1785 = vmatprep.subr.mxu0 0.0
        %1786 = vmatpush1.msra.mxu0 %v467
        %1787 = vmatprep.subr.mxu0 0.0
        %1788 = vmatpush1.msra.mxu0 %v470
        %1789 = vmatprep.subr.mxu0 0.0
        %1790 = vmatpush1.msra.mxu0 0.0
        %1791 = vmatprep.subr.mxu0 0.0
        %1792 = vmatpush1.msra.mxu0 0.0
        %1793 = vmatprep.subr.mxu0 0.0
        %1794 = vmatpush1.msra.mxu0 0.0
        %1795 = vmatprep.subr.mxu0 0.0
        %1796 = vmatpush1.msra.mxu0 0.0
        %1797 = vmatprep.subr.mxu0 0.0
        %1798 = vmatpush1.msra.mxu0 0.0
        %1799 = vmatprep.subr.mxu0 0.0
        %1800 = vmatpush1.msra.mxu0 0.0
        %1801 = vmatprep.subr.mxu0 0.0
        %1802 = vmatpush1.msra.mxu0 0.0
        %1803 = vmatprep.subr.mxu0 0.0
        %1804 = vmatpush1.msra.mxu0 0.0
        %1805 = vmatprep.subr.mxu0 0.0
        %1806 = vmatpush1.msra.mxu0 0.0
        %1807 = vmatprep.subr.mxu0 0.0
        %1808 = vmatpush1.msra.mxu0 0.0
        %1809 = vmatprep.subr.mxu0 0.0
        %1810 = vmatpush1.msra.mxu0 0.0
        %1811 = vmatprep.subr.mxu0 0.0
        %1812 = vmatpush1.msra.mxu0 0.0
        %1813 = vmatprep.subr.mxu0 0.0
        %1814 = vmatpush1.msra.mxu0 0.0
        %1815 = vmatprep.subr.mxu0 0.0
        %1816 = vmatpush1.msra.mxu0 0.0
        %1817 = vmatprep.subr.mxu0 0.0
        %1818 = vmatpush1.msra.mxu0 0.0
        %1819 = vmatprep.subr.mxu0 0.0
        %1820 = vmatpush1.msra.mxu0 0.0
        %1821 = vmatprep.mubr.f32.mxu0 0.0
        %1822 = vmatmul.mubr.f32.gmra.mrb[0].mxu0 %v851
        %v1823 = vpop.f32.mrb[0].mxu0
        %v1824 = vadd.f32 %v1606, %v1823
        %v1825 = vpop.f32.mrb[0].mxu0
        %1826 = vmatprep.mubr.f32.mxu0 0.0
        %1827 = vmatmul.mubr.f32.gmra.mrb[0].mxu0 %v932
        %v1828 = vpop.f32.mrb[0].mxu0
        %v1829 = vadd.f32 %v1611, %v1828
        %v1830 = vpop.f32.mrb[0].mxu0
        %1831 = vmatprep.mubr.f32.mxu0 0.0
        %1832 = vmatmul.mubr.f32.gmra.mrb[0].mxu0 %v1013
        %v1833 = vpop.f32.mrb[0].mxu0
        %v1834 = vadd.f32 %v1616, %v1833
        %v1835 = vpop.f32.mrb[0].mxu0
        %1836 = vmatprep.mubr.f32.mxu0 0.0
        %1837 = vmatmul.mubr.f32.gmra.mrb[0].mxu0 %v1094
        %v1838 = vpop.f32.mrb[0].mxu0
        %v1839 = vadd.f32 %v1621, %v1838
        %v1840 = vpop.f32.mrb[0].mxu0
        %1841 = vmatprep.mubr.f32.mxu0 0.0
        %1842 = vmatmul.mubr.f32.gmra.mrb[0].mxu0 %v1175
        %v1843 = vpop.f32.mrb[0].mxu0
        %v1844 = vadd.f32 %v1626, %v1843
        %v1845 = vpop.f32.mrb[0].mxu0
        %1846 = vmatprep.mubr.f32.mxu0 0.0
        %1847 = vmatmul.mubr.f32.gmra.mrb[0].mxu0 %v1256
        %v1848 = vpop.f32.mrb[0].mxu0
        %v1849 = vadd.f32 %v1631, %v1848
        %v1850 = vpop.f32.mrb[0].mxu0
        %1851 = vmatprep.mubr.f32.mxu0 0.0
        %1852 = vmatmul.mubr.f32.gmra.mrb[0].mxu0 %v1337
        %v1853 = vpop.f32.mrb[0].mxu0
        %v1854 = vadd.f32 %v1636, %v1853
        %v1855 = vpop.f32.mrb[0].mxu0
        %1856 = vmatprep.mubr.f32.mxu0 0.0
        %1857 = vmatmul.mubr.f32.gmra.mrb[0].mxu0 %v1418
        %v1858 = vpop.f32.mrb[0].mxu0
        %v1859 = vadd.f32 %v1641, %v1858
        %v1860 = vpop.f32.mrb[0].mxu0
        %1861 = vdwg.mxu0
        %v1862 = vadd.f32 %v1711, %v739
        %v1863 = vadd.f32 %v1713, %v740
        %v1864 = vadd.f32 %v1824, %v741
        %v1865 = vadd.f32 %v1717, %v742
        %v1866 = vadd.f32 %v1719, %v743
        %v1867 = vadd.f32 %v1829, %v744
        %v1868 = vadd.f32 %v1723, %v745
        %v1869 = vadd.f32 %v1725, %v746
        %v1870 = vadd.f32 %v1834, %v747
        %v1871 = vadd.f32 %v1729, %v748
        %v1872 = vadd.f32 %v1731, %v749
        %v1873 = vadd.f32 %v1839, %v750
        %v1874 = vadd.f32 %v1735, %v751
        %v1875 = vadd.f32 %v1737, %v752
        %v1876 = vadd.f32 %v1844, %v753
        %v1877 = vadd.f32 %v1741, %v754
        %v1878 = vadd.f32 %v1743, %v755
        %v1879 = vadd.f32 %v1849, %v756
        %v1880 = vadd.f32 %v1747, %v757
        %v1881 = vadd.f32 %v1749, %v758
        %v1882 = vadd.f32 %v1854, %v759
        %v1883 = vadd.f32 %v1753, %v760
        %v1884 = vadd.f32 %v1755, %v761
        %v1885 = vadd.f32 %v1859, %v762
        %1886 = vmatprep.subr.mxu0 %v520
        %1887 = vmatpush1.msra.mxu0 %v519
        %1888 = vmatprep.subr.mxu0 %v523
        %1889 = vmatpush1.msra.mxu0 %v522
        %1890 = vmatprep.subr.mxu0 %v526
        %1891 = vmatpush1.msra.mxu0 %v525
        %1892 = vmatprep.subr.mxu0 %v529
        %1893 = vmatpush1.msra.mxu0 %v528
        %1894 = vmatprep.subr.mxu0 %v532
        %1895 = vmatpush1.msra.mxu0 %v531
        %1896 = vmatprep.subr.mxu0 %v535
        %1897 = vmatpush1.msra.mxu0 %v534
        %1898 = vmatprep.subr.mxu0 %v538
        %1899 = vmatpush1.msra.mxu0 %v537
        %1900 = vmatprep.subr.mxu0 %v541
        %1901 = vmatpush1.msra.mxu0 %v540
        %1902 = vmatprep.subr.mxu0 %v544
        %1903 = vmatpush1.msra.mxu0 %v543
        %1904 = vmatprep.subr.mxu0 %v547
        %1905 = vmatpush1.msra.mxu0 %v546
        %1906 = vmatprep.subr.mxu0 %v550
        %1907 = vmatpush1.msra.mxu0 %v549
        %1908 = vmatprep.subr.mxu0 %v553
        %1909 = vmatpush1.msra.mxu0 %v552
        %1910 = vmatprep.subr.mxu0 %v556
        %1911 = vmatpush1.msra.mxu0 %v555
        %1912 = vmatprep.subr.mxu0 %v559
        %1913 = vmatpush1.msra.mxu0 %v558
        %1914 = vmatprep.subr.mxu0 %v562
        %1915 = vmatpush1.msra.mxu0 %v561
        %1916 = vmatprep.subr.mxu0 %v565
        %1917 = vmatpush1.msra.mxu0 %v564
        %1918 = vmatprep.subr.mxu0 0.0
        %1919 = vmatpush1.msra.mxu0 0.0
        %1920 = vmatprep.subr.mxu0 0.0
        %1921 = vmatpush1.msra.mxu0 0.0
        %1922 = vmatprep.subr.mxu0 0.0
        %1923 = vmatpush1.msra.mxu0 0.0
        %1924 = vmatprep.subr.mxu0 0.0
        %1925 = vmatpush1.msra.mxu0 0.0
        %1926 = vmatprep.subr.mxu0 0.0
        %1927 = vmatpush1.msra.mxu0 0.0
        %1928 = vmatprep.subr.mxu0 0.0
        %1929 = vmatpush1.msra.mxu0 0.0
        %1930 = vmatprep.subr.mxu0 0.0
        %1931 = vmatpush1.msra.mxu0 0.0
        %1932 = vmatprep.subr.mxu0 0.0
        %1933 = vmatpush1.msra.mxu0 0.0
        %1934 = vmatprep.subr.mxu0 0.0
        %1935 = vmatpush1.msra.mxu0 0.0
        %1936 = vmatprep.subr.mxu0 0.0
        %1937 = vmatpush1.msra.mxu0 0.0
        %1938 = vmatprep.subr.mxu0 0.0
        %1939 = vmatpush1.msra.mxu0 0.0
        %1940 = vmatprep.subr.mxu0 0.0
        %1941 = vmatpush1.msra.mxu0 0.0
        %1942 = vmatprep.subr.mxu0 0.0
        %1943 = vmatpush1.msra.mxu0 0.0
        %1944 = vmatprep.subr.mxu0 0.0
        %1945 = vmatpush1.msra.mxu0 0.0
        %1946 = vmatprep.subr.mxu0 0.0
        %1947 = vmatpush1.msra.mxu0 0.0
        %1948 = vmatprep.subr.mxu0 0.0
        %1949 = vmatpush1.msra.mxu0 0.0
        %1950 = vmatprep.mubr.f32.mxu0 0.0
        %1951 = vmatmul.mubr.f32.gmra.mrb[0].mxu0 %v770
        %v1952 = vpop.f32.mrb[0].mxu0
        %v1953 = vadd.f32 0.0, %v1952
        %v1954 = vpop.f32.mrb[0].mxu0
        %v1955 = vadd.f32 0.0, %v1954
        %1956 = vmatprep.mubr.f32.mxu0 0.0
        %1957 = vmatmul.mubr.f32.gmra.mrb[0].mxu0 %v771
        %v1958 = vpop.f32.mrb[0].mxu0
        %v1959 = vadd.f32 0.0, %v1958
        %v1960 = vpop.f32.mrb[0].mxu0
        %v1961 = vadd.f32 0.0, %v1960
        %1962 = vmatprep.mubr.f32.mxu0 0.0
        %1963 = vmatmul.mubr.f32.gmra.mrb[0].mxu0 %v772
        %v1964 = vpop.f32.mrb[0].mxu0
        %v1965 = vadd.f32 0.0, %v1964
        %v1966 = vpop.f32.mrb[0].mxu0
        %v1967 = vadd.f32 0.0, %v1966
        %1968 = vmatprep.mubr.f32.mxu0 0.0
        %1969 = vmatmul.mubr.f32.gmra.mrb[0].mxu0 %v773
        %v1970 = vpop.f32.mrb[0].mxu0
        %v1971 = vadd.f32 0.0, %v1970
        %v1972 = vpop.f32.mrb[0].mxu0
        %v1973 = vadd.f32 0.0, %v1972
        %1974 = vmatprep.mubr.f32.mxu0 0.0
        %1975 = vmatmul.mubr.f32.gmra.mrb[0].mxu0 %v774
        %v1976 = vpop.f32.mrb[0].mxu0
        %v1977 = vadd.f32 0.0, %v1976
        %v1978 = vpop.f32.mrb[0].mxu0
        %v1979 = vadd.f32 0.0, %v1978
        %1980 = vmatprep.mubr.f32.mxu0 0.0
        %1981 = vmatmul.mubr.f32.gmra.mrb[0].mxu0 %v775
        %v1982 = vpop.f32.mrb[0].mxu0
        %v1983 = vadd.f32 0.0, %v1982
        %v1984 = vpop.f32.mrb[0].mxu0
        %v1985 = vadd.f32 0.0, %v1984
        %1986 = vmatprep.mubr.f32.mxu0 0.0
        %1987 = vmatmul.mubr.f32.gmra.mrb[0].mxu0 %v776
        %v1988 = vpop.f32.mrb[0].mxu0
        %v1989 = vadd.f32 0.0, %v1988
        %v1990 = vpop.f32.mrb[0].mxu0
        %v1991 = vadd.f32 0.0, %v1990
        %1992 = vmatprep.mubr.f32.mxu0 0.0
        %1993 = vmatmul.mubr.f32.gmra.mrb[0].mxu0 %v777
        %v1994 = vpop.f32.mrb[0].mxu0
        %v1995 = vadd.f32 0.0, %v1994
        %v1996 = vpop.f32.mrb[0].mxu0
        %v1997 = vadd.f32 0.0, %v1996
        %1998 = vdwg.mxu0
        %1999 = vmatprep.subr.mxu0 0.0
        %2000 = vmatpush1.msra.mxu0 %v521
        %2001 = vmatprep.subr.mxu0 0.0
        %2002 = vmatpush1.msra.mxu0 %v524
        %2003 = vmatprep.subr.mxu0 0.0
        %2004 = vmatpush1.msra.mxu0 %v527
        %2005 = vmatprep.subr.mxu0 0.0
        %2006 = vmatpush1.msra.mxu0 %v530
        %2007 = vmatprep.subr.mxu0 0.0
        %2008 = vmatpush1.msra.mxu0 %v533
        %2009 = vmatprep.subr.mxu0 0.0
        %2010 = vmatpush1.msra.mxu0 %v536
        %2011 = vmatprep.subr.mxu0 0.0
        %2012 = vmatpush1.msra.mxu0 %v539
        %2013 = vmatprep.subr.mxu0 0.0
        %2014 = vmatpush1.msra.mxu0 %v542
        %2015 = vmatprep.subr.mxu0 0.0
        %2016 = vmatpush1.msra.mxu0 %v545
        %2017 = vmatprep.subr.mxu0 0.0
        %2018 = vmatpush1.msra.mxu0 %v548
        %2019 = vmatprep.subr.mxu0 0.0
        %2020 = vmatpush1.msra.mxu0 %v551
        %2021 = vmatprep.subr.mxu0 0.0
        %2022 = vmatpush1.msra.mxu0 %v554
        %2023 = vmatprep.subr.mxu0 0.0
        %2024 = vmatpush1.msra.mxu0 %v557
        %2025 = vmatprep.subr.mxu0 0.0
        %2026 = vmatpush1.msra.mxu0 %v560
        %2027 = vmatprep.subr.mxu0 0.0
        %2028 = vmatpush1.msra.mxu0 %v563
        %2029 = vmatprep.subr.mxu0 0.0
        %2030 = vmatpush1.msra.mxu0 %v566
        %2031 = vmatprep.subr.mxu0 0.0
        %2032 = vmatpush1.msra.mxu0 0.0
        %2033 = vmatprep.subr.mxu0 0.0
        %2034 = vmatpush1.msra.mxu0 0.0
        %2035 = vmatprep.subr.mxu0 0.0
        %2036 = vmatpush1.msra.mxu0 0.0
        %2037 = vmatprep.subr.mxu0 0.0
        %2038 = vmatpush1.msra.mxu0 0.0
        %2039 = vmatprep.subr.mxu0 0.0
        %2040 = vmatpush1.msra.mxu0 0.0
        %2041 = vmatprep.subr.mxu0 0.0
        %2042 = vmatpush1.msra.mxu0 0.0
        %2043 = vmatprep.subr.mxu0 0.0
        %2044 = vmatpush1.msra.mxu0 0.0
        %2045 = vmatprep.subr.mxu0 0.0
        %2046 = vmatpush1.msra.mxu0 0.0
        %2047 = vmatprep.subr.mxu0 0.0
        %2048 = vmatpush1.msra.mxu0 0.0
        %2049 = vmatprep.subr.mxu0 0.0
        %2050 = vmatpush1.msra.mxu0 0.0
        %2051 = vmatprep.subr.mxu0 0.0
        %2052 = vmatpush1.msra.mxu0 0.0
        %2053 = vmatprep.subr.mxu0 0.0
        %2054 = vmatpush1.msra.mxu0 0.0
        %2055 = vmatprep.subr.mxu0 0.0
        %2056 = vmatpush1.msra.mxu0 0.0
        %2057 = vmatprep.subr.mxu0 0.0
        %2058 = vmatpush1.msra.mxu0 0.0
        %2059 = vmatprep.subr.mxu0 0.0
        %2060 = vmatpush1.msra.mxu0 0.0
        %2061 = vmatprep.subr.mxu0 0.0
        %2062 = vmatpush1.msra.mxu0 0.0
        %2063 = vmatprep.mubr.f32.mxu0 0.0
        %2064 = vmatmul.mubr.f32.gmra.mrb[0].mxu0 %v770
        %v2065 = vpop.f32.mrb[0].mxu0
        %v2066 = vadd.f32 0.0, %v2065
        %v2067 = vpop.f32.mrb[0].mxu0
        %2068 = vmatprep.mubr.f32.mxu0 0.0
        %2069 = vmatmul.mubr.f32.gmra.mrb[0].mxu0 %v771
        %v2070 = vpop.f32.mrb[0].mxu0
        %v2071 = vadd.f32 0.0, %v2070
        %v2072 = vpop.f32.mrb[0].mxu0
        %2073 = vmatprep.mubr.f32.mxu0 0.0
        %2074 = vmatmul.mubr.f32.gmra.mrb[0].mxu0 %v772
        %v2075 = vpop.f32.mrb[0].mxu0
        %v2076 = vadd.f32 0.0, %v2075
        %v2077 = vpop.f32.mrb[0].mxu0
        %2078 = vmatprep.mubr.f32.mxu0 0.0
        %2079 = vmatmul.mubr.f32.gmra.mrb[0].mxu0 %v773
        %v2080 = vpop.f32.mrb[0].mxu0
        %v2081 = vadd.f32 0.0, %v2080
        %v2082 = vpop.f32.mrb[0].mxu0
        %2083 = vmatprep.mubr.f32.mxu0 0.0
        %2084 = vmatmul.mubr.f32.gmra.mrb[0].mxu0 %v774
        %v2085 = vpop.f32.mrb[0].mxu0
        %v2086 = vadd.f32 0.0, %v2085
        %v2087 = vpop.f32.mrb[0].mxu0
        %2088 = vmatprep.mubr.f32.mxu0 0.0
        %2089 = vmatmul.mubr.f32.gmra.mrb[0].mxu0 %v775
        %v2090 = vpop.f32.mrb[0].mxu0
        %v2091 = vadd.f32 0.0, %v2090
        %v2092 = vpop.f32.mrb[0].mxu0
        %2093 = vmatprep.mubr.f32.mxu0 0.0
        %2094 = vmatmul.mubr.f32.gmra.mrb[0].mxu0 %v776
        %v2095 = vpop.f32.mrb[0].mxu0
        %v2096 = vadd.f32 0.0, %v2095
        %v2097 = vpop.f32.mrb[0].mxu0
        %2098 = vmatprep.mubr.f32.mxu0 0.0
        %2099 = vmatmul.mubr.f32.gmra.mrb[0].mxu0 %v777
        %v2100 = vpop.f32.mrb[0].mxu0
        %v2101 = vadd.f32 0.0, %v2100
        %v2102 = vpop.f32.mrb[0].mxu0
        %2103 = vdwg.mxu0
        %v2104 = vadd.f32 %v2066, %v768
        %v2105 = vadd.f32 %v2071, %v768
        %v2106 = vadd.f32 %v2076, %v768
        %v2107 = vadd.f32 %v2081, %v768
        %v2108 = vadd.f32 %v2086, %v768
        %v2109 = vadd.f32 %v2091, %v768
        %v2110 = vadd.f32 %v2096, %v768
        %v2111 = vadd.f32 %v2101, %v768
        %v2112 = vadd.f32 %v1862, %v1953
        %v2113 = vadd.f32 %v1865, %v1959
        %v2114 = vadd.f32 %v1868, %v1965
        %v2115 = vadd.f32 %v1871, %v1971
        %v2116 = vadd.f32 %v1874, %v1977
        %v2117 = vadd.f32 %v1877, %v1983
        %v2118 = vadd.f32 %v1880, %v1989
        %v2119 = vadd.f32 %v1883, %v1995
        %v2120 = vxor.u32 %v2112, 2147483648
        %v2121 = vxor.u32 %v2113, 2147483648
        %v2122 = vxor.u32 %v2114, 2147483648
        %v2123 = vxor.u32 %v2115, 2147483648
        %v2124 = vxor.u32 %v2116, 2147483648
        %v2125 = vxor.u32 %v2117, 2147483648
        %v2126 = vxor.u32 %v2118, 2147483648
        %v2127 = vxor.u32 %v2119, 2147483648
        %v2128 = vmul.f32 %v2120, 1.442695
        %v2129 = vpow.pop %v2128
        %v2130 = vmul.f32 %v2121, 1.442695
        %v2131 = vpow.pop %v2130
        %v2132 = vmul.f32 %v2122, 1.442695
        %v2133 = vpow.pop %v2132
        %v2134 = vmul.f32 %v2123, 1.442695
        %v2135 = vpow.pop %v2134
        %v2136 = vmul.f32 %v2124, 1.442695
        %v2137 = vpow.pop %v2136
        %v2138 = vmul.f32 %v2125, 1.442695
        %v2139 = vpow.pop %v2138
        %v2140 = vmul.f32 %v2126, 1.442695
        %v2141 = vpow.pop %v2140
        %v2142 = vmul.f32 %v2127, 1.442695
        %v2143 = vpow.pop %v2142
        %v2144 = vadd.f32 %v2129, 1.0
        %v2145 = vadd.f32 %v2131, 1.0
        %v2146 = vadd.f32 %v2133, 1.0
        %v2147 = vadd.f32 %v2135, 1.0
        %v2148 = vadd.f32 %v2137, 1.0
        %v2149 = vadd.f32 %v2139, 1.0
        %v2150 = vadd.f32 %v2141, 1.0
        %v2151 = vadd.f32 %v2143, 1.0
        %v2152 = vrcp.pop %v2144
        %v2153 = vmul.f32 1.0, %v2152
        %v2154 = vrcp.pop %v2145
        %v2155 = vmul.f32 1.0, %v2154
        %v2156 = vrcp.pop %v2146
        %v2157 = vmul.f32 1.0, %v2156
        %v2158 = vrcp.pop %v2147
        %v2159 = vmul.f32 1.0, %v2158
        %v2160 = vrcp.pop %v2148
        %v2161 = vmul.f32 1.0, %v2160
        %v2162 = vrcp.pop %v2149
        %v2163 = vmul.f32 1.0, %v2162
        %v2164 = vrcp.pop %v2150
        %v2165 = vmul.f32 1.0, %v2164
        %v2166 = vrcp.pop %v2151
        %v2167 = vmul.f32 1.0, %v2166
        %v2168 = vadd.f32 %v1863, %v1955
        %v2169 = vadd.f32 %v1866, %v1961
        %v2170 = vadd.f32 %v1869, %v1967
        %v2171 = vadd.f32 %v1872, %v1973
        %v2172 = vadd.f32 %v1875, %v1979
        %v2173 = vadd.f32 %v1878, %v1985
        %v2174 = vadd.f32 %v1881, %v1991
        %v2175 = vadd.f32 %v1884, %v1997
        %v2176 = vxor.u32 %v2168, 2147483648
        %v2177 = vxor.u32 %v2169, 2147483648
        %v2178 = vxor.u32 %v2170, 2147483648
        %v2179 = vxor.u32 %v2171, 2147483648
        %v2180 = vxor.u32 %v2172, 2147483648
        %v2181 = vxor.u32 %v2173, 2147483648
        %v2182 = vxor.u32 %v2174, 2147483648
        %v2183 = vxor.u32 %v2175, 2147483648
        %v2184 = vmul.f32 %v2176, 1.442695
        %v2185 = vpow.pop %v2184
        %v2186 = vmul.f32 %v2177, 1.442695
        %v2187 = vpow.pop %v2186
        %v2188 = vmul.f32 %v2178, 1.442695
        %v2189 = vpow.pop %v2188
        %v2190 = vmul.f32 %v2179, 1.442695
        %v2191 = vpow.pop %v2190
        %v2192 = vmul.f32 %v2180, 1.442695
        %v2193 = vpow.pop %v2192
        %v2194 = vmul.f32 %v2181, 1.442695
        %v2195 = vpow.pop %v2194
        %v2196 = vmul.f32 %v2182, 1.442695
        %v2197 = vpow.pop %v2196
        %v2198 = vmul.f32 %v2183, 1.442695
        %v2199 = vpow.pop %v2198
        %v2200 = vadd.f32 %v2185, 1.0
        %v2201 = vadd.f32 %v2187, 1.0
        %v2202 = vadd.f32 %v2189, 1.0
        %v2203 = vadd.f32 %v2191, 1.0
        %v2204 = vadd.f32 %v2193, 1.0
        %v2205 = vadd.f32 %v2195, 1.0
        %v2206 = vadd.f32 %v2197, 1.0
        %v2207 = vadd.f32 %v2199, 1.0
        %v2208 = vrcp.pop %v2200
        %v2209 = vmul.f32 1.0, %v2208
        %v2210 = vrcp.pop %v2201
        %v2211 = vmul.f32 1.0, %v2210
        %v2212 = vrcp.pop %v2202
        %v2213 = vmul.f32 1.0, %v2212
        %v2214 = vrcp.pop %v2203
        %v2215 = vmul.f32 1.0, %v2214
        %v2216 = vrcp.pop %v2204
        %v2217 = vmul.f32 1.0, %v2216
        %v2218 = vrcp.pop %v2205
        %v2219 = vmul.f32 1.0, %v2218
        %v2220 = vrcp.pop %v2206
        %v2221 = vmul.f32 1.0, %v2220
        %v2222 = vrcp.pop %v2207
        %v2223 = vmul.f32 1.0, %v2222
        %v2224 = vmul.f32 %v2153, %v2104
        %v2225 = vmul.f32 %v2155, %v2105
        %v2226 = vmul.f32 %v2157, %v2106
        %v2227 = vmul.f32 %v2159, %v2107
        %v2228 = vmul.f32 %v2161, %v2108
        %v2229 = vmul.f32 %v2163, %v2109
        %v2230 = vmul.f32 %v2165, %v2110
        %v2231 = vmul.f32 %v2167, %v2111
        %v2232 = vadd.f32 %v1864, %v2224
        %v2233 = vadd.f32 %v1867, %v2225
        %v2234 = vadd.f32 %v1870, %v2226
        %v2235 = vadd.f32 %v1873, %v2227
        %v2236 = vadd.f32 %v1876, %v2228
        %v2237 = vadd.f32 %v1879, %v2229
        %v2238 = vadd.f32 %v1882, %v2230
        %v2239 = vadd.f32 %v1885, %v2231
        %v2240 = vtanh.pop %v2232
        %v2241 = vtanh.pop %v2233
        %v2242 = vtanh.pop %v2234
        %v2243 = vtanh.pop %v2235
        %v2244 = vtanh.pop %v2236
        %v2245 = vtanh.pop %v2237
        %v2246 = vtanh.pop %v2238
        %v2247 = vtanh.pop %v2239
        %v2248 = vsub.f32 %v770, %v2240
        %v2249 = vsub.f32 %v771, %v2241
        %v2250 = vsub.f32 %v772, %v2242
        %v2251 = vsub.f32 %v773, %v2243
        %v2252 = vsub.f32 %v774, %v2244
        %v2253 = vsub.f32 %v775, %v2245
        %v2254 = vsub.f32 %v776, %v2246
        %v2255 = vsub.f32 %v777, %v2247
        %v2256 = vmul.f32 %v2209, %v2248
        %v2257 = vmul.f32 %v2211, %v2249
        %v2258 = vmul.f32 %v2213, %v2250
        %v2259 = vmul.f32 %v2215, %v2251
        %v2260 = vmul.f32 %v2217, %v2252
        %v2261 = vmul.f32 %v2219, %v2253
        %v2262 = vmul.f32 %v2221, %v2254
        %v2263 = vmul.f32 %v2223, %v2255
        %v2264 = vadd.f32 %v2240, %v2256
        %v2265 = vadd.f32 %v2241, %v2257
        %v2266 = vadd.f32 %v2242, %v2258
        %v2267 = vadd.f32 %v2243, %v2259
        %v2268 = vadd.f32 %v2244, %v2260
        %v2269 = vadd.f32 %v2245, %v2261
        %v2270 = vadd.f32 %v2246, %v2262
        %v2271 = vadd.f32 %v2247, %v2263
        %2272 = vmatprep.subr.mxu0 0.0
        %2273 = vmatpush1.msra.mxu0 %v2264
        %2274 = vmatprep.subr.mxu0 0.0
        %2275 = vmatpush1.msra.mxu0 0.0
        %2276 = vmatprep.subr.mxu0 0.0
        %2277 = vmatpush1.msra.mxu0 0.0
        %2278 = vmatprep.subr.mxu0 0.0
        %2279 = vmatpush1.msra.mxu0 0.0
        %2280 = vmatprep.subr.mxu0 0.0
        %2281 = vmatpush1.msra.mxu0 0.0
        %2282 = vmatprep.subr.mxu0 0.0
        %2283 = vmatpush1.msra.mxu0 0.0
        %2284 = vmatprep.subr.mxu0 0.0
        %2285 = vmatpush1.msra.mxu0 0.0
        %2286 = vmatprep.subr.mxu0 0.0
        %2287 = vmatpush1.msra.mxu0 0.0
        %2288 = vmatprep.subr.mxu0 0.0
        %2289 = vmatpush1.msra.mxu0 0.0
        %2290 = vmatprep.subr.mxu0 0.0
        %2291 = vmatpush1.msra.mxu0 0.0
        %2292 = vmatprep.subr.mxu0 0.0
        %2293 = vmatpush1.msra.mxu0 0.0
        %2294 = vmatprep.subr.mxu0 0.0
        %2295 = vmatpush1.msra.mxu0 0.0
        %2296 = vmatprep.subr.mxu0 0.0
        %2297 = vmatpush1.msra.mxu0 0.0
        %2298 = vmatprep.subr.mxu0 0.0
        %2299 = vmatpush1.msra.mxu0 0.0
        %2300 = vmatprep.subr.mxu0 0.0
        %2301 = vmatpush1.msra.mxu0 0.0
        %2302 = vmatprep.subr.mxu0 0.0
        %2303 = vmatpush1.msra.mxu0 0.0
        %2304 = vmatprep.subr.mxu0 0.0
        %2305 = vmatpush1.msra.mxu0 0.0
        %2306 = vmatprep.subr.mxu0 0.0
        %2307 = vmatpush1.msra.mxu0 0.0
        %2308 = vmatprep.subr.mxu0 0.0
        %2309 = vmatpush1.msra.mxu0 0.0
        %2310 = vmatprep.subr.mxu0 0.0
        %2311 = vmatpush1.msra.mxu0 0.0
        %2312 = vmatprep.subr.mxu0 0.0
        %2313 = vmatpush1.msra.mxu0 0.0
        %2314 = vmatprep.subr.mxu0 0.0
        %2315 = vmatpush1.msra.mxu0 0.0
        %2316 = vmatprep.subr.mxu0 0.0
        %2317 = vmatpush1.msra.mxu0 0.0
        %2318 = vmatprep.subr.mxu0 0.0
        %2319 = vmatpush1.msra.mxu0 0.0
        %2320 = vmatprep.subr.mxu0 0.0
        %2321 = vmatpush1.msra.mxu0 0.0
        %2322 = vmatprep.subr.mxu0 0.0
        %2323 = vmatpush1.msra.mxu0 0.0
        %2324 = vmatprep.subr.mxu0 0.0
        %2325 = vmatpush1.msra.mxu0 0.0
        %2326 = vmatprep.subr.mxu0 0.0
        %2327 = vmatpush1.msra.mxu0 0.0
        %2328 = vmatprep.subr.mxu0 0.0
        %2329 = vmatpush1.msra.mxu0 0.0
        %2330 = vmatprep.subr.mxu0 0.0
        %2331 = vmatpush1.msra.mxu0 0.0
        %2332 = vmatprep.subr.mxu0 0.0
        %2333 = vmatpush1.msra.mxu0 0.0
        %2334 = vmatprep.subr.mxu0 0.0
        %2335 = vmatpush1.msra.mxu0 0.0
        %2336 = vmatprep.mubr.f32.mxu0 0.0
        %2337 = vmatmul.mubr.f32.gmra.mrb[0].mxu0 %v779
        %v2338 = vpop.f32.mrb[0].mxu0
        %v2339 = vadd.f32 0.0, %v2338
        %v2340 = vpop.f32.mrb[0].mxu0
        %2341 = vmatprep.mubr.f32.mxu0 0.0
        %2342 = vmatmul.mubr.f32.gmra.mrb[0].mxu0 %v782
        %v2343 = vpop.f32.mrb[0].mxu0
        %v2344 = vadd.f32 0.0, %v2343
        %v2345 = vpop.f32.mrb[0].mxu0
        %2346 = vdwg.mxu0
        %2347 = vmatprep.subr.mxu0 0.0
        %2348 = vmatpush1.msra.mxu0 %v2265
        %2349 = vmatprep.subr.mxu0 0.0
        %2350 = vmatpush1.msra.mxu0 0.0
        %2351 = vmatprep.subr.mxu0 0.0
        %2352 = vmatpush1.msra.mxu0 0.0
        %2353 = vmatprep.subr.mxu0 0.0
        %2354 = vmatpush1.msra.mxu0 0.0
        %2355 = vmatprep.subr.mxu0 0.0
        %2356 = vmatpush1.msra.mxu0 0.0
        %2357 = vmatprep.subr.mxu0 0.0
        %2358 = vmatpush1.msra.mxu0 0.0
        %2359 = vmatprep.subr.mxu0 0.0
        %2360 = vmatpush1.msra.mxu0 0.0
        %2361 = vmatprep.subr.mxu0 0.0
        %2362 = vmatpush1.msra.mxu0 0.0
        %2363 = vmatprep.subr.mxu0 0.0
        %2364 = vmatpush1.msra.mxu0 0.0
        %2365 = vmatprep.subr.mxu0 0.0
        %2366 = vmatpush1.msra.mxu0 0.0
        %2367 = vmatprep.subr.mxu0 0.0
        %2368 = vmatpush1.msra.mxu0 0.0
        %2369 = vmatprep.subr.mxu0 0.0
        %2370 = vmatpush1.msra.mxu0 0.0
        %2371 = vmatprep.subr.mxu0 0.0
        %2372 = vmatpush1.msra.mxu0 0.0
        %2373 = vmatprep.subr.mxu0 0.0
        %2374 = vmatpush1.msra.mxu0 0.0
        %2375 = vmatprep.subr.mxu0 0.0
        %2376 = vmatpush1.msra.mxu0 0.0
        %2377 = vmatprep.subr.mxu0 0.0
        %2378 = vmatpush1.msra.mxu0 0.0
        %2379 = vmatprep.subr.mxu0 0.0
        %2380 = vmatpush1.msra.mxu0 0.0
        %2381 = vmatprep.subr.mxu0 0.0
        %2382 = vmatpush1.msra.mxu0 0.0
        %2383 = vmatprep.subr.mxu0 0.0
        %2384 = vmatpush1.msra.mxu0 0.0
        %2385 = vmatprep.subr.mxu0 0.0
        %2386 = vmatpush1.msra.mxu0 0.0
        %2387 = vmatprep.subr.mxu0 0.0
        %2388 = vmatpush1.msra.mxu0 0.0
        %2389 = vmatprep.subr.mxu0 0.0
        %2390 = vmatpush1.msra.mxu0 0.0
        %2391 = vmatprep.subr.mxu0 0.0
        %2392 = vmatpush1.msra.mxu0 0.0
        %2393 = vmatprep.subr.mxu0 0.0
        %2394 = vmatpush1.msra.mxu0 0.0
        %2395 = vmatprep.subr.mxu0 0.0
        %2396 = vmatpush1.msra.mxu0 0.0
        %2397 = vmatprep.subr.mxu0 0.0
        %2398 = vmatpush1.msra.mxu0 0.0
        %2399 = vmatprep.subr.mxu0 0.0
        %2400 = vmatpush1.msra.mxu0 0.0
        %2401 = vmatprep.subr.mxu0 0.0
        %2402 = vmatpush1.msra.mxu0 0.0
        %2403 = vmatprep.subr.mxu0 0.0
        %2404 = vmatpush1.msra.mxu0 0.0
        %2405 = vmatprep.subr.mxu0 0.0
        %2406 = vmatpush1.msra.mxu0 0.0
        %2407 = vmatprep.subr.mxu0 0.0
        %2408 = vmatpush1.msra.mxu0 0.0
        %2409 = vmatprep.subr.mxu0 0.0
        %2410 = vmatpush1.msra.mxu0 0.0
        %2411 = vmatprep.mubr.f32.mxu0 0.0
        %2412 = vmatmul.mubr.f32.gmra.mrb[0].mxu0 %v860
        %v2413 = vpop.f32.mrb[0].mxu0
        %v2414 = vadd.f32 0.0, %v2413
        %v2415 = vpop.f32.mrb[0].mxu0
        %2416 = vmatprep.mubr.f32.mxu0 0.0
        %2417 = vmatmul.mubr.f32.gmra.mrb[0].mxu0 %v863
        %v2418 = vpop.f32.mrb[0].mxu0
        %v2419 = vadd.f32 0.0, %v2418
        %v2420 = vpop.f32.mrb[0].mxu0
        %2421 = vdwg.mxu0
        %2422 = vmatprep.subr.mxu0 0.0
        %2423 = vmatpush1.msra.mxu0 %v2266
        %2424 = vmatprep.subr.mxu0 0.0
        %2425 = vmatpush1.msra.mxu0 0.0
        %2426 = vmatprep.subr.mxu0 0.0
        %2427 = vmatpush1.msra.mxu0 0.0
        %2428 = vmatprep.subr.mxu0 0.0
        %2429 = vmatpush1.msra.mxu0 0.0
        %2430 = vmatprep.subr.mxu0 0.0
        %2431 = vmatpush1.msra.mxu0 0.0
        %2432 = vmatprep.subr.mxu0 0.0
        %2433 = vmatpush1.msra.mxu0 0.0
        %2434 = vmatprep.subr.mxu0 0.0
        %2435 = vmatpush1.msra.mxu0 0.0
        %2436 = vmatprep.subr.mxu0 0.0
        %2437 = vmatpush1.msra.mxu0 0.0
        %2438 = vmatprep.subr.mxu0 0.0
        %2439 = vmatpush1.msra.mxu0 0.0
        %2440 = vmatprep.subr.mxu0 0.0
        %2441 = vmatpush1.msra.mxu0 0.0
        %2442 = vmatprep.subr.mxu0 0.0
        %2443 = vmatpush1.msra.mxu0 0.0
        %2444 = vmatprep.subr.mxu0 0.0
        %2445 = vmatpush1.msra.mxu0 0.0
        %2446 = vmatprep.subr.mxu0 0.0
        %2447 = vmatpush1.msra.mxu0 0.0
        %2448 = vmatprep.subr.mxu0 0.0
        %2449 = vmatpush1.msra.mxu0 0.0
        %2450 = vmatprep.subr.mxu0 0.0
        %2451 = vmatpush1.msra.mxu0 0.0
        %2452 = vmatprep.subr.mxu0 0.0
        %2453 = vmatpush1.msra.mxu0 0.0
        %2454 = vmatprep.subr.mxu0 0.0
        %2455 = vmatpush1.msra.mxu0 0.0
        %2456 = vmatprep.subr.mxu0 0.0
        %2457 = vmatpush1.msra.mxu0 0.0
        %2458 = vmatprep.subr.mxu0 0.0
        %2459 = vmatpush1.msra.mxu0 0.0
        %2460 = vmatprep.subr.mxu0 0.0
        %2461 = vmatpush1.msra.mxu0 0.0
        %2462 = vmatprep.subr.mxu0 0.0
        %2463 = vmatpush1.msra.mxu0 0.0
        %2464 = vmatprep.subr.mxu0 0.0
        %2465 = vmatpush1.msra.mxu0 0.0
        %2466 = vmatprep.subr.mxu0 0.0
        %2467 = vmatpush1.msra.mxu0 0.0
        %2468 = vmatprep.subr.mxu0 0.0
        %2469 = vmatpush1.msra.mxu0 0.0
        %2470 = vmatprep.subr.mxu0 0.0
        %2471 = vmatpush1.msra.mxu0 0.0
        %2472 = vmatprep.subr.mxu0 0.0
        %2473 = vmatpush1.msra.mxu0 0.0
        %2474 = vmatprep.subr.mxu0 0.0
        %2475 = vmatpush1.msra.mxu0 0.0
        %2476 = vmatprep.subr.mxu0 0.0
        %2477 = vmatpush1.msra.mxu0 0.0
        %2478 = vmatprep.subr.mxu0 0.0
        %2479 = vmatpush1.msra.mxu0 0.0
        %2480 = vmatprep.subr.mxu0 0.0
        %2481 = vmatpush1.msra.mxu0 0.0
        %2482 = vmatprep.subr.mxu0 0.0
        %2483 = vmatpush1.msra.mxu0 0.0
        %2484 = vmatprep.subr.mxu0 0.0
        %2485 = vmatpush1.msra.mxu0 0.0
        %2486 = vmatprep.mubr.f32.mxu0 0.0
        %2487 = vmatmul.mubr.f32.gmra.mrb[0].mxu0 %v941
        %v2488 = vpop.f32.mrb[0].mxu0
        %v2489 = vadd.f32 0.0, %v2488
        %v2490 = vpop.f32.mrb[0].mxu0
        %2491 = vmatprep.mubr.f32.mxu0 0.0
        %2492 = vmatmul.mubr.f32.gmra.mrb[0].mxu0 %v944
        %v2493 = vpop.f32.mrb[0].mxu0
        %v2494 = vadd.f32 0.0, %v2493
        %v2495 = vpop.f32.mrb[0].mxu0
        %2496 = vdwg.mxu0
        %2497 = vmatprep.subr.mxu0 0.0
        %2498 = vmatpush1.msra.mxu0 %v2267
        %2499 = vmatprep.subr.mxu0 0.0
        %2500 = vmatpush1.msra.mxu0 0.0
        %2501 = vmatprep.subr.mxu0 0.0
        %2502 = vmatpush1.msra.mxu0 0.0
        %2503 = vmatprep.subr.mxu0 0.0
        %2504 = vmatpush1.msra.mxu0 0.0
        %2505 = vmatprep.subr.mxu0 0.0
        %2506 = vmatpush1.msra.mxu0 0.0
        %2507 = vmatprep.subr.mxu0 0.0
        %2508 = vmatpush1.msra.mxu0 0.0
        %2509 = vmatprep.subr.mxu0 0.0
        %2510 = vmatpush1.msra.mxu0 0.0
        %2511 = vmatprep.subr.mxu0 0.0
        %2512 = vmatpush1.msra.mxu0 0.0
        %2513 = vmatprep.subr.mxu0 0.0
        %2514 = vmatpush1.msra.mxu0 0.0
        %2515 = vmatprep.subr.mxu0 0.0
        %2516 = vmatpush1.msra.mxu0 0.0
        %2517 = vmatprep.subr.mxu0 0.0
        %2518 = vmatpush1.msra.mxu0 0.0
        %2519 = vmatprep.subr.mxu0 0.0
        %2520 = vmatpush1.msra.mxu0 0.0
        %2521 = vmatprep.subr.mxu0 0.0
        %2522 = vmatpush1.msra.mxu0 0.0
        %2523 = vmatprep.subr.mxu0 0.0
        %2524 = vmatpush1.msra.mxu0 0.0
        %2525 = vmatprep.subr.mxu0 0.0
        %2526 = vmatpush1.msra.mxu0 0.0
        %2527 = vmatprep.subr.mxu0 0.0
        %2528 = vmatpush1.msra.mxu0 0.0
        %2529 = vmatprep.subr.mxu0 0.0
        %2530 = vmatpush1.msra.mxu0 0.0
        %2531 = vmatprep.subr.mxu0 0.0
        %2532 = vmatpush1.msra.mxu0 0.0
        %2533 = vmatprep.subr.mxu0 0.0
        %2534 = vmatpush1.msra.mxu0 0.0
        %2535 = vmatprep.subr.mxu0 0.0
        %2536 = vmatpush1.msra.mxu0 0.0
        %2537 = vmatprep.subr.mxu0 0.0
        %2538 = vmatpush1.msra.mxu0 0.0
        %2539 = vmatprep.subr.mxu0 0.0
        %2540 = vmatpush1.msra.mxu0 0.0
        %2541 = vmatprep.subr.mxu0 0.0
        %2542 = vmatpush1.msra.mxu0 0.0
        %2543 = vmatprep.subr.mxu0 0.0
        %2544 = vmatpush1.msra.mxu0 0.0
        %2545 = vmatprep.subr.mxu0 0.0
        %2546 = vmatpush1.msra.mxu0 0.0
        %2547 = vmatprep.subr.mxu0 0.0
        %2548 = vmatpush1.msra.mxu0 0.0
        %2549 = vmatprep.subr.mxu0 0.0
        %2550 = vmatpush1.msra.mxu0 0.0
        %2551 = vmatprep.subr.mxu0 0.0
        %2552 = vmatpush1.msra.mxu0 0.0
        %2553 = vmatprep.subr.mxu0 0.0
        %2554 = vmatpush1.msra.mxu0 0.0
        %2555 = vmatprep.subr.mxu0 0.0
        %2556 = vmatpush1.msra.mxu0 0.0
        %2557 = vmatprep.subr.mxu0 0.0
        %2558 = vmatpush1.msra.mxu0 0.0
        %2559 = vmatprep.subr.mxu0 0.0
        %2560 = vmatpush1.msra.mxu0 0.0
        %2561 = vmatprep.mubr.f32.mxu0 0.0
        %2562 = vmatmul.mubr.f32.gmra.mrb[0].mxu0 %v1022
        %v2563 = vpop.f32.mrb[0].mxu0
        %v2564 = vadd.f32 0.0, %v2563
        %v2565 = vpop.f32.mrb[0].mxu0
        %2566 = vmatprep.mubr.f32.mxu0 0.0
        %2567 = vmatmul.mubr.f32.gmra.mrb[0].mxu0 %v1025
        %v2568 = vpop.f32.mrb[0].mxu0
        %v2569 = vadd.f32 0.0, %v2568
        %v2570 = vpop.f32.mrb[0].mxu0
        %2571 = vdwg.mxu0
        %2572 = vmatprep.subr.mxu0 0.0
        %2573 = vmatpush1.msra.mxu0 %v2268
        %2574 = vmatprep.subr.mxu0 0.0
        %2575 = vmatpush1.msra.mxu0 0.0
        %2576 = vmatprep.subr.mxu0 0.0
        %2577 = vmatpush1.msra.mxu0 0.0
        %2578 = vmatprep.subr.mxu0 0.0
        %2579 = vmatpush1.msra.mxu0 0.0
        %2580 = vmatprep.subr.mxu0 0.0
        %2581 = vmatpush1.msra.mxu0 0.0
        %2582 = vmatprep.subr.mxu0 0.0
        %2583 = vmatpush1.msra.mxu0 0.0
        %2584 = vmatprep.subr.mxu0 0.0
        %2585 = vmatpush1.msra.mxu0 0.0
        %2586 = vmatprep.subr.mxu0 0.0
        %2587 = vmatpush1.msra.mxu0 0.0
        %2588 = vmatprep.subr.mxu0 0.0
        %2589 = vmatpush1.msra.mxu0 0.0
        %2590 = vmatprep.subr.mxu0 0.0
        %2591 = vmatpush1.msra.mxu0 0.0
        %2592 = vmatprep.subr.mxu0 0.0
        %2593 = vmatpush1.msra.mxu0 0.0
        %2594 = vmatprep.subr.mxu0 0.0
        %2595 = vmatpush1.msra.mxu0 0.0
        %2596 = vmatprep.subr.mxu0 0.0
        %2597 = vmatpush1.msra.mxu0 0.0
        %2598 = vmatprep.subr.mxu0 0.0
        %2599 = vmatpush1.msra.mxu0 0.0
        %2600 = vmatprep.subr.mxu0 0.0
        %2601 = vmatpush1.msra.mxu0 0.0
        %2602 = vmatprep.subr.mxu0 0.0
        %2603 = vmatpush1.msra.mxu0 0.0
        %2604 = vmatprep.subr.mxu0 0.0
        %2605 = vmatpush1.msra.mxu0 0.0
        %2606 = vmatprep.subr.mxu0 0.0
        %2607 = vmatpush1.msra.mxu0 0.0
        %2608 = vmatprep.subr.mxu0 0.0
        %2609 = vmatpush1.msra.mxu0 0.0
        %2610 = vmatprep.subr.mxu0 0.0
        %2611 = vmatpush1.msra.mxu0 0.0
        %2612 = vmatprep.subr.mxu0 0.0
        %2613 = vmatpush1.msra.mxu0 0.0
        %2614 = vmatprep.subr.mxu0 0.0
        %2615 = vmatpush1.msra.mxu0 0.0
        %2616 = vmatprep.subr.mxu0 0.0
        %2617 = vmatpush1.msra.mxu0 0.0
        %2618 = vmatprep.subr.mxu0 0.0
        %2619 = vmatpush1.msra.mxu0 0.0
        %2620 = vmatprep.subr.mxu0 0.0
        %2621 = vmatpush1.msra.mxu0 0.0
        %2622 = vmatprep.subr.mxu0 0.0
        %2623 = vmatpush1.msra.mxu0 0.0
        %2624 = vmatprep.subr.mxu0 0.0
        %2625 = vmatpush1.msra.mxu0 0.0
        %2626 = vmatprep.subr.mxu0 0.0
        %2627 = vmatpush1.msra.mxu0 0.0
        %2628 = vmatprep.subr.mxu0 0.0
        %2629 = vmatpush1.msra.mxu0 0.0
        %2630 = vmatprep.subr.mxu0 0.0
        %2631 = vmatpush1.msra.mxu0 0.0
        %2632 = vmatprep.subr.mxu0 0.0
        %2633 = vmatpush1.msra.mxu0 0.0
        %2634 = vmatprep.subr.mxu0 0.0
        %2635 = vmatpush1.msra.mxu0 0.0
        %2636 = vmatprep.mubr.f32.mxu0 0.0
        %2637 = vmatmul.mubr.f32.gmra.mrb[0].mxu0 %v1103
        %v2638 = vpop.f32.mrb[0].mxu0
        %v2639 = vadd.f32 0.0, %v2638
        %v2640 = vpop.f32.mrb[0].mxu0
        %2641 = vmatprep.mubr.f32.mxu0 0.0
        %2642 = vmatmul.mubr.f32.gmra.mrb[0].mxu0 %v1106
        %v2643 = vpop.f32.mrb[0].mxu0
        %v2644 = vadd.f32 0.0, %v2643
        %v2645 = vpop.f32.mrb[0].mxu0
        %2646 = vdwg.mxu0
        %2647 = vmatprep.subr.mxu0 0.0
        %2648 = vmatpush1.msra.mxu0 %v2269
        %2649 = vmatprep.subr.mxu0 0.0
        %2650 = vmatpush1.msra.mxu0 0.0
        %2651 = vmatprep.subr.mxu0 0.0
        %2652 = vmatpush1.msra.mxu0 0.0
        %2653 = vmatprep.subr.mxu0 0.0
        %2654 = vmatpush1.msra.mxu0 0.0
        %2655 = vmatprep.subr.mxu0 0.0
        %2656 = vmatpush1.msra.mxu0 0.0
        %2657 = vmatprep.subr.mxu0 0.0
        %2658 = vmatpush1.msra.mxu0 0.0
        %2659 = vmatprep.subr.mxu0 0.0
        %2660 = vmatpush1.msra.mxu0 0.0
        %2661 = vmatprep.subr.mxu0 0.0
        %2662 = vmatpush1.msra.mxu0 0.0
        %2663 = vmatprep.subr.mxu0 0.0
        %2664 = vmatpush1.msra.mxu0 0.0
        %2665 = vmatprep.subr.mxu0 0.0
        %2666 = vmatpush1.msra.mxu0 0.0
        %2667 = vmatprep.subr.mxu0 0.0
        %2668 = vmatpush1.msra.mxu0 0.0
        %2669 = vmatprep.subr.mxu0 0.0
        %2670 = vmatpush1.msra.mxu0 0.0
        %2671 = vmatprep.subr.mxu0 0.0
        %2672 = vmatpush1.msra.mxu0 0.0
        %2673 = vmatprep.subr.mxu0 0.0
        %2674 = vmatpush1.msra.mxu0 0.0
        %2675 = vmatprep.subr.mxu0 0.0
        %2676 = vmatpush1.msra.mxu0 0.0
        %2677 = vmatprep.subr.mxu0 0.0
        %2678 = vmatpush1.msra.mxu0 0.0
        %2679 = vmatprep.subr.mxu0 0.0
        %2680 = vmatpush1.msra.mxu0 0.0
        %2681 = vmatprep.subr.mxu0 0.0
        %2682 = vmatpush1.msra.mxu0 0.0
        %2683 = vmatprep.subr.mxu0 0.0
        %2684 = vmatpush1.msra.mxu0 0.0
        %2685 = vmatprep.subr.mxu0 0.0
        %2686 = vmatpush1.msra.mxu0 0.0
        %2687 = vmatprep.subr.mxu0 0.0
        %2688 = vmatpush1.msra.mxu0 0.0
        %2689 = vmatprep.subr.mxu0 0.0
        %2690 = vmatpush1.msra.mxu0 0.0
        %2691 = vmatprep.subr.mxu0 0.0
        %2692 = vmatpush1.msra.mxu0 0.0
        %2693 = vmatprep.subr.mxu0 0.0
        %2694 = vmatpush1.msra.mxu0 0.0
        %2695 = vmatprep.subr.mxu0 0.0
        %2696 = vmatpush1.msra.mxu0 0.0
        %2697 = vmatprep.subr.mxu0 0.0
        %2698 = vmatpush1.msra.mxu0 0.0
        %2699 = vmatprep.subr.mxu0 0.0
        %2700 = vmatpush1.msra.mxu0 0.0
        %2701 = vmatprep.subr.mxu0 0.0
        %2702 = vmatpush1.msra.mxu0 0.0
        %2703 = vmatprep.subr.mxu0 0.0
        %2704 = vmatpush1.msra.mxu0 0.0
        %2705 = vmatprep.subr.mxu0 0.0
        %2706 = vmatpush1.msra.mxu0 0.0
        %2707 = vmatprep.subr.mxu0 0.0
        %2708 = vmatpush1.msra.mxu0 0.0
        %2709 = vmatprep.subr.mxu0 0.0
        %2710 = vmatpush1.msra.mxu0 0.0
        %2711 = vmatprep.mubr.f32.mxu0 0.0
        %2712 = vmatmul.mubr.f32.gmra.mrb[0].mxu0 %v1184
        %v2713 = vpop.f32.mrb[0].mxu0
        %v2714 = vadd.f32 0.0, %v2713
        %v2715 = vpop.f32.mrb[0].mxu0
        %2716 = vmatprep.mubr.f32.mxu0 0.0
        %2717 = vmatmul.mubr.f32.gmra.mrb[0].mxu0 %v1187
        %v2718 = vpop.f32.mrb[0].mxu0
        %v2719 = vadd.f32 0.0, %v2718
        %v2720 = vpop.f32.mrb[0].mxu0
        %2721 = vdwg.mxu0
        %2722 = vmatprep.subr.mxu0 0.0
        %2723 = vmatpush1.msra.mxu0 %v2270
        %2724 = vmatprep.subr.mxu0 0.0
        %2725 = vmatpush1.msra.mxu0 0.0
        %2726 = vmatprep.subr.mxu0 0.0
        %2727 = vmatpush1.msra.mxu0 0.0
        %2728 = vmatprep.subr.mxu0 0.0
        %2729 = vmatpush1.msra.mxu0 0.0
        %2730 = vmatprep.subr.mxu0 0.0
        %2731 = vmatpush1.msra.mxu0 0.0
        %2732 = vmatprep.subr.mxu0 0.0
        %2733 = vmatpush1.msra.mxu0 0.0
        %2734 = vmatprep.subr.mxu0 0.0
        %2735 = vmatpush1.msra.mxu0 0.0
        %2736 = vmatprep.subr.mxu0 0.0
        %2737 = vmatpush1.msra.mxu0 0.0
        %2738 = vmatprep.subr.mxu0 0.0
        %2739 = vmatpush1.msra.mxu0 0.0
        %2740 = vmatprep.subr.mxu0 0.0
        %2741 = vmatpush1.msra.mxu0 0.0
        %2742 = vmatprep.subr.mxu0 0.0
        %2743 = vmatpush1.msra.mxu0 0.0
        %2744 = vmatprep.subr.mxu0 0.0
        %2745 = vmatpush1.msra.mxu0 0.0
        %2746 = vmatprep.subr.mxu0 0.0
        %2747 = vmatpush1.msra.mxu0 0.0
        %2748 = vmatprep.subr.mxu0 0.0
        %2749 = vmatpush1.msra.mxu0 0.0
        %2750 = vmatprep.subr.mxu0 0.0
        %2751 = vmatpush1.msra.mxu0 0.0
        %2752 = vmatprep.subr.mxu0 0.0
        %2753 = vmatpush1.msra.mxu0 0.0
        %2754 = vmatprep.subr.mxu0 0.0
        %2755 = vmatpush1.msra.mxu0 0.0
        %2756 = vmatprep.subr.mxu0 0.0
        %2757 = vmatpush1.msra.mxu0 0.0
        %2758 = vmatprep.subr.mxu0 0.0
        %2759 = vmatpush1.msra.mxu0 0.0
        %2760 = vmatprep.subr.mxu0 0.0
        %2761 = vmatpush1.msra.mxu0 0.0
        %2762 = vmatprep.subr.mxu0 0.0
        %2763 = vmatpush1.msra.mxu0 0.0
        %2764 = vmatprep.subr.mxu0 0.0
        %2765 = vmatpush1.msra.mxu0 0.0
        %2766 = vmatprep.subr.mxu0 0.0
        %2767 = vmatpush1.msra.mxu0 0.0
        %2768 = vmatprep.subr.mxu0 0.0
        %2769 = vmatpush1.msra.mxu0 0.0
        %2770 = vmatprep.subr.mxu0 0.0
        %2771 = vmatpush1.msra.mxu0 0.0
        %2772 = vmatprep.subr.mxu0 0.0
        %2773 = vmatpush1.msra.mxu0 0.0
        %2774 = vmatprep.subr.mxu0 0.0
        %2775 = vmatpush1.msra.mxu0 0.0
        %2776 = vmatprep.subr.mxu0 0.0
        %2777 = vmatpush1.msra.mxu0 0.0
        %2778 = vmatprep.subr.mxu0 0.0
        %2779 = vmatpush1.msra.mxu0 0.0
        %2780 = vmatprep.subr.mxu0 0.0
        %2781 = vmatpush1.msra.mxu0 0.0
        %2782 = vmatprep.subr.mxu0 0.0
        %2783 = vmatpush1.msra.mxu0 0.0
        %2784 = vmatprep.subr.mxu0 0.0
        %2785 = vmatpush1.msra.mxu0 0.0
        %2786 = vmatprep.mubr.f32.mxu0 0.0
        %2787 = vmatmul.mubr.f32.gmra.mrb[0].mxu0 %v1265
        %v2788 = vpop.f32.mrb[0].mxu0
        %v2789 = vadd.f32 0.0, %v2788
        %v2790 = vpop.f32.mrb[0].mxu0
        %2791 = vmatprep.mubr.f32.mxu0 0.0
        %2792 = vmatmul.mubr.f32.gmra.mrb[0].mxu0 %v1268
        %v2793 = vpop.f32.mrb[0].mxu0
        %v2794 = vadd.f32 0.0, %v2793
        %v2795 = vpop.f32.mrb[0].mxu0
        %2796 = vdwg.mxu0
        %2797 = vmatprep.subr.mxu0 0.0
        %2798 = vmatpush1.msra.mxu0 %v2271
        %2799 = vmatprep.subr.mxu0 0.0
        %2800 = vmatpush1.msra.mxu0 0.0
        %2801 = vmatprep.subr.mxu0 0.0
        %2802 = vmatpush1.msra.mxu0 0.0
        %2803 = vmatprep.subr.mxu0 0.0
        %2804 = vmatpush1.msra.mxu0 0.0
        %2805 = vmatprep.subr.mxu0 0.0
        %2806 = vmatpush1.msra.mxu0 0.0
        %2807 = vmatprep.subr.mxu0 0.0
        %2808 = vmatpush1.msra.mxu0 0.0
        %2809 = vmatprep.subr.mxu0 0.0
        %2810 = vmatpush1.msra.mxu0 0.0
        %2811 = vmatprep.subr.mxu0 0.0
        %2812 = vmatpush1.msra.mxu0 0.0
        %2813 = vmatprep.subr.mxu0 0.0
        %2814 = vmatpush1.msra.mxu0 0.0
        %2815 = vmatprep.subr.mxu0 0.0
        %2816 = vmatpush1.msra.mxu0 0.0
        %2817 = vmatprep.subr.mxu0 0.0
        %2818 = vmatpush1.msra.mxu0 0.0
        %2819 = vmatprep.subr.mxu0 0.0
        %2820 = vmatpush1.msra.mxu0 0.0
        %2821 = vmatprep.subr.mxu0 0.0
        %2822 = vmatpush1.msra.mxu0 0.0
        %2823 = vmatprep.subr.mxu0 0.0
        %2824 = vmatpush1.msra.mxu0 0.0
        %2825 = vmatprep.subr.mxu0 0.0
        %2826 = vmatpush1.msra.mxu0 0.0
        %2827 = vmatprep.subr.mxu0 0.0
        %2828 = vmatpush1.msra.mxu0 0.0
        %2829 = vmatprep.subr.mxu0 0.0
        %2830 = vmatpush1.msra.mxu0 0.0
        %2831 = vmatprep.subr.mxu0 0.0
        %2832 = vmatpush1.msra.mxu0 0.0
        %2833 = vmatprep.subr.mxu0 0.0
        %2834 = vmatpush1.msra.mxu0 0.0
        %2835 = vmatprep.subr.mxu0 0.0
        %2836 = vmatpush1.msra.mxu0 0.0
        %2837 = vmatprep.subr.mxu0 0.0
        %2838 = vmatpush1.msra.mxu0 0.0
        %2839 = vmatprep.subr.mxu0 0.0
        %2840 = vmatpush1.msra.mxu0 0.0
        %2841 = vmatprep.subr.mxu0 0.0
        %2842 = vmatpush1.msra.mxu0 0.0
        %2843 = vmatprep.subr.mxu0 0.0
        %2844 = vmatpush1.msra.mxu0 0.0
        %2845 = vmatprep.subr.mxu0 0.0
        %2846 = vmatpush1.msra.mxu0 0.0
        %2847 = vmatprep.subr.mxu0 0.0
        %2848 = vmatpush1.msra.mxu0 0.0
        %2849 = vmatprep.subr.mxu0 0.0
        %2850 = vmatpush1.msra.mxu0 0.0
        %2851 = vmatprep.subr.mxu0 0.0
        %2852 = vmatpush1.msra.mxu0 0.0
        %2853 = vmatprep.subr.mxu0 0.0
        %2854 = vmatpush1.msra.mxu0 0.0
        %2855 = vmatprep.subr.mxu0 0.0
        %2856 = vmatpush1.msra.mxu0 0.0
        %2857 = vmatprep.subr.mxu0 0.0
        %2858 = vmatpush1.msra.mxu0 0.0
        %2859 = vmatprep.subr.mxu0 0.0
        %2860 = vmatpush1.msra.mxu0 0.0
        %2861 = vmatprep.mubr.f32.mxu0 0.0
        %2862 = vmatmul.mubr.f32.gmra.mrb[0].mxu0 %v1346
        %v2863 = vpop.f32.mrb[0].mxu0
        %v2864 = vadd.f32 0.0, %v2863
        %v2865 = vpop.f32.mrb[0].mxu0
        %2866 = vmatprep.mubr.f32.mxu0 0.0
        %2867 = vmatmul.mubr.f32.gmra.mrb[0].mxu0 %v1349
        %v2868 = vpop.f32.mrb[0].mxu0
        %v2869 = vadd.f32 0.0, %v2868
        %v2870 = vpop.f32.mrb[0].mxu0
        %2871 = vdwg.mxu0
        %2872 = vmatprep.subr.mxu0 %v472
        %2873 = vmatpush1.msra.mxu0 %v471
        %2874 = vmatprep.subr.mxu0 %v475
        %2875 = vmatpush1.msra.mxu0 %v474
        %2876 = vmatprep.subr.mxu0 %v478
        %2877 = vmatpush1.msra.mxu0 %v477
        %2878 = vmatprep.subr.mxu0 %v481
        %2879 = vmatpush1.msra.mxu0 %v480
        %2880 = vmatprep.subr.mxu0 %v484
        %2881 = vmatpush1.msra.mxu0 %v483
        %2882 = vmatprep.subr.mxu0 %v487
        %2883 = vmatpush1.msra.mxu0 %v486
        %2884 = vmatprep.subr.mxu0 %v490
        %2885 = vmatpush1.msra.mxu0 %v489
        %2886 = vmatprep.subr.mxu0 %v493
        %2887 = vmatpush1.msra.mxu0 %v492
        %2888 = vmatprep.subr.mxu0 %v496
        %2889 = vmatpush1.msra.mxu0 %v495
        %2890 = vmatprep.subr.mxu0 %v499
        %2891 = vmatpush1.msra.mxu0 %v498
        %2892 = vmatprep.subr.mxu0 %v502
        %2893 = vmatpush1.msra.mxu0 %v501
        %2894 = vmatprep.subr.mxu0 %v505
        %2895 = vmatpush1.msra.mxu0 %v504
        %2896 = vmatprep.subr.mxu0 %v508
        %2897 = vmatpush1.msra.mxu0 %v507
        %2898 = vmatprep.subr.mxu0 %v511
        %2899 = vmatpush1.msra.mxu0 %v510
        %2900 = vmatprep.subr.mxu0 %v514
        %2901 = vmatpush1.msra.mxu0 %v513
        %2902 = vmatprep.subr.mxu0 %v517
        %2903 = vmatpush1.msra.mxu0 %v516
        %2904 = vmatprep.subr.mxu0 0.0
        %2905 = vmatpush1.msra.mxu0 0.0
        %2906 = vmatprep.subr.mxu0 0.0
        %2907 = vmatpush1.msra.mxu0 0.0
        %2908 = vmatprep.subr.mxu0 0.0
        %2909 = vmatpush1.msra.mxu0 0.0
        %2910 = vmatprep.subr.mxu0 0.0
        %2911 = vmatpush1.msra.mxu0 0.0
        %2912 = vmatprep.subr.mxu0 0.0
        %2913 = vmatpush1.msra.mxu0 0.0
        %2914 = vmatprep.subr.mxu0 0.0
        %2915 = vmatpush1.msra.mxu0 0.0
        %2916 = vmatprep.subr.mxu0 0.0
        %2917 = vmatpush1.msra.mxu0 0.0
        %2918 = vmatprep.subr.mxu0 0.0
        %2919 = vmatpush1.msra.mxu0 0.0
        %2920 = vmatprep.subr.mxu0 0.0
        %2921 = vmatpush1.msra.mxu0 0.0
        %2922 = vmatprep.subr.mxu0 0.0
        %2923 = vmatpush1.msra.mxu0 0.0
        %2924 = vmatprep.subr.mxu0 0.0
        %2925 = vmatpush1.msra.mxu0 0.0
        %2926 = vmatprep.subr.mxu0 0.0
        %2927 = vmatpush1.msra.mxu0 0.0
        %2928 = vmatprep.subr.mxu0 0.0
        %2929 = vmatpush1.msra.mxu0 0.0
        %2930 = vmatprep.subr.mxu0 0.0
        %2931 = vmatpush1.msra.mxu0 0.0
        %2932 = vmatprep.subr.mxu0 0.0
        %2933 = vmatpush1.msra.mxu0 0.0
        %2934 = vmatprep.subr.mxu0 0.0
        %2935 = vmatpush1.msra.mxu0 0.0
        %2936 = vmatprep.mubr.f32.mxu0 0.0
        %2937 = vmatmul.mubr.f32.gmra.mrb[0].mxu0 %v2344
        %v2938 = vpop.f32.mrb[0].mxu0
        %v2939 = vadd.f32 0.0, %v2938
        %v2940 = vpop.f32.mrb[0].mxu0
        %v2941 = vadd.f32 0.0, %v2940
        %2942 = vmatprep.mubr.f32.mxu0 0.0
        %2943 = vmatmul.mubr.f32.gmra.mrb[0].mxu0 %v2419
        %v2944 = vpop.f32.mrb[0].mxu0
        %v2945 = vadd.f32 0.0, %v2944
        %v2946 = vpop.f32.mrb[0].mxu0
        %v2947 = vadd.f32 0.0, %v2946
        %2948 = vmatprep.mubr.f32.mxu0 0.0
        %2949 = vmatmul.mubr.f32.gmra.mrb[0].mxu0 %v2494
        %v2950 = vpop.f32.mrb[0].mxu0
        %v2951 = vadd.f32 0.0, %v2950
        %v2952 = vpop.f32.mrb[0].mxu0
        %v2953 = vadd.f32 0.0, %v2952
        %2954 = vmatprep.mubr.f32.mxu0 0.0
        %2955 = vmatmul.mubr.f32.gmra.mrb[0].mxu0 %v2569
        %v2956 = vpop.f32.mrb[0].mxu0
        %v2957 = vadd.f32 0.0, %v2956
        %v2958 = vpop.f32.mrb[0].mxu0
        %v2959 = vadd.f32 0.0, %v2958
        %2960 = vmatprep.mubr.f32.mxu0 0.0
        %2961 = vmatmul.mubr.f32.gmra.mrb[0].mxu0 %v2644
        %v2962 = vpop.f32.mrb[0].mxu0
        %v2963 = vadd.f32 0.0, %v2962
        %v2964 = vpop.f32.mrb[0].mxu0
        %v2965 = vadd.f32 0.0, %v2964
        %2966 = vmatprep.mubr.f32.mxu0 0.0
        %2967 = vmatmul.mubr.f32.gmra.mrb[0].mxu0 %v2719
        %v2968 = vpop.f32.mrb[0].mxu0
        %v2969 = vadd.f32 0.0, %v2968
        %v2970 = vpop.f32.mrb[0].mxu0
        %v2971 = vadd.f32 0.0, %v2970
        %2972 = vmatprep.mubr.f32.mxu0 0.0
        %2973 = vmatmul.mubr.f32.gmra.mrb[0].mxu0 %v2794
        %v2974 = vpop.f32.mrb[0].mxu0
        %v2975 = vadd.f32 0.0, %v2974
        %v2976 = vpop.f32.mrb[0].mxu0
        %v2977 = vadd.f32 0.0, %v2976
        %2978 = vmatprep.mubr.f32.mxu0 0.0
        %2979 = vmatmul.mubr.f32.gmra.mrb[0].mxu0 %v2869
        %v2980 = vpop.f32.mrb[0].mxu0
        %v2981 = vadd.f32 0.0, %v2980
        %v2982 = vpop.f32.mrb[0].mxu0
        %v2983 = vadd.f32 0.0, %v2982
        %2984 = vdwg.mxu0
        %2985 = vmatprep.subr.mxu0 0.0
        %2986 = vmatpush1.msra.mxu0 %v473
        %2987 = vmatprep.subr.mxu0 0.0
        %2988 = vmatpush1.msra.mxu0 %v476
        %2989 = vmatprep.subr.mxu0 0.0
        %2990 = vmatpush1.msra.mxu0 %v479
        %2991 = vmatprep.subr.mxu0 0.0
        %2992 = vmatpush1.msra.mxu0 %v482
        %2993 = vmatprep.subr.mxu0 0.0
        %2994 = vmatpush1.msra.mxu0 %v485
        %2995 = vmatprep.subr.mxu0 0.0
        %2996 = vmatpush1.msra.mxu0 %v488
        %2997 = vmatprep.subr.mxu0 0.0
        %2998 = vmatpush1.msra.mxu0 %v491
        %2999 = vmatprep.subr.mxu0 0.0
        %3000 = vmatpush1.msra.mxu0 %v494
        %3001 = vmatprep.subr.mxu0 0.0
        %3002 = vmatpush1.msra.mxu0 %v497
        %3003 = vmatprep.subr.mxu0 0.0
        %3004 = vmatpush1.msra.mxu0 %v500
        %3005 = vmatprep.subr.mxu0 0.0
        %3006 = vmatpush1.msra.mxu0 %v503
        %3007 = vmatprep.subr.mxu0 0.0
        %3008 = vmatpush1.msra.mxu0 %v506
        %3009 = vmatprep.subr.mxu0 0.0
        %3010 = vmatpush1.msra.mxu0 %v509
        %3011 = vmatprep.subr.mxu0 0.0
        %3012 = vmatpush1.msra.mxu0 %v512
        %3013 = vmatprep.subr.mxu0 0.0
        %3014 = vmatpush1.msra.mxu0 %v515
        %3015 = vmatprep.subr.mxu0 0.0
        %3016 = vmatpush1.msra.mxu0 %v518
        %3017 = vmatprep.subr.mxu0 0.0
        %3018 = vmatpush1.msra.mxu0 0.0
        %3019 = vmatprep.subr.mxu0 0.0
        %3020 = vmatpush1.msra.mxu0 0.0
        %3021 = vmatprep.subr.mxu0 0.0
        %3022 = vmatpush1.msra.mxu0 0.0
        %3023 = vmatprep.subr.mxu0 0.0
        %3024 = vmatpush1.msra.mxu0 0.0
        %3025 = vmatprep.subr.mxu0 0.0
        %3026 = vmatpush1.msra.mxu0 0.0
        %3027 = vmatprep.subr.mxu0 0.0
        %3028 = vmatpush1.msra.mxu0 0.0
        %3029 = vmatprep.subr.mxu0 0.0
        %3030 = vmatpush1.msra.mxu0 0.0
        %3031 = vmatprep.subr.mxu0 0.0
        %3032 = vmatpush1.msra.mxu0 0.0
        %3033 = vmatprep.subr.mxu0 0.0
        %3034 = vmatpush1.msra.mxu0 0.0
        %3035 = vmatprep.subr.mxu0 0.0
        %3036 = vmatpush1.msra.mxu0 0.0
        %3037 = vmatprep.subr.mxu0 0.0
        %3038 = vmatpush1.msra.mxu0 0.0
        %3039 = vmatprep.subr.mxu0 0.0
        %3040 = vmatpush1.msra.mxu0 0.0
        %3041 = vmatprep.subr.mxu0 0.0
        %3042 = vmatpush1.msra.mxu0 0.0
        %3043 = vmatprep.subr.mxu0 0.0
        %3044 = vmatpush1.msra.mxu0 0.0
        %3045 = vmatprep.subr.mxu0 0.0
        %3046 = vmatpush1.msra.mxu0 0.0
        %3047 = vmatprep.subr.mxu0 0.0
        %3048 = vmatpush1.msra.mxu0 0.0
        %3049 = vmatprep.mubr.f32.mxu0 0.0
        %3050 = vmatmul.mubr.f32.gmra.mrb[0].mxu0 %v2344
        %v3051 = vpop.f32.mrb[0].mxu0
        %v3052 = vadd.f32 0.0, %v3051
        %v3053 = vpop.f32.mrb[0].mxu0
        %3054 = vmatprep.mubr.f32.mxu0 0.0
        %3055 = vmatmul.mubr.f32.gmra.mrb[0].mxu0 %v2419
        %v3056 = vpop.f32.mrb[0].mxu0
        %v3057 = vadd.f32 0.0, %v3056
        %v3058 = vpop.f32.mrb[0].mxu0
        %3059 = vmatprep.mubr.f32.mxu0 0.0
        %3060 = vmatmul.mubr.f32.gmra.mrb[0].mxu0 %v2494
        %v3061 = vpop.f32.mrb[0].mxu0
        %v3062 = vadd.f32 0.0, %v3061
        %v3063 = vpop.f32.mrb[0].mxu0
        %3064 = vmatprep.mubr.f32.mxu0 0.0
        %3065 = vmatmul.mubr.f32.gmra.mrb[0].mxu0 %v2569
        %v3066 = vpop.f32.mrb[0].mxu0
        %v3067 = vadd.f32 0.0, %v3066
        %v3068 = vpop.f32.mrb[0].mxu0
        %3069 = vmatprep.mubr.f32.mxu0 0.0
        %3070 = vmatmul.mubr.f32.gmra.mrb[0].mxu0 %v2644
        %v3071 = vpop.f32.mrb[0].mxu0
        %v3072 = vadd.f32 0.0, %v3071
        %v3073 = vpop.f32.mrb[0].mxu0
        %3074 = vmatprep.mubr.f32.mxu0 0.0
        %3075 = vmatmul.mubr.f32.gmra.mrb[0].mxu0 %v2719
        %v3076 = vpop.f32.mrb[0].mxu0
        %v3077 = vadd.f32 0.0, %v3076
        %v3078 = vpop.f32.mrb[0].mxu0
        %3079 = vmatprep.mubr.f32.mxu0 0.0
        %3080 = vmatmul.mubr.f32.gmra.mrb[0].mxu0 %v2794
        %v3081 = vpop.f32.mrb[0].mxu0
        %v3082 = vadd.f32 0.0, %v3081
        %v3083 = vpop.f32.mrb[0].mxu0
        %3084 = vmatprep.mubr.f32.mxu0 0.0
        %3085 = vmatmul.mubr.f32.gmra.mrb[0].mxu0 %v2869
        %v3086 = vpop.f32.mrb[0].mxu0
        %v3087 = vadd.f32 0.0, %v3086
        %v3088 = vpop.f32.mrb[0].mxu0
        %3089 = vdwg.mxu0
        %3090 = vmatprep.subr.mxu0 %v424
        %3091 = vmatpush1.msra.mxu0 %v423
        %3092 = vmatprep.subr.mxu0 %v427
        %3093 = vmatpush1.msra.mxu0 %v426
        %3094 = vmatprep.subr.mxu0 %v430
        %3095 = vmatpush1.msra.mxu0 %v429
        %3096 = vmatprep.subr.mxu0 %v433
        %3097 = vmatpush1.msra.mxu0 %v432
        %3098 = vmatprep.subr.mxu0 %v436
        %3099 = vmatpush1.msra.mxu0 %v435
        %3100 = vmatprep.subr.mxu0 %v439
        %3101 = vmatpush1.msra.mxu0 %v438
        %3102 = vmatprep.subr.mxu0 %v442
        %3103 = vmatpush1.msra.mxu0 %v441
        %3104 = vmatprep.subr.mxu0 %v445
        %3105 = vmatpush1.msra.mxu0 %v444
        %3106 = vmatprep.subr.mxu0 %v448
        %3107 = vmatpush1.msra.mxu0 %v447
        %3108 = vmatprep.subr.mxu0 %v451
        %3109 = vmatpush1.msra.mxu0 %v450
        %3110 = vmatprep.subr.mxu0 %v454
        %3111 = vmatpush1.msra.mxu0 %v453
        %3112 = vmatprep.subr.mxu0 %v457
        %3113 = vmatpush1.msra.mxu0 %v456
        %3114 = vmatprep.subr.mxu0 %v460
        %3115 = vmatpush1.msra.mxu0 %v459
        %3116 = vmatprep.subr.mxu0 %v463
        %3117 = vmatpush1.msra.mxu0 %v462
        %3118 = vmatprep.subr.mxu0 %v466
        %3119 = vmatpush1.msra.mxu0 %v465
        %3120 = vmatprep.subr.mxu0 %v469
        %3121 = vmatpush1.msra.mxu0 %v468
        %3122 = vmatprep.subr.mxu0 0.0
        %3123 = vmatpush1.msra.mxu0 0.0
        %3124 = vmatprep.subr.mxu0 0.0
        %3125 = vmatpush1.msra.mxu0 0.0
        %3126 = vmatprep.subr.mxu0 0.0
        %3127 = vmatpush1.msra.mxu0 0.0
        %3128 = vmatprep.subr.mxu0 0.0
        %3129 = vmatpush1.msra.mxu0 0.0
        %3130 = vmatprep.subr.mxu0 0.0
        %3131 = vmatpush1.msra.mxu0 0.0
        %3132 = vmatprep.subr.mxu0 0.0
        %3133 = vmatpush1.msra.mxu0 0.0
        %3134 = vmatprep.subr.mxu0 0.0
        %3135 = vmatpush1.msra.mxu0 0.0
        %3136 = vmatprep.subr.mxu0 0.0
        %3137 = vmatpush1.msra.mxu0 0.0
        %3138 = vmatprep.subr.mxu0 0.0
        %3139 = vmatpush1.msra.mxu0 0.0
        %3140 = vmatprep.subr.mxu0 0.0
        %3141 = vmatpush1.msra.mxu0 0.0
        %3142 = vmatprep.subr.mxu0 0.0
        %3143 = vmatpush1.msra.mxu0 0.0
        %3144 = vmatprep.subr.mxu0 0.0
        %3145 = vmatpush1.msra.mxu0 0.0
        %3146 = vmatprep.subr.mxu0 0.0
        %3147 = vmatpush1.msra.mxu0 0.0
        %3148 = vmatprep.subr.mxu0 0.0
        %3149 = vmatpush1.msra.mxu0 0.0
        %3150 = vmatprep.subr.mxu0 0.0
        %3151 = vmatpush1.msra.mxu0 0.0
        %3152 = vmatprep.subr.mxu0 0.0
        %3153 = vmatpush1.msra.mxu0 0.0
        %3154 = vmatprep.mubr.f32.mxu0 0.0
        %3155 = vmatmul.mubr.f32.gmra.mrb[0].mxu0 %v2339
        %v3156 = vpop.f32.mrb[0].mxu0
        %v3157 = vadd.f32 %v2939, %v3156
        %v3158 = vpop.f32.mrb[0].mxu0
        %v3159 = vadd.f32 %v2941, %v3158
        %3160 = vmatprep.mubr.f32.mxu0 0.0
        %3161 = vmatmul.mubr.f32.gmra.mrb[0].mxu0 %v2414
        %v3162 = vpop.f32.mrb[0].mxu0
        %v3163 = vadd.f32 %v2945, %v3162
        %v3164 = vpop.f32.mrb[0].mxu0
        %v3165 = vadd.f32 %v2947, %v3164
        %3166 = vmatprep.mubr.f32.mxu0 0.0
        %3167 = vmatmul.mubr.f32.gmra.mrb[0].mxu0 %v2489
        %v3168 = vpop.f32.mrb[0].mxu0
        %v3169 = vadd.f32 %v2951, %v3168
        %v3170 = vpop.f32.mrb[0].mxu0
        %v3171 = vadd.f32 %v2953, %v3170
        %3172 = vmatprep.mubr.f32.mxu0 0.0
        %3173 = vmatmul.mubr.f32.gmra.mrb[0].mxu0 %v2564
        %v3174 = vpop.f32.mrb[0].mxu0
        %v3175 = vadd.f32 %v2957, %v3174
        %v3176 = vpop.f32.mrb[0].mxu0
        %v3177 = vadd.f32 %v2959, %v3176
        %3178 = vmatprep.mubr.f32.mxu0 0.0
        %3179 = vmatmul.mubr.f32.gmra.mrb[0].mxu0 %v2639
        %v3180 = vpop.f32.mrb[0].mxu0
        %v3181 = vadd.f32 %v2963, %v3180
        %v3182 = vpop.f32.mrb[0].mxu0
        %v3183 = vadd.f32 %v2965, %v3182
        %3184 = vmatprep.mubr.f32.mxu0 0.0
        %3185 = vmatmul.mubr.f32.gmra.mrb[0].mxu0 %v2714
        %v3186 = vpop.f32.mrb[0].mxu0
        %v3187 = vadd.f32 %v2969, %v3186
        %v3188 = vpop.f32.mrb[0].mxu0
        %v3189 = vadd.f32 %v2971, %v3188
        %3190 = vmatprep.mubr.f32.mxu0 0.0
        %3191 = vmatmul.mubr.f32.gmra.mrb[0].mxu0 %v2789
        %v3192 = vpop.f32.mrb[0].mxu0
        %v3193 = vadd.f32 %v2975, %v3192
        %v3194 = vpop.f32.mrb[0].mxu0
        %v3195 = vadd.f32 %v2977, %v3194
        %3196 = vmatprep.mubr.f32.mxu0 0.0
        %3197 = vmatmul.mubr.f32.gmra.mrb[0].mxu0 %v2864
        %v3198 = vpop.f32.mrb[0].mxu0
        %v3199 = vadd.f32 %v2981, %v3198
        %v3200 = vpop.f32.mrb[0].mxu0
        %v3201 = vadd.f32 %v2983, %v3200
        %3202 = vdwg.mxu0
        %3203 = vmatprep.subr.mxu0 0.0
        %3204 = vmatpush1.msra.mxu0 %v425
        %3205 = vmatprep.subr.mxu0 0.0
        %3206 = vmatpush1.msra.mxu0 %v428
        %3207 = vmatprep.subr.mxu0 0.0
        %3208 = vmatpush1.msra.mxu0 %v431
        %3209 = vmatprep.subr.mxu0 0.0
        %3210 = vmatpush1.msra.mxu0 %v434
        %3211 = vmatprep.subr.mxu0 0.0
        %3212 = vmatpush1.msra.mxu0 %v437
        %3213 = vmatprep.subr.mxu0 0.0
        %3214 = vmatpush1.msra.mxu0 %v440
        %3215 = vmatprep.subr.mxu0 0.0
        %3216 = vmatpush1.msra.mxu0 %v443
        %3217 = vmatprep.subr.mxu0 0.0
        %3218 = vmatpush1.msra.mxu0 %v446
        %3219 = vmatprep.subr.mxu0 0.0
        %3220 = vmatpush1.msra.mxu0 %v449
        %3221 = vmatprep.subr.mxu0 0.0
        %3222 = vmatpush1.msra.mxu0 %v452
        %3223 = vmatprep.subr.mxu0 0.0
        %3224 = vmatpush1.msra.mxu0 %v455
        %3225 = vmatprep.subr.mxu0 0.0
        %3226 = vmatpush1.msra.mxu0 %v458
        %3227 = vmatprep.subr.mxu0 0.0
        %3228 = vmatpush1.msra.mxu0 %v461
        %3229 = vmatprep.subr.mxu0 0.0
        %3230 = vmatpush1.msra.mxu0 %v464
        %3231 = vmatprep.subr.mxu0 0.0
        %3232 = vmatpush1.msra.mxu0 %v467
        %3233 = vmatprep.subr.mxu0 0.0
        %3234 = vmatpush1.msra.mxu0 %v470
        %3235 = vmatprep.subr.mxu0 0.0
        %3236 = vmatpush1.msra.mxu0 0.0
        %3237 = vmatprep.subr.mxu0 0.0
        %3238 = vmatpush1.msra.mxu0 0.0
        %3239 = vmatprep.subr.mxu0 0.0
        %3240 = vmatpush1.msra.mxu0 0.0
        %3241 = vmatprep.subr.mxu0 0.0
        %3242 = vmatpush1.msra.mxu0 0.0
        %3243 = vmatprep.subr.mxu0 0.0
        %3244 = vmatpush1.msra.mxu0 0.0
        %3245 = vmatprep.subr.mxu0 0.0
        %3246 = vmatpush1.msra.mxu0 0.0
        %3247 = vmatprep.subr.mxu0 0.0
        %3248 = vmatpush1.msra.mxu0 0.0
        %3249 = vmatprep.subr.mxu0 0.0
        %3250 = vmatpush1.msra.mxu0 0.0
        %3251 = vmatprep.subr.mxu0 0.0
        %3252 = vmatpush1.msra.mxu0 0.0
        %3253 = vmatprep.subr.mxu0 0.0
        %3254 = vmatpush1.msra.mxu0 0.0
        %3255 = vmatprep.subr.mxu0 0.0
        %3256 = vmatpush1.msra.mxu0 0.0
        %3257 = vmatprep.subr.mxu0 0.0
        %3258 = vmatpush1.msra.mxu0 0.0
        %3259 = vmatprep.subr.mxu0 0.0
        %3260 = vmatpush1.msra.mxu0 0.0
        %3261 = vmatprep.subr.mxu0 0.0
        %3262 = vmatpush1.msra.mxu0 0.0
        %3263 = vmatprep.subr.mxu0 0.0
        %3264 = vmatpush1.msra.mxu0 0.0
        %3265 = vmatprep.subr.mxu0 0.0
        %3266 = vmatpush1.msra.mxu0 0.0
        %3267 = vmatprep.mubr.f32.mxu0 0.0
        %3268 = vmatmul.mubr.f32.gmra.mrb[0].mxu0 %v2339
        %v3269 = vpop.f32.mrb[0].mxu0
        %v3270 = vadd.f32 %v3052, %v3269
        %v3271 = vpop.f32.mrb[0].mxu0
        %3272 = vmatprep.mubr.f32.mxu0 0.0
        %3273 = vmatmul.mubr.f32.gmra.mrb[0].mxu0 %v2414
        %v3274 = vpop.f32.mrb[0].mxu0
        %v3275 = vadd.f32 %v3057, %v3274
        %v3276 = vpop.f32.mrb[0].mxu0
        %3277 = vmatprep.mubr.f32.mxu0 0.0
        %3278 = vmatmul.mubr.f32.gmra.mrb[0].mxu0 %v2489
        %v3279 = vpop.f32.mrb[0].mxu0
        %v3280 = vadd.f32 %v3062, %v3279
        %v3281 = vpop.f32.mrb[0].mxu0
        %3282 = vmatprep.mubr.f32.mxu0 0.0
        %3283 = vmatmul.mubr.f32.gmra.mrb[0].mxu0 %v2564
        %v3284 = vpop.f32.mrb[0].mxu0
        %v3285 = vadd.f32 %v3067, %v3284
        %v3286 = vpop.f32.mrb[0].mxu0
        %3287 = vmatprep.mubr.f32.mxu0 0.0
        %3288 = vmatmul.mubr.f32.gmra.mrb[0].mxu0 %v2639
        %v3289 = vpop.f32.mrb[0].mxu0
        %v3290 = vadd.f32 %v3072, %v3289
        %v3291 = vpop.f32.mrb[0].mxu0
        %3292 = vmatprep.mubr.f32.mxu0 0.0
        %3293 = vmatmul.mubr.f32.gmra.mrb[0].mxu0 %v2714
        %v3294 = vpop.f32.mrb[0].mxu0
        %v3295 = vadd.f32 %v3077, %v3294
        %v3296 = vpop.f32.mrb[0].mxu0
        %3297 = vmatprep.mubr.f32.mxu0 0.0
        %3298 = vmatmul.mubr.f32.gmra.mrb[0].mxu0 %v2789
        %v3299 = vpop.f32.mrb[0].mxu0
        %v3300 = vadd.f32 %v3082, %v3299
        %v3301 = vpop.f32.mrb[0].mxu0
        %3302 = vmatprep.mubr.f32.mxu0 0.0
        %3303 = vmatmul.mubr.f32.gmra.mrb[0].mxu0 %v2864
        %v3304 = vpop.f32.mrb[0].mxu0
        %v3305 = vadd.f32 %v3087, %v3304
        %v3306 = vpop.f32.mrb[0].mxu0
        %3307 = vdwg.mxu0
        %v3308 = vadd.f32 %v3157, %v739
        %v3309 = vadd.f32 %v3159, %v740
        %v3310 = vadd.f32 %v3270, %v741
        %v3311 = vadd.f32 %v3163, %v742
        %v3312 = vadd.f32 %v3165, %v743
        %v3313 = vadd.f32 %v3275, %v744
        %v3314 = vadd.f32 %v3169, %v745
        %v3315 = vadd.f32 %v3171, %v746
        %v3316 = vadd.f32 %v3280, %v747
        %v3317 = vadd.f32 %v3175, %v748
        %v3318 = vadd.f32 %v3177, %v749
        %v3319 = vadd.f32 %v3285, %v750
        %v3320 = vadd.f32 %v3181, %v751
        %v3321 = vadd.f32 %v3183, %v752
        %v3322 = vadd.f32 %v3290, %v753
        %v3323 = vadd.f32 %v3187, %v754
        %v3324 = vadd.f32 %v3189, %v755
        %v3325 = vadd.f32 %v3295, %v756
        %v3326 = vadd.f32 %v3193, %v757
        %v3327 = vadd.f32 %v3195, %v758
        %v3328 = vadd.f32 %v3300, %v759
        %v3329 = vadd.f32 %v3199, %v760
        %v3330 = vadd.f32 %v3201, %v761
        %v3331 = vadd.f32 %v3305, %v762
        %3332 = vmatprep.subr.mxu0 %v520
        %3333 = vmatpush1.msra.mxu0 %v519
        %3334 = vmatprep.subr.mxu0 %v523
        %3335 = vmatpush1.msra.mxu0 %v522
        %3336 = vmatprep.subr.mxu0 %v526
        %3337 = vmatpush1.msra.mxu0 %v525
        %3338 = vmatprep.subr.mxu0 %v529
        %3339 = vmatpush1.msra.mxu0 %v528
        %3340 = vmatprep.subr.mxu0 %v532
        %3341 = vmatpush1.msra.mxu0 %v531
        %3342 = vmatprep.subr.mxu0 %v535
        %3343 = vmatpush1.msra.mxu0 %v534
        %3344 = vmatprep.subr.mxu0 %v538
        %3345 = vmatpush1.msra.mxu0 %v537
        %3346 = vmatprep.subr.mxu0 %v541
        %3347 = vmatpush1.msra.mxu0 %v540
        %3348 = vmatprep.subr.mxu0 %v544
        %3349 = vmatpush1.msra.mxu0 %v543
        %3350 = vmatprep.subr.mxu0 %v547
        %3351 = vmatpush1.msra.mxu0 %v546
        %3352 = vmatprep.subr.mxu0 %v550
        %3353 = vmatpush1.msra.mxu0 %v549
        %3354 = vmatprep.subr.mxu0 %v553
        %3355 = vmatpush1.msra.mxu0 %v552
        %3356 = vmatprep.subr.mxu0 %v556
        %3357 = vmatpush1.msra.mxu0 %v555
        %3358 = vmatprep.subr.mxu0 %v559
        %3359 = vmatpush1.msra.mxu0 %v558
        %3360 = vmatprep.subr.mxu0 %v562
        %3361 = vmatpush1.msra.mxu0 %v561
        %3362 = vmatprep.subr.mxu0 %v565
        %3363 = vmatpush1.msra.mxu0 %v564
        %3364 = vmatprep.subr.mxu0 0.0
        %3365 = vmatpush1.msra.mxu0 0.0
        %3366 = vmatprep.subr.mxu0 0.0
        %3367 = vmatpush1.msra.mxu0 0.0
        %3368 = vmatprep.subr.mxu0 0.0
        %3369 = vmatpush1.msra.mxu0 0.0
        %3370 = vmatprep.subr.mxu0 0.0
        %3371 = vmatpush1.msra.mxu0 0.0
        %3372 = vmatprep.subr.mxu0 0.0
        %3373 = vmatpush1.msra.mxu0 0.0
        %3374 = vmatprep.subr.mxu0 0.0
        %3375 = vmatpush1.msra.mxu0 0.0
        %3376 = vmatprep.subr.mxu0 0.0
        %3377 = vmatpush1.msra.mxu0 0.0
        %3378 = vmatprep.subr.mxu0 0.0
        %3379 = vmatpush1.msra.mxu0 0.0
        %3380 = vmatprep.subr.mxu0 0.0
        %3381 = vmatpush1.msra.mxu0 0.0
        %3382 = vmatprep.subr.mxu0 0.0
        %3383 = vmatpush1.msra.mxu0 0.0
        %3384 = vmatprep.subr.mxu0 0.0
        %3385 = vmatpush1.msra.mxu0 0.0
        %3386 = vmatprep.subr.mxu0 0.0
        %3387 = vmatpush1.msra.mxu0 0.0
        %3388 = vmatprep.subr.mxu0 0.0
        %3389 = vmatpush1.msra.mxu0 0.0
        %3390 = vmatprep.subr.mxu0 0.0
        %3391 = vmatpush1.msra.mxu0 0.0
        %3392 = vmatprep.subr.mxu0 0.0
        %3393 = vmatpush1.msra.mxu0 0.0
        %3394 = vmatprep.subr.mxu0 0.0
        %3395 = vmatpush1.msra.mxu0 0.0
        %3396 = vmatprep.mubr.f32.mxu0 0.0
        %3397 = vmatmul.mubr.f32.gmra.mrb[0].mxu0 %v2264
        %v3398 = vpop.f32.mrb[0].mxu0
        %v3399 = vadd.f32 0.0, %v3398
        %v3400 = vpop.f32.mrb[0].mxu0
        %v3401 = vadd.f32 0.0, %v3400
        %3402 = vmatprep.mubr.f32.mxu0 0.0
        %3403 = vmatmul.mubr.f32.gmra.mrb[0].mxu0 %v2265
        %v3404 = vpop.f32.mrb[0].mxu0
        %v3405 = vadd.f32 0.0, %v3404
        %v3406 = vpop.f32.mrb[0].mxu0
        %v3407 = vadd.f32 0.0, %v3406
        %3408 = vmatprep.mubr.f32.mxu0 0.0
        %3409 = vmatmul.mubr.f32.gmra.mrb[0].mxu0 %v2266
        %v3410 = vpop.f32.mrb[0].mxu0
        %v3411 = vadd.f32 0.0, %v3410
        %v3412 = vpop.f32.mrb[0].mxu0
        %v3413 = vadd.f32 0.0, %v3412
        %3414 = vmatprep.mubr.f32.mxu0 0.0
        %3415 = vmatmul.mubr.f32.gmra.mrb[0].mxu0 %v2267
        %v3416 = vpop.f32.mrb[0].mxu0
        %v3417 = vadd.f32 0.0, %v3416
        %v3418 = vpop.f32.mrb[0].mxu0
        %v3419 = vadd.f32 0.0, %v3418
        %3420 = vmatprep.mubr.f32.mxu0 0.0
        %3421 = vmatmul.mubr.f32.gmra.mrb[0].mxu0 %v2268
        %v3422 = vpop.f32.mrb[0].mxu0
        %v3423 = vadd.f32 0.0, %v3422
        %v3424 = vpop.f32.mrb[0].mxu0
        %v3425 = vadd.f32 0.0, %v3424
        %3426 = vmatprep.mubr.f32.mxu0 0.0
        %3427 = vmatmul.mubr.f32.gmra.mrb[0].mxu0 %v2269
        %v3428 = vpop.f32.mrb[0].mxu0
        %v3429 = vadd.f32 0.0, %v3428
        %v3430 = vpop.f32.mrb[0].mxu0
        %v3431 = vadd.f32 0.0, %v3430
        %3432 = vmatprep.mubr.f32.mxu0 0.0
        %3433 = vmatmul.mubr.f32.gmra.mrb[0].mxu0 %v2270
        %v3434 = vpop.f32.mrb[0].mxu0
        %v3435 = vadd.f32 0.0, %v3434
        %v3436 = vpop.f32.mrb[0].mxu0
        %v3437 = vadd.f32 0.0, %v3436
        %3438 = vmatprep.mubr.f32.mxu0 0.0
        %3439 = vmatmul.mubr.f32.gmra.mrb[0].mxu0 %v2271
        %v3440 = vpop.f32.mrb[0].mxu0
        %v3441 = vadd.f32 0.0, %v3440
        %v3442 = vpop.f32.mrb[0].mxu0
        %v3443 = vadd.f32 0.0, %v3442
        %3444 = vdwg.mxu0
        %3445 = vmatprep.subr.mxu0 0.0
        %3446 = vmatpush1.msra.mxu0 %v521
        %3447 = vmatprep.subr.mxu0 0.0
        %3448 = vmatpush1.msra.mxu0 %v524
        %3449 = vmatprep.subr.mxu0 0.0
        %3450 = vmatpush1.msra.mxu0 %v527
        %3451 = vmatprep.subr.mxu0 0.0
        %3452 = vmatpush1.msra.mxu0 %v530
        %3453 = vmatprep.subr.mxu0 0.0
        %3454 = vmatpush1.msra.mxu0 %v533
        %3455 = vmatprep.subr.mxu0 0.0
        %3456 = vmatpush1.msra.mxu0 %v536
        %3457 = vmatprep.subr.mxu0 0.0
        %3458 = vmatpush1.msra.mxu0 %v539
        %3459 = vmatprep.subr.mxu0 0.0
        %3460 = vmatpush1.msra.mxu0 %v542
        %3461 = vmatprep.subr.mxu0 0.0
        %3462 = vmatpush1.msra.mxu0 %v545
        %3463 = vmatprep.subr.mxu0 0.0
        %3464 = vmatpush1.msra.mxu0 %v548
        %3465 = vmatprep.subr.mxu0 0.0
        %3466 = vmatpush1.msra.mxu0 %v551
        %3467 = vmatprep.subr.mxu0 0.0
        %3468 = vmatpush1.msra.mxu0 %v554
        %3469 = vmatprep.subr.mxu0 0.0
        %3470 = vmatpush1.msra.mxu0 %v557
        %3471 = vmatprep.subr.mxu0 0.0
        %3472 = vmatpush1.msra.mxu0 %v560
        %3473 = vmatprep.subr.mxu0 0.0
        %3474 = vmatpush1.msra.mxu0 %v563
        %3475 = vmatprep.subr.mxu0 0.0
        %3476 = vmatpush1.msra.mxu0 %v566
        %3477 = vmatprep.subr.mxu0 0.0
        %3478 = vmatpush1.msra.mxu0 0.0
        %3479 = vmatprep.subr.mxu0 0.0
        %3480 = vmatpush1.msra.mxu0 0.0
        %3481 = vmatprep.subr.mxu0 0.0
        %3482 = vmatpush1.msra.mxu0 0.0
        %3483 = vmatprep.subr.mxu0 0.0
        %3484 = vmatpush1.msra.mxu0 0.0
        %3485 = vmatprep.subr.mxu0 0.0
        %3486 = vmatpush1.msra.mxu0 0.0
        %3487 = vmatprep.subr.mxu0 0.0
        %3488 = vmatpush1.msra.mxu0 0.0
        %3489 = vmatprep.subr.mxu0 0.0
        %3490 = vmatpush1.msra.mxu0 0.0
        %3491 = vmatprep.subr.mxu0 0.0
        %3492 = vmatpush1.msra.mxu0 0.0
        %3493 = vmatprep.subr.mxu0 0.0
        %3494 = vmatpush1.msra.mxu0 0.0
        %3495 = vmatprep.subr.mxu0 0.0
        %3496 = vmatpush1.msra.mxu0 0.0
        %3497 = vmatprep.subr.mxu0 0.0
        %3498 = vmatpush1.msra.mxu0 0.0
        %3499 = vmatprep.subr.mxu0 0.0
        %3500 = vmatpush1.msra.mxu0 0.0
        %3501 = vmatprep.subr.mxu0 0.0
        %3502 = vmatpush1.msra.mxu0 0.0
        %3503 = vmatprep.subr.mxu0 0.0
        %3504 = vmatpush1.msra.mxu0 0.0
        %3505 = vmatprep.subr.mxu0 0.0
        %3506 = vmatpush1.msra.mxu0 0.0
        %3507 = vmatprep.subr.mxu0 0.0
        %3508 = vmatpush1.msra.mxu0 0.0
        %3509 = vmatprep.mubr.f32.mxu0 0.0
        %3510 = vmatmul.mubr.f32.gmra.mrb[0].mxu0 %v2264
        %v3511 = vpop.f32.mrb[0].mxu0
        %v3512 = vadd.f32 0.0, %v3511
        %v3513 = vpop.f32.mrb[0].mxu0
        %3514 = vmatprep.mubr.f32.mxu0 0.0
        %3515 = vmatmul.mubr.f32.gmra.mrb[0].mxu0 %v2265
        %v3516 = vpop.f32.mrb[0].mxu0
        %v3517 = vadd.f32 0.0, %v3516
        %v3518 = vpop.f32.mrb[0].mxu0
        %3519 = vmatprep.mubr.f32.mxu0 0.0
        %3520 = vmatmul.mubr.f32.gmra.mrb[0].mxu0 %v2266
        %v3521 = vpop.f32.mrb[0].mxu0
        %v3522 = vadd.f32 0.0, %v3521
        %v3523 = vpop.f32.mrb[0].mxu0
        %3524 = vmatprep.mubr.f32.mxu0 0.0
        %3525 = vmatmul.mubr.f32.gmra.mrb[0].mxu0 %v2267
        %v3526 = vpop.f32.mrb[0].mxu0
        %v3527 = vadd.f32 0.0, %v3526
        %v3528 = vpop.f32.mrb[0].mxu0
        %3529 = vmatprep.mubr.f32.mxu0 0.0
        %3530 = vmatmul.mubr.f32.gmra.mrb[0].mxu0 %v2268
        %v3531 = vpop.f32.mrb[0].mxu0
        %v3532 = vadd.f32 0.0, %v3531
        %v3533 = vpop.f32.mrb[0].mxu0
        %3534 = vmatprep.mubr.f32.mxu0 0.0
        %3535 = vmatmul.mubr.f32.gmra.mrb[0].mxu0 %v2269
        %v3536 = vpop.f32.mrb[0].mxu0
        %v3537 = vadd.f32 0.0, %v3536
        %v3538 = vpop.f32.mrb[0].mxu0
        %3539 = vmatprep.mubr.f32.mxu0 0.0
        %3540 = vmatmul.mubr.f32.gmra.mrb[0].mxu0 %v2270
        %v3541 = vpop.f32.mrb[0].mxu0
        %v3542 = vadd.f32 0.0, %v3541
        %v3543 = vpop.f32.mrb[0].mxu0
        %3544 = vmatprep.mubr.f32.mxu0 0.0
        %3545 = vmatmul.mubr.f32.gmra.mrb[0].mxu0 %v2271
        %v3546 = vpop.f32.mrb[0].mxu0
        %v3547 = vadd.f32 0.0, %v3546
        %v3548 = vpop.f32.mrb[0].mxu0
        %3549 = vdwg.mxu0
        %v3550 = vadd.f32 %v3512, %v768
        %v3551 = vadd.f32 %v3517, %v768
        %v3552 = vadd.f32 %v3522, %v768
        %v3553 = vadd.f32 %v3527, %v768
        %v3554 = vadd.f32 %v3532, %v768
        %v3555 = vadd.f32 %v3537, %v768
        %v3556 = vadd.f32 %v3542, %v768
        %v3557 = vadd.f32 %v3547, %v768
        %v3558 = vadd.f32 %v3308, %v3399
        %v3559 = vadd.f32 %v3311, %v3405
        %v3560 = vadd.f32 %v3314, %v3411
        %v3561 = vadd.f32 %v3317, %v3417
        %v3562 = vadd.f32 %v3320, %v3423
        %v3563 = vadd.f32 %v3323, %v3429
        %v3564 = vadd.f32 %v3326, %v3435
        %v3565 = vadd.f32 %v3329, %v3441
        %v3566 = vxor.u32 %v3558, 2147483648
        %v3567 = vxor.u32 %v3559, 2147483648
        %v3568 = vxor.u32 %v3560, 2147483648
        %v3569 = vxor.u32 %v3561, 2147483648
        %v3570 = vxor.u32 %v3562, 2147483648
        %v3571 = vxor.u32 %v3563, 2147483648
        %v3572 = vxor.u32 %v3564, 2147483648
        %v3573 = vxor.u32 %v3565, 2147483648
        %v3574 = vmul.f32 %v3566, 1.442695
        %v3575 = vpow.pop %v3574
        %v3576 = vmul.f32 %v3567, 1.442695
        %v3577 = vpow.pop %v3576
        %v3578 = vmul.f32 %v3568, 1.442695
        %v3579 = vpow.pop %v3578
        %v3580 = vmul.f32 %v3569, 1.442695
        %v3581 = vpow.pop %v3580
        %v3582 = vmul.f32 %v3570, 1.442695
        %v3583 = vpow.pop %v3582
        %v3584 = vmul.f32 %v3571, 1.442695
        %v3585 = vpow.pop %v3584
        %v3586 = vmul.f32 %v3572, 1.442695
        %v3587 = vpow.pop %v3586
        %v3588 = vmul.f32 %v3573, 1.442695
        %v3589 = vpow.pop %v3588
        %v3590 = vadd.f32 %v3575, 1.0
        %v3591 = vadd.f32 %v3577, 1.0
        %v3592 = vadd.f32 %v3579, 1.0
        %v3593 = vadd.f32 %v3581, 1.0
        %v3594 = vadd.f32 %v3583, 1.0
        %v3595 = vadd.f32 %v3585, 1.0
        %v3596 = vadd.f32 %v3587, 1.0
        %v3597 = vadd.f32 %v3589, 1.0
        %v3598 = vrcp.pop %v3590
        %v3599 = vmul.f32 1.0, %v3598
        %v3600 = vrcp.pop %v3591
        %v3601 = vmul.f32 1.0, %v3600
        %v3602 = vrcp.pop %v3592
        %v3603 = vmul.f32 1.0, %v3602
        %v3604 = vrcp.pop %v3593
        %v3605 = vmul.f32 1.0, %v3604
        %v3606 = vrcp.pop %v3594
        %v3607 = vmul.f32 1.0, %v3606
        %v3608 = vrcp.pop %v3595
        %v3609 = vmul.f32 1.0, %v3608
        %v3610 = vrcp.pop %v3596
        %v3611 = vmul.f32 1.0, %v3610
        %v3612 = vrcp.pop %v3597
        %v3613 = vmul.f32 1.0, %v3612
        %v3614 = vadd.f32 %v3309, %v3401
        %v3615 = vadd.f32 %v3312, %v3407
        %v3616 = vadd.f32 %v3315, %v3413
        %v3617 = vadd.f32 %v3318, %v3419
        %v3618 = vadd.f32 %v3321, %v3425
        %v3619 = vadd.f32 %v3324, %v3431
        %v3620 = vadd.f32 %v3327, %v3437
        %v3621 = vadd.f32 %v3330, %v3443
        %v3622 = vxor.u32 %v3614, 2147483648
        %v3623 = vxor.u32 %v3615, 2147483648
        %v3624 = vxor.u32 %v3616, 2147483648
        %v3625 = vxor.u32 %v3617, 2147483648
        %v3626 = vxor.u32 %v3618, 2147483648
        %v3627 = vxor.u32 %v3619, 2147483648
        %v3628 = vxor.u32 %v3620, 2147483648
        %v3629 = vxor.u32 %v3621, 2147483648
        %v3630 = vmul.f32 %v3622, 1.442695
        %v3631 = vpow.pop %v3630
        %v3632 = vmul.f32 %v3623, 1.442695
        %v3633 = vpow.pop %v3632
        %v3634 = vmul.f32 %v3624, 1.442695
        %v3635 = vpow.pop %v3634
        %v3636 = vmul.f32 %v3625, 1.442695
        %v3637 = vpow.pop %v3636
        %v3638 = vmul.f32 %v3626, 1.442695
        %v3639 = vpow.pop %v3638
        %v3640 = vmul.f32 %v3627, 1.442695
        %v3641 = vpow.pop %v3640
        %v3642 = vmul.f32 %v3628, 1.442695
        %v3643 = vpow.pop %v3642
        %v3644 = vmul.f32 %v3629, 1.442695
        %v3645 = vpow.pop %v3644
        %v3646 = vadd.f32 %v3631, 1.0
        %v3647 = vadd.f32 %v3633, 1.0
        %v3648 = vadd.f32 %v3635, 1.0
        %v3649 = vadd.f32 %v3637, 1.0
        %v3650 = vadd.f32 %v3639, 1.0
        %v3651 = vadd.f32 %v3641, 1.0
        %v3652 = vadd.f32 %v3643, 1.0
        %v3653 = vadd.f32 %v3645, 1.0
        %v3654 = vrcp.pop %v3646
        %v3655 = vmul.f32 1.0, %v3654
        %v3656 = vrcp.pop %v3647
        %v3657 = vmul.f32 1.0, %v3656
        %v3658 = vrcp.pop %v3648
        %v3659 = vmul.f32 1.0, %v3658
        %v3660 = vrcp.pop %v3649
        %v3661 = vmul.f32 1.0, %v3660
        %v3662 = vrcp.pop %v3650
        %v3663 = vmul.f32 1.0, %v3662
        %v3664 = vrcp.pop %v3651
        %v3665 = vmul.f32 1.0, %v3664
        %v3666 = vrcp.pop %v3652
        %v3667 = vmul.f32 1.0, %v3666
        %v3668 = vrcp.pop %v3653
        %v3669 = vmul.f32 1.0, %v3668
        %v3670 = vmul.f32 %v3599, %v3550
        %v3671 = vmul.f32 %v3601, %v3551
        %v3672 = vmul.f32 %v3603, %v3552
        %v3673 = vmul.f32 %v3605, %v3553
        %v3674 = vmul.f32 %v3607, %v3554
        %v3675 = vmul.f32 %v3609, %v3555
        %v3676 = vmul.f32 %v3611, %v3556
        %v3677 = vmul.f32 %v3613, %v3557
        %v3678 = vadd.f32 %v3310, %v3670
        %v3679 = vadd.f32 %v3313, %v3671
        %v3680 = vadd.f32 %v3316, %v3672
        %v3681 = vadd.f32 %v3319, %v3673
        %v3682 = vadd.f32 %v3322, %v3674
        %v3683 = vadd.f32 %v3325, %v3675
        %v3684 = vadd.f32 %v3328, %v3676
        %v3685 = vadd.f32 %v3331, %v3677
        %v3686 = vtanh.pop %v3678
        %v3687 = vtanh.pop %v3679
        %v3688 = vtanh.pop %v3680
        %v3689 = vtanh.pop %v3681
        %v3690 = vtanh.pop %v3682
        %v3691 = vtanh.pop %v3683
        %v3692 = vtanh.pop %v3684
        %v3693 = vtanh.pop %v3685
        %v3694 = vsub.f32 %v2264, %v3686
        %v3695 = vsub.f32 %v2265, %v3687
        %v3696 = vsub.f32 %v2266, %v3688
        %v3697 = vsub.f32 %v2267, %v3689
        %v3698 = vsub.f32 %v2268, %v3690
        %v3699 = vsub.f32 %v2269, %v3691
        %v3700 = vsub.f32 %v2270, %v3692
        %v3701 = vsub.f32 %v2271, %v3693
        %v3702 = vmul.f32 %v3655, %v3694
        %v3703 = vmul.f32 %v3657, %v3695
        %v3704 = vmul.f32 %v3659, %v3696
        %v3705 = vmul.f32 %v3661, %v3697
        %v3706 = vmul.f32 %v3663, %v3698
        %v3707 = vmul.f32 %v3665, %v3699
        %v3708 = vmul.f32 %v3667, %v3700
        %v3709 = vmul.f32 %v3669, %v3701
        %v3710 = vadd.f32 %v3686, %v3702
        %v3711 = vadd.f32 %v3687, %v3703
        %v3712 = vadd.f32 %v3688, %v3704
        %v3713 = vadd.f32 %v3689, %v3705
        %v3714 = vadd.f32 %v3690, %v3706
        %v3715 = vadd.f32 %v3691, %v3707
        %v3716 = vadd.f32 %v3692, %v3708
        %v3717 = vadd.f32 %v3693, %v3709
        %3718 = vst [vmem:[%s397] sm:$0xff] %v3710
        %3719 = vst [vmem:[%s397 + $0x8] sm:$0xff] %v3711
        %3720 = vst [vmem:[%s397 + $0x10] sm:$0xff] %v3712
        %3721 = vst [vmem:[%s397 + $0x18] sm:$0xff] %v3713
        %3722 = vst [vmem:[%s397 + $0x20] sm:$0xff] %v3714
        %3723 = vst [vmem:[%s397 + $0x28] sm:$0xff] %v3715
        %3724 = vst [vmem:[%s397 + $0x30] sm:$0xff] %v3716
        %3725 = vst [vmem:[%s397 + $0x38] sm:$0xff] %v3717
        %s3726 = sand.u32 %s234, 1
        %s3727 = scalar_lea.sflag [#allocation4], %s3726
        %s3728 = sand.u32 %s234, 1
        %s3729 = smul.addr %s3728, 64
        %s3730 = scalar_lea.vmem [#allocation8], %s3729
        // Predicated region
        $region69: #{tpu_custom_call.1} parent=55 // pred_check
          %p3731 = pneg %p244
        $region70: #{tpu_custom_call.1} parent=55 // pred_check_branch
          %3733 = sbr.rel (%p3731) target = $region72
        $region71: #{tpu_custom_call.1} parent=55 // pred_region
          %s3734 = smul.u32 8, %s27
          %s3736 = ssub.s32 1024, 1024
          %3737 = vsyncadd %s3727, %s3736
          %s3738 = smul.addr %s3734, 128
          %s3739 = scalar_lea.hbm %s9, %s3738
          %s3740 = sshll.u32 %s3730, 4
          %s3741 = int_to_ptr.vmem [resolvable:$true] %s3740
          %3746 = dma.vmem_to_hbm [thread:$0]  %s3741, 1024, %s3739, %s3727, 128, 128, 8
        $region72: #{tpu_custom_call.1} parent=55 // pred_fallthru
          _
      $region56: #{tpu_custom_call.1} parent=5 // pred_fallthru
        _
      %p3747 = scmp.le.s32.totalorder 2, %s22
      // Predicated region
      $region73: #{tpu_custom_call.1} parent=5 // pred_check
        %p3748 = pneg %p3747
      $region74: #{tpu_custom_call.1} parent=5 // pred_check_branch
        %3750 = sbr.rel (%p3748) target = $region76
      $region75: #{tpu_custom_call.1} parent=5 // pred_region
        %s3751 = ssub.s32 %s22, 2
        // Predicated region
        $region77: #{tpu_custom_call.1} parent=75 // pred_check
          %p3752 = pneg %p250
        $region78: #{tpu_custom_call.1} parent=75 // pred_check_branch
          %3754 = sbr.rel (%p3752) target = $region80
        $region79: #{tpu_custom_call.1} parent=75 // pred_region
          %s3755 = sand.u32 %s235, 1
          %s3756 = scalar_lea.sflag [#allocation4], %s3755
          %s3757 = sand.u32 %s235, 1
          %s3758 = smul.addr %s3757, 64
          %s3759 = scalar_lea.vmem [#allocation8], %s3758
          %3760 = dma.done %s3756, 1024
        $region80: #{tpu_custom_call.1} parent=75 // pred_fallthru
          _
      $region76: #{tpu_custom_call.1} parent=5 // pred_fallthru
        _
    $region6: #{tpu_custom_call.1} parent=1 // loop_footer
      %s26 = sadd.s32 1, %s22
    $region7: #{tpu_custom_call.1} parent=1 // loop_footer_branch
      %21 = sbr.rel target = $region3
    $region8: #{tpu_custom_call.1} parent=1 // loop_exit
      _
    %3761 = vsyncpa [#allocation3], 1
    %s3762 = scalar_lea.sflag [#allocation3], 1
    %3763 = vsyncpa %s3762, 1
    %3764 = vsyncpa [#allocation6], 1
    %3765 = vsyncpa [#allocation4], 1
    %s3766 = scalar_lea.sflag [#allocation4], 1
    %3767 = vsyncpa %s3766, 1

// kernel: tpu_custom_call.1
$region0: #{tpu_custom_call.1}
  #allocation0 [shape = 'u32[]', space=smem, size = 0x4, offset = 0x4, fixed_abs, tag = 'smem constant byte address 0x4 - core index']
  #allocation1 [shape = 'u32[144,128]{1,0:T(1,128)}', space=vmem, size = 0x12000, scoped, tag = 'internal scratch']
  %s0 = inlined_call_operand.vmem [shape: f32[16,16,8], index: 0, kind: input, shape index: {}]
  %s1 = inlined_call_operand.hbm [shape: f32[16,8,128], index: 1, kind: input, shape index: {}]
  %s2 = inlined_call_operand.vmem [shape: f32[128,384], index: 2, kind: input, shape index: {}]
  %s3 = inlined_call_operand.hbm [shape: f32[128,384], index: 3, kind: input, shape index: {}]
  %s4 = inlined_call_operand.hbm [shape: f32[128,384], index: 4, kind: input, shape index: {}]
  %s5 = inlined_call_operand.vmem [shape: f32[1,384], index: 5, kind: input, shape index: {}]
  %s6 = inlined_call_operand.vmem [shape: f32[1,384], index: 6, kind: input, shape index: {}]
  %s7 = inlined_call_operand.vmem [shape: f32[1,384], index: 7, kind: input, shape index: {}]
  %s8 = inlined_call_operand.vmem [shape: f32[1,128], index: 8, kind: input, shape index: {}]
  %s9 = inlined_call_operand.hbm [shape: f32[16,8,128], index: 9, kind: output, shape index: {}]
  %s10 = sld [smem:[#allocation0]]
  $region81: #{tpu_custom_call.1} parent=0
    _
  %s12 = ssub.s32 1, %s10
  %s13 = scalar_select 0, %s12, %s10
  $region1: #{tpu_custom_call.1} parent=0
    #allocation2 [shape = 'u8[65536]{0}', space=vmem, size = 0x10000, scoped, tag = 'input window, operand 1']
    #allocation3 [shape = 's32[2]{0}', space=sflag, size = 0x8, scoped, tag = 'scoped memory for tpu_custom_call.1']
    #allocation4 [shape = 's32[2]{0}', space=sflag, size = 0x8, scoped, tag = 'scoped memory for tpu_custom_call.1']
    #allocation5 [shape = 'u8[196608]{0}', space=vmem, size = 0x30000, scoped, tag = 'input window, operand 3, single buffered']
    #allocation6 [shape = 's32[1]{0}', space=sflag, size = 0x4, scoped, tag = 'scoped memory for tpu_custom_call.1']
    #allocation7 [shape = 'u8[196608]{0}', space=vmem, size = 0x30000, scoped, tag = 'input window, operand 4, single buffered']
    #allocation8 [shape = 'u8[65536]{0}', space=vmem, size = 0x10000, scoped, tag = 'output window, operand 0']
    %14 = vsyncpa [#allocation3], 0
    %s15 = scalar_lea.sflag [#allocation3], 1
    %16 = vsyncpa %s15, 0
    %17 = vsyncpa [#allocation6], 0
    %18 = vsyncpa [#allocation4], 0
    %s19 = scalar_lea.sflag [#allocation4], 1
    %20 = vsyncpa %s19, 0
    loop: start=0, step=1, limit=4
    $region2: #{tpu_custom_call.1} parent=1 // loop_pre_header
      _
    $region3: #{tpu_custom_call.1} parent=1 // loop_header
      %s22 = sphi 0, %s26
      %p23 = scmp.ge.s32.totalorder %s22, 4
      %s32 = sphi 0, %s34
      %s35 = sphi 0, %s32
      %s36 = sphi 0, %s35
      %s52 = sphi 0, %s36
      %s58 = sphi 0, %s60
      %s61 = sphi 0, %s58
      %s62 = sphi 0, %s61
      %s78 = sphi 0, %s62
      %s82 = sphi 0, %s82
      %s84 = sphi 0, %s82
      %s85 = sphi 0, %s84
      %s99 = sphi 0, %s85
      %s103 = sphi 0, %s103
      %s105 = sphi 0, %s103
      %s106 = sphi 0, %s105
      %s120 = sphi 0, %s106
      %s124 = sphi 0, %s124
      %s126 = sphi 0, %s124
      %s127 = sphi 0, %s126
      %s141 = sphi 0, %s127
      %s145 = sphi 0, %s145
      %s147 = sphi 0, %s145
      %s148 = sphi 0, %s147
      %s162 = sphi 0, %s148
      %s166 = sphi 0, %s166
      %s168 = sphi 0, %s166
      %s169 = sphi 0, %s168
      %s183 = sphi 0, %s169
      %s187 = sphi 0, %s187
      %s189 = sphi 0, %s187
      %s190 = sphi 0, %s189
      %s204 = sphi 0, %s190
      %s208 = sphi 0, %s208
      %s210 = sphi 0, %s208
      %s211 = sphi 0, %s210
      %s225 = sphi 0, %s211
      %s231 = sphi 0, %s233
      %s234 = sphi 0, %s231
      %s235 = sphi 0, %s234
      %s251 = sphi 0, %s235
    $region4: #{tpu_custom_call.1} parent=1 // loop_header_branch
      %25 = sbr.rel (%p23) target = $region8
    $region5: #{tpu_custom_call.1} parent=1 // loop_body
      %s27 = ssub.s32 %s22, 1
      %s28 = ssub.s32 %s22, 2
      %s29 = sadd.s32 %s22, 1
      %s30 = ssub.s32 %s22, %s29
      %p31 = scmp.eq.s32.totalorder %s30, 0
      %s33 = sadd.s32 %s32, 1
      %s34 = scalar_select %p31, %s32, %s33
      %p37 = pneg %p31
      %p38 = scmp.eq.s32.totalorder %s22, 1
      %p39 = por %p37, %p38
      %p40 = scmp.ne.s32.totalorder %s32, %s35
      %p41 = scmp.eq.s32.totalorder %s22, 0
      %p42 = por %p40, %p41
      %p43 = scmp.ne.s32.totalorder %s32, %s35
      %p44 = scmp.eq.s32.totalorder %s27, 1
      %p45 = por %p43, %p44
      %p46 = scmp.ne.s32.totalorder %s35, %s36
      %p47 = scmp.eq.s32.totalorder %s27, 0
      %p48 = por %p46, %p47
      %p49 = scmp.ne.s32.totalorder %s35, %s36
      %p50 = scmp.eq.s32.totalorder %s28, 1
      %p51 = por %p49, %p50
      %p53 = scmp.ne.s32.totalorder %s36, %s52
      %p54 = scmp.eq.s32.totalorder %s28, 0
      %p55 = por %p53, %p54
      %s56 = ssub.s32 %s22, %s29
      %p57 = scmp.eq.s32.totalorder %s56, 0
      %s59 = sadd.s32 %s58, 1
      %s60 = scalar_select %p57, %s58, %s59
      %p63 = pneg %p57
      %p64 = scmp.eq.s32.totalorder %s22, 1
      %p65 = por %p63, %p64
      %p66 = scmp.ne.s32.totalorder %s58, %s61
      %p67 = scmp.eq.s32.totalorder %s22, 0
      %p68 = por %p66, %p67
      %p69 = scmp.ne.s32.totalorder %s58, %s61
      %p70 = scmp.eq.s32.totalorder %s27, 1
      %p71 = por %p69, %p70
      %p72 = scmp.ne.s32.totalorder %s61, %s62
      %p73 = scmp.eq.s32.totalorder %s27, 0
      %p74 = por %p72, %p73
      %p75 = scmp.ne.s32.totalorder %s61, %s62
      %p76 = scmp.eq.s32.totalorder %s28, 1
      %p77 = por %p75, %p76
      %p79 = scmp.ne.s32.totalorder %s62, %s78
      %p80 = scmp.eq.s32.totalorder %s28, 0
      %p81 = por %p79, %p80
      %s83 = sadd.s32 %s82, 1
      %p86 = scmp.eq.s32.totalorder %s22, 1
      %p87 = scmp.ne.s32.totalorder %s82, %s84
      %p88 = scmp.eq.s32.totalorder %s22, 0
      %p89 = por %p87, %p88
      %p90 = scmp.ne.s32.totalorder %s82, %s84
      %p91 = scmp.eq.s32.totalorder %s27, 1
      %p92 = por %p90, %p91
      %p93 = scmp.ne.s32.totalorder %s84, %s85
      %p94 = scmp.eq.s32.totalorder %s27, 0
      %p95 = por %p93, %p94
      %p96 = scmp.ne.s32.totalorder %s84, %s85
      %p97 = scmp.eq.s32.totalorder %s28, 1
      %p98 = por %p96, %p97
      %p100 = scmp.ne.s32.totalorder %s85, %s99
      %p101 = scmp.eq.s32.totalorder %s28, 0
      %p102 = por %p100, %p101
      %s104 = sadd.s32 %s103, 1
      %p107 = scmp.eq.s32.totalorder %s22, 1
      %p108 = scmp.ne.s32.totalorder %s103, %s105
      %p109 = scmp.eq.s32.totalorder %s22, 0
      %p110 = por %p108, %p109
      %p111 = scmp.ne.s32.totalorder %s103, %s105
      %p112 = scmp.eq.s32.totalorder %s27, 1
      %p113 = por %p111, %p112
      %p114 = scmp.ne.s32.totalorder %s105, %s106
      %p115 = scmp.eq.s32.totalorder %s27, 0
      %p116 = por %p114, %p115
      %p117 = scmp.ne.s32.totalorder %s105, %s106
      %p118 = scmp.eq.s32.totalorder %s28, 1
      %p119 = por %p117, %p118
      %p121 = scmp.ne.s32.totalorder %s106, %s120
      %p122 = scmp.eq.s32.totalorder %s28, 0
      %p123 = por %p121, %p122
      %s125 = sadd.s32 %s124, 1
      %p128 = scmp.eq.s32.totalorder %s22, 1
      %p129 = scmp.ne.s32.totalorder %s124, %s126
      %p130 = scmp.eq.s32.totalorder %s22, 0
      %p131 = por %p129, %p130
      %p132 = scmp.ne.s32.totalorder %s124, %s126
      %p133 = scmp.eq.s32.totalorder %s27, 1
      %p134 = por %p132, %p133
      %p135 = scmp.ne.s32.totalorder %s126, %s127
      %p136 = scmp.eq.s32.totalorder %s27, 0
      %p137 = por %p135, %p136
      %p138 = scmp.ne.s32.totalorder %s126, %s127
      %p139 = scmp.eq.s32.totalorder %s28, 1
      %p140 = por %p138, %p139
      %p142 = scmp.ne.s32.totalorder %s127, %s141
      %p143 = scmp.eq.s32.totalorder %s28, 0
      %p144 = por %p142, %p143
      %s146 = sadd.s32 %s145, 1
      %p149 = scmp.eq.s32.totalorder %s22, 1
      %p150 = scmp.ne.s32.totalorder %s145, %s147
      %p151 = scmp.eq.s32.totalorder %s22, 0
      %p152 = por %p150, %p151
      %p153 = scmp.ne.s32.totalorder %s145, %s147
      %p154 = scmp.eq.s32.totalorder %s27, 1
      %p155 = por %p153, %p154
      %p156 = scmp.ne.s32.totalorder %s147, %s148
      %p157 = scmp.eq.s32.totalorder %s27, 0
      %p158 = por %p156, %p157
      %p159 = scmp.ne.s32.totalorder %s147, %s148
      %p160 = scmp.eq.s32.totalorder %s28, 1
      %p161 = por %p159, %p160
      %p163 = scmp.ne.s32.totalorder %s148, %s162
      %p164 = scmp.eq.s32.totalorder %s28, 0
      %p165 = por %p163, %p164
      %s167 = sadd.s32 %s166, 1
      %p170 = scmp.eq.s32.totalorder %s22, 1
      %p171 = scmp.ne.s32.totalorder %s166, %s168
      %p172 = scmp.eq.s32.totalorder %s22, 0
      %p173 = por %p171, %p172
      %p174 = scmp.ne.s32.totalorder %s166, %s168
      %p175 = scmp.eq.s32.totalorder %s27, 1
      %p176 = por %p174, %p175
      %p177 = scmp.ne.s32.totalorder %s168, %s169
      %p178 = scmp.eq.s32.totalorder %s27, 0
      %p179 = por %p177, %p178
      %p180 = scmp.ne.s32.totalorder %s168, %s169
      %p181 = scmp.eq.s32.totalorder %s28, 1
      %p182 = por %p180, %p181
      %p184 = scmp.ne.s32.totalorder %s169, %s183
      %p185 = scmp.eq.s32.totalorder %s28, 0
      %p186 = por %p184, %p185
      %s188 = sadd.s32 %s187, 1
      %p191 = scmp.eq.s32.totalorder %s22, 1
      %p192 = scmp.ne.s32.totalorder %s187, %s189
      %p193 = scmp.eq.s32.totalorder %s22, 0
      %p194 = por %p192, %p193
      %p195 = scmp.ne.s32.totalorder %s187, %s189
      %p196 = scmp.eq.s32.totalorder %s27, 1
      %p197 = por %p195, %p196
      %p198 = scmp.ne.s32.totalorder %s189, %s190
      %p199 = scmp.eq.s32.totalorder %s27, 0
      %p200 = por %p198, %p199
      %p201 = scmp.ne.s32.totalorder %s189, %s190
      %p202 = scmp.eq.s32.totalorder %s28, 1
      %p203 = por %p201, %p202
      %p205 = scmp.ne.s32.totalorder %s190, %s204
      %p206 = scmp.eq.s32.totalorder %s28, 0
      %p207 = por %p205, %p206
      %s209 = sadd.s32 %s208, 1
      %p212 = scmp.eq.s32.totalorder %s22, 1
      %p213 = scmp.ne.s32.totalorder %s208, %s210
      %p214 = scmp.eq.s32.totalorder %s22, 0
      %p215 = por %p213, %p214
      %p216 = scmp.ne.s32.totalorder %s208, %s210
      %p217 = scmp.eq.s32.totalorder %s27, 1
      %p218 = por %p216, %p217
      %p219 = scmp.ne.s32.totalorder %s210, %s211
      %p220 = scmp.eq.s32.totalorder %s27, 0
      %p221 = por %p219, %p220
      %p222 = scmp.ne.s32.totalorder %s210, %s211
      %p223 = scmp.eq.s32.totalorder %s28, 1
      %p224 = por %p222, %p223
      %p226 = scmp.ne.s32.totalorder %s211, %s225
      %p227 = scmp.eq.s32.totalorder %s28, 0
      %p228 = por %p226, %p227
      %s229 = ssub.s32 %s22, %s29
      %p230 = scmp.eq.s32.totalorder %s229, 0
      %s232 = sadd.s32 %s231, 1
      %s233 = scalar_select %p230, %s231, %s232
      %p236 = pneg %p230
      %p237 = scmp.eq.s32.totalorder %s22, 1
      %p238 = por %p236, %p237
      %p239 = scmp.ne.s32.totalorder %s231, %s234
      %p240 = scmp.eq.s32.totalorder %s22, 0
      %p241 = por %p239, %p240
      %p242 = scmp.ne.s32.totalorder %s231, %s234
      %p243 = scmp.eq.s32.totalorder %s27, 1
      %p244 = por %p242, %p243
      %p245 = scmp.ne.s32.totalorder %s234, %s235
      %p246 = scmp.eq.s32.totalorder %s27, 0
      %p247 = por %p245, %p246
      %p248 = scmp.ne.s32.totalorder %s234, %s235
      %p249 = scmp.eq.s32.totalorder %s28, 1
      %p250 = por %p248, %p249
      %p252 = scmp.ne.s32.totalorder %s235, %s251
      %p253 = scmp.eq.s32.totalorder %s28, 0
      %p254 = por %p252, %p253
      %p255 = scmp.le.s32.totalorder 1, %s22
      %p256 = scmp.lt.s32.totalorder %s22, 3
      %p257 = pnand %p255, %p256
      %p258 = pneg %p257
      // Predicated region
      $region9: #{tpu_custom_call.1} parent=5 // pred_check
        _
      $region10: #{tpu_custom_call.1} parent=5 // pred_check_branch
        %260 = sbr.rel (%p257) target = $region12
      $region11: #{tpu_custom_call.1} parent=5 // pred_region
        %s261 = ssub.s32 %s22, 1
        // Predicated region
        $region13: #{tpu_custom_call.1} parent=11 // pred_check
          %p262 = pneg %p95
        $region14: #{tpu_custom_call.1} parent=11 // pred_check_branch
          %264 = sbr.rel (%p262) target = $region16
        $region15: #{tpu_custom_call.1} parent=11 // pred_region
          _
        $region16: #{tpu_custom_call.1} parent=11 // pred_fallthru
          _
        // Predicated region
        $region17: #{tpu_custom_call.1} parent=11 // pred_check
          %p265 = pneg %p116
        $region18: #{tpu_custom_call.1} parent=11 // pred_check_branch
          %267 = sbr.rel (%p265) target = $region20
        $region19: #{tpu_custom_call.1} parent=11 // pred_region
          %s269 = ssub.s32 6144, 6144
          %270 = vsyncadd [#allocation6], %s269
          %s271 = sshll.u32 [#allocation5], 4
          %s272 = int_to_ptr.vmem [resolvable:$true] %s271
          %277 = dma.hbm_to_vmem [thread:$0]  %s3, 6144, %s272, [#allocation6], 384, 384, 24
        $region20: #{tpu_custom_call.1} parent=11 // pred_fallthru
          _
        // Predicated region
        $region21: #{tpu_custom_call.1} parent=11 // pred_check
          %p278 = pneg %p137
        $region22: #{tpu_custom_call.1} parent=11 // pred_check_branch
          %280 = sbr.rel (%p278) target = $region24
        $region23: #{tpu_custom_call.1} parent=11 // pred_region
          %s282 = ssub.s32 6144, 6144
          %283 = vsyncadd [#allocation6], %s282
          %s284 = sshll.u32 [#allocation7], 4
          %s285 = int_to_ptr.vmem [resolvable:$true] %s284
          %290 = dma.hbm_to_vmem [thread:$0]  %s4, 6144, %s285, [#allocation6], 384, 384, 24
        $region24: #{tpu_custom_call.1} parent=11 // pred_fallthru
          _
        // Predicated region
        $region25: #{tpu_custom_call.1} parent=11 // pred_check
          %p291 = pneg %p158
        $region26: #{tpu_custom_call.1} parent=11 // pred_check_branch
          %293 = sbr.rel (%p291) target = $region28
        $region27: #{tpu_custom_call.1} parent=11 // pred_region
          _
        $region28: #{tpu_custom_call.1} parent=11 // pred_fallthru
          _
        // Predicated region
        $region29: #{tpu_custom_call.1} parent=11 // pred_check
          %p294 = pneg %p179
        $region30: #{tpu_custom_call.1} parent=11 // pred_check_branch
          %296 = sbr.rel (%p294) target = $region32
        $region31: #{tpu_custom_call.1} parent=11 // pred_region
          _
        $region32: #{tpu_custom_call.1} parent=11 // pred_fallthru
          _
        // Predicated region
        $region33: #{tpu_custom_call.1} parent=11 // pred_check
          %p297 = pneg %p200
        $region34: #{tpu_custom_call.1} parent=11 // pred_check_branch
          %299 = sbr.rel (%p297) target = $region36
        $region35: #{tpu_custom_call.1} parent=11 // pred_region
          _
        $region36: #{tpu_custom_call.1} parent=11 // pred_fallthru
          _
        // Predicated region
        $region37: #{tpu_custom_call.1} parent=11 // pred_check
          %p300 = pneg %p221
        $region38: #{tpu_custom_call.1} parent=11 // pred_check_branch
          %302 = sbr.rel (%p300) target = $region40
        $region39: #{tpu_custom_call.1} parent=11 // pred_region
          _
        $region40: #{tpu_custom_call.1} parent=11 // pred_fallthru
          _
      $region12: #{tpu_custom_call.1} parent=5 // pred_fallthru
        _
      %p303 = scmp.lt.s32.totalorder %s22, 2
      // Predicated region
      $region41: #{tpu_custom_call.1} parent=5 // pred_check
        %p304 = pneg %p303
      $region42: #{tpu_custom_call.1} parent=5 // pred_check_branch
        %306 = sbr.rel (%p304) target = $region44
      $region43: #{tpu_custom_call.1} parent=5 // pred_region
        // Predicated region
        $region45: #{tpu_custom_call.1} parent=43 // pred_check
          %p307 = pneg %p42
        $region46: #{tpu_custom_call.1} parent=43 // pred_check_branch
          %309 = sbr.rel (%p307) target = $region48
        $region47: #{tpu_custom_call.1} parent=43 // pred_region
          %s310 = smul.u32 8, %s22
          %p311 = scmp.lt.s32.totalorder %s310, 15
          %s312 = scalar_select %p311, %s310, 15
          %s313 = smul.addr %s312, 2
          %s314 = smul.addr %s313, 8
          %s315 = scalar_lea.vmem %s0, %s314
          %s316 = smul.u32 8, %s22
        $region48: #{tpu_custom_call.1} parent=43 // pred_fallthru
          _
        // Predicated region
        $region49: #{tpu_custom_call.1} parent=43 // pred_check
          %p317 = pneg %p68
        $region50: #{tpu_custom_call.1} parent=43 // pred_check_branch
          %319 = sbr.rel (%p317) target = $region52
        $region51: #{tpu_custom_call.1} parent=43 // pred_region
          %s320 = sand.u32 %s58, 1
          %s321 = scalar_lea.sflag [#allocation3], %s320
          %s322 = sand.u32 %s58, 1
          %s323 = smul.addr %s322, 64
          %s324 = scalar_lea.vmem [#allocation2], %s323
          %s325 = smul.u32 8, %s22
          %s327 = ssub.s32 1024, 1024
          %328 = vsyncadd %s321, %s327
          %s329 = smul.addr %s325, 128
          %s330 = scalar_lea.hbm %s1, %s329
          %s331 = sshll.u32 %s324, 4
          %s332 = int_to_ptr.vmem [resolvable:$true] %s331
          %337 = dma.hbm_to_vmem [thread:$0]  %s330, 1024, %s332, %s321, 128, 128, 8
        $region52: #{tpu_custom_call.1} parent=43 // pred_fallthru
          _
      $region44: #{tpu_custom_call.1} parent=5 // pred_fallthru
        _
      %p338 = scmp.le.s32.totalorder 1, %s22
      %p339 = scmp.lt.s32.totalorder %s22, 3
      %p340 = pnand %p338, %p339
      %p341 = pneg %p340
      // Predicated region
      $region53: #{tpu_custom_call.1} parent=5 // pred_check
        _
      $region54: #{tpu_custom_call.1} parent=5 // pred_check_branch
        %343 = sbr.rel (%p340) target = $region56
      $region55: #{tpu_custom_call.1} parent=5 // pred_region
        %s344 = ssub.s32 %s22, 1
        %s345 = sand.u32 %s61, 1
        %s346 = scalar_lea.sflag [#allocation3], %s345
        %s347 = sand.u32 %s61, 1
        %s348 = smul.addr %s347, 64
        %s349 = scalar_lea.vmem [#allocation2], %s348
        // Predicated region
        $region57: #{tpu_custom_call.1} parent=55 // pred_check
          %p350 = pneg %p74
        $region58: #{tpu_custom_call.1} parent=55 // pred_check_branch
          %352 = sbr.rel (%p350) target = $region60
        $region59: #{tpu_custom_call.1} parent=55 // pred_region
          %353 = dma.done %s346, 1024
        $region60: #{tpu_custom_call.1} parent=55 // pred_fallthru
          _
        // Predicated region
        $region61: #{tpu_custom_call.1} parent=55 // pred_check
          %p354 = pneg %p116
        $region62: #{tpu_custom_call.1} parent=55 // pred_check_branch
          %356 = sbr.rel (%p354) target = $region64
        $region63: #{tpu_custom_call.1} parent=55 // pred_region
          %357 = dma.done [#allocation6], 6144
        $region64: #{tpu_custom_call.1} parent=55 // pred_fallthru
          _
        // Predicated region
        $region65: #{tpu_custom_call.1} parent=55 // pred_check
          %p358 = pneg %p137
        $region66: #{tpu_custom_call.1} parent=55 // pred_check_branch
          %360 = sbr.rel (%p358) target = $region68
        $region67: #{tpu_custom_call.1} parent=55 // pred_region
          %361 = dma.done [#allocation6], 6144
        $region68: #{tpu_custom_call.1} parent=55 // pred_fallthru
          _
        %s362 = smul.u32 8, %s27
        %p363 = scmp.lt.s32.totalorder %s362, 15
        %s364 = scalar_select %p363, %s362, 15
        %s365 = smul.addr %s364, 2
        %s366 = smul.addr %s365, 8
        %s367 = scalar_lea.vmem %s0, %s366
        %p368 = pneg %p48
        %p369 = pneg %p45
        %s370 = sand.u32 %s61, 1
        %s371 = scalar_lea.sflag [#allocation3], %s370
        %s372 = sand.u32 %s61, 1
        %s373 = smul.addr %s372, 64
        %s374 = scalar_lea.vmem [#allocation2], %s373
        %p375 = pneg %p74
        %p376 = pneg %p71
        %p377 = pneg %p95
        %p378 = pneg %p92
        %p379 = pneg %p116
        %p380 = pneg %p113
        %p381 = pneg %p137
        %p382 = pneg %p134
        %p383 = pneg %p158
        %p384 = pneg %p155
        %p385 = pneg %p179
        %p386 = pneg %p176
        %p387 = pneg %p200
        %p388 = pneg %p197
        %p389 = pneg %p221
        %p390 = pneg %p218
        %p391 = pneg %p247
        %p392 = pneg %p244
        %s393 = sand.u32 %s234, 1
        %s394 = scalar_lea.sflag [#allocation4], %s393
        %s395 = sand.u32 %s234, 1
        %s396 = smul.addr %s395, 64
        %s397 = scalar_lea.vmem [#allocation8], %s396
        %s398 = smul.u32 8, %s27
        %p399 = scmp.lt.s32.totalorder %s398, 15
        %s400 = scalar_select %p399, %s398, 15
        %s401 = smul.addr %s400, 2
        %s402 = smul.addr %s401, 8
        %s403 = scalar_lea.vmem %s0, %s402
        %s404 = smul.u32 8, %s27
        %s405 = smul.u32 8, %s27
        %s406 = smul.u32 8, %s27
        %v407 = vld [vmem:[%s403] sm:$0xff]
        %v408 = vld [vmem:[%s403 + $0x8] sm:$0xff]
        %v409 = vld [vmem:[%s403 + $0x10] sm:$0xff]
        %v410 = vld [vmem:[%s403 + $0x18] sm:$0xff]
        %v411 = vld [vmem:[%s403 + $0x20] sm:$0xff]
        %v412 = vld [vmem:[%s403 + $0x28] sm:$0xff]
        %v413 = vld [vmem:[%s403 + $0x30] sm:$0xff]
        %v414 = vld [vmem:[%s403 + $0x38] sm:$0xff]
        %v415 = vld [vmem:[%s403 + $0x40] sm:$0xff]
        %v416 = vld [vmem:[%s403 + $0x48] sm:$0xff]
        %v417 = vld [vmem:[%s403 + $0x50] sm:$0xff]
        %v418 = vld [vmem:[%s403 + $0x58] sm:$0xff]
        %v419 = vld [vmem:[%s403 + $0x60] sm:$0xff]
        %v420 = vld [vmem:[%s403 + $0x68] sm:$0xff]
        %v421 = vld [vmem:[%s403 + $0x70] sm:$0xff]
        %v422 = vld [vmem:[%s403 + $0x78] sm:$0xff]
        %v423 = vld [vmem:[%s2] sm:$0xff]
        %v424 = vld [vmem:[%s2 + $0x8] sm:$0xff]
        %v425 = vld [vmem:[%s2 + $0x10] sm:$0xff]
        %v426 = vld [vmem:[%s2 + $0x18] sm:$0xff]
        %v427 = vld [vmem:[%s2 + $0x20] sm:$0xff]
        %v428 = vld [vmem:[%s2 + $0x28] sm:$0xff]
        %v429 = vld [vmem:[%s2 + $0x30] sm:$0xff]
        %v430 = vld [vmem:[%s2 + $0x38] sm:$0xff]
        %v431 = vld [vmem:[%s2 + $0x40] sm:$0xff]
        %v432 = vld [vmem:[%s2 + $0x48] sm:$0xff]
        %v433 = vld [vmem:[%s2 + $0x50] sm:$0xff]
        %v434 = vld [vmem:[%s2 + $0x58] sm:$0xff]
        %v435 = vld [vmem:[%s2 + $0x60] sm:$0xff]
        %v436 = vld [vmem:[%s2 + $0x68] sm:$0xff]
        %v437 = vld [vmem:[%s2 + $0x70] sm:$0xff]
        %v438 = vld [vmem:[%s2 + $0x78] sm:$0xff]
        %v439 = vld [vmem:[%s2 + $0x80] sm:$0xff]
        %v440 = vld [vmem:[%s2 + $0x88] sm:$0xff]
        %v441 = vld [vmem:[%s2 + $0x90] sm:$0xff]
        %v442 = vld [vmem:[%s2 + $0x98] sm:$0xff]
        %v443 = vld [vmem:[%s2 + $0xa0] sm:$0xff]
        %v444 = vld [vmem:[%s2 + $0xa8] sm:$0xff]
        %v445 = vld [vmem:[%s2 + $0xb0] sm:$0xff]
        %v446 = vld [vmem:[%s2 + $0xb8] sm:$0xff]
        %v447 = vld [vmem:[%s2 + $0xc0] sm:$0xff]
        %v448 = vld [vmem:[%s2 + $0xc8] sm:$0xff]
        %v449 = vld [vmem:[%s2 + $0xd0] sm:$0xff]
        %v450 = vld [vmem:[%s2 + $0xd8] sm:$0xff]
        %v451 = vld [vmem:[%s2 + $0xe0] sm:$0xff]
        %v452 = vld [vmem:[%s2 + $0xe8] sm:$0xff]
        %v453 = vld [vmem:[%s2 + $0xf0] sm:$0xff]
        %v454 = vld [vmem:[%s2 + $0xf8] sm:$0xff]
        %v455 = vld [vmem:[%s2 + $0x100] sm:$0xff]
        %v456 = vld [vmem:[%s2 + $0x108] sm:$0xff]
        %v457 = vld [vmem:[%s2 + $0x110] sm:$0xff]
        %v458 = vld [vmem:[%s2 + $0x118] sm:$0xff]
        %v459 = vld [vmem:[%s2 + $0x120] sm:$0xff]
        %v460 = vld [vmem:[%s2 + $0x128] sm:$0xff]
        %v461 = vld [vmem:[%s2 + $0x130] sm:$0xff]
        %v462 = vld [vmem:[%s2 + $0x138] sm:$0xff]
        %v463 = vld [vmem:[%s2 + $0x140] sm:$0xff]
        %v464 = vld [vmem:[%s2 + $0x148] sm:$0xff]
        %v465 = vld [vmem:[%s2 + $0x150] sm:$0xff]
        %v466 = vld [vmem:[%s2 + $0x158] sm:$0xff]
        %v467 = vld [vmem:[%s2 + $0x160] sm:$0xff]
        %v468 = vld [vmem:[%s2 + $0x168] sm:$0xff]
        %v469 = vld [vmem:[%s2 + $0x170] sm:$0xff]
        %v470 = vld [vmem:[%s2 + $0x178] sm:$0xff]
        %v471 = vld [vmem:[#allocation5] sm:$0xff]
        %v472 = vld [vmem:[#allocation5 + $0x8] sm:$0xff]
        %v473 = vld [vmem:[#allocation5 + $0x10] sm:$0xff]
        %v474 = vld [vmem:[#allocation5 + $0x18] sm:$0xff]
        %v475 = vld [vmem:[#allocation5 + $0x20] sm:$0xff]
        %v476 = vld [vmem:[#allocation5 + $0x28] sm:$0xff]
        %v477 = vld [vmem:[#allocation5 + $0x30] sm:$0xff]
        %v478 = vld [vmem:[#allocation5 + $0x38] sm:$0xff]
        %v479 = vld [vmem:[#allocation5 + $0x40] sm:$0xff]
        %v480 = vld [vmem:[#allocation5 + $0x48] sm:$0xff]
        %v481 = vld [vmem:[#allocation5 + $0x50] sm:$0xff]
        %v482 = vld [vmem:[#allocation5 + $0x58] sm:$0xff]
        %v483 = vld [vmem:[#allocation5 + $0x60] sm:$0xff]
        %v484 = vld [vmem:[#allocation5 + $0x68] sm:$0xff]
        %v485 = vld [vmem:[#allocation5 + $0x70] sm:$0xff]
        %v486 = vld [vmem:[#allocation5 + $0x78] sm:$0xff]
        %v487 = vld [vmem:[#allocation5 + $0x80] sm:$0xff]
        %v488 = vld [vmem:[#allocation5 + $0x88] sm:$0xff]
        %v489 = vld [vmem:[#allocation5 + $0x90] sm:$0xff]
        %v490 = vld [vmem:[#allocation5 + $0x98] sm:$0xff]
        %v491 = vld [vmem:[#allocation5 + $0xa0] sm:$0xff]
        %v492 = vld [vmem:[#allocation5 + $0xa8] sm:$0xff]
        %v493 = vld [vmem:[#allocation5 + $0xb0] sm:$0xff]
        %v494 = vld [vmem:[#allocation5 + $0xb8] sm:$0xff]
        %v495 = vld [vmem:[#allocation5 + $0xc0] sm:$0xff]
        %v496 = vld [vmem:[#allocation5 + $0xc8] sm:$0xff]
        %v497 = vld [vmem:[#allocation5 + $0xd0] sm:$0xff]
        %v498 = vld [vmem:[#allocation5 + $0xd8] sm:$0xff]
        %v499 = vld [vmem:[#allocation5 + $0xe0] sm:$0xff]
        %v500 = vld [vmem:[#allocation5 + $0xe8] sm:$0xff]
        %v501 = vld [vmem:[#allocation5 + $0xf0] sm:$0xff]
        %v502 = vld [vmem:[#allocation5 + $0xf8] sm:$0xff]
        %v503 = vld [vmem:[#allocation5 + $0x100] sm:$0xff]
        %v504 = vld [vmem:[#allocation5 + $0x108] sm:$0xff]
        %v505 = vld [vmem:[#allocation5 + $0x110] sm:$0xff]
        %v506 = vld [vmem:[#allocation5 + $0x118] sm:$0xff]
        %v507 = vld [vmem:[#allocation5 + $0x120] sm:$0xff]
        %v508 = vld [vmem:[#allocation5 + $0x128] sm:$0xff]
        %v509 = vld [vmem:[#allocation5 + $0x130] sm:$0xff]
        %v510 = vld [vmem:[#allocation5 + $0x138] sm:$0xff]
        %v511 = vld [vmem:[#allocation5 + $0x140] sm:$0xff]
        %v512 = vld [vmem:[#allocation5 + $0x148] sm:$0xff]
        %v513 = vld [vmem:[#allocation5 + $0x150] sm:$0xff]
        %v514 = vld [vmem:[#allocation5 + $0x158] sm:$0xff]
        %v515 = vld [vmem:[#allocation5 + $0x160] sm:$0xff]
        %v516 = vld [vmem:[#allocation5 + $0x168] sm:$0xff]
        %v517 = vld [vmem:[#allocation5 + $0x170] sm:$0xff]
        %v518 = vld [vmem:[#allocation5 + $0x178] sm:$0xff]
        %v519 = vld [vmem:[#allocation7] sm:$0xff]
        %v520 = vld [vmem:[#allocation7 + $0x8] sm:$0xff]
        %v521 = vld [vmem:[#allocation7 + $0x10] sm:$0xff]
        %v522 = vld [vmem:[#allocation7 + $0x18] sm:$0xff]
        %v523 = vld [vmem:[#allocation7 + $0x20] sm:$0xff]
        %v524 = vld [vmem:[#allocation7 + $0x28] sm:$0xff]
        %v525 = vld [vmem:[#allocation7 + $0x30] sm:$0xff]
        %v526 = vld [vmem:[#allocation7 + $0x38] sm:$0xff]
        %v527 = vld [vmem:[#allocation7 + $0x40] sm:$0xff]
        %v528 = vld [vmem:[#allocation7 + $0x48] sm:$0xff]
        %v529 = vld [vmem:[#allocation7 + $0x50] sm:$0xff]
        %v530 = vld [vmem:[#allocation7 + $0x58] sm:$0xff]
        %v531 = vld [vmem:[#allocation7 + $0x60] sm:$0xff]
        %v532 = vld [vmem:[#allocation7 + $0x68] sm:$0xff]
        %v533 = vld [vmem:[#allocation7 + $0x70] sm:$0xff]
        %v534 = vld [vmem:[#allocation7 + $0x78] sm:$0xff]
        %v535 = vld [vmem:[#allocation7 + $0x80] sm:$0xff]
        %v536 = vld [vmem:[#allocation7 + $0x88] sm:$0xff]
        %v537 = vld [vmem:[#allocation7 + $0x90] sm:$0xff]
        %v538 = vld [vmem:[#allocation7 + $0x98] sm:$0xff]
        %v539 = vld [vmem:[#allocation7 + $0xa0] sm:$0xff]
        %v540 = vld [vmem:[#allocation7 + $0xa8] sm:$0xff]
        %v541 = vld [vmem:[#allocation7 + $0xb0] sm:$0xff]
        %v542 = vld [vmem:[#allocation7 + $0xb8] sm:$0xff]
        %v543 = vld [vmem:[#allocation7 + $0xc0] sm:$0xff]
        %v544 = vld [vmem:[#allocation7 + $0xc8] sm:$0xff]
        %v545 = vld [vmem:[#allocation7 + $0xd0] sm:$0xff]
        %v546 = vld [vmem:[#allocation7 + $0xd8] sm:$0xff]
        %v547 = vld [vmem:[#allocation7 + $0xe0] sm:$0xff]
        %v548 = vld [vmem:[#allocation7 + $0xe8] sm:$0xff]
        %v549 = vld [vmem:[#allocation7 + $0xf0] sm:$0xff]
        %v550 = vld [vmem:[#allocation7 + $0xf8] sm:$0xff]
        %v551 = vld [vmem:[#allocation7 + $0x100] sm:$0xff]
        %v552 = vld [vmem:[#allocation7 + $0x108] sm:$0xff]
        %v553 = vld [vmem:[#allocation7 + $0x110] sm:$0xff]
        %v554 = vld [vmem:[#allocation7 + $0x118] sm:$0xff]
        %v555 = vld [vmem:[#allocation7 + $0x120] sm:$0xff]
        %v556 = vld [vmem:[#allocation7 + $0x128] sm:$0xff]
        %v557 = vld [vmem:[#allocation7 + $0x130] sm:$0xff]
        %v558 = vld [vmem:[#allocation7 + $0x138] sm:$0xff]
        %v559 = vld [vmem:[#allocation7 + $0x140] sm:$0xff]
        %v560 = vld [vmem:[#allocation7 + $0x148] sm:$0xff]
        %v561 = vld [vmem:[#allocation7 + $0x150] sm:$0xff]
        %v562 = vld [vmem:[#allocation7 + $0x158] sm:$0xff]
        %v563 = vld [vmem:[#allocation7 + $0x160] sm:$0xff]
        %v564 = vld [vmem:[#allocation7 + $0x168] sm:$0xff]
        %v565 = vld [vmem:[#allocation7 + $0x170] sm:$0xff]
        %v566 = vld [vmem:[#allocation7 + $0x178] sm:$0xff]
        %vm567 = vcmask 64512
        %v568 = vsel %vm567, %v407, 0.0
        %569 = vadd.xlane.f32.xlu0 %v568
        %v570 = vpop.xlane.xlu0 %569
        %v571 = vsel %vm567, %v408, 0.0
        %572 = vadd.xlane.f32.xlu0 %v571
        %v573 = vpop.xlane.xlu0 %572
        %v574 = vsel %vm567, %v409, 0.0
        %575 = vadd.xlane.f32.xlu0 %v574
        %v576 = vpop.xlane.xlu0 %575
        %v577 = vsel %vm567, %v410, 0.0
        %578 = vadd.xlane.f32.xlu0 %v577
        %v579 = vpop.xlane.xlu0 %578
        %v580 = vsel %vm567, %v411, 0.0
        %581 = vadd.xlane.f32.xlu0 %v580
        %v582 = vpop.xlane.xlu0 %581
        %v583 = vsel %vm567, %v412, 0.0
        %584 = vadd.xlane.f32.xlu0 %v583
        %v585 = vpop.xlane.xlu0 %584
        %v586 = vsel %vm567, %v413, 0.0
        %587 = vadd.xlane.f32.xlu0 %v586
        %v588 = vpop.xlane.xlu0 %587
        %v589 = vsel %vm567, %v414, 0.0
        %590 = vadd.xlane.f32.xlu0 %v589
        %v591 = vpop.xlane.xlu0 %590
        %v592 = vsel %vm567, %v415, 0.0
        %593 = vadd.xlane.f32.xlu0 %v592
        %v594 = vpop.xlane.xlu0 %593
        %v595 = vsel %vm567, %v416, 0.0
        %596 = vadd.xlane.f32.xlu0 %v595
        %v597 = vpop.xlane.xlu0 %596
        %v598 = vsel %vm567, %v417, 0.0
        %599 = vadd.xlane.f32.xlu0 %v598
        %v600 = vpop.xlane.xlu0 %599
        %v601 = vsel %vm567, %v418, 0.0
        %602 = vadd.xlane.f32.xlu0 %v601
        %v603 = vpop.xlane.xlu0 %602
        %v604 = vsel %vm567, %v419, 0.0
        %605 = vadd.xlane.f32.xlu0 %v604
        %v606 = vpop.xlane.xlu0 %605
        %v607 = vsel %vm567, %v420, 0.0
        %608 = vadd.xlane.f32.xlu0 %v607
        %v609 = vpop.xlane.xlu0 %608
        %v610 = vsel %vm567, %v421, 0.0
        %611 = vadd.xlane.f32.xlu0 %v610
        %v612 = vpop.xlane.xlu0 %611
        %v613 = vsel %vm567, %v422, 0.0
        %614 = vadd.xlane.f32.xlu0 %v613
        %v615 = vpop.xlane.xlu0 %614
        %v616 = vld [vmem:[%s5] sm:$0x7]
        %v617 = vld [vmem:[%s6] sm:$0x7]
        %v618 = vld [vmem:[%s7] sm:$0x7]
        %v620 = vlaneseq
        %v621 = vshrl.u32 %v620, 7
        %v622 = vsub.s32 0, %v621
        %v623 = vrot.slane %v616, %v622
        %v624 = vlaneseq
        %v625 = vshrl.u32 %v624, 7
        %v626 = vsub.s32 1, %v625
        %v627 = vrot.slane %v616, %v626
        %v628 = vlaneseq
        %v629 = vshrl.u32 %v628, 7
        %v630 = vsub.s32 2, %v629
        %v631 = vrot.slane %v616, %v630
        %v635 = vmul.f32 %v570, %v623
        %v636 = vmul.f32 %v570, %v627
        %v637 = vmul.f32 %v570, %v631
        %v638 = vmul.f32 %v576, %v623
        %v639 = vmul.f32 %v576, %v627
        %v640 = vmul.f32 %v576, %v631
        %v641 = vmul.f32 %v582, %v623
        %v642 = vmul.f32 %v582, %v627
        %v643 = vmul.f32 %v582, %v631
        %v644 = vmul.f32 %v588, %v623
        %v645 = vmul.f32 %v588, %v627
        %v646 = vmul.f32 %v588, %v631
        %v647 = vmul.f32 %v594, %v623
        %v648 = vmul.f32 %v594, %v627
        %v649 = vmul.f32 %v594, %v631
        %v650 = vmul.f32 %v600, %v623
        %v651 = vmul.f32 %v600, %v627
        %v652 = vmul.f32 %v600, %v631
        %v653 = vmul.f32 %v606, %v623
        %v654 = vmul.f32 %v606, %v627
        %v655 = vmul.f32 %v606, %v631
        %v656 = vmul.f32 %v612, %v623
        %v657 = vmul.f32 %v612, %v627
        %v658 = vmul.f32 %v612, %v631
        %v660 = vlaneseq
        %v661 = vshrl.u32 %v660, 7
        %v662 = vsub.s32 0, %v661
        %v663 = vrot.slane %v618, %v662
        %v664 = vlaneseq
        %v665 = vshrl.u32 %v664, 7
        %v666 = vsub.s32 1, %v665
        %v667 = vrot.slane %v618, %v666
        %v668 = vlaneseq
        %v669 = vshrl.u32 %v668, 7
        %v670 = vsub.s32 2, %v669
        %v671 = vrot.slane %v618, %v670
        %v675 = vadd.f32 %v663, %v635
        %v676 = vadd.f32 %v667, %v636
        %v677 = vadd.f32 %v671, %v637
        %v678 = vadd.f32 %v663, %v638
        %v679 = vadd.f32 %v667, %v639
        %v680 = vadd.f32 %v671, %v640
        %v681 = vadd.f32 %v663, %v641
        %v682 = vadd.f32 %v667, %v642
        %v683 = vadd.f32 %v671, %v643
        %v684 = vadd.f32 %v663, %v644
        %v685 = vadd.f32 %v667, %v645
        %v686 = vadd.f32 %v671, %v646
        %v687 = vadd.f32 %v663, %v647
        %v688 = vadd.f32 %v667, %v648
        %v689 = vadd.f32 %v671, %v649
        %v690 = vadd.f32 %v663, %v650
        %v691 = vadd.f32 %v667, %v651
        %v692 = vadd.f32 %v671, %v652
        %v693 = vadd.f32 %v663, %v653
        %v694 = vadd.f32 %v667, %v654
        %v695 = vadd.f32 %v671, %v655
        %v696 = vadd.f32 %v663, %v656
        %v697 = vadd.f32 %v667, %v657
        %v698 = vadd.f32 %v671, %v658
        %v700 = vlaneseq
        %v701 = vshrl.u32 %v700, 7
        %v702 = vsub.s32 0, %v701
        %v703 = vrot.slane %v617, %v702
        %v704 = vlaneseq
        %v705 = vshrl.u32 %v704, 7
        %v706 = vsub.s32 1, %v705
        %v707 = vrot.slane %v617, %v706
        %v708 = vlaneseq
        %v709 = vshrl.u32 %v708, 7
        %v710 = vsub.s32 2, %v709
        %v711 = vrot.slane %v617, %v710
        %v715 = vmul.f32 %v573, %v703
        %v716 = vmul.f32 %v573, %v707
        %v717 = vmul.f32 %v573, %v711
        %v718 = vmul.f32 %v579, %v703
        %v719 = vmul.f32 %v579, %v707
        %v720 = vmul.f32 %v579, %v711
        %v721 = vmul.f32 %v585, %v703
        %v722 = vmul.f32 %v585, %v707
        %v723 = vmul.f32 %v585, %v711
        %v724 = vmul.f32 %v591, %v703
        %v725 = vmul.f32 %v591, %v707
        %v726 = vmul.f32 %v591, %v711
        %v727 = vmul.f32 %v597, %v703
        %v728 = vmul.f32 %v597, %v707
        %v729 = vmul.f32 %v597, %v711
        %v730 = vmul.f32 %v603, %v703
        %v731 = vmul.f32 %v603, %v707
        %v732 = vmul.f32 %v603, %v711
        %v733 = vmul.f32 %v609, %v703
        %v734 = vmul.f32 %v609, %v707
        %v735 = vmul.f32 %v609, %v711
        %v736 = vmul.f32 %v615, %v703
        %v737 = vmul.f32 %v615, %v707
        %v738 = vmul.f32 %v615, %v711
        %v739 = vadd.f32 %v675, %v715
        %v740 = vadd.f32 %v676, %v716
        %v741 = vadd.f32 %v677, %v717
        %v742 = vadd.f32 %v678, %v718
        %v743 = vadd.f32 %v679, %v719
        %v744 = vadd.f32 %v680, %v720
        %v745 = vadd.f32 %v681, %v721
        %v746 = vadd.f32 %v682, %v722
        %v747 = vadd.f32 %v683, %v723
        %v748 = vadd.f32 %v684, %v724
        %v749 = vadd.f32 %v685, %v725
        %v750 = vadd.f32 %v686, %v726
        %v751 = vadd.f32 %v687, %v727
        %v752 = vadd.f32 %v688, %v728
        %v753 = vadd.f32 %v689, %v729
        %v754 = vadd.f32 %v690, %v730
        %v755 = vadd.f32 %v691, %v731
        %v756 = vadd.f32 %v692, %v732
        %v757 = vadd.f32 %v693, %v733
        %v758 = vadd.f32 %v694, %v734
        %v759 = vadd.f32 %v695, %v735
        %v760 = vadd.f32 %v696, %v736
        %v761 = vadd.f32 %v697, %v737
        %v762 = vadd.f32 %v698, %v738
        %v763 = vld [vmem:[%s8] sm:$0x1]
        %v765 = vlaneseq
        %v766 = vshrl.u32 %v765, 7
        %v767 = vsub.s32 0, %v766
        %v768 = vrot.slane %v763, %v767
        %v770 = vld [vmem:[%s349] sm:$0xff]
        %v771 = vld [vmem:[%s349 + $0x8] sm:$0xff]
        %v772 = vld [vmem:[%s349 + $0x10] sm:$0xff]
        %v773 = vld [vmem:[%s349 + $0x18] sm:$0xff]
        %v774 = vld [vmem:[%s349 + $0x20] sm:$0xff]
        %v775 = vld [vmem:[%s349 + $0x28] sm:$0xff]
        %v776 = vld [vmem:[%s349 + $0x30] sm:$0xff]
        %v777 = vld [vmem:[%s349 + $0x38] sm:$0xff]
        %v779 = vsel %vm567, %v407, 0
        %v782 = vsel %vm567, %v408, 0
        %784 = vmatprep.subr.mxu0 0.0
        %785 = vmatpush1.msra.mxu0 %v770
        %786 = vmatprep.subr.mxu0 0.0
        %787 = vmatpush1.msra.mxu0 0.0
        %788 = vmatprep.subr.mxu0 0.0
        %789 = vmatpush1.msra.mxu0 0.0
        %790 = vmatprep.subr.mxu0 0.0
        %791 = vmatpush1.msra.mxu0 0.0
        %792 = vmatprep.subr.mxu0 0.0
        %793 = vmatpush1.msra.mxu0 0.0
        %794 = vmatprep.subr.mxu0 0.0
        %795 = vmatpush1.msra.mxu0 0.0
        %796 = vmatprep.subr.mxu0 0.0
        %797 = vmatpush1.msra.mxu0 0.0
        %798 = vmatprep.subr.mxu0 0.0
        %799 = vmatpush1.msra.mxu0 0.0
        %800 = vmatprep.subr.mxu0 0.0
        %801 = vmatpush1.msra.mxu0 0.0
        %802 = vmatprep.subr.mxu0 0.0
        %803 = vmatpush1.msra.mxu0 0.0
        %804 = vmatprep.subr.mxu0 0.0
        %805 = vmatpush1.msra.mxu0 0.0
        %806 = vmatprep.subr.mxu0 0.0
        %807 = vmatpush1.msra.mxu0 0.0
        %808 = vmatprep.subr.mxu0 0.0
        %809 = vmatpush1.msra.mxu0 0.0
        %810 = vmatprep.subr.mxu0 0.0
        %811 = vmatpush1.msra.mxu0 0.0
        %812 = vmatprep.subr.mxu0 0.0
        %813 = vmatpush1.msra.mxu0 0.0
        %814 = vmatprep.subr.mxu0 0.0
        %815 = vmatpush1.msra.mxu0 0.0
        %816 = vmatprep.subr.mxu0 0.0
        %817 = vmatpush1.msra.mxu0 0.0
        %818 = vmatprep.subr.mxu0 0.0
        %819 = vmatpush1.msra.mxu0 0.0
        %820 = vmatprep.subr.mxu0 0.0
        %821 = vmatpush1.msra.mxu0 0.0
        %822 = vmatprep.subr.mxu0 0.0
        %823 = vmatpush1.msra.mxu0 0.0
        %824 = vmatprep.subr.mxu0 0.0
        %825 = vmatpush1.msra.mxu0 0.0
        %826 = vmatprep.subr.mxu0 0.0
        %827 = vmatpush1.msra.mxu0 0.0
        %828 = vmatprep.subr.mxu0 0.0
        %829 = vmatpush1.msra.mxu0 0.0
        %830 = vmatprep.subr.mxu0 0.0
        %831 = vmatpush1.msra.mxu0 0.0
        %832 = vmatprep.subr.mxu0 0.0
        %833 = vmatpush1.msra.mxu0 0.0
        %834 = vmatprep.subr.mxu0 0.0
        %835 = vmatpush1.msra.mxu0 0.0
        %836 = vmatprep.subr.mxu0 0.0
        %837 = vmatpush1.msra.mxu0 0.0
        %838 = vmatprep.subr.mxu0 0.0
        %839 = vmatpush1.msra.mxu0 0.0
        %840 = vmatprep.subr.mxu0 0.0
        %841 = vmatpush1.msra.mxu0 0.0
        %842 = vmatprep.subr.mxu0 0.0
        %843 = vmatpush1.msra.mxu0 0.0
        %844 = vmatprep.subr.mxu0 0.0
        %845 = vmatpush1.msra.mxu0 0.0
        %846 = vmatprep.subr.mxu0 0.0
        %847 = vmatpush1.msra.mxu0 0.0
        %848 = vmatprep.mubr.f32.mxu0 0.0
        %849 = vmatmul.mubr.f32.gmra.mrb[0].mxu0 %v779
        %v850 = vpop.f32.mrb[0].mxu0
        %v851 = vadd.f32 0.0, %v850
        %v852 = vpop.f32.mrb[0].mxu0
        %853 = vmatprep.mubr.f32.mxu0 0.0
        %854 = vmatmul.mubr.f32.gmra.mrb[0].mxu0 %v782
        %v855 = vpop.f32.mrb[0].mxu0
        %v856 = vadd.f32 0.0, %v855
        %v857 = vpop.f32.mrb[0].mxu0
        %858 = vdwg.mxu0
        %v860 = vsel %vm567, %v409, 0
        %v863 = vsel %vm567, %v410, 0
        %865 = vmatprep.subr.mxu0 0.0
        %866 = vmatpush1.msra.mxu0 %v771
        %867 = vmatprep.subr.mxu0 0.0
        %868 = vmatpush1.msra.mxu0 0.0
        %869 = vmatprep.subr.mxu0 0.0
        %870 = vmatpush1.msra.mxu0 0.0
        %871 = vmatprep.subr.mxu0 0.0
        %872 = vmatpush1.msra.mxu0 0.0
        %873 = vmatprep.subr.mxu0 0.0
        %874 = vmatpush1.msra.mxu0 0.0
        %875 = vmatprep.subr.mxu0 0.0
        %876 = vmatpush1.msra.mxu0 0.0
        %877 = vmatprep.subr.mxu0 0.0
        %878 = vmatpush1.msra.mxu0 0.0
        %879 = vmatprep.subr.mxu0 0.0
        %880 = vmatpush1.msra.mxu0 0.0
        %881 = vmatprep.subr.mxu0 0.0
        %882 = vmatpush1.msra.mxu0 0.0
        %883 = vmatprep.subr.mxu0 0.0
        %884 = vmatpush1.msra.mxu0 0.0
        %885 = vmatprep.subr.mxu0 0.0
        %886 = vmatpush1.msra.mxu0 0.0
        %887 = vmatprep.subr.mxu0 0.0
        %888 = vmatpush1.msra.mxu0 0.0
        %889 = vmatprep.subr.mxu0 0.0
        %890 = vmatpush1.msra.mxu0 0.0
        %891 = vmatprep.subr.mxu0 0.0
        %892 = vmatpush1.msra.mxu0 0.0
        %893 = vmatprep.subr.mxu0 0.0
        %894 = vmatpush1.msra.mxu0 0.0
        %895 = vmatprep.subr.mxu0 0.0
        %896 = vmatpush1.msra.mxu0 0.0
        %897 = vmatprep.subr.mxu0 0.0
        %898 = vmatpush1.msra.mxu0 0.0
        %899 = vmatprep.subr.mxu0 0.0
        %900 = vmatpush1.msra.mxu0 0.0
        %901 = vmatprep.subr.mxu0 0.0
        %902 = vmatpush1.msra.mxu0 0.0
        %903 = vmatprep.subr.mxu0 0.0
        %904 = vmatpush1.msra.mxu0 0.0
        %905 = vmatprep.subr.mxu0 0.0
        %906 = vmatpush1.msra.mxu0 0.0
        %907 = vmatprep.subr.mxu0 0.0
        %908 = vmatpush1.msra.mxu0 0.0
        %909 = vmatprep.subr.mxu0 0.0
        %910 = vmatpush1.msra.mxu0 0.0
        %911 = vmatprep.subr.mxu0 0.0
        %912 = vmatpush1.msra.mxu0 0.0
        %913 = vmatprep.subr.mxu0 0.0
        %914 = vmatpush1.msra.mxu0 0.0
        %915 = vmatprep.subr.mxu0 0.0
        %916 = vmatpush1.msra.mxu0 0.0
        %917 = vmatprep.subr.mxu0 0.0
        %918 = vmatpush1.msra.mxu0 0.0
        %919 = vmatprep.subr.mxu0 0.0
        %920 = vmatpush1.msra.mxu0 0.0
        %921 = vmatprep.subr.mxu0 0.0
        %922 = vmatpush1.msra.mxu0 0.0
        %923 = vmatprep.subr.mxu0 0.0
        %924 = vmatpush1.msra.mxu0 0.0
        %925 = vmatprep.subr.mxu0 0.0
        %926 = vmatpush1.msra.mxu0 0.0
        %927 = vmatprep.subr.mxu0 0.0
        %928 = vmatpush1.msra.mxu0 0.0
        %929 = vmatprep.mubr.f32.mxu0 0.0
        %930 = vmatmul.mubr.f32.gmra.mrb[0].mxu0 %v860
        %v931 = vpop.f32.mrb[0].mxu0
        %v932 = vadd.f32 0.0, %v931
        %v933 = vpop.f32.mrb[0].mxu0
        %934 = vmatprep.mubr.f32.mxu0 0.0
        %935 = vmatmul.mubr.f32.gmra.mrb[0].mxu0 %v863
        %v936 = vpop.f32.mrb[0].mxu0
        %v937 = vadd.f32 0.0, %v936
        %v938 = vpop.f32.mrb[0].mxu0
        %939 = vdwg.mxu0
        %v941 = vsel %vm567, %v411, 0
        %v944 = vsel %vm567, %v412, 0
        %946 = vmatprep.subr.mxu0 0.0
        %947 = vmatpush1.msra.mxu0 %v772
        %948 = vmatprep.subr.mxu0 0.0
        %949 = vmatpush1.msra.mxu0 0.0
        %950 = vmatprep.subr.mxu0 0.0
        %951 = vmatpush1.msra.mxu0 0.0
        %952 = vmatprep.subr.mxu0 0.0
        %953 = vmatpush1.msra.mxu0 0.0
        %954 = vmatprep.subr.mxu0 0.0
        %955 = vmatpush1.msra.mxu0 0.0
        %956 = vmatprep.subr.mxu0 0.0
        %957 = vmatpush1.msra.mxu0 0.0
        %958 = vmatprep.subr.mxu0 0.0
        %959 = vmatpush1.msra.mxu0 0.0
        %960 = vmatprep.subr.mxu0 0.0
        %961 = vmatpush1.msra.mxu0 0.0
        %962 = vmatprep.subr.mxu0 0.0
        %963 = vmatpush1.msra.mxu0 0.0
        %964 = vmatprep.subr.mxu0 0.0
        %965 = vmatpush1.msra.mxu0 0.0
        %966 = vmatprep.subr.mxu0 0.0
        %967 = vmatpush1.msra.mxu0 0.0
        %968 = vmatprep.subr.mxu0 0.0
        %969 = vmatpush1.msra.mxu0 0.0
        %970 = vmatprep.subr.mxu0 0.0
        %971 = vmatpush1.msra.mxu0 0.0
        %972 = vmatprep.subr.mxu0 0.0
        %973 = vmatpush1.msra.mxu0 0.0
        %974 = vmatprep.subr.mxu0 0.0
        %975 = vmatpush1.msra.mxu0 0.0
        %976 = vmatprep.subr.mxu0 0.0
        %977 = vmatpush1.msra.mxu0 0.0
        %978 = vmatprep.subr.mxu0 0.0
        %979 = vmatpush1.msra.mxu0 0.0
        %980 = vmatprep.subr.mxu0 0.0
        %981 = vmatpush1.msra.mxu0 0.0
        %982 = vmatprep.subr.mxu0 0.0
        %983 = vmatpush1.msra.mxu0 0.0
        %984 = vmatprep.subr.mxu0 0.0
        %985 = vmatpush1.msra.mxu0 0.0
        %986 = vmatprep.subr.mxu0 0.0
        %987 = vmatpush1.msra.mxu0 0.0
        %988 = vmatprep.subr.mxu0 0.0
        %989 = vmatpush1.msra.mxu0 0.0
        %990 = vmatprep.subr.mxu0 0.0
        %991 = vmatpush1.msra.mxu0 0.0
        %992 = vmatprep.subr.mxu0 0.0
        %993 = vmatpush1.msra.mxu0 0.0
        %994 = vmatprep.subr.mxu0 0.0
        %995 = vmatpush1.msra.mxu0 0.0
        %996 = vmatprep.subr.mxu0 0.0
        %997 = vmatpush1.msra.mxu0 0.0
        %998 = vmatprep.subr.mxu0 0.0
        %999 = vmatpush1.msra.mxu0 0.0
        %1000 = vmatprep.subr.mxu0 0.0
        %1001 = vmatpush1.msra.mxu0 0.0
        %1002 = vmatprep.subr.mxu0 0.0
        %1003 = vmatpush1.msra.mxu0 0.0
        %1004 = vmatprep.subr.mxu0 0.0
        %1005 = vmatpush1.msra.mxu0 0.0
        %1006 = vmatprep.subr.mxu0 0.0
        %1007 = vmatpush1.msra.mxu0 0.0
        %1008 = vmatprep.subr.mxu0 0.0
        %1009 = vmatpush1.msra.mxu0 0.0
        %1010 = vmatprep.mubr.f32.mxu0 0.0
        %1011 = vmatmul.mubr.f32.gmra.mrb[0].mxu0 %v941
        %v1012 = vpop.f32.mrb[0].mxu0
        %v1013 = vadd.f32 0.0, %v1012
        %v1014 = vpop.f32.mrb[0].mxu0
        %1015 = vmatprep.mubr.f32.mxu0 0.0
        %1016 = vmatmul.mubr.f32.gmra.mrb[0].mxu0 %v944
        %v1017 = vpop.f32.mrb[0].mxu0
        %v1018 = vadd.f32 0.0, %v1017
        %v1019 = vpop.f32.mrb[0].mxu0
        %1020 = vdwg.mxu0
        %v1022 = vsel %vm567, %v413, 0
        %v1025 = vsel %vm567, %v414, 0
        %1027 = vmatprep.subr.mxu0 0.0
        %1028 = vmatpush1.msra.mxu0 %v773
        %1029 = vmatprep.subr.mxu0 0.0
        %1030 = vmatpush1.msra.mxu0 0.0
        %1031 = vmatprep.subr.mxu0 0.0
        %1032 = vmatpush1.msra.mxu0 0.0
        %1033 = vmatprep.subr.mxu0 0.0
        %1034 = vmatpush1.msra.mxu0 0.0
        %1035 = vmatprep.subr.mxu0 0.0
        %1036 = vmatpush1.msra.mxu0 0.0
        %1037 = vmatprep.subr.mxu0 0.0
        %1038 = vmatpush1.msra.mxu0 0.0
        %1039 = vmatprep.subr.mxu0 0.0
        %1040 = vmatpush1.msra.mxu0 0.0
        %1041 = vmatprep.subr.mxu0 0.0
        %1042 = vmatpush1.msra.mxu0 0.0
        %1043 = vmatprep.subr.mxu0 0.0
        %1044 = vmatpush1.msra.mxu0 0.0
        %1045 = vmatprep.subr.mxu0 0.0
        %1046 = vmatpush1.msra.mxu0 0.0
        %1047 = vmatprep.subr.mxu0 0.0
        %1048 = vmatpush1.msra.mxu0 0.0
        %1049 = vmatprep.subr.mxu0 0.0
        %1050 = vmatpush1.msra.mxu0 0.0
        %1051 = vmatprep.subr.mxu0 0.0
        %1052 = vmatpush1.msra.mxu0 0.0
        %1053 = vmatprep.subr.mxu0 0.0
        %1054 = vmatpush1.msra.mxu0 0.0
        %1055 = vmatprep.subr.mxu0 0.0
        %1056 = vmatpush1.msra.mxu0 0.0
        %1057 = vmatprep.subr.mxu0 0.0
        %1058 = vmatpush1.msra.mxu0 0.0
        %1059 = vmatprep.subr.mxu0 0.0
        %1060 = vmatpush1.msra.mxu0 0.0
        %1061 = vmatprep.subr.mxu0 0.0
        %1062 = vmatpush1.msra.mxu0 0.0
        %1063 = vmatprep.subr.mxu0 0.0
        %1064 = vmatpush1.msra.mxu0 0.0
        %1065 = vmatprep.subr.mxu0 0.0
        %1066 = vmatpush1.msra.mxu0 0.0
        %1067 = vmatprep.subr.mxu0 0.0
        %1068 = vmatpush1.msra.mxu0 0.0
        %1069 = vmatprep.subr.mxu0 0.0
        %1070 = vmatpush1.msra.mxu0 0.0
        %1071 = vmatprep.subr.mxu0 0.0
        %1072 = vmatpush1.msra.mxu0 0.0
        %1073 = vmatprep.subr.mxu0 0.0
        %1074 = vmatpush1.msra.mxu0 0.0
        %1075 = vmatprep.subr.mxu0 0.0
        %1076 = vmatpush1.msra.mxu0 0.0
        %1077 = vmatprep.subr.mxu0 0.0
        %1078 = vmatpush1.msra.mxu0 0.0
        %1079 = vmatprep.subr.mxu0 0.0
        %1080 = vmatpush1.msra.mxu0 0.0
        %1081 = vmatprep.subr.mxu0 0.0
        %1082 = vmatpush1.msra.mxu0 0.0
        %1083 = vmatprep.subr.mxu0 0.0
        %1084 = vmatpush1.msra.mxu0 0.0
        %1085 = vmatprep.subr.mxu0 0.0
        %1086 = vmatpush1.msra.mxu0 0.0
        %1087 = vmatprep.subr.mxu0 0.0
        %1088 = vmatpush1.msra.mxu0 0.0
        %1089 = vmatprep.subr.mxu0 0.0
        %1090 = vmatpush1.msra.mxu0 0.0
        %1091 = vmatprep.mubr.f32.mxu0 0.0
        %1092 = vmatmul.mubr.f32.gmra.mrb[0].mxu0 %v1022
        %v1093 = vpop.f32.mrb[0].mxu0
        %v1094 = vadd.f32 0.0, %v1093
        %v1095 = vpop.f32.mrb[0].mxu0
        %1096 = vmatprep.mubr.f32.mxu0 0.0
        %1097 = vmatmul.mubr.f32.gmra.mrb[0].mxu0 %v1025
        %v1098 = vpop.f32.mrb[0].mxu0
        %v1099 = vadd.f32 0.0, %v1098
        %v1100 = vpop.f32.mrb[0].mxu0
        %1101 = vdwg.mxu0
        %v1103 = vsel %vm567, %v415, 0
        %v1106 = vsel %vm567, %v416, 0
        %1108 = vmatprep.subr.mxu0 0.0
        %1109 = vmatpush1.msra.mxu0 %v774
        %1110 = vmatprep.subr.mxu0 0.0
        %1111 = vmatpush1.msra.mxu0 0.0
        %1112 = vmatprep.subr.mxu0 0.0
        %1113 = vmatpush1.msra.mxu0 0.0
        %1114 = vmatprep.subr.mxu0 0.0
        %1115 = vmatpush1.msra.mxu0 0.0
        %1116 = vmatprep.subr.mxu0 0.0
        %1117 = vmatpush1.msra.mxu0 0.0
        %1118 = vmatprep.subr.mxu0 0.0
        %1119 = vmatpush1.msra.mxu0 0.0
        %1120 = vmatprep.subr.mxu0 0.0
        %1121 = vmatpush1.msra.mxu0 0.0
        %1122 = vmatprep.subr.mxu0 0.0
        %1123 = vmatpush1.msra.mxu0 0.0
        %1124 = vmatprep.subr.mxu0 0.0
        %1125 = vmatpush1.msra.mxu0 0.0
        %1126 = vmatprep.subr.mxu0 0.0
        %1127 = vmatpush1.msra.mxu0 0.0
        %1128 = vmatprep.subr.mxu0 0.0
        %1129 = vmatpush1.msra.mxu0 0.0
        %1130 = vmatprep.subr.mxu0 0.0
        %1131 = vmatpush1.msra.mxu0 0.0
        %1132 = vmatprep.subr.mxu0 0.0
        %1133 = vmatpush1.msra.mxu0 0.0
        %1134 = vmatprep.subr.mxu0 0.0
        %1135 = vmatpush1.msra.mxu0 0.0
        %1136 = vmatprep.subr.mxu0 0.0
        %1137 = vmatpush1.msra.mxu0 0.0
        %1138 = vmatprep.subr.mxu0 0.0
        %1139 = vmatpush1.msra.mxu0 0.0
        %1140 = vmatprep.subr.mxu0 0.0
        %1141 = vmatpush1.msra.mxu0 0.0
        %1142 = vmatprep.subr.mxu0 0.0
        %1143 = vmatpush1.msra.mxu0 0.0
        %1144 = vmatprep.subr.mxu0 0.0
        %1145 = vmatpush1.msra.mxu0 0.0
        %1146 = vmatprep.subr.mxu0 0.0
        %1147 = vmatpush1.msra.mxu0 0.0
        %1148 = vmatprep.subr.mxu0 0.0
        %1149 = vmatpush1.msra.mxu0 0.0
        %1150 = vmatprep.subr.mxu0 0.0
        %1151 = vmatpush1.msra.mxu0 0.0
        %1152 = vmatprep.subr.mxu0 0.0
        %1153 = vmatpush1.msra.mxu0 0.0
        %1154 = vmatprep.subr.mxu0 0.0
        %1155 = vmatpush1.msra.mxu0 0.0
        %1156 = vmatprep.subr.mxu0 0.0
        %1157 = vmatpush1.msra.mxu0 0.0
        %1158 = vmatprep.subr.mxu0 0.0
        %1159 = vmatpush1.msra.mxu0 0.0
        %1160 = vmatprep.subr.mxu0 0.0
        %1161 = vmatpush1.msra.mxu0 0.0
        %1162 = vmatprep.subr.mxu0 0.0
        %1163 = vmatpush1.msra.mxu0 0.0
        %1164 = vmatprep.subr.mxu0 0.0
        %1165 = vmatpush1.msra.mxu0 0.0
        %1166 = vmatprep.subr.mxu0 0.0
        %1167 = vmatpush1.msra.mxu0 0.0
        %1168 = vmatprep.subr.mxu0 0.0
        %1169 = vmatpush1.msra.mxu0 0.0
        %1170 = vmatprep.subr.mxu0 0.0
        %1171 = vmatpush1.msra.mxu0 0.0
        %1172 = vmatprep.mubr.f32.mxu0 0.0
        %1173 = vmatmul.mubr.f32.gmra.mrb[0].mxu0 %v1103
        %v1174 = vpop.f32.mrb[0].mxu0
        %v1175 = vadd.f32 0.0, %v1174
        %v1176 = vpop.f32.mrb[0].mxu0
        %1177 = vmatprep.mubr.f32.mxu0 0.0
        %1178 = vmatmul.mubr.f32.gmra.mrb[0].mxu0 %v1106
        %v1179 = vpop.f32.mrb[0].mxu0
        %v1180 = vadd.f32 0.0, %v1179
        %v1181 = vpop.f32.mrb[0].mxu0
        %1182 = vdwg.mxu0
        %v1184 = vsel %vm567, %v417, 0
        %v1187 = vsel %vm567, %v418, 0
        %1189 = vmatprep.subr.mxu0 0.0
        %1190 = vmatpush1.msra.mxu0 %v775
        %1191 = vmatprep.subr.mxu0 0.0
        %1192 = vmatpush1.msra.mxu0 0.0
        %1193 = vmatprep.subr.mxu0 0.0
        %1194 = vmatpush1.msra.mxu0 0.0
        %1195 = vmatprep.subr.mxu0 0.0
        %1196 = vmatpush1.msra.mxu0 0.0
        %1197 = vmatprep.subr.mxu0 0.0
        %1198 = vmatpush1.msra.mxu0 0.0
        %1199 = vmatprep.subr.mxu0 0.0
        %1200 = vmatpush1.msra.mxu0 0.0
        %1201 = vmatprep.subr.mxu0 0.0
        %1202 = vmatpush1.msra.mxu0 0.0
        %1203 = vmatprep.subr.mxu0 0.0
        %1204 = vmatpush1.msra.mxu0 0.0
        %1205 = vmatprep.subr.mxu0 0.0
        %1206 = vmatpush1.msra.mxu0 0.0
        %1207 = vmatprep.subr.mxu0 0.0
        %1208 = vmatpush1.msra.mxu0 0.0
        %1209 = vmatprep.subr.mxu0 0.0
        %1210 = vmatpush1.msra.mxu0 0.0
        %1211 = vmatprep.subr.mxu0 0.0
        %1212 = vmatpush1.msra.mxu0 0.0
        %1213 = vmatprep.subr.mxu0 0.0
        %1214 = vmatpush1.msra.mxu0 0.0
        %1215 = vmatprep.subr.mxu0 0.0
        %1216 = vmatpush1.msra.mxu0 0.0
        %1217 = vmatprep.subr.mxu0 0.0
        %1218 = vmatpush1.msra.mxu0 0.0
        %1219 = vmatprep.subr.mxu0 0.0
        %1220 = vmatpush1.msra.mxu0 0.0
        %1221 = vmatprep.subr.mxu0 0.0
        %1222 = vmatpush1.msra.mxu0 0.0
        %1223 = vmatprep.subr.mxu0 0.0
        %1224 = vmatpush1.msra.mxu0 0.0
        %1225 = vmatprep.subr.mxu0 0.0
        %1226 = vmatpush1.msra.mxu0 0.0
        %1227 = vmatprep.subr.mxu0 0.0
        %1228 = vmatpush1.msra.mxu0 0.0
        %1229 = vmatprep.subr.mxu0 0.0
        %1230 = vmatpush1.msra.mxu0 0.0
        %1231 = vmatprep.subr.mxu0 0.0
        %1232 = vmatpush1.msra.mxu0 0.0
        %1233 = vmatprep.subr.mxu0 0.0
        %1234 = vmatpush1.msra.mxu0 0.0
        %1235 = vmatprep.subr.mxu0 0.0
        %1236 = vmatpush1.msra.mxu0 0.0
        %1237 = vmatprep.subr.mxu0 0.0
        %1238 = vmatpush1.msra.mxu0 0.0
        %1239 = vmatprep.subr.mxu0 0.0
        %1240 = vmatpush1.msra.mxu0 0.0
        %1241 = vmatprep.subr.mxu0 0.0
        %1242 = vmatpush1.msra.mxu0 0.0
        %1243 = vmatprep.subr.mxu0 0.0
        %1244 = vmatpush1.msra.mxu0 0.0
        %1245 = vmatprep.subr.mxu0 0.0
        %1246 = vmatpush1.msra.mxu0 0.0
        %1247 = vmatprep.subr.mxu0 0.0
        %1248 = vmatpush1.msra.mxu0 0.0
        %1249 = vmatprep.subr.mxu0 0.0
        %1250 = vmatpush1.msra.mxu0 0.0
        %1251 = vmatprep.subr.mxu0 0.0
        %1252 = vmatpush1.msra.mxu0 0.0
        %1253 = vmatprep.mubr.f32.mxu0 0.0
        %1254 = vmatmul.mubr.f32.gmra.mrb[0].mxu0 %v1184
        %v1255 = vpop.f32.mrb[0].mxu0
        %v1256 = vadd.f32 0.0, %v1255
        %v1257 = vpop.f32.mrb[0].mxu0
        %1258 = vmatprep.mubr.f32.mxu0 0.0
        %1259 = vmatmul.mubr.f32.gmra.mrb[0].mxu0 %v1187
        %v1260 = vpop.f32.mrb[0].mxu0
        %v1261 = vadd.f32 0.0, %v1260
        %v1262 = vpop.f32.mrb[0].mxu0
        %1263 = vdwg.mxu0
        %v1265 = vsel %vm567, %v419, 0
        %v1268 = vsel %vm567, %v420, 0
        %1270 = vmatprep.subr.mxu0 0.0
        %1271 = vmatpush1.msra.mxu0 %v776
        %1272 = vmatprep.subr.mxu0 0.0
        %1273 = vmatpush1.msra.mxu0 0.0
        %1274 = vmatprep.subr.mxu0 0.0
        %1275 = vmatpush1.msra.mxu0 0.0
        %1276 = vmatprep.subr.mxu0 0.0
        %1277 = vmatpush1.msra.mxu0 0.0
        %1278 = vmatprep.subr.mxu0 0.0
        %1279 = vmatpush1.msra.mxu0 0.0
        %1280 = vmatprep.subr.mxu0 0.0
        %1281 = vmatpush1.msra.mxu0 0.0
        %1282 = vmatprep.subr.mxu0 0.0
        %1283 = vmatpush1.msra.mxu0 0.0
        %1284 = vmatprep.subr.mxu0 0.0
        %1285 = vmatpush1.msra.mxu0 0.0
        %1286 = vmatprep.subr.mxu0 0.0
        %1287 = vmatpush1.msra.mxu0 0.0
        %1288 = vmatprep.subr.mxu0 0.0
        %1289 = vmatpush1.msra.mxu0 0.0
        %1290 = vmatprep.subr.mxu0 0.0
        %1291 = vmatpush1.msra.mxu0 0.0
        %1292 = vmatprep.subr.mxu0 0.0
        %1293 = vmatpush1.msra.mxu0 0.0
        %1294 = vmatprep.subr.mxu0 0.0
        %1295 = vmatpush1.msra.mxu0 0.0
        %1296 = vmatprep.subr.mxu0 0.0
        %1297 = vmatpush1.msra.mxu0 0.0
        %1298 = vmatprep.subr.mxu0 0.0
        %1299 = vmatpush1.msra.mxu0 0.0
        %1300 = vmatprep.subr.mxu0 0.0
        %1301 = vmatpush1.msra.mxu0 0.0
        %1302 = vmatprep.subr.mxu0 0.0
        %1303 = vmatpush1.msra.mxu0 0.0
        %1304 = vmatprep.subr.mxu0 0.0
        %1305 = vmatpush1.msra.mxu0 0.0
        %1306 = vmatprep.subr.mxu0 0.0
        %1307 = vmatpush1.msra.mxu0 0.0
        %1308 = vmatprep.subr.mxu0 0.0
        %1309 = vmatpush1.msra.mxu0 0.0
        %1310 = vmatprep.subr.mxu0 0.0
        %1311 = vmatpush1.msra.mxu0 0.0
        %1312 = vmatprep.subr.mxu0 0.0
        %1313 = vmatpush1.msra.mxu0 0.0
        %1314 = vmatprep.subr.mxu0 0.0
        %1315 = vmatpush1.msra.mxu0 0.0
        %1316 = vmatprep.subr.mxu0 0.0
        %1317 = vmatpush1.msra.mxu0 0.0
        %1318 = vmatprep.subr.mxu0 0.0
        %1319 = vmatpush1.msra.mxu0 0.0
        %1320 = vmatprep.subr.mxu0 0.0
        %1321 = vmatpush1.msra.mxu0 0.0
        %1322 = vmatprep.subr.mxu0 0.0
        %1323 = vmatpush1.msra.mxu0 0.0
        %1324 = vmatprep.subr.mxu0 0.0
        %1325 = vmatpush1.msra.mxu0 0.0
        %1326 = vmatprep.subr.mxu0 0.0
        %1327 = vmatpush1.msra.mxu0 0.0
        %1328 = vmatprep.subr.mxu0 0.0
        %1329 = vmatpush1.msra.mxu0 0.0
        %1330 = vmatprep.subr.mxu0 0.0
        %1331 = vmatpush1.msra.mxu0 0.0
        %1332 = vmatprep.subr.mxu0 0.0
        %1333 = vmatpush1.msra.mxu0 0.0
        %1334 = vmatprep.mubr.f32.mxu0 0.0
        %1335 = vmatmul.mubr.f32.gmra.mrb[0].mxu0 %v1265
        %v1336 = vpop.f32.mrb[0].mxu0
        %v1337 = vadd.f32 0.0, %v1336
        %v1338 = vpop.f32.mrb[0].mxu0
        %1339 = vmatprep.mubr.f32.mxu0 0.0
        %1340 = vmatmul.mubr.f32.gmra.mrb[0].mxu0 %v1268
        %v1341 = vpop.f32.mrb[0].mxu0
        %v1342 = vadd.f32 0.0, %v1341
        %v1343 = vpop.f32.mrb[0].mxu0
        %1344 = vdwg.mxu0
        %v1346 = vsel %vm567, %v421, 0
        %v1349 = vsel %vm567, %v422, 0
        %1351 = vmatprep.subr.mxu0 0.0
        %1352 = vmatpush1.msra.mxu0 %v777
        %1353 = vmatprep.subr.mxu0 0.0
        %1354 = vmatpush1.msra.mxu0 0.0
        %1355 = vmatprep.subr.mxu0 0.0
        %1356 = vmatpush1.msra.mxu0 0.0
        %1357 = vmatprep.subr.mxu0 0.0
        %1358 = vmatpush1.msra.mxu0 0.0
        %1359 = vmatprep.subr.mxu0 0.0
        %1360 = vmatpush1.msra.mxu0 0.0
        %1361 = vmatprep.subr.mxu0 0.0
        %1362 = vmatpush1.msra.mxu0 0.0
        %1363 = vmatprep.subr.mxu0 0.0
        %1364 = vmatpush1.msra.mxu0 0.0
        %1365 = vmatprep.subr.mxu0 0.0
        %1366 = vmatpush1.msra.mxu0 0.0
        %1367 = vmatprep.subr.mxu0 0.0
        %1368 = vmatpush1.msra.mxu0 0.0
        %1369 = vmatprep.subr.mxu0 0.0
        %1370 = vmatpush1.msra.mxu0 0.0
        %1371 = vmatprep.subr.mxu0 0.0
        %1372 = vmatpush1.msra.mxu0 0.0
        %1373 = vmatprep.subr.mxu0 0.0
        %1374 = vmatpush1.msra.mxu0 0.0
        %1375 = vmatprep.subr.mxu0 0.0
        %1376 = vmatpush1.msra.mxu0 0.0
        %1377 = vmatprep.subr.mxu0 0.0
        %1378 = vmatpush1.msra.mxu0 0.0
        %1379 = vmatprep.subr.mxu0 0.0
        %1380 = vmatpush1.msra.mxu0 0.0
        %1381 = vmatprep.subr.mxu0 0.0
        %1382 = vmatpush1.msra.mxu0 0.0
        %1383 = vmatprep.subr.mxu0 0.0
        %1384 = vmatpush1.msra.mxu0 0.0
        %1385 = vmatprep.subr.mxu0 0.0
        %1386 = vmatpush1.msra.mxu0 0.0
        %1387 = vmatprep.subr.mxu0 0.0
        %1388 = vmatpush1.msra.mxu0 0.0
        %1389 = vmatprep.subr.mxu0 0.0
        %1390 = vmatpush1.msra.mxu0 0.0
        %1391 = vmatprep.subr.mxu0 0.0
        %1392 = vmatpush1.msra.mxu0 0.0
        %1393 = vmatprep.subr.mxu0 0.0
        %1394 = vmatpush1.msra.mxu0 0.0
        %1395 = vmatprep.subr.mxu0 0.0
        %1396 = vmatpush1.msra.mxu0 0.0
        %1397 = vmatprep.subr.mxu0 0.0
        %1398 = vmatpush1.msra.mxu0 0.0
        %1399 = vmatprep.subr.mxu0 0.0
        %1400 = vmatpush1.msra.mxu0 0.0
        %1401 = vmatprep.subr.mxu0 0.0
        %1402 = vmatpush1.msra.mxu0 0.0
        %1403 = vmatprep.subr.mxu0 0.0
        %1404 = vmatpush1.msra.mxu0 0.0
        %1405 = vmatprep.subr.mxu0 0.0
        %1406 = vmatpush1.msra.mxu0 0.0
        %1407 = vmatprep.subr.mxu0 0.0
        %1408 = vmatpush1.msra.mxu0 0.0
        %1409 = vmatprep.subr.mxu0 0.0
        %1410 = vmatpush1.msra.mxu0 0.0
        %1411 = vmatprep.subr.mxu0 0.0
        %1412 = vmatpush1.msra.mxu0 0.0
        %1413 = vmatprep.subr.mxu0 0.0
        %1414 = vmatpush1.msra.mxu0 0.0
        %1415 = vmatprep.mubr.f32.mxu0 0.0
        %1416 = vmatmul.mubr.f32.gmra.mrb[0].mxu0 %v1346
        %v1417 = vpop.f32.mrb[0].mxu0
        %v1418 = vadd.f32 0.0, %v1417
        %v1419 = vpop.f32.mrb[0].mxu0
        %1420 = vmatprep.mubr.f32.mxu0 0.0
        %1421 = vmatmul.mubr.f32.gmra.mrb[0].mxu0 %v1349
        %v1422 = vpop.f32.mrb[0].mxu0
        %v1423 = vadd.f32 0.0, %v1422
        %v1424 = vpop.f32.mrb[0].mxu0
        %1425 = vdwg.mxu0
        %1426 = vmatprep.subr.mxu0 %v472
        %1427 = vmatpush1.msra.mxu0 %v471
        %1428 = vmatprep.subr.mxu0 %v475
        %1429 = vmatpush1.msra.mxu0 %v474
        %1430 = vmatprep.subr.mxu0 %v478
        %1431 = vmatpush1.msra.mxu0 %v477
        %1432 = vmatprep.subr.mxu0 %v481
        %1433 = vmatpush1.msra.mxu0 %v480
        %1434 = vmatprep.subr.mxu0 %v484
        %1435 = vmatpush1.msra.mxu0 %v483
        %1436 = vmatprep.subr.mxu0 %v487
        %1437 = vmatpush1.msra.mxu0 %v486
        %1438 = vmatprep.subr.mxu0 %v490
        %1439 = vmatpush1.msra.mxu0 %v489
        %1440 = vmatprep.subr.mxu0 %v493
        %1441 = vmatpush1.msra.mxu0 %v492
        %1442 = vmatprep.subr.mxu0 %v496
        %1443 = vmatpush1.msra.mxu0 %v495
        %1444 = vmatprep.subr.mxu0 %v499
        %1445 = vmatpush1.msra.mxu0 %v498
        %1446 = vmatprep.subr.mxu0 %v502
        %1447 = vmatpush1.msra.mxu0 %v501
        %1448 = vmatprep.subr.mxu0 %v505
        %1449 = vmatpush1.msra.mxu0 %v504
        %1450 = vmatprep.subr.mxu0 %v508
        %1451 = vmatpush1.msra.mxu0 %v507
        %1452 = vmatprep.subr.mxu0 %v511
        %1453 = vmatpush1.msra.mxu0 %v510
        %1454 = vmatprep.subr.mxu0 %v514
        %1455 = vmatpush1.msra.mxu0 %v513
        %1456 = vmatprep.subr.mxu0 %v517
        %1457 = vmatpush1.msra.mxu0 %v516
        %1458 = vmatprep.subr.mxu0 0.0
        %1459 = vmatpush1.msra.mxu0 0.0
        %1460 = vmatprep.subr.mxu0 0.0
        %1461 = vmatpush1.msra.mxu0 0.0
        %1462 = vmatprep.subr.mxu0 0.0
        %1463 = vmatpush1.msra.mxu0 0.0
        %1464 = vmatprep.subr.mxu0 0.0
        %1465 = vmatpush1.msra.mxu0 0.0
        %1466 = vmatprep.subr.mxu0 0.0
        %1467 = vmatpush1.msra.mxu0 0.0
        %1468 = vmatprep.subr.mxu0 0.0
        %1469 = vmatpush1.msra.mxu0 0.0
        %1470 = vmatprep.subr.mxu0 0.0
        %1471 = vmatpush1.msra.mxu0 0.0
        %1472 = vmatprep.subr.mxu0 0.0
        %1473 = vmatpush1.msra.mxu0 0.0
        %1474 = vmatprep.subr.mxu0 0.0
        %1475 = vmatpush1.msra.mxu0 0.0
        %1476 = vmatprep.subr.mxu0 0.0
        %1477 = vmatpush1.msra.mxu0 0.0
        %1478 = vmatprep.subr.mxu0 0.0
        %1479 = vmatpush1.msra.mxu0 0.0
        %1480 = vmatprep.subr.mxu0 0.0
        %1481 = vmatpush1.msra.mxu0 0.0
        %1482 = vmatprep.subr.mxu0 0.0
        %1483 = vmatpush1.msra.mxu0 0.0
        %1484 = vmatprep.subr.mxu0 0.0
        %1485 = vmatpush1.msra.mxu0 0.0
        %1486 = vmatprep.subr.mxu0 0.0
        %1487 = vmatpush1.msra.mxu0 0.0
        %1488 = vmatprep.subr.mxu0 0.0
        %1489 = vmatpush1.msra.mxu0 0.0
        %1490 = vmatprep.mubr.f32.mxu0 0.0
        %1491 = vmatmul.mubr.f32.gmra.mrb[0].mxu0 %v856
        %v1492 = vpop.f32.mrb[0].mxu0
        %v1493 = vadd.f32 0.0, %v1492
        %v1494 = vpop.f32.mrb[0].mxu0
        %v1495 = vadd.f32 0.0, %v1494
        %1496 = vmatprep.mubr.f32.mxu0 0.0
        %1497 = vmatmul.mubr.f32.gmra.mrb[0].mxu0 %v937
        %v1498 = vpop.f32.mrb[0].mxu0
        %v1499 = vadd.f32 0.0, %v1498
        %v1500 = vpop.f32.mrb[0].mxu0
        %v1501 = vadd.f32 0.0, %v1500
        %1502 = vmatprep.mubr.f32.mxu0 0.0
        %1503 = vmatmul.mubr.f32.gmra.mrb[0].mxu0 %v1018
        %v1504 = vpop.f32.mrb[0].mxu0
        %v1505 = vadd.f32 0.0, %v1504
        %v1506 = vpop.f32.mrb[0].mxu0
        %v1507 = vadd.f32 0.0, %v1506
        %1508 = vmatprep.mubr.f32.mxu0 0.0
        %1509 = vmatmul.mubr.f32.gmra.mrb[0].mxu0 %v1099
        %v1510 = vpop.f32.mrb[0].mxu0
        %v1511 = vadd.f32 0.0, %v1510
        %v1512 = vpop.f32.mrb[0].mxu0
        %v1513 = vadd.f32 0.0, %v1512
        %1514 = vmatprep.mubr.f32.mxu0 0.0
        %1515 = vmatmul.mubr.f32.gmra.mrb[0].mxu0 %v1180
        %v1516 = vpop.f32.mrb[0].mxu0
        %v1517 = vadd.f32 0.0, %v1516
        %v1518 = vpop.f32.mrb[0].mxu0
        %v1519 = vadd.f32 0.0, %v1518
        %1520 = vmatprep.mubr.f32.mxu0 0.0
        %1521 = vmatmul.mubr.f32.gmra.mrb[0].mxu0 %v1261
        %v1522 = vpop.f32.mrb[0].mxu0
        %v1523 = vadd.f32 0.0, %v1522
        %v1524 = vpop.f32.mrb[0].mxu0
        %v1525 = vadd.f32 0.0, %v1524
        %1526 = vmatprep.mubr.f32.mxu0 0.0
        %1527 = vmatmul.mubr.f32.gmra.mrb[0].mxu0 %v1342
        %v1528 = vpop.f32.mrb[0].mxu0
        %v1529 = vadd.f32 0.0, %v1528
        %v1530 = vpop.f32.mrb[0].mxu0
        %v1531 = vadd.f32 0.0, %v1530
        %1532 = vmatprep.mubr.f32.mxu0 0.0
        %1533 = vmatmul.mubr.f32.gmra.mrb[0].mxu0 %v1423
        %v1534 = vpop.f32.mrb[0].mxu0
        %v1535 = vadd.f32 0.0, %v1534
        %v1536 = vpop.f32.mrb[0].mxu0
        %v1537 = vadd.f32 0.0, %v1536
        %1538 = vdwg.mxu0
        %1539 = vmatprep.subr.mxu0 0.0
        %1540 = vmatpush1.msra.mxu0 %v473
        %1541 = vmatprep.subr.mxu0 0.0
        %1542 = vmatpush1.msra.mxu0 %v476
        %1543 = vmatprep.subr.mxu0 0.0
        %1544 = vmatpush1.msra.mxu0 %v479
        %1545 = vmatprep.subr.mxu0 0.0
        %1546 = vmatpush1.msra.mxu0 %v482
        %1547 = vmatprep.subr.mxu0 0.0
        %1548 = vmatpush1.msra.mxu0 %v485
        %1549 = vmatprep.subr.mxu0 0.0
        %1550 = vmatpush1.msra.mxu0 %v488
        %1551 = vmatprep.subr.mxu0 0.0
        %1552 = vmatpush1.msra.mxu0 %v491
        %1553 = vmatprep.subr.mxu0 0.0
        %1554 = vmatpush1.msra.mxu0 %v494
        %1555 = vmatprep.subr.mxu0 0.0
        %1556 = vmatpush1.msra.mxu0 %v497
        %1557 = vmatprep.subr.mxu0 0.0
        %1558 = vmatpush1.msra.mxu0 %v500
        %1559 = vmatprep.subr.mxu0 0.0
        %1560 = vmatpush1.msra.mxu0 %v503
        %1561 = vmatprep.subr.mxu0 0.0
        %1562 = vmatpush1.msra.mxu0 %v506
        %1563 = vmatprep.subr.mxu0 0.0
        %1564 = vmatpush1.msra.mxu0 %v509
        %1565 = vmatprep.subr.mxu0 0.0
        %1566 = vmatpush1.msra.mxu0 %v512
        %1567 = vmatprep.subr.mxu0 0.0
        %1568 = vmatpush1.msra.mxu0 %v515
        %1569 = vmatprep.subr.mxu0 0.0
        %1570 = vmatpush1.msra.mxu0 %v518
        %1571 = vmatprep.subr.mxu0 0.0
        %1572 = vmatpush1.msra.mxu0 0.0
        %1573 = vmatprep.subr.mxu0 0.0
        %1574 = vmatpush1.msra.mxu0 0.0
        %1575 = vmatprep.subr.mxu0 0.0
        %1576 = vmatpush1.msra.mxu0 0.0
        %1577 = vmatprep.subr.mxu0 0.0
        %1578 = vmatpush1.msra.mxu0 0.0
        %1579 = vmatprep.subr.mxu0 0.0
        %1580 = vmatpush1.msra.mxu0 0.0
        %1581 = vmatprep.subr.mxu0 0.0
        %1582 = vmatpush1.msra.mxu0 0.0
        %1583 = vmatprep.subr.mxu0 0.0
        %1584 = vmatpush1.msra.mxu0 0.0
        %1585 = vmatprep.subr.mxu0 0.0
        %1586 = vmatpush1.msra.mxu0 0.0
        %1587 = vmatprep.subr.mxu0 0.0
        %1588 = vmatpush1.msra.mxu0 0.0
        %1589 = vmatprep.subr.mxu0 0.0
        %1590 = vmatpush1.msra.mxu0 0.0
        %1591 = vmatprep.subr.mxu0 0.0
        %1592 = vmatpush1.msra.mxu0 0.0
        %1593 = vmatprep.subr.mxu0 0.0
        %1594 = vmatpush1.msra.mxu0 0.0
        %1595 = vmatprep.subr.mxu0 0.0
        %1596 = vmatpush1.msra.mxu0 0.0
        %1597 = vmatprep.subr.mxu0 0.0
        %1598 = vmatpush1.msra.mxu0 0.0
        %1599 = vmatprep.subr.mxu0 0.0
        %1600 = vmatpush1.msra.mxu0 0.0
        %1601 = vmatprep.subr.mxu0 0.0
        %1602 = vmatpush1.msra.mxu0 0.0
        %1603 = vmatprep.mubr.f32.mxu0 0.0
        %1604 = vmatmul.mubr.f32.gmra.mrb[0].mxu0 %v856
        %v1605 = vpop.f32.mrb[0].mxu0
        %v1606 = vadd.f32 0.0, %v1605
        %v1607 = vpop.f32.mrb[0].mxu0
        %1608 = vmatprep.mubr.f32.mxu0 0.0
        %1609 = vmatmul.mubr.f32.gmra.mrb[0].mxu0 %v937
        %v1610 = vpop.f32.mrb[0].mxu0
        %v1611 = vadd.f32 0.0, %v1610
        %v1612 = vpop.f32.mrb[0].mxu0
        %1613 = vmatprep.mubr.f32.mxu0 0.0
        %1614 = vmatmul.mubr.f32.gmra.mrb[0].mxu0 %v1018
        %v1615 = vpop.f32.mrb[0].mxu0
        %v1616 = vadd.f32 0.0, %v1615
        %v1617 = vpop.f32.mrb[0].mxu0
        %1618 = vmatprep.mubr.f32.mxu0 0.0
        %1619 = vmatmul.mubr.f32.gmra.mrb[0].mxu0 %v1099
        %v1620 = vpop.f32.mrb[0].mxu0
        %v1621 = vadd.f32 0.0, %v1620
        %v1622 = vpop.f32.mrb[0].mxu0
        %1623 = vmatprep.mubr.f32.mxu0 0.0
        %1624 = vmatmul.mubr.f32.gmra.mrb[0].mxu0 %v1180
        %v1625 = vpop.f32.mrb[0].mxu0
        %v1626 = vadd.f32 0.0, %v1625
        %v1627 = vpop.f32.mrb[0].mxu0
        %1628 = vmatprep.mubr.f32.mxu0 0.0
        %1629 = vmatmul.mubr.f32.gmra.mrb[0].mxu0 %v1261
        %v1630 = vpop.f32.mrb[0].mxu0
        %v1631 = vadd.f32 0.0, %v1630
        %v1632 = vpop.f32.mrb[0].mxu0
        %1633 = vmatprep.mubr.f32.mxu0 0.0
        %1634 = vmatmul.mubr.f32.gmra.mrb[0].mxu0 %v1342
        %v1635 = vpop.f32.mrb[0].mxu0
        %v1636 = vadd.f32 0.0, %v1635
        %v1637 = vpop.f32.mrb[0].mxu0
        %1638 = vmatprep.mubr.f32.mxu0 0.0
        %1639 = vmatmul.mubr.f32.gmra.mrb[0].mxu0 %v1423
        %v1640 = vpop.f32.mrb[0].mxu0
        %v1641 = vadd.f32 0.0, %v1640
        %v1642 = vpop.f32.mrb[0].mxu0
        %1643 = vdwg.mxu0
        %1644 = vmatprep.subr.mxu0 %v424
        %1645 = vmatpush1.msra.mxu0 %v423
        %1646 = vmatprep.subr.mxu0 %v427
        %1647 = vmatpush1.msra.mxu0 %v426
        %1648 = vmatprep.subr.mxu0 %v430
        %1649 = vmatpush1.msra.mxu0 %v429
        %1650 = vmatprep.subr.mxu0 %v433
        %1651 = vmatpush1.msra.mxu0 %v432
        %1652 = vmatprep.subr.mxu0 %v436
        %1653 = vmatpush1.msra.mxu0 %v435
        %1654 = vmatprep.subr.mxu0 %v439
        %1655 = vmatpush1.msra.mxu0 %v438
        %1656 = vmatprep.subr.mxu0 %v442
        %1657 = vmatpush1.msra.mxu0 %v441
        %1658 = vmatprep.subr.mxu0 %v445
        %1659 = vmatpush1.msra.mxu0 %v444
        %1660 = vmatprep.subr.mxu0 %v448
        %1661 = vmatpush1.msra.mxu0 %v447
        %1662 = vmatprep.subr.mxu0 %v451
        %1663 = vmatpush1.msra.mxu0 %v450
        %1664 = vmatprep.subr.mxu0 %v454
        %1665 = vmatpush1.msra.mxu0 %v453
        %1666 = vmatprep.subr.mxu0 %v457
        %1667 = vmatpush1.msra.mxu0 %v456
        %1668 = vmatprep.subr.mxu0 %v460
        %1669 = vmatpush1.msra.mxu0 %v459
        %1670 = vmatprep.subr.mxu0 %v463
        %1671 = vmatpush1.msra.mxu0 %v462
        %1672 = vmatprep.subr.mxu0 %v466
        %1673 = vmatpush1.msra.mxu0 %v465
        %1674 = vmatprep.subr.mxu0 %v469
        %1675 = vmatpush1.msra.mxu0 %v468
        %1676 = vmatprep.subr.mxu0 0.0
        %1677 = vmatpush1.msra.mxu0 0.0
        %1678 = vmatprep.subr.mxu0 0.0
        %1679 = vmatpush1.msra.mxu0 0.0
        %1680 = vmatprep.subr.mxu0 0.0
        %1681 = vmatpush1.msra.mxu0 0.0
        %1682 = vmatprep.subr.mxu0 0.0
        %1683 = vmatpush1.msra.mxu0 0.0
        %1684 = vmatprep.subr.mxu0 0.0
        %1685 = vmatpush1.msra.mxu0 0.0
        %1686 = vmatprep.subr.mxu0 0.0
        %1687 = vmatpush1.msra.mxu0 0.0
        %1688 = vmatprep.subr.mxu0 0.0
        %1689 = vmatpush1.msra.mxu0 0.0
        %1690 = vmatprep.subr.mxu0 0.0
        %1691 = vmatpush1.msra.mxu0 0.0
        %1692 = vmatprep.subr.mxu0 0.0
        %1693 = vmatpush1.msra.mxu0 0.0
        %1694 = vmatprep.subr.mxu0 0.0
        %1695 = vmatpush1.msra.mxu0 0.0
        %1696 = vmatprep.subr.mxu0 0.0
        %1697 = vmatpush1.msra.mxu0 0.0
        %1698 = vmatprep.subr.mxu0 0.0
        %1699 = vmatpush1.msra.mxu0 0.0
        %1700 = vmatprep.subr.mxu0 0.0
        %1701 = vmatpush1.msra.mxu0 0.0
        %1702 = vmatprep.subr.mxu0 0.0
        %1703 = vmatpush1.msra.mxu0 0.0
        %1704 = vmatprep.subr.mxu0 0.0
        %1705 = vmatpush1.msra.mxu0 0.0
        %1706 = vmatprep.subr.mxu0 0.0
        %1707 = vmatpush1.msra.mxu0 0.0
        %1708 = vmatprep.mubr.f32.mxu0 0.0
        %1709 = vmatmul.mubr.f32.gmra.mrb[0].mxu0 %v851
        %v1710 = vpop.f32.mrb[0].mxu0
        %v1711 = vadd.f32 %v1493, %v1710
        %v1712 = vpop.f32.mrb[0].mxu0
        %v1713 = vadd.f32 %v1495, %v1712
        %1714 = vmatprep.mubr.f32.mxu0 0.0
        %1715 = vmatmul.mubr.f32.gmra.mrb[0].mxu0 %v932
        %v1716 = vpop.f32.mrb[0].mxu0
        %v1717 = vadd.f32 %v1499, %v1716
        %v1718 = vpop.f32.mrb[0].mxu0
        %v1719 = vadd.f32 %v1501, %v1718
        %1720 = vmatprep.mubr.f32.mxu0 0.0
        %1721 = vmatmul.mubr.f32.gmra.mrb[0].mxu0 %v1013
        %v1722 = vpop.f32.mrb[0].mxu0
        %v1723 = vadd.f32 %v1505, %v1722
        %v1724 = vpop.f32.mrb[0].mxu0
        %v1725 = vadd.f32 %v1507, %v1724
        %1726 = vmatprep.mubr.f32.mxu0 0.0
        %1727 = vmatmul.mubr.f32.gmra.mrb[0].mxu0 %v1094
        %v1728 = vpop.f32.mrb[0].mxu0
        %v1729 = vadd.f32 %v1511, %v1728
        %v1730 = vpop.f32.mrb[0].mxu0
        %v1731 = vadd.f32 %v1513, %v1730
        %1732 = vmatprep.mubr.f32.mxu0 0.0
        %1733 = vmatmul.mubr.f32.gmra.mrb[0].mxu0 %v1175
        %v1734 = vpop.f32.mrb[0].mxu0
        %v1735 = vadd.f32 %v1517, %v1734
        %v1736 = vpop.f32.mrb[0].mxu0
        %v1737 = vadd.f32 %v1519, %v1736
        %1738 = vmatprep.mubr.f32.mxu0 0.0
        %1739 = vmatmul.mubr.f32.gmra.mrb[0].mxu0 %v1256
        %v1740 = vpop.f32.mrb[0].mxu0
        %v1741 = vadd.f32 %v1523, %v1740
        %v1742 = vpop.f32.mrb[0].mxu0
        %v1743 = vadd.f32 %v1525, %v1742
        %1744 = vmatprep.mubr.f32.mxu0 0.0
        %1745 = vmatmul.mubr.f32.gmra.mrb[0].mxu0 %v1337
        %v1746 = vpop.f32.mrb[0].mxu0
        %v1747 = vadd.f32 %v1529, %v1746
        %v1748 = vpop.f32.mrb[0].mxu0
        %v1749 = vadd.f32 %v1531, %v1748
        %1750 = vmatprep.mubr.f32.mxu0 0.0
        %1751 = vmatmul.mubr.f32.gmra.mrb[0].mxu0 %v1418
        %v1752 = vpop.f32.mrb[0].mxu0
        %v1753 = vadd.f32 %v1535, %v1752
        %v1754 = vpop.f32.mrb[0].mxu0
        %v1755 = vadd.f32 %v1537, %v1754
        %1756 = vdwg.mxu0
        %1757 = vmatprep.subr.mxu0 0.0
        %1758 = vmatpush1.msra.mxu0 %v425
        %1759 = vmatprep.subr.mxu0 0.0
        %1760 = vmatpush1.msra.mxu0 %v428
        %1761 = vmatprep.subr.mxu0 0.0
        %1762 = vmatpush1.msra.mxu0 %v431
        %1763 = vmatprep.subr.mxu0 0.0
        %1764 = vmatpush1.msra.mxu0 %v434
        %1765 = vmatprep.subr.mxu0 0.0
        %1766 = vmatpush1.msra.mxu0 %v437
        %1767 = vmatprep.subr.mxu0 0.0
        %1768 = vmatpush1.msra.mxu0 %v440
        %1769 = vmatprep.subr.mxu0 0.0
        %1770 = vmatpush1.msra.mxu0 %v443
        %1771 = vmatprep.subr.mxu0 0.0
        %1772 = vmatpush1.msra.mxu0 %v446
        %1773 = vmatprep.subr.mxu0 0.0
        %1774 = vmatpush1.msra.mxu0 %v449
        %1775 = vmatprep.subr.mxu0 0.0
        %1776 = vmatpush1.msra.mxu0 %v452
        %1777 = vmatprep.subr.mxu0 0.0
        %1778 = vmatpush1.msra.mxu0 %v455
        %1779 = vmatprep.subr.mxu0 0.0
        %1780 = vmatpush1.msra.mxu0 %v458
        %1781 = vmatprep.subr.mxu0 0.0
        %1782 = vmatpush1.msra.mxu0 %v461
        %1783 = vmatprep.subr.mxu0 0.0
        %1784 = vmatpush1.msra.mxu0 %v464
        %1785 = vmatprep.subr.mxu0 0.0
        %1786 = vmatpush1.msra.mxu0 %v467
        %1787 = vmatprep.subr.mxu0 0.0
        %1788 = vmatpush1.msra.mxu0 %v470
        %1789 = vmatprep.subr.mxu0 0.0
        %1790 = vmatpush1.msra.mxu0 0.0
        %1791 = vmatprep.subr.mxu0 0.0
        %1792 = vmatpush1.msra.mxu0 0.0
        %1793 = vmatprep.subr.mxu0 0.0
        %1794 = vmatpush1.msra.mxu0 0.0
        %1795 = vmatprep.subr.mxu0 0.0
        %1796 = vmatpush1.msra.mxu0 0.0
        %1797 = vmatprep.subr.mxu0 0.0
        %1798 = vmatpush1.msra.mxu0 0.0
        %1799 = vmatprep.subr.mxu0 0.0
        %1800 = vmatpush1.msra.mxu0 0.0
        %1801 = vmatprep.subr.mxu0 0.0
        %1802 = vmatpush1.msra.mxu0 0.0
        %1803 = vmatprep.subr.mxu0 0.0
        %1804 = vmatpush1.msra.mxu0 0.0
        %1805 = vmatprep.subr.mxu0 0.0
        %1806 = vmatpush1.msra.mxu0 0.0
        %1807 = vmatprep.subr.mxu0 0.0
        %1808 = vmatpush1.msra.mxu0 0.0
        %1809 = vmatprep.subr.mxu0 0.0
        %1810 = vmatpush1.msra.mxu0 0.0
        %1811 = vmatprep.subr.mxu0 0.0
        %1812 = vmatpush1.msra.mxu0 0.0
        %1813 = vmatprep.subr.mxu0 0.0
        %1814 = vmatpush1.msra.mxu0 0.0
        %1815 = vmatprep.subr.mxu0 0.0
        %1816 = vmatpush1.msra.mxu0 0.0
        %1817 = vmatprep.subr.mxu0 0.0
        %1818 = vmatpush1.msra.mxu0 0.0
        %1819 = vmatprep.subr.mxu0 0.0
        %1820 = vmatpush1.msra.mxu0 0.0
        %1821 = vmatprep.mubr.f32.mxu0 0.0
        %1822 = vmatmul.mubr.f32.gmra.mrb[0].mxu0 %v851
        %v1823 = vpop.f32.mrb[0].mxu0
        %v1824 = vadd.f32 %v1606, %v1823
        %v1825 = vpop.f32.mrb[0].mxu0
        %1826 = vmatprep.mubr.f32.mxu0 0.0
        %1827 = vmatmul.mubr.f32.gmra.mrb[0].mxu0 %v932
        %v1828 = vpop.f32.mrb[0].mxu0
        %v1829 = vadd.f32 %v1611, %v1828
        %v1830 = vpop.f32.mrb[0].mxu0
        %1831 = vmatprep.mubr.f32.mxu0 0.0
        %1832 = vmatmul.mubr.f32.gmra.mrb[0].mxu0 %v1013
        %v1833 = vpop.f32.mrb[0].mxu0
        %v1834 = vadd.f32 %v1616, %v1833
        %v1835 = vpop.f32.mrb[0].mxu0
        %1836 = vmatprep.mubr.f32.mxu0 0.0
        %1837 = vmatmul.mubr.f32.gmra.mrb[0].mxu0 %v1094
        %v1838 = vpop.f32.mrb[0].mxu0
        %v1839 = vadd.f32 %v1621, %v1838
        %v1840 = vpop.f32.mrb[0].mxu0
        %1841 = vmatprep.mubr.f32.mxu0 0.0
        %1842 = vmatmul.mubr.f32.gmra.mrb[0].mxu0 %v1175
        %v1843 = vpop.f32.mrb[0].mxu0
        %v1844 = vadd.f32 %v1626, %v1843
        %v1845 = vpop.f32.mrb[0].mxu0
        %1846 = vmatprep.mubr.f32.mxu0 0.0
        %1847 = vmatmul.mubr.f32.gmra.mrb[0].mxu0 %v1256
        %v1848 = vpop.f32.mrb[0].mxu0
        %v1849 = vadd.f32 %v1631, %v1848
        %v1850 = vpop.f32.mrb[0].mxu0
        %1851 = vmatprep.mubr.f32.mxu0 0.0
        %1852 = vmatmul.mubr.f32.gmra.mrb[0].mxu0 %v1337
        %v1853 = vpop.f32.mrb[0].mxu0
        %v1854 = vadd.f32 %v1636, %v1853
        %v1855 = vpop.f32.mrb[0].mxu0
        %1856 = vmatprep.mubr.f32.mxu0 0.0
        %1857 = vmatmul.mubr.f32.gmra.mrb[0].mxu0 %v1418
        %v1858 = vpop.f32.mrb[0].mxu0
        %v1859 = vadd.f32 %v1641, %v1858
        %v1860 = vpop.f32.mrb[0].mxu0
        %1861 = vdwg.mxu0
        %v1862 = vadd.f32 %v1711, %v739
        %v1863 = vadd.f32 %v1713, %v740
        %v1864 = vadd.f32 %v1824, %v741
        %v1865 = vadd.f32 %v1717, %v742
        %v1866 = vadd.f32 %v1719, %v743
        %v1867 = vadd.f32 %v1829, %v744
        %v1868 = vadd.f32 %v1723, %v745
        %v1869 = vadd.f32 %v1725, %v746
        %v1870 = vadd.f32 %v1834, %v747
        %v1871 = vadd.f32 %v1729, %v748
        %v1872 = vadd.f32 %v1731, %v749
        %v1873 = vadd.f32 %v1839, %v750
        %v1874 = vadd.f32 %v1735, %v751
        %v1875 = vadd.f32 %v1737, %v752
        %v1876 = vadd.f32 %v1844, %v753
        %v1877 = vadd.f32 %v1741, %v754
        %v1878 = vadd.f32 %v1743, %v755
        %v1879 = vadd.f32 %v1849, %v756
        %v1880 = vadd.f32 %v1747, %v757
        %v1881 = vadd.f32 %v1749, %v758
        %v1882 = vadd.f32 %v1854, %v759
        %v1883 = vadd.f32 %v1753, %v760
        %v1884 = vadd.f32 %v1755, %v761
        %v1885 = vadd.f32 %v1859, %v762
        %1886 = vmatprep.subr.mxu0 %v520
        %1887 = vmatpush1.msra.mxu0 %v519
        %1888 = vmatprep.subr.mxu0 %v523
        %1889 = vmatpush1.msra.mxu0 %v522
        %1890 = vmatprep.subr.mxu0 %v526
        %1891 = vmatpush1.msra.mxu0 %v525
        %1892 = vmatprep.subr.mxu0 %v529
        %1893 = vmatpush1.msra.mxu0 %v528
        %1894 = vmatprep.subr.mxu0 %v532
        %1895 = vmatpush1.msra.mxu0 %v531
        %1896 = vmatprep.subr.mxu0 %v535
        %1897 = vmatpush1.msra.mxu0 %v534
        %1898 = vmatprep.subr.mxu0 %v538
        %1899 = vmatpush1.msra.mxu0 %v537
        %1900 = vmatprep.subr.mxu0 %v541
        %1901 = vmatpush1.msra.mxu0 %v540
        %1902 = vmatprep.subr.mxu0 %v544
        %1903 = vmatpush1.msra.mxu0 %v543
        %1904 = vmatprep.subr.mxu0 %v547
        %1905 = vmatpush1.msra.mxu0 %v546
        %1906 = vmatprep.subr.mxu0 %v550
        %1907 = vmatpush1.msra.mxu0 %v549
        %1908 = vmatprep.subr.mxu0 %v553
        %1909 = vmatpush1.msra.mxu0 %v552
        %1910 = vmatprep.subr.mxu0 %v556
        %1911 = vmatpush1.msra.mxu0 %v555
        %1912 = vmatprep.subr.mxu0 %v559
        %1913 = vmatpush1.msra.mxu0 %v558
        %1914 = vmatprep.subr.mxu0 %v562
        %1915 = vmatpush1.msra.mxu0 %v561
        %1916 = vmatprep.subr.mxu0 %v565
        %1917 = vmatpush1.msra.mxu0 %v564
        %1918 = vmatprep.subr.mxu0 0.0
        %1919 = vmatpush1.msra.mxu0 0.0
        %1920 = vmatprep.subr.mxu0 0.0
        %1921 = vmatpush1.msra.mxu0 0.0
        %1922 = vmatprep.subr.mxu0 0.0
        %1923 = vmatpush1.msra.mxu0 0.0
        %1924 = vmatprep.subr.mxu0 0.0
        %1925 = vmatpush1.msra.mxu0 0.0
        %1926 = vmatprep.subr.mxu0 0.0
        %1927 = vmatpush1.msra.mxu0 0.0
        %1928 = vmatprep.subr.mxu0 0.0
        %1929 = vmatpush1.msra.mxu0 0.0
        %1930 = vmatprep.subr.mxu0 0.0
        %1931 = vmatpush1.msra.mxu0 0.0
        %1932 = vmatprep.subr.mxu0 0.0
        %1933 = vmatpush1.msra.mxu0 0.0
        %1934 = vmatprep.subr.mxu0 0.0
        %1935 = vmatpush1.msra.mxu0 0.0
        %1936 = vmatprep.subr.mxu0 0.0
        %1937 = vmatpush1.msra.mxu0 0.0
        %1938 = vmatprep.subr.mxu0 0.0
        %1939 = vmatpush1.msra.mxu0 0.0
        %1940 = vmatprep.subr.mxu0 0.0
        %1941 = vmatpush1.msra.mxu0 0.0
        %1942 = vmatprep.subr.mxu0 0.0
        %1943 = vmatpush1.msra.mxu0 0.0
        %1944 = vmatprep.subr.mxu0 0.0
        %1945 = vmatpush1.msra.mxu0 0.0
        %1946 = vmatprep.subr.mxu0 0.0
        %1947 = vmatpush1.msra.mxu0 0.0
        %1948 = vmatprep.subr.mxu0 0.0
        %1949 = vmatpush1.msra.mxu0 0.0
        %1950 = vmatprep.mubr.f32.mxu0 0.0
        %1951 = vmatmul.mubr.f32.gmra.mrb[0].mxu0 %v770
        %v1952 = vpop.f32.mrb[0].mxu0
        %v1953 = vadd.f32 0.0, %v1952
        %v1954 = vpop.f32.mrb[0].mxu0
        %v1955 = vadd.f32 0.0, %v1954
        %1956 = vmatprep.mubr.f32.mxu0 0.0
        %1957 = vmatmul.mubr.f32.gmra.mrb[0].mxu0 %v771
        %v1958 = vpop.f32.mrb[0].mxu0
        %v1959 = vadd.f32 0.0, %v1958
        %v1960 = vpop.f32.mrb[0].mxu0
        %v1961 = vadd.f32 0.0, %v1960
        %1962 = vmatprep.mubr.f32.mxu0 0.0
        %1963 = vmatmul.mubr.f32.gmra.mrb[0].mxu0 %v772
        %v1964 = vpop.f32.mrb[0].mxu0
        %v1965 = vadd.f32 0.0, %v1964
        %v1966 = vpop.f32.mrb[0].mxu0
        %v1967 = vadd.f32 0.0, %v1966
        %1968 = vmatprep.mubr.f32.mxu0 0.0
        %1969 = vmatmul.mubr.f32.gmra.mrb[0].mxu0 %v773
        %v1970 = vpop.f32.mrb[0].mxu0
        %v1971 = vadd.f32 0.0, %v1970
        %v1972 = vpop.f32.mrb[0].mxu0
        %v1973 = vadd.f32 0.0, %v1972
        %1974 = vmatprep.mubr.f32.mxu0 0.0
        %1975 = vmatmul.mubr.f32.gmra.mrb[0].mxu0 %v774
        %v1976 = vpop.f32.mrb[0].mxu0
        %v1977 = vadd.f32 0.0, %v1976
        %v1978 = vpop.f32.mrb[0].mxu0
        %v1979 = vadd.f32 0.0, %v1978
        %1980 = vmatprep.mubr.f32.mxu0 0.0
        %1981 = vmatmul.mubr.f32.gmra.mrb[0].mxu0 %v775
        %v1982 = vpop.f32.mrb[0].mxu0
        %v1983 = vadd.f32 0.0, %v1982
        %v1984 = vpop.f32.mrb[0].mxu0
        %v1985 = vadd.f32 0.0, %v1984
        %1986 = vmatprep.mubr.f32.mxu0 0.0
        %1987 = vmatmul.mubr.f32.gmra.mrb[0].mxu0 %v776
        %v1988 = vpop.f32.mrb[0].mxu0
        %v1989 = vadd.f32 0.0, %v1988
        %v1990 = vpop.f32.mrb[0].mxu0
        %v1991 = vadd.f32 0.0, %v1990
        %1992 = vmatprep.mubr.f32.mxu0 0.0
        %1993 = vmatmul.mubr.f32.gmra.mrb[0].mxu0 %v777
        %v1994 = vpop.f32.mrb[0].mxu0
        %v1995 = vadd.f32 0.0, %v1994
        %v1996 = vpop.f32.mrb[0].mxu0
        %v1997 = vadd.f32 0.0, %v1996
        %1998 = vdwg.mxu0
        %1999 = vmatprep.subr.mxu0 0.0
        %2000 = vmatpush1.msra.mxu0 %v521
        %2001 = vmatprep.subr.mxu0 0.0
        %2002 = vmatpush1.msra.mxu0 %v524
        %2003 = vmatprep.subr.mxu0 0.0
        %2004 = vmatpush1.msra.mxu0 %v527
        %2005 = vmatprep.subr.mxu0 0.0
        %2006 = vmatpush1.msra.mxu0 %v530
        %2007 = vmatprep.subr.mxu0 0.0
        %2008 = vmatpush1.msra.mxu0 %v533
        %2009 = vmatprep.subr.mxu0 0.0
        %2010 = vmatpush1.msra.mxu0 %v536
        %2011 = vmatprep.subr.mxu0 0.0
        %2012 = vmatpush1.msra.mxu0 %v539
        %2013 = vmatprep.subr.mxu0 0.0
        %2014 = vmatpush1.msra.mxu0 %v542
        %2015 = vmatprep.subr.mxu0 0.0
        %2016 = vmatpush1.msra.mxu0 %v545
        %2017 = vmatprep.subr.mxu0 0.0
        %2018 = vmatpush1.msra.mxu0 %v548
        %2019 = vmatprep.subr.mxu0 0.0
        %2020 = vmatpush1.msra.mxu0 %v551
        %2021 = vmatprep.subr.mxu0 0.0
        %2022 = vmatpush1.msra.mxu0 %v554
        %2023 = vmatprep.subr.mxu0 0.0
        %2024 = vmatpush1.msra.mxu0 %v557
        %2025 = vmatprep.subr.mxu0 0.0
        %2026 = vmatpush1.msra.mxu0 %v560
        %2027 = vmatprep.subr.mxu0 0.0
        %2028 = vmatpush1.msra.mxu0 %v563
        %2029 = vmatprep.subr.mxu0 0.0
        %2030 = vmatpush1.msra.mxu0 %v566
        %2031 = vmatprep.subr.mxu0 0.0
        %2032 = vmatpush1.msra.mxu0 0.0
        %2033 = vmatprep.subr.mxu0 0.0
        %2034 = vmatpush1.msra.mxu0 0.0
        %2035 = vmatprep.subr.mxu0 0.0
        %2036 = vmatpush1.msra.mxu0 0.0
        %2037 = vmatprep.subr.mxu0 0.0
        %2038 = vmatpush1.msra.mxu0 0.0
        %2039 = vmatprep.subr.mxu0 0.0
        %2040 = vmatpush1.msra.mxu0 0.0
        %2041 = vmatprep.subr.mxu0 0.0
        %2042 = vmatpush1.msra.mxu0 0.0
        %2043 = vmatprep.subr.mxu0 0.0
        %2044 = vmatpush1.msra.mxu0 0.0
        %2045 = vmatprep.subr.mxu0 0.0
        %2046 = vmatpush1.msra.mxu0 0.0
        %2047 = vmatprep.subr.mxu0 0.0
        %2048 = vmatpush1.msra.mxu0 0.0
        %2049 = vmatprep.subr.mxu0 0.0
        %2050 = vmatpush1.msra.mxu0 0.0
        %2051 = vmatprep.subr.mxu0 0.0
        %2052 = vmatpush1.msra.mxu0 0.0
        %2053 = vmatprep.subr.mxu0 0.0
        %2054 = vmatpush1.msra.mxu0 0.0
        %2055 = vmatprep.subr.mxu0 0.0
        %2056 = vmatpush1.msra.mxu0 0.0
        %2057 = vmatprep.subr.mxu0 0.0
        %2058 = vmatpush1.msra.mxu0 0.0
        %2059 = vmatprep.subr.mxu0 0.0
        %2060 = vmatpush1.msra.mxu0 0.0
        %2061 = vmatprep.subr.mxu0 0.0
        %2062 = vmatpush1.msra.mxu0 0.0
        %2063 = vmatprep.mubr.f32.mxu0 0.0
        %2064 = vmatmul.mubr.f32.gmra.mrb[0].mxu0 %v770
        %v2065 = vpop.f32.mrb[0].mxu0
        %v2066 = vadd.f32 0.0, %v2065
        %v2067 = vpop.f32.mrb[0].mxu0
        %2068 = vmatprep.mubr.f32.mxu0 0.0
        %2069 = vmatmul.mubr.f32.gmra.mrb[0].mxu0 %v771
        %v2070 = vpop.f32.mrb[0].mxu0
        %v2071 = vadd.f32 0.0, %v2070
        %v2072 = vpop.f32.mrb[0].mxu0
        %2073 = vmatprep.mubr.f32.mxu0 0.0
        %2074 = vmatmul.mubr.f32.gmra.mrb[0].mxu0 %v772
        %v2075 = vpop.f32.mrb[0].mxu0
        %v2076 = vadd.f32 0.0, %v2075
        %v2077 = vpop.f32.mrb[0].mxu0
        %2078 = vmatprep.mubr.f32.mxu0 0.0
        %2079 = vmatmul.mubr.f32.gmra.mrb[0].mxu0 %v773
        %v2080 = vpop.f32.mrb[0].mxu0
        %v2081 = vadd.f32 0.0, %v2080
        %v2082 = vpop.f32.mrb[0].mxu0
        %2083 = vmatprep.mubr.f32.mxu0 0.0
        %2084 = vmatmul.mubr.f32.gmra.mrb[0].mxu0 %v774
        %v2085 = vpop.f32.mrb[0].mxu0
        %v2086 = vadd.f32 0.0, %v2085
        %v2087 = vpop.f32.mrb[0].mxu0
        %2088 = vmatprep.mubr.f32.mxu0 0.0
        %2089 = vmatmul.mubr.f32.gmra.mrb[0].mxu0 %v775
        %v2090 = vpop.f32.mrb[0].mxu0
        %v2091 = vadd.f32 0.0, %v2090
        %v2092 = vpop.f32.mrb[0].mxu0
        %2093 = vmatprep.mubr.f32.mxu0 0.0
        %2094 = vmatmul.mubr.f32.gmra.mrb[0].mxu0 %v776
        %v2095 = vpop.f32.mrb[0].mxu0
        %v2096 = vadd.f32 0.0, %v2095
        %v2097 = vpop.f32.mrb[0].mxu0
        %2098 = vmatprep.mubr.f32.mxu0 0.0
        %2099 = vmatmul.mubr.f32.gmra.mrb[0].mxu0 %v777
        %v2100 = vpop.f32.mrb[0].mxu0
        %v2101 = vadd.f32 0.0, %v2100
        %v2102 = vpop.f32.mrb[0].mxu0
        %2103 = vdwg.mxu0
        %v2104 = vadd.f32 %v2066, %v768
        %v2105 = vadd.f32 %v2071, %v768
        %v2106 = vadd.f32 %v2076, %v768
        %v2107 = vadd.f32 %v2081, %v768
        %v2108 = vadd.f32 %v2086, %v768
        %v2109 = vadd.f32 %v2091, %v768
        %v2110 = vadd.f32 %v2096, %v768
        %v2111 = vadd.f32 %v2101, %v768
        %v2112 = vadd.f32 %v1862, %v1953
        %v2113 = vadd.f32 %v1865, %v1959
        %v2114 = vadd.f32 %v1868, %v1965
        %v2115 = vadd.f32 %v1871, %v1971
        %v2116 = vadd.f32 %v1874, %v1977
        %v2117 = vadd.f32 %v1877, %v1983
        %v2118 = vadd.f32 %v1880, %v1989
        %v2119 = vadd.f32 %v1883, %v1995
        %v2120 = vxor.u32 %v2112, 2147483648
        %v2121 = vxor.u32 %v2113, 2147483648
        %v2122 = vxor.u32 %v2114, 2147483648
        %v2123 = vxor.u32 %v2115, 2147483648
        %v2124 = vxor.u32 %v2116, 2147483648
        %v2125 = vxor.u32 %v2117, 2147483648
        %v2126 = vxor.u32 %v2118, 2147483648
        %v2127 = vxor.u32 %v2119, 2147483648
        %v2128 = vmul.f32 %v2120, 1.442695
        %v2129 = vpow.pop %v2128
        %v2130 = vmul.f32 %v2121, 1.442695
        %v2131 = vpow.pop %v2130
        %v2132 = vmul.f32 %v2122, 1.442695
        %v2133 = vpow.pop %v2132
        %v2134 = vmul.f32 %v2123, 1.442695
        %v2135 = vpow.pop %v2134
        %v2136 = vmul.f32 %v2124, 1.442695
        %v2137 = vpow.pop %v2136
        %v2138 = vmul.f32 %v2125, 1.442695
        %v2139 = vpow.pop %v2138
        %v2140 = vmul.f32 %v2126, 1.442695
        %v2141 = vpow.pop %v2140
        %v2142 = vmul.f32 %v2127, 1.442695
        %v2143 = vpow.pop %v2142
        %v2144 = vadd.f32 %v2129, 1.0
        %v2145 = vadd.f32 %v2131, 1.0
        %v2146 = vadd.f32 %v2133, 1.0
        %v2147 = vadd.f32 %v2135, 1.0
        %v2148 = vadd.f32 %v2137, 1.0
        %v2149 = vadd.f32 %v2139, 1.0
        %v2150 = vadd.f32 %v2141, 1.0
        %v2151 = vadd.f32 %v2143, 1.0
        %v2152 = vrcp.pop %v2144
        %v2153 = vmul.f32 1.0, %v2152
        %v2154 = vrcp.pop %v2145
        %v2155 = vmul.f32 1.0, %v2154
        %v2156 = vrcp.pop %v2146
        %v2157 = vmul.f32 1.0, %v2156
        %v2158 = vrcp.pop %v2147
        %v2159 = vmul.f32 1.0, %v2158
        %v2160 = vrcp.pop %v2148
        %v2161 = vmul.f32 1.0, %v2160
        %v2162 = vrcp.pop %v2149
        %v2163 = vmul.f32 1.0, %v2162
        %v2164 = vrcp.pop %v2150
        %v2165 = vmul.f32 1.0, %v2164
        %v2166 = vrcp.pop %v2151
        %v2167 = vmul.f32 1.0, %v2166
        %v2168 = vadd.f32 %v1863, %v1955
        %v2169 = vadd.f32 %v1866, %v1961
        %v2170 = vadd.f32 %v1869, %v1967
        %v2171 = vadd.f32 %v1872, %v1973
        %v2172 = vadd.f32 %v1875, %v1979
        %v2173 = vadd.f32 %v1878, %v1985
        %v2174 = vadd.f32 %v1881, %v1991
        %v2175 = vadd.f32 %v1884, %v1997
        %v2176 = vxor.u32 %v2168, 2147483648
        %v2177 = vxor.u32 %v2169, 2147483648
        %v2178 = vxor.u32 %v2170, 2147483648
        %v2179 = vxor.u32 %v2171, 2147483648
        %v2180 = vxor.u32 %v2172, 2147483648
        %v2181 = vxor.u32 %v2173, 2147483648
        %v2182 = vxor.u32 %v2174, 2147483648
        %v2183 = vxor.u32 %v2175, 2147483648
        %v2184 = vmul.f32 %v2176, 1.442695
        %v2185 = vpow.pop %v2184
        %v2186 = vmul.f32 %v2177, 1.442695
        %v2187 = vpow.pop %v2186
        %v2188 = vmul.f32 %v2178, 1.442695
        %v2189 = vpow.pop %v2188
        %v2190 = vmul.f32 %v2179, 1.442695
        %v2191 = vpow.pop %v2190
        %v2192 = vmul.f32 %v2180, 1.442695
        %v2193 = vpow.pop %v2192
        %v2194 = vmul.f32 %v2181, 1.442695
        %v2195 = vpow.pop %v2194
        %v2196 = vmul.f32 %v2182, 1.442695
        %v2197 = vpow.pop %v2196
        %v2198 = vmul.f32 %v2183, 1.442695
        %v2199 = vpow.pop %v2198
        %v2200 = vadd.f32 %v2185, 1.0
        %v2201 = vadd.f32 %v2187, 1.0
        %v2202 = vadd.f32 %v2189, 1.0
        %v2203 = vadd.f32 %v2191, 1.0
        %v2204 = vadd.f32 %v2193, 1.0
        %v2205 = vadd.f32 %v2195, 1.0
        %v2206 = vadd.f32 %v2197, 1.0
        %v2207 = vadd.f32 %v2199, 1.0
        %v2208 = vrcp.pop %v2200
        %v2209 = vmul.f32 1.0, %v2208
        %v2210 = vrcp.pop %v2201
        %v2211 = vmul.f32 1.0, %v2210
        %v2212 = vrcp.pop %v2202
        %v2213 = vmul.f32 1.0, %v2212
        %v2214 = vrcp.pop %v2203
        %v2215 = vmul.f32 1.0, %v2214
        %v2216 = vrcp.pop %v2204
        %v2217 = vmul.f32 1.0, %v2216
        %v2218 = vrcp.pop %v2205
        %v2219 = vmul.f32 1.0, %v2218
        %v2220 = vrcp.pop %v2206
        %v2221 = vmul.f32 1.0, %v2220
        %v2222 = vrcp.pop %v2207
        %v2223 = vmul.f32 1.0, %v2222
        %v2224 = vmul.f32 %v2153, %v2104
        %v2225 = vmul.f32 %v2155, %v2105
        %v2226 = vmul.f32 %v2157, %v2106
        %v2227 = vmul.f32 %v2159, %v2107
        %v2228 = vmul.f32 %v2161, %v2108
        %v2229 = vmul.f32 %v2163, %v2109
        %v2230 = vmul.f32 %v2165, %v2110
        %v2231 = vmul.f32 %v2167, %v2111
        %v2232 = vadd.f32 %v1864, %v2224
        %v2233 = vadd.f32 %v1867, %v2225
        %v2234 = vadd.f32 %v1870, %v2226
        %v2235 = vadd.f32 %v1873, %v2227
        %v2236 = vadd.f32 %v1876, %v2228
        %v2237 = vadd.f32 %v1879, %v2229
        %v2238 = vadd.f32 %v1882, %v2230
        %v2239 = vadd.f32 %v1885, %v2231
        %v2240 = vtanh.pop %v2232
        %v2241 = vtanh.pop %v2233
        %v2242 = vtanh.pop %v2234
        %v2243 = vtanh.pop %v2235
        %v2244 = vtanh.pop %v2236
        %v2245 = vtanh.pop %v2237
        %v2246 = vtanh.pop %v2238
        %v2247 = vtanh.pop %v2239
        %v2248 = vsub.f32 %v770, %v2240
        %v2249 = vsub.f32 %v771, %v2241
        %v2250 = vsub.f32 %v772, %v2242
        %v2251 = vsub.f32 %v773, %v2243
        %v2252 = vsub.f32 %v774, %v2244
        %v2253 = vsub.f32 %v775, %v2245
        %v2254 = vsub.f32 %v776, %v2246
        %v2255 = vsub.f32 %v777, %v2247
        %v2256 = vmul.f32 %v2209, %v2248
        %v2257 = vmul.f32 %v2211, %v2249
        %v2258 = vmul.f32 %v2213, %v2250
        %v2259 = vmul.f32 %v2215, %v2251
        %v2260 = vmul.f32 %v2217, %v2252
        %v2261 = vmul.f32 %v2219, %v2253
        %v2262 = vmul.f32 %v2221, %v2254
        %v2263 = vmul.f32 %v2223, %v2255
        %v2264 = vadd.f32 %v2240, %v2256
        %v2265 = vadd.f32 %v2241, %v2257
        %v2266 = vadd.f32 %v2242, %v2258
        %v2267 = vadd.f32 %v2243, %v2259
        %v2268 = vadd.f32 %v2244, %v2260
        %v2269 = vadd.f32 %v2245, %v2261
        %v2270 = vadd.f32 %v2246, %v2262
        %v2271 = vadd.f32 %v2247, %v2263
        %2272 = vmatprep.subr.mxu0 0.0
        %2273 = vmatpush1.msra.mxu0 %v2264
        %2274 = vmatprep.subr.mxu0 0.0
        %2275 = vmatpush1.msra.mxu0 0.0
        %2276 = vmatprep.subr.mxu0 0.0
        %2277 = vmatpush1.msra.mxu0 0.0
        %2278 = vmatprep.subr.mxu0 0.0
        %2279 = vmatpush1.msra.mxu0 0.0
        %2280 = vmatprep.subr.mxu0 0.0
        %2281 = vmatpush1.msra.mxu0 0.0
        %2282 = vmatprep.subr.mxu0 0.0
        %2283 = vmatpush1.msra.mxu0 0.0
        %2284 = vmatprep.subr.mxu0 0.0
        %2285 = vmatpush1.msra.mxu0 0.0
        %2286 = vmatprep.subr.mxu0 0.0
        %2287 = vmatpush1.msra.mxu0 0.0
        %2288 = vmatprep.subr.mxu0 0.0
        %2289 = vmatpush1.msra.mxu0 0.0
        %2290 = vmatprep.subr.mxu0 0.0
        %2291 = vmatpush1.msra.mxu0 0.0
        %2292 = vmatprep.subr.mxu0 0.0
        %2293 = vmatpush1.msra.mxu0 0.0
        %2294 = vmatprep.subr.mxu0 0.0
        %2295 = vmatpush1.msra.mxu0 0.0
        %2296 = vmatprep.subr.mxu0 0.0
        %2297 = vmatpush1.msra.mxu0 0.0
        %2298 = vmatprep.subr.mxu0 0.0
        %2299 = vmatpush1.msra.mxu0 0.0
        %2300 = vmatprep.subr.mxu0 0.0
        %2301 = vmatpush1.msra.mxu0 0.0
        %2302 = vmatprep.subr.mxu0 0.0
        %2303 = vmatpush1.msra.mxu0 0.0
        %2304 = vmatprep.subr.mxu0 0.0
        %2305 = vmatpush1.msra.mxu0 0.0
        %2306 = vmatprep.subr.mxu0 0.0
        %2307 = vmatpush1.msra.mxu0 0.0
        %2308 = vmatprep.subr.mxu0 0.0
        %2309 = vmatpush1.msra.mxu0 0.0
        %2310 = vmatprep.subr.mxu0 0.0
        %2311 = vmatpush1.msra.mxu0 0.0
        %2312 = vmatprep.subr.mxu0 0.0
        %2313 = vmatpush1.msra.mxu0 0.0
        %2314 = vmatprep.subr.mxu0 0.0
        %2315 = vmatpush1.msra.mxu0 0.0
        %2316 = vmatprep.subr.mxu0 0.0
        %2317 = vmatpush1.msra.mxu0 0.0
        %2318 = vmatprep.subr.mxu0 0.0
        %2319 = vmatpush1.msra.mxu0 0.0
        %2320 = vmatprep.subr.mxu0 0.0
        %2321 = vmatpush1.msra.mxu0 0.0
        %2322 = vmatprep.subr.mxu0 0.0
        %2323 = vmatpush1.msra.mxu0 0.0
        %2324 = vmatprep.subr.mxu0 0.0
        %2325 = vmatpush1.msra.mxu0 0.0
        %2326 = vmatprep.subr.mxu0 0.0
        %2327 = vmatpush1.msra.mxu0 0.0
        %2328 = vmatprep.subr.mxu0 0.0
        %2329 = vmatpush1.msra.mxu0 0.0
        %2330 = vmatprep.subr.mxu0 0.0
        %2331 = vmatpush1.msra.mxu0 0.0
        %2332 = vmatprep.subr.mxu0 0.0
        %2333 = vmatpush1.msra.mxu0 0.0
        %2334 = vmatprep.subr.mxu0 0.0
        %2335 = vmatpush1.msra.mxu0 0.0
        %2336 = vmatprep.mubr.f32.mxu0 0.0
        %2337 = vmatmul.mubr.f32.gmra.mrb[0].mxu0 %v779
        %v2338 = vpop.f32.mrb[0].mxu0
        %v2339 = vadd.f32 0.0, %v2338
        %v2340 = vpop.f32.mrb[0].mxu0
        %2341 = vmatprep.mubr.f32.mxu0 0.0
        %2342 = vmatmul.mubr.f32.gmra.mrb[0].mxu0 %v782
        %v2343 = vpop.f32.mrb[0].mxu0
        %v2344 = vadd.f32 0.0, %v2343
        %v2345 = vpop.f32.mrb[0].mxu0
        %2346 = vdwg.mxu0
        %2347 = vmatprep.subr.mxu0 0.0
        %2348 = vmatpush1.msra.mxu0 %v2265
        %2349 = vmatprep.subr.mxu0 0.0
        %2350 = vmatpush1.msra.mxu0 0.0
        %2351 = vmatprep.subr.mxu0 0.0
        %2352 = vmatpush1.msra.mxu0 0.0
        %2353 = vmatprep.subr.mxu0 0.0
        %2354 = vmatpush1.msra.mxu0 0.0
        %2355 = vmatprep.subr.mxu0 0.0
        %2356 = vmatpush1.msra.mxu0 0.0
        %2357 = vmatprep.subr.mxu0 0.0
        %2358 = vmatpush1.msra.mxu0 0.0
        %2359 = vmatprep.subr.mxu0 0.0
        %2360 = vmatpush1.msra.mxu0 0.0
        %2361 = vmatprep.subr.mxu0 0.0
        %2362 = vmatpush1.msra.mxu0 0.0
        %2363 = vmatprep.subr.mxu0 0.0
        %2364 = vmatpush1.msra.mxu0 0.0
        %2365 = vmatprep.subr.mxu0 0.0
        %2366 = vmatpush1.msra.mxu0 0.0
        %2367 = vmatprep.subr.mxu0 0.0
        %2368 = vmatpush1.msra.mxu0 0.0
        %2369 = vmatprep.subr.mxu0 0.0
        %2370 = vmatpush1.msra.mxu0 0.0
        %2371 = vmatprep.subr.mxu0 0.0
        %2372 = vmatpush1.msra.mxu0 0.0
        %2373 = vmatprep.subr.mxu0 0.0
        %2374 = vmatpush1.msra.mxu0 0.0
        %2375 = vmatprep.subr.mxu0 0.0
        %2376 = vmatpush1.msra.mxu0 0.0
        %2377 = vmatprep.subr.mxu0 0.0
        %2378 = vmatpush1.msra.mxu0 0.0
        %2379 = vmatprep.subr.mxu0 0.0
        %2380 = vmatpush1.msra.mxu0 0.0
        %2381 = vmatprep.subr.mxu0 0.0
        %2382 = vmatpush1.msra.mxu0 0.0
        %2383 = vmatprep.subr.mxu0 0.0
        %2384 = vmatpush1.msra.mxu0 0.0
        %2385 = vmatprep.subr.mxu0 0.0
        %2386 = vmatpush1.msra.mxu0 0.0
        %2387 = vmatprep.subr.mxu0 0.0
        %2388 = vmatpush1.msra.mxu0 0.0
        %2389 = vmatprep.subr.mxu0 0.0
        %2390 = vmatpush1.msra.mxu0 0.0
        %2391 = vmatprep.subr.mxu0 0.0
        %2392 = vmatpush1.msra.mxu0 0.0
        %2393 = vmatprep.subr.mxu0 0.0
        %2394 = vmatpush1.msra.mxu0 0.0
        %2395 = vmatprep.subr.mxu0 0.0
        %2396 = vmatpush1.msra.mxu0 0.0
        %2397 = vmatprep.subr.mxu0 0.0
        %2398 = vmatpush1.msra.mxu0 0.0
        %2399 = vmatprep.subr.mxu0 0.0
        %2400 = vmatpush1.msra.mxu0 0.0
        %2401 = vmatprep.subr.mxu0 0.0
        %2402 = vmatpush1.msra.mxu0 0.0
        %2403 = vmatprep.subr.mxu0 0.0
        %2404 = vmatpush1.msra.mxu0 0.0
        %2405 = vmatprep.subr.mxu0 0.0
        %2406 = vmatpush1.msra.mxu0 0.0
        %2407 = vmatprep.subr.mxu0 0.0
        %2408 = vmatpush1.msra.mxu0 0.0
        %2409 = vmatprep.subr.mxu0 0.0
        %2410 = vmatpush1.msra.mxu0 0.0
        %2411 = vmatprep.mubr.f32.mxu0 0.0
        %2412 = vmatmul.mubr.f32.gmra.mrb[0].mxu0 %v860
        %v2413 = vpop.f32.mrb[0].mxu0
        %v2414 = vadd.f32 0.0, %v2413
        %v2415 = vpop.f32.mrb[0].mxu0
        %2416 = vmatprep.mubr.f32.mxu0 0.0
        %2417 = vmatmul.mubr.f32.gmra.mrb[0].mxu0 %v863
        %v2418 = vpop.f32.mrb[0].mxu0
        %v2419 = vadd.f32 0.0, %v2418
        %v2420 = vpop.f32.mrb[0].mxu0
        %2421 = vdwg.mxu0
        %2422 = vmatprep.subr.mxu0 0.0
        %2423 = vmatpush1.msra.mxu0 %v2266
        %2424 = vmatprep.subr.mxu0 0.0
        %2425 = vmatpush1.msra.mxu0 0.0
        %2426 = vmatprep.subr.mxu0 0.0
        %2427 = vmatpush1.msra.mxu0 0.0
        %2428 = vmatprep.subr.mxu0 0.0
        %2429 = vmatpush1.msra.mxu0 0.0
        %2430 = vmatprep.subr.mxu0 0.0
        %2431 = vmatpush1.msra.mxu0 0.0
        %2432 = vmatprep.subr.mxu0 0.0
        %2433 = vmatpush1.msra.mxu0 0.0
        %2434 = vmatprep.subr.mxu0 0.0
        %2435 = vmatpush1.msra.mxu0 0.0
        %2436 = vmatprep.subr.mxu0 0.0
        %2437 = vmatpush1.msra.mxu0 0.0
        %2438 = vmatprep.subr.mxu0 0.0
        %2439 = vmatpush1.msra.mxu0 0.0
        %2440 = vmatprep.subr.mxu0 0.0
        %2441 = vmatpush1.msra.mxu0 0.0
        %2442 = vmatprep.subr.mxu0 0.0
        %2443 = vmatpush1.msra.mxu0 0.0
        %2444 = vmatprep.subr.mxu0 0.0
        %2445 = vmatpush1.msra.mxu0 0.0
        %2446 = vmatprep.subr.mxu0 0.0
        %2447 = vmatpush1.msra.mxu0 0.0
        %2448 = vmatprep.subr.mxu0 0.0
        %2449 = vmatpush1.msra.mxu0 0.0
        %2450 = vmatprep.subr.mxu0 0.0
        %2451 = vmatpush1.msra.mxu0 0.0
        %2452 = vmatprep.subr.mxu0 0.0
        %2453 = vmatpush1.msra.mxu0 0.0
        %2454 = vmatprep.subr.mxu0 0.0
        %2455 = vmatpush1.msra.mxu0 0.0
        %2456 = vmatprep.subr.mxu0 0.0
        %2457 = vmatpush1.msra.mxu0 0.0
        %2458 = vmatprep.subr.mxu0 0.0
        %2459 = vmatpush1.msra.mxu0 0.0
        %2460 = vmatprep.subr.mxu0 0.0
        %2461 = vmatpush1.msra.mxu0 0.0
        %2462 = vmatprep.subr.mxu0 0.0
        %2463 = vmatpush1.msra.mxu0 0.0
        %2464 = vmatprep.subr.mxu0 0.0
        %2465 = vmatpush1.msra.mxu0 0.0
        %2466 = vmatprep.subr.mxu0 0.0
        %2467 = vmatpush1.msra.mxu0 0.0
        %2468 = vmatprep.subr.mxu0 0.0
        %2469 = vmatpush1.msra.mxu0 0.0
        %2470 = vmatprep.subr.mxu0 0.0
        %2471 = vmatpush1.msra.mxu0 0.0
        %2472 = vmatprep.subr.mxu0 0.0
        %2473 = vmatpush1.msra.mxu0 0.0
        %2474 = vmatprep.subr.mxu0 0.0
        %2475 = vmatpush1.msra.mxu0 0.0
        %2476 = vmatprep.subr.mxu0 0.0
        %2477 = vmatpush1.msra.mxu0 0.0
        %2478 = vmatprep.subr.mxu0 0.0
        %2479 = vmatpush1.msra.mxu0 0.0
        %2480 = vmatprep.subr.mxu0 0.0
        %2481 = vmatpush1.msra.mxu0 0.0
        %2482 = vmatprep.subr.mxu0 0.0
        %2483 = vmatpush1.msra.mxu0 0.0
        %2484 = vmatprep.subr.mxu0 0.0
        %2485 = vmatpush1.msra.mxu0 0.0
        %2486 = vmatprep.mubr.f32.mxu0 0.0
        %2487 = vmatmul.mubr.f32.gmra.mrb[0].mxu0 %v941
        %v2488 = vpop.f32.mrb[0].mxu0
        %v2489 = vadd.f32 0.0, %v2488
        %v2490 = vpop.f32.mrb[0].mxu0
        %2491 = vmatprep.mubr.f32.mxu0 0.0
        %2492 = vmatmul.mubr.f32.gmra.mrb[0].mxu0 %v944
        %v2493 = vpop.f32.mrb[0].mxu0
        %v2494 = vadd.f32 0.0, %v2493
        %v2495 = vpop.f32.mrb[0].mxu0
        %2496 = vdwg.mxu0
        %2497 = vmatprep.subr.mxu0 0.0
        %2498 = vmatpush1.msra.mxu0 %v2267
        %2499 = vmatprep.subr.mxu0 0.0
        %2500 = vmatpush1.msra.mxu0 0.0
        %2501 = vmatprep.subr.mxu0 0.0
        %2502 = vmatpush1.msra.mxu0 0.0
        %2503 = vmatprep.subr.mxu0 0.0
        %2504 = vmatpush1.msra.mxu0 0.0
        %2505 = vmatprep.subr.mxu0 0.0
        %2506 = vmatpush1.msra.mxu0 0.0
        %2507 = vmatprep.subr.mxu0 0.0
        %2508 = vmatpush1.msra.mxu0 0.0
        %2509 = vmatprep.subr.mxu0 0.0
        %2510 = vmatpush1.msra.mxu0 0.0
        %2511 = vmatprep.subr.mxu0 0.0
        %2512 = vmatpush1.msra.mxu0 0.0
        %2513 = vmatprep.subr.mxu0 0.0
        %2514 = vmatpush1.msra.mxu0 0.0
        %2515 = vmatprep.subr.mxu0 0.0
        %2516 = vmatpush1.msra.mxu0 0.0
        %2517 = vmatprep.subr.mxu0 0.0
        %2518 = vmatpush1.msra.mxu0 0.0
        %2519 = vmatprep.subr.mxu0 0.0
        %2520 = vmatpush1.msra.mxu0 0.0
        %2521 = vmatprep.subr.mxu0 0.0
        %2522 = vmatpush1.msra.mxu0 0.0
        %2523 = vmatprep.subr.mxu0 0.0
        %2524 = vmatpush1.msra.mxu0 0.0
        %2525 = vmatprep.subr.mxu0 0.0
        %2526 = vmatpush1.msra.mxu0 0.0
        %2527 = vmatprep.subr.mxu0 0.0
        %2528 = vmatpush1.msra.mxu0 0.0
        %2529 = vmatprep.subr.mxu0 0.0
        %2530 = vmatpush1.msra.mxu0 0.0
        %2531 = vmatprep.subr.mxu0 0.0
        %2532 = vmatpush1.msra.mxu0 0.0
        %2533 = vmatprep.subr.mxu0 0.0
        %2534 = vmatpush1.msra.mxu0 0.0
        %2535 = vmatprep.subr.mxu0 0.0
        %2536 = vmatpush1.msra.mxu0 0.0
        %2537 = vmatprep.subr.mxu0 0.0
        %2538 = vmatpush1.msra.mxu0 0.0
        %2539 = vmatprep.subr.mxu0 0.0
        %2540 = vmatpush1.msra.mxu0 0.0
        %2541 = vmatprep.subr.mxu0 0.0
        %2542 = vmatpush1.msra.mxu0 0.0
        %2543 = vmatprep.subr.mxu0 0.0
        %2544 = vmatpush1.msra.mxu0 0.0
        %2545 = vmatprep.subr.mxu0 0.0
        %2546 = vmatpush1.msra.mxu0 0.0
        %2547 = vmatprep.subr.mxu0 0.0
        %2548 = vmatpush1.msra.mxu0 0.0
        %2549 = vmatprep.subr.mxu0 0.0
        %2550 = vmatpush1.msra.mxu0 0.0
        %2551 = vmatprep.subr.mxu0 0.0
        %2552 = vmatpush1.msra.mxu0 0.0
        %2553 = vmatprep.subr.mxu0 0.0
        %2554 = vmatpush1.msra.mxu0 0.0
        %2555 = vmatprep.subr.mxu0 0.0
        %2556 = vmatpush1.msra.mxu0 0.0
        %2557 = vmatprep.subr.mxu0 0.0
        %2558 = vmatpush1.msra.mxu0 0.0
        %2559 = vmatprep.subr.mxu0 0.0
        %2560 = vmatpush1.msra.mxu0 0.0
        %2561 = vmatprep.mubr.f32.mxu0 0.0
        %2562 = vmatmul.mubr.f32.gmra.mrb[0].mxu0 %v1022
        %v2563 = vpop.f32.mrb[0].mxu0
        %v2564 = vadd.f32 0.0, %v2563
        %v2565 = vpop.f32.mrb[0].mxu0
        %2566 = vmatprep.mubr.f32.mxu0 0.0
        %2567 = vmatmul.mubr.f32.gmra.mrb[0].mxu0 %v1025
        %v2568 = vpop.f32.mrb[0].mxu0
        %v2569 = vadd.f32 0.0, %v2568
        %v2570 = vpop.f32.mrb[0].mxu0
        %2571 = vdwg.mxu0
        %2572 = vmatprep.subr.mxu0 0.0
        %2573 = vmatpush1.msra.mxu0 %v2268
        %2574 = vmatprep.subr.mxu0 0.0
        %2575 = vmatpush1.msra.mxu0 0.0
        %2576 = vmatprep.subr.mxu0 0.0
        %2577 = vmatpush1.msra.mxu0 0.0
        %2578 = vmatprep.subr.mxu0 0.0
        %2579 = vmatpush1.msra.mxu0 0.0
        %2580 = vmatprep.subr.mxu0 0.0
        %2581 = vmatpush1.msra.mxu0 0.0
        %2582 = vmatprep.subr.mxu0 0.0
        %2583 = vmatpush1.msra.mxu0 0.0
        %2584 = vmatprep.subr.mxu0 0.0
        %2585 = vmatpush1.msra.mxu0 0.0
        %2586 = vmatprep.subr.mxu0 0.0
        %2587 = vmatpush1.msra.mxu0 0.0
        %2588 = vmatprep.subr.mxu0 0.0
        %2589 = vmatpush1.msra.mxu0 0.0
        %2590 = vmatprep.subr.mxu0 0.0
        %2591 = vmatpush1.msra.mxu0 0.0
        %2592 = vmatprep.subr.mxu0 0.0
        %2593 = vmatpush1.msra.mxu0 0.0
        %2594 = vmatprep.subr.mxu0 0.0
        %2595 = vmatpush1.msra.mxu0 0.0
        %2596 = vmatprep.subr.mxu0 0.0
        %2597 = vmatpush1.msra.mxu0 0.0
        %2598 = vmatprep.subr.mxu0 0.0
        %2599 = vmatpush1.msra.mxu0 0.0
        %2600 = vmatprep.subr.mxu0 0.0
        %2601 = vmatpush1.msra.mxu0 0.0
        %2602 = vmatprep.subr.mxu0 0.0
        %2603 = vmatpush1.msra.mxu0 0.0
        %2604 = vmatprep.subr.mxu0 0.0
        %2605 = vmatpush1.msra.mxu0 0.0
        %2606 = vmatprep.subr.mxu0 0.0
        %2607 = vmatpush1.msra.mxu0 0.0
        %2608 = vmatprep.subr.mxu0 0.0
        %2609 = vmatpush1.msra.mxu0 0.0
        %2610 = vmatprep.subr.mxu0 0.0
        %2611 = vmatpush1.msra.mxu0 0.0
        %2612 = vmatprep.subr.mxu0 0.0
        %2613 = vmatpush1.msra.mxu0 0.0
        %2614 = vmatprep.subr.mxu0 0.0
        %2615 = vmatpush1.msra.mxu0 0.0
        %2616 = vmatprep.subr.mxu0 0.0
        %2617 = vmatpush1.msra.mxu0 0.0
        %2618 = vmatprep.subr.mxu0 0.0
        %2619 = vmatpush1.msra.mxu0 0.0
        %2620 = vmatprep.subr.mxu0 0.0
        %2621 = vmatpush1.msra.mxu0 0.0
        %2622 = vmatprep.subr.mxu0 0.0
        %2623 = vmatpush1.msra.mxu0 0.0
        %2624 = vmatprep.subr.mxu0 0.0
        %2625 = vmatpush1.msra.mxu0 0.0
        %2626 = vmatprep.subr.mxu0 0.0
        %2627 = vmatpush1.msra.mxu0 0.0
        %2628 = vmatprep.subr.mxu0 0.0
        %2629 = vmatpush1.msra.mxu0 0.0
        %2630 = vmatprep.subr.mxu0 0.0
        %2631 = vmatpush1.msra.mxu0 0.0
        %2632 = vmatprep.subr.mxu0 0.0
        %2633 = vmatpush1.msra.mxu0 0.0
        %2634 = vmatprep.subr.mxu0 0.0
        %2635 = vmatpush1.msra.mxu0 0.0
        %2636 = vmatprep.mubr.f32.mxu0 0.0
        %2637 = vmatmul.mubr.f32.gmra.mrb[0].mxu0 %v1103
        %v2638 = vpop.f32.mrb[0].mxu0
        %v2639 = vadd.f32 0.0, %v2638
        %v2640 = vpop.f32.mrb[0].mxu0
        %2641 = vmatprep.mubr.f32.mxu0 0.0
        %2642 = vmatmul.mubr.f32.gmra.mrb[0].mxu0 %v1106
        %v2643 = vpop.f32.mrb[0].mxu0
        %v2644 = vadd.f32 0.0, %v2643
        %v2645 = vpop.f32.mrb[0].mxu0
        %2646 = vdwg.mxu0
        %2647 = vmatprep.subr.mxu0 0.0
        %2648 = vmatpush1.msra.mxu0 %v2269
        %2649 = vmatprep.subr.mxu0 0.0
        %2650 = vmatpush1.msra.mxu0 0.0
        %2651 = vmatprep.subr.mxu0 0.0
        %2652 = vmatpush1.msra.mxu0 0.0
        %2653 = vmatprep.subr.mxu0 0.0
        %2654 = vmatpush1.msra.mxu0 0.0
        %2655 = vmatprep.subr.mxu0 0.0
        %2656 = vmatpush1.msra.mxu0 0.0
        %2657 = vmatprep.subr.mxu0 0.0
        %2658 = vmatpush1.msra.mxu0 0.0
        %2659 = vmatprep.subr.mxu0 0.0
        %2660 = vmatpush1.msra.mxu0 0.0
        %2661 = vmatprep.subr.mxu0 0.0
        %2662 = vmatpush1.msra.mxu0 0.0
        %2663 = vmatprep.subr.mxu0 0.0
        %2664 = vmatpush1.msra.mxu0 0.0
        %2665 = vmatprep.subr.mxu0 0.0
        %2666 = vmatpush1.msra.mxu0 0.0
        %2667 = vmatprep.subr.mxu0 0.0
        %2668 = vmatpush1.msra.mxu0 0.0
        %2669 = vmatprep.subr.mxu0 0.0
        %2670 = vmatpush1.msra.mxu0 0.0
        %2671 = vmatprep.subr.mxu0 0.0
        %2672 = vmatpush1.msra.mxu0 0.0
        %2673 = vmatprep.subr.mxu0 0.0
        %2674 = vmatpush1.msra.mxu0 0.0
        %2675 = vmatprep.subr.mxu0 0.0
        %2676 = vmatpush1.msra.mxu0 0.0
        %2677 = vmatprep.subr.mxu0 0.0
        %2678 = vmatpush1.msra.mxu0 0.0
        %2679 = vmatprep.subr.mxu0 0.0
        %2680 = vmatpush1.msra.mxu0 0.0
        %2681 = vmatprep.subr.mxu0 0.0
        %2682 = vmatpush1.msra.mxu0 0.0
        %2683 = vmatprep.subr.mxu0 0.0
        %2684 = vmatpush1.msra.mxu0 0.0
        %2685 = vmatprep.subr.mxu0 0.0
        %2686 = vmatpush1.msra.mxu0 0.0
        %2687 = vmatprep.subr.mxu0 0.0
        %2688 = vmatpush1.msra.mxu0 0.0
        %2689 = vmatprep.subr.mxu0 0.0
        %2690 = vmatpush1.msra.mxu0 0.0
        %2691 = vmatprep.subr.mxu0 0.0
        %2692 = vmatpush1.msra.mxu0 0.0
        %2693 = vmatprep.subr.mxu0 0.0
        %2694 = vmatpush1.msra.mxu0 0.0
        %2695 = vmatprep.subr.mxu0 0.0
        %2696 = vmatpush1.msra.mxu0 0.0
        %2697 = vmatprep.subr.mxu0 0.0
        %2698 = vmatpush1.msra.mxu0 0.0
        %2699 = vmatprep.subr.mxu0 0.0
        %2700 = vmatpush1.msra.mxu0 0.0
        %2701 = vmatprep.subr.mxu0 0.0
        %2702 = vmatpush1.msra.mxu0 0.0
        %2703 = vmatprep.subr.mxu0 0.0
        %2704 = vmatpush1.msra.mxu0 0.0
        %2705 = vmatprep.subr.mxu0 0.0
        %2706 = vmatpush1.msra.mxu0 0.0
        %2707 = vmatprep.subr.mxu0 0.0
        %2708 = vmatpush1.msra.mxu0 0.0
        %2709 = vmatprep.subr.mxu0 0.0
        %2710 = vmatpush1.msra.mxu0 0.0
        %2711 = vmatprep.mubr.f32.mxu0 0.0
        %2712 = vmatmul.mubr.f32.gmra.mrb[0].mxu0 %v1184
        %v2713 = vpop.f32.mrb[0].mxu0
        %v2714 = vadd.f32 0.0, %v2713
        %v2715 = vpop.f32.mrb[0].mxu0
        %2716 = vmatprep.mubr.f32.mxu0 0.0
        %2717 = vmatmul.mubr.f32.gmra.mrb[0].mxu0 %v1187
        %v2718 = vpop.f32.mrb[0].mxu0
        %v2719 = vadd.f32 0.0, %v2718
        %v2720 = vpop.f32.mrb[0].mxu0
        %2721 = vdwg.mxu0
        %2722 = vmatprep.subr.mxu0 0.0
        %2723 = vmatpush1.msra.mxu0 %v2270
        %2724 = vmatprep.subr.mxu0 0.0
        %2725 = vmatpush1.msra.mxu0 0.0
        %2726 = vmatprep.subr.mxu0 0.0
        %2727 = vmatpush1.msra.mxu0 0.0
        %2728 = vmatprep.subr.mxu0 0.0
        %2729 = vmatpush1.msra.mxu0 0.0
        %2730 = vmatprep.subr.mxu0 0.0
        %2731 = vmatpush1.msra.mxu0 0.0
        %2732 = vmatprep.subr.mxu0 0.0
        %2733 = vmatpush1.msra.mxu0 0.0
        %2734 = vmatprep.subr.mxu0 0.0
        %2735 = vmatpush1.msra.mxu0 0.0
        %2736 = vmatprep.subr.mxu0 0.0
        %2737 = vmatpush1.msra.mxu0 0.0
        %2738 = vmatprep.subr.mxu0 0.0
        %2739 = vmatpush1.msra.mxu0 0.0
        %2740 = vmatprep.subr.mxu0 0.0
        %2741 = vmatpush1.msra.mxu0 0.0
        %2742 = vmatprep.subr.mxu0 0.0
        %2743 = vmatpush1.msra.mxu0 0.0
        %2744 = vmatprep.subr.mxu0 0.0
        %2745 = vmatpush1.msra.mxu0 0.0
        %2746 = vmatprep.subr.mxu0 0.0
        %2747 = vmatpush1.msra.mxu0 0.0
        %2748 = vmatprep.subr.mxu0 0.0
        %2749 = vmatpush1.msra.mxu0 0.0
        %2750 = vmatprep.subr.mxu0 0.0
        %2751 = vmatpush1.msra.mxu0 0.0
        %2752 = vmatprep.subr.mxu0 0.0
        %2753 = vmatpush1.msra.mxu0 0.0
        %2754 = vmatprep.subr.mxu0 0.0
        %2755 = vmatpush1.msra.mxu0 0.0
        %2756 = vmatprep.subr.mxu0 0.0
        %2757 = vmatpush1.msra.mxu0 0.0
        %2758 = vmatprep.subr.mxu0 0.0
        %2759 = vmatpush1.msra.mxu0 0.0
        %2760 = vmatprep.subr.mxu0 0.0
        %2761 = vmatpush1.msra.mxu0 0.0
        %2762 = vmatprep.subr.mxu0 0.0
        %2763 = vmatpush1.msra.mxu0 0.0
        %2764 = vmatprep.subr.mxu0 0.0
        %2765 = vmatpush1.msra.mxu0 0.0
        %2766 = vmatprep.subr.mxu0 0.0
        %2767 = vmatpush1.msra.mxu0 0.0
        %2768 = vmatprep.subr.mxu0 0.0
        %2769 = vmatpush1.msra.mxu0 0.0
        %2770 = vmatprep.subr.mxu0 0.0
        %2771 = vmatpush1.msra.mxu0 0.0
        %2772 = vmatprep.subr.mxu0 0.0
        %2773 = vmatpush1.msra.mxu0 0.0
        %2774 = vmatprep.subr.mxu0 0.0
        %2775 = vmatpush1.msra.mxu0 0.0
        %2776 = vmatprep.subr.mxu0 0.0
        %2777 = vmatpush1.msra.mxu0 0.0
        %2778 = vmatprep.subr.mxu0 0.0
        %2779 = vmatpush1.msra.mxu0 0.0
        %2780 = vmatprep.subr.mxu0 0.0
        %2781 = vmatpush1.msra.mxu0 0.0
        %2782 = vmatprep.subr.mxu0 0.0
        %2783 = vmatpush1.msra.mxu0 0.0
        %2784 = vmatprep.subr.mxu0 0.0
        %2785 = vmatpush1.msra.mxu0 0.0
        %2786 = vmatprep.mubr.f32.mxu0 0.0
        %2787 = vmatmul.mubr.f32.gmra.mrb[0].mxu0 %v1265
        %v2788 = vpop.f32.mrb[0].mxu0
        %v2789 = vadd.f32 0.0, %v2788
        %v2790 = vpop.f32.mrb[0].mxu0
        %2791 = vmatprep.mubr.f32.mxu0 0.0
        %2792 = vmatmul.mubr.f32.gmra.mrb[0].mxu0 %v1268
        %v2793 = vpop.f32.mrb[0].mxu0
        %v2794 = vadd.f32 0.0, %v2793
        %v2795 = vpop.f32.mrb[0].mxu0
        %2796 = vdwg.mxu0
        %2797 = vmatprep.subr.mxu0 0.0
        %2798 = vmatpush1.msra.mxu0 %v2271
        %2799 = vmatprep.subr.mxu0 0.0
        %2800 = vmatpush1.msra.mxu0 0.0
        %2801 = vmatprep.subr.mxu0 0.0
        %2802 = vmatpush1.msra.mxu0 0.0
        %2803 = vmatprep.subr.mxu0 0.0
        %2804 = vmatpush1.msra.mxu0 0.0
        %2805 = vmatprep.subr.mxu0 0.0
        %2806 = vmatpush1.msra.mxu0 0.0
        %2807 = vmatprep.subr.mxu0 0.0
        %2808 = vmatpush1.msra.mxu0 0.0
        %2809 = vmatprep.subr.mxu0 0.0
        %2810 = vmatpush1.msra.mxu0 0.0
        %2811 = vmatprep.subr.mxu0 0.0
        %2812 = vmatpush1.msra.mxu0 0.0
        %2813 = vmatprep.subr.mxu0 0.0
        %2814 = vmatpush1.msra.mxu0 0.0
        %2815 = vmatprep.subr.mxu0 0.0
        %2816 = vmatpush1.msra.mxu0 0.0
        %2817 = vmatprep.subr.mxu0 0.0
        %2818 = vmatpush1.msra.mxu0 0.0
        %2819 = vmatprep.subr.mxu0 0.0
        %2820 = vmatpush1.msra.mxu0 0.0
        %2821 = vmatprep.subr.mxu0 0.0
        %2822 = vmatpush1.msra.mxu0 0.0
        %2823 = vmatprep.subr.mxu0 0.0
        %2824 = vmatpush1.msra.mxu0 0.0
        %2825 = vmatprep.subr.mxu0 0.0
        %2826 = vmatpush1.msra.mxu0 0.0
        %2827 = vmatprep.subr.mxu0 0.0
        %2828 = vmatpush1.msra.mxu0 0.0
        %2829 = vmatprep.subr.mxu0 0.0
        %2830 = vmatpush1.msra.mxu0 0.0
        %2831 = vmatprep.subr.mxu0 0.0
        %2832 = vmatpush1.msra.mxu0 0.0
        %2833 = vmatprep.subr.mxu0 0.0
        %2834 = vmatpush1.msra.mxu0 0.0
        %2835 = vmatprep.subr.mxu0 0.0
        %2836 = vmatpush1.msra.mxu0 0.0
        %2837 = vmatprep.subr.mxu0 0.0
        %2838 = vmatpush1.msra.mxu0 0.0
        %2839 = vmatprep.subr.mxu0 0.0
        %2840 = vmatpush1.msra.mxu0 0.0
        %2841 = vmatprep.subr.mxu0 0.0
        %2842 = vmatpush1.msra.mxu0 0.0
        %2843 = vmatprep.subr.mxu0 0.0
        %2844 = vmatpush1.msra.mxu0 0.0
        %2845 = vmatprep.subr.mxu0 0.0
        %2846 = vmatpush1.msra.mxu0 0.0
        %2847 = vmatprep.subr.mxu0 0.0
        %2848 = vmatpush1.msra.mxu0 0.0
        %2849 = vmatprep.subr.mxu0 0.0
        %2850 = vmatpush1.msra.mxu0 0.0
        %2851 = vmatprep.subr.mxu0 0.0
        %2852 = vmatpush1.msra.mxu0 0.0
        %2853 = vmatprep.subr.mxu0 0.0
        %2854 = vmatpush1.msra.mxu0 0.0
        %2855 = vmatprep.subr.mxu0 0.0
        %2856 = vmatpush1.msra.mxu0 0.0
        %2857 = vmatprep.subr.mxu0 0.0
        %2858 = vmatpush1.msra.mxu0 0.0
        %2859 = vmatprep.subr.mxu0 0.0
        %2860 = vmatpush1.msra.mxu0 0.0
        %2861 = vmatprep.mubr.f32.mxu0 0.0
        %2862 = vmatmul.mubr.f32.gmra.mrb[0].mxu0 %v1346
        %v2863 = vpop.f32.mrb[0].mxu0
        %v2864 = vadd.f32 0.0, %v2863
        %v2865 = vpop.f32.mrb[0].mxu0
        %2866 = vmatprep.mubr.f32.mxu0 0.0
        %2867 = vmatmul.mubr.f32.gmra.mrb[0].mxu0 %v1349
        %v2868 = vpop.f32.mrb[0].mxu0
        %v2869 = vadd.f32 0.0, %v2868
        %v2870 = vpop.f32.mrb[0].mxu0
        %2871 = vdwg.mxu0
        %2872 = vmatprep.subr.mxu0 %v472
        %2873 = vmatpush1.msra.mxu0 %v471
        %2874 = vmatprep.subr.mxu0 %v475
        %2875 = vmatpush1.msra.mxu0 %v474
        %2876 = vmatprep.subr.mxu0 %v478
        %2877 = vmatpush1.msra.mxu0 %v477
        %2878 = vmatprep.subr.mxu0 %v481
        %2879 = vmatpush1.msra.mxu0 %v480
        %2880 = vmatprep.subr.mxu0 %v484
        %2881 = vmatpush1.msra.mxu0 %v483
        %2882 = vmatprep.subr.mxu0 %v487
        %2883 = vmatpush1.msra.mxu0 %v486
        %2884 = vmatprep.subr.mxu0 %v490
        %2885 = vmatpush1.msra.mxu0 %v489
        %2886 = vmatprep.subr.mxu0 %v493
        %2887 = vmatpush1.msra.mxu0 %v492
        %2888 = vmatprep.subr.mxu0 %v496
        %2889 = vmatpush1.msra.mxu0 %v495
        %2890 = vmatprep.subr.mxu0 %v499
        %2891 = vmatpush1.msra.mxu0 %v498
        %2892 = vmatprep.subr.mxu0 %v502
        %2893 = vmatpush1.msra.mxu0 %v501
        %2894 = vmatprep.subr.mxu0 %v505
        %2895 = vmatpush1.msra.mxu0 %v504
        %2896 = vmatprep.subr.mxu0 %v508
        %2897 = vmatpush1.msra.mxu0 %v507
        %2898 = vmatprep.subr.mxu0 %v511
        %2899 = vmatpush1.msra.mxu0 %v510
        %2900 = vmatprep.subr.mxu0 %v514
        %2901 = vmatpush1.msra.mxu0 %v513
        %2902 = vmatprep.subr.mxu0 %v517
        %2903 = vmatpush1.msra.mxu0 %v516
        %2904 = vmatprep.subr.mxu0 0.0
        %2905 = vmatpush1.msra.mxu0 0.0
        %2906 = vmatprep.subr.mxu0 0.0
        %2907 = vmatpush1.msra.mxu0 0.0
        %2908 = vmatprep.subr.mxu0 0.0
        %2909 = vmatpush1.msra.mxu0 0.0
        %2910 = vmatprep.subr.mxu0 0.0
        %2911 = vmatpush1.msra.mxu0 0.0
        %2912 = vmatprep.subr.mxu0 0.0
        %2913 = vmatpush1.msra.mxu0 0.0
        %2914 = vmatprep.subr.mxu0 0.0
        %2915 = vmatpush1.msra.mxu0 0.0
        %2916 = vmatprep.subr.mxu0 0.0
        %2917 = vmatpush1.msra.mxu0 0.0
        %2918 = vmatprep.subr.mxu0 0.0
        %2919 = vmatpush1.msra.mxu0 0.0
        %2920 = vmatprep.subr.mxu0 0.0
        %2921 = vmatpush1.msra.mxu0 0.0
        %2922 = vmatprep.subr.mxu0 0.0
        %2923 = vmatpush1.msra.mxu0 0.0
        %2924 = vmatprep.subr.mxu0 0.0
        %2925 = vmatpush1.msra.mxu0 0.0
        %2926 = vmatprep.subr.mxu0 0.0
        %2927 = vmatpush1.msra.mxu0 0.0
        %2928 = vmatprep.subr.mxu0 0.0
        %2929 = vmatpush1.msra.mxu0 0.0
        %2930 = vmatprep.subr.mxu0 0.0
        %2931 = vmatpush1.msra.mxu0 0.0
        %2932 = vmatprep.subr.mxu0 0.0
        %2933 = vmatpush1.msra.mxu0 0.0
        %2934 = vmatprep.subr.mxu0 0.0
        %2935 = vmatpush1.msra.mxu0 0.0
        %2936 = vmatprep.mubr.f32.mxu0 0.0
        %2937 = vmatmul.mubr.f32.gmra.mrb[0].mxu0 %v2344
        %v2938 = vpop.f32.mrb[0].mxu0
        %v2939 = vadd.f32 0.0, %v2938
        %v2940 = vpop.f32.mrb[0].mxu0
        %v2941 = vadd.f32 0.0, %v2940
        %2942 = vmatprep.mubr.f32.mxu0 0.0
        %2943 = vmatmul.mubr.f32.gmra.mrb[0].mxu0 %v2419
        %v2944 = vpop.f32.mrb[0].mxu0
        %v2945 = vadd.f32 0.0, %v2944
        %v2946 = vpop.f32.mrb[0].mxu0
        %v2947 = vadd.f32 0.0, %v2946
        %2948 = vmatprep.mubr.f32.mxu0 0.0
        %2949 = vmatmul.mubr.f32.gmra.mrb[0].mxu0 %v2494
        %v2950 = vpop.f32.mrb[0].mxu0
        %v2951 = vadd.f32 0.0, %v2950
        %v2952 = vpop.f32.mrb[0].mxu0
        %v2953 = vadd.f32 0.0, %v2952
        %2954 = vmatprep.mubr.f32.mxu0 0.0
        %2955 = vmatmul.mubr.f32.gmra.mrb[0].mxu0 %v2569
        %v2956 = vpop.f32.mrb[0].mxu0
        %v2957 = vadd.f32 0.0, %v2956
        %v2958 = vpop.f32.mrb[0].mxu0
        %v2959 = vadd.f32 0.0, %v2958
        %2960 = vmatprep.mubr.f32.mxu0 0.0
        %2961 = vmatmul.mubr.f32.gmra.mrb[0].mxu0 %v2644
        %v2962 = vpop.f32.mrb[0].mxu0
        %v2963 = vadd.f32 0.0, %v2962
        %v2964 = vpop.f32.mrb[0].mxu0
        %v2965 = vadd.f32 0.0, %v2964
        %2966 = vmatprep.mubr.f32.mxu0 0.0
        %2967 = vmatmul.mubr.f32.gmra.mrb[0].mxu0 %v2719
        %v2968 = vpop.f32.mrb[0].mxu0
        %v2969 = vadd.f32 0.0, %v2968
        %v2970 = vpop.f32.mrb[0].mxu0
        %v2971 = vadd.f32 0.0, %v2970
        %2972 = vmatprep.mubr.f32.mxu0 0.0
        %2973 = vmatmul.mubr.f32.gmra.mrb[0].mxu0 %v2794
        %v2974 = vpop.f32.mrb[0].mxu0
        %v2975 = vadd.f32 0.0, %v2974
        %v2976 = vpop.f32.mrb[0].mxu0
        %v2977 = vadd.f32 0.0, %v2976
        %2978 = vmatprep.mubr.f32.mxu0 0.0
        %2979 = vmatmul.mubr.f32.gmra.mrb[0].mxu0 %v2869
        %v2980 = vpop.f32.mrb[0].mxu0
        %v2981 = vadd.f32 0.0, %v2980
        %v2982 = vpop.f32.mrb[0].mxu0
        %v2983 = vadd.f32 0.0, %v2982
        %2984 = vdwg.mxu0
        %2985 = vmatprep.subr.mxu0 0.0
        %2986 = vmatpush1.msra.mxu0 %v473
        %2987 = vmatprep.subr.mxu0 0.0
        %2988 = vmatpush1.msra.mxu0 %v476
        %2989 = vmatprep.subr.mxu0 0.0
        %2990 = vmatpush1.msra.mxu0 %v479
        %2991 = vmatprep.subr.mxu0 0.0
        %2992 = vmatpush1.msra.mxu0 %v482
        %2993 = vmatprep.subr.mxu0 0.0
        %2994 = vmatpush1.msra.mxu0 %v485
        %2995 = vmatprep.subr.mxu0 0.0
        %2996 = vmatpush1.msra.mxu0 %v488
        %2997 = vmatprep.subr.mxu0 0.0
        %2998 = vmatpush1.msra.mxu0 %v491
        %2999 = vmatprep.subr.mxu0 0.0
        %3000 = vmatpush1.msra.mxu0 %v494
        %3001 = vmatprep.subr.mxu0 0.0
        %3002 = vmatpush1.msra.mxu0 %v497
        %3003 = vmatprep.subr.mxu0 0.0
        %3004 = vmatpush1.msra.mxu0 %v500
        %3005 = vmatprep.subr.mxu0 0.0
        %3006 = vmatpush1.msra.mxu0 %v503
        %3007 = vmatprep.subr.mxu0 0.0
        %3008 = vmatpush1.msra.mxu0 %v506
        %3009 = vmatprep.subr.mxu0 0.0
        %3010 = vmatpush1.msra.mxu0 %v509
        %3011 = vmatprep.subr.mxu0 0.0
        %3012 = vmatpush1.msra.mxu0 %v512
        %3013 = vmatprep.subr.mxu0 0.0
        %3014 = vmatpush1.msra.mxu0 %v515
        %3015 = vmatprep.subr.mxu0 0.0
        %3016 = vmatpush1.msra.mxu0 %v518
        %3017 = vmatprep.subr.mxu0 0.0
        %3018 = vmatpush1.msra.mxu0 0.0
        %3019 = vmatprep.subr.mxu0 0.0
        %3020 = vmatpush1.msra.mxu0 0.0
        %3021 = vmatprep.subr.mxu0 0.0
        %3022 = vmatpush1.msra.mxu0 0.0
        %3023 = vmatprep.subr.mxu0 0.0
        %3024 = vmatpush1.msra.mxu0 0.0
        %3025 = vmatprep.subr.mxu0 0.0
        %3026 = vmatpush1.msra.mxu0 0.0
        %3027 = vmatprep.subr.mxu0 0.0
        %3028 = vmatpush1.msra.mxu0 0.0
        %3029 = vmatprep.subr.mxu0 0.0
        %3030 = vmatpush1.msra.mxu0 0.0
        %3031 = vmatprep.subr.mxu0 0.0
        %3032 = vmatpush1.msra.mxu0 0.0
        %3033 = vmatprep.subr.mxu0 0.0
        %3034 = vmatpush1.msra.mxu0 0.0
        %3035 = vmatprep.subr.mxu0 0.0
        %3036 = vmatpush1.msra.mxu0 0.0
        %3037 = vmatprep.subr.mxu0 0.0
        %3038 = vmatpush1.msra.mxu0 0.0
        %3039 = vmatprep.subr.mxu0 0.0
        %3040 = vmatpush1.msra.mxu0 0.0
        %3041 = vmatprep.subr.mxu0 0.0
        %3042 = vmatpush1.msra.mxu0 0.0
        %3043 = vmatprep.subr.mxu0 0.0
        %3044 = vmatpush1.msra.mxu0 0.0
        %3045 = vmatprep.subr.mxu0 0.0
        %3046 = vmatpush1.msra.mxu0 0.0
        %3047 = vmatprep.subr.mxu0 0.0
        %3048 = vmatpush1.msra.mxu0 0.0
        %3049 = vmatprep.mubr.f32.mxu0 0.0
        %3050 = vmatmul.mubr.f32.gmra.mrb[0].mxu0 %v2344
        %v3051 = vpop.f32.mrb[0].mxu0
        %v3052 = vadd.f32 0.0, %v3051
        %v3053 = vpop.f32.mrb[0].mxu0
        %3054 = vmatprep.mubr.f32.mxu0 0.0
        %3055 = vmatmul.mubr.f32.gmra.mrb[0].mxu0 %v2419
        %v3056 = vpop.f32.mrb[0].mxu0
        %v3057 = vadd.f32 0.0, %v3056
        %v3058 = vpop.f32.mrb[0].mxu0
        %3059 = vmatprep.mubr.f32.mxu0 0.0
        %3060 = vmatmul.mubr.f32.gmra.mrb[0].mxu0 %v2494
        %v3061 = vpop.f32.mrb[0].mxu0
        %v3062 = vadd.f32 0.0, %v3061
        %v3063 = vpop.f32.mrb[0].mxu0
        %3064 = vmatprep.mubr.f32.mxu0 0.0
        %3065 = vmatmul.mubr.f32.gmra.mrb[0].mxu0 %v2569
        %v3066 = vpop.f32.mrb[0].mxu0
        %v3067 = vadd.f32 0.0, %v3066
        %v3068 = vpop.f32.mrb[0].mxu0
        %3069 = vmatprep.mubr.f32.mxu0 0.0
        %3070 = vmatmul.mubr.f32.gmra.mrb[0].mxu0 %v2644
        %v3071 = vpop.f32.mrb[0].mxu0
        %v3072 = vadd.f32 0.0, %v3071
        %v3073 = vpop.f32.mrb[0].mxu0
        %3074 = vmatprep.mubr.f32.mxu0 0.0
        %3075 = vmatmul.mubr.f32.gmra.mrb[0].mxu0 %v2719
        %v3076 = vpop.f32.mrb[0].mxu0
        %v3077 = vadd.f32 0.0, %v3076
        %v3078 = vpop.f32.mrb[0].mxu0
        %3079 = vmatprep.mubr.f32.mxu0 0.0
        %3080 = vmatmul.mubr.f32.gmra.mrb[0].mxu0 %v2794
        %v3081 = vpop.f32.mrb[0].mxu0
        %v3082 = vadd.f32 0.0, %v3081
        %v3083 = vpop.f32.mrb[0].mxu0
        %3084 = vmatprep.mubr.f32.mxu0 0.0
        %3085 = vmatmul.mubr.f32.gmra.mrb[0].mxu0 %v2869
        %v3086 = vpop.f32.mrb[0].mxu0
        %v3087 = vadd.f32 0.0, %v3086
        %v3088 = vpop.f32.mrb[0].mxu0
        %3089 = vdwg.mxu0
        %3090 = vmatprep.subr.mxu0 %v424
        %3091 = vmatpush1.msra.mxu0 %v423
        %3092 = vmatprep.subr.mxu0 %v427
        %3093 = vmatpush1.msra.mxu0 %v426
        %3094 = vmatprep.subr.mxu0 %v430
        %3095 = vmatpush1.msra.mxu0 %v429
        %3096 = vmatprep.subr.mxu0 %v433
        %3097 = vmatpush1.msra.mxu0 %v432
        %3098 = vmatprep.subr.mxu0 %v436
        %3099 = vmatpush1.msra.mxu0 %v435
        %3100 = vmatprep.subr.mxu0 %v439
        %3101 = vmatpush1.msra.mxu0 %v438
        %3102 = vmatprep.subr.mxu0 %v442
        %3103 = vmatpush1.msra.mxu0 %v441
        %3104 = vmatprep.subr.mxu0 %v445
        %3105 = vmatpush1.msra.mxu0 %v444
        %3106 = vmatprep.subr.mxu0 %v448
        %3107 = vmatpush1.msra.mxu0 %v447
        %3108 = vmatprep.subr.mxu0 %v451
        %3109 = vmatpush1.msra.mxu0 %v450
        %3110 = vmatprep.subr.mxu0 %v454
        %3111 = vmatpush1.msra.mxu0 %v453
        %3112 = vmatprep.subr.mxu0 %v457
        %3113 = vmatpush1.msra.mxu0 %v456
        %3114 = vmatprep.subr.mxu0 %v460
        %3115 = vmatpush1.msra.mxu0 %v459
        %3116 = vmatprep.subr.mxu0 %v463
        %3117 = vmatpush1.msra.mxu0 %v462
        %3118 = vmatprep.subr.mxu0 %v466
        %3119 = vmatpush1.msra.mxu0 %v465
        %3120 = vmatprep.subr.mxu0 %v469
        %3121 = vmatpush1.msra.mxu0 %v468
        %3122 = vmatprep.subr.mxu0 0.0
        %3123 = vmatpush1.msra.mxu0 0.0
        %3124 = vmatprep.subr.mxu0 0.0
        %3125 = vmatpush1.msra.mxu0 0.0
        %3126 = vmatprep.subr.mxu0 0.0
        %3127 = vmatpush1.msra.mxu0 0.0
        %3128 = vmatprep.subr.mxu0 0.0
        %3129 = vmatpush1.msra.mxu0 0.0
        %3130 = vmatprep.subr.mxu0 0.0
        %3131 = vmatpush1.msra.mxu0 0.0
        %3132 = vmatprep.subr.mxu0 0.0
        %3133 = vmatpush1.msra.mxu0 0.0
        %3134 = vmatprep.subr.mxu0 0.0
        %3135 = vmatpush1.msra.mxu0 0.0
        %3136 = vmatprep.subr.mxu0 0.0
        %3137 = vmatpush1.msra.mxu0 0.0
        %3138 = vmatprep.subr.mxu0 0.0
        %3139 = vmatpush1.msra.mxu0 0.0
        %3140 = vmatprep.subr.mxu0 0.0
        %3141 = vmatpush1.msra.mxu0 0.0
        %3142 = vmatprep.subr.mxu0 0.0
        %3143 = vmatpush1.msra.mxu0 0.0
        %3144 = vmatprep.subr.mxu0 0.0
        %3145 = vmatpush1.msra.mxu0 0.0
        %3146 = vmatprep.subr.mxu0 0.0
        %3147 = vmatpush1.msra.mxu0 0.0
        %3148 = vmatprep.subr.mxu0 0.0
        %3149 = vmatpush1.msra.mxu0 0.0
        %3150 = vmatprep.subr.mxu0 0.0
        %3151 = vmatpush1.msra.mxu0 0.0
        %3152 = vmatprep.subr.mxu0 0.0
        %3153 = vmatpush1.msra.mxu0 0.0
        %3154 = vmatprep.mubr.f32.mxu0 0.0
        %3155 = vmatmul.mubr.f32.gmra.mrb[0].mxu0 %v2339
        %v3156 = vpop.f32.mrb[0].mxu0
        %v3157 = vadd.f32 %v2939, %v3156
        %v3158 = vpop.f32.mrb[0].mxu0
        %v3159 = vadd.f32 %v2941, %v3158
        %3160 = vmatprep.mubr.f32.mxu0 0.0
        %3161 = vmatmul.mubr.f32.gmra.mrb[0].mxu0 %v2414
        %v3162 = vpop.f32.mrb[0].mxu0
        %v3163 = vadd.f32 %v2945, %v3162
        %v3164 = vpop.f32.mrb[0].mxu0
        %v3165 = vadd.f32 %v2947, %v3164
        %3166 = vmatprep.mubr.f32.mxu0 0.0
        %3167 = vmatmul.mubr.f32.gmra.mrb[0].mxu0 %v2489
        %v3168 = vpop.f32.mrb[0].mxu0
        %v3169 = vadd.f32 %v2951, %v3168
        %v3170 = vpop.f32.mrb[0].mxu0
        %v3171 = vadd.f32 %v2953, %v3170
        %3172 = vmatprep.mubr.f32.mxu0 0.0
        %3173 = vmatmul.mubr.f32.gmra.mrb[0].mxu0 %v2564
        %v3174 = vpop.f32.mrb[0].mxu0
        %v3175 = vadd.f32 %v2957, %v3174
        %v3176 = vpop.f32.mrb[0].mxu0
        %v3177 = vadd.f32 %v2959, %v3176
        %3178 = vmatprep.mubr.f32.mxu0 0.0
        %3179 = vmatmul.mubr.f32.gmra.mrb[0].mxu0 %v2639
        %v3180 = vpop.f32.mrb[0].mxu0
        %v3181 = vadd.f32 %v2963, %v3180
        %v3182 = vpop.f32.mrb[0].mxu0
        %v3183 = vadd.f32 %v2965, %v3182
        %3184 = vmatprep.mubr.f32.mxu0 0.0
        %3185 = vmatmul.mubr.f32.gmra.mrb[0].mxu0 %v2714
        %v3186 = vpop.f32.mrb[0].mxu0
        %v3187 = vadd.f32 %v2969, %v3186
        %v3188 = vpop.f32.mrb[0].mxu0
        %v3189 = vadd.f32 %v2971, %v3188
        %3190 = vmatprep.mubr.f32.mxu0 0.0
        %3191 = vmatmul.mubr.f32.gmra.mrb[0].mxu0 %v2789
        %v3192 = vpop.f32.mrb[0].mxu0
        %v3193 = vadd.f32 %v2975, %v3192
        %v3194 = vpop.f32.mrb[0].mxu0
        %v3195 = vadd.f32 %v2977, %v3194
        %3196 = vmatprep.mubr.f32.mxu0 0.0
        %3197 = vmatmul.mubr.f32.gmra.mrb[0].mxu0 %v2864
        %v3198 = vpop.f32.mrb[0].mxu0
        %v3199 = vadd.f32 %v2981, %v3198
        %v3200 = vpop.f32.mrb[0].mxu0
        %v3201 = vadd.f32 %v2983, %v3200
        %3202 = vdwg.mxu0
        %3203 = vmatprep.subr.mxu0 0.0
        %3204 = vmatpush1.msra.mxu0 %v425
        %3205 = vmatprep.subr.mxu0 0.0
        %3206 = vmatpush1.msra.mxu0 %v428
        %3207 = vmatprep.subr.mxu0 0.0
        %3208 = vmatpush1.msra.mxu0 %v431
        %3209 = vmatprep.subr.mxu0 0.0
        %3210 = vmatpush1.msra.mxu0 %v434
        %3211 = vmatprep.subr.mxu0 0.0
        %3212 = vmatpush1.msra.mxu0 %v437
        %3213 = vmatprep.subr.mxu0 0.0
        %3214 = vmatpush1.msra.mxu0 %v440
        %3215 = vmatprep.subr.mxu0 0.0
        %3216 = vmatpush1.msra.mxu0 %v443
        %3217 = vmatprep.subr.mxu0 0.0
        %3218 = vmatpush1.msra.mxu0 %v446
        %3219 = vmatprep.subr.mxu0 0.0
        %3220 = vmatpush1.msra.mxu0 %v449
        %3221 = vmatprep.subr.mxu0 0.0
        %3222 = vmatpush1.msra.mxu0 %v452
        %3223 = vmatprep.subr.mxu0 0.0
        %3224 = vmatpush1.msra.mxu0 %v455
        %3225 = vmatprep.subr.mxu0 0.0
        %3226 = vmatpush1.msra.mxu0 %v458
        %3227 = vmatprep.subr.mxu0 0.0
        %3228 = vmatpush1.msra.mxu0 %v461
        %3229 = vmatprep.subr.mxu0 0.0
        %3230 = vmatpush1.msra.mxu0 %v464
        %3231 = vmatprep.subr.mxu0 0.0
        %3232 = vmatpush1.msra.mxu0 %v467
        %3233 = vmatprep.subr.mxu0 0.0
        %3234 = vmatpush1.msra.mxu0 %v470
        %3235 = vmatprep.subr.mxu0 0.0
        %3236 = vmatpush1.msra.mxu0 0.0
        %3237 = vmatprep.subr.mxu0 0.0
        %3238 = vmatpush1.msra.mxu0 0.0
        %3239 = vmatprep.subr.mxu0 0.0
        %3240 = vmatpush1.msra.mxu0 0.0
        %3241 = vmatprep.subr.mxu0 0.0
        %3242 = vmatpush1.msra.mxu0 0.0
        %3243 = vmatprep.subr.mxu0 0.0
        %3244 = vmatpush1.msra.mxu0 0.0
        %3245 = vmatprep.subr.mxu0 0.0
        %3246 = vmatpush1.msra.mxu0 0.0
        %3247 = vmatprep.subr.mxu0 0.0
        %3248 = vmatpush1.msra.mxu0 0.0
        %3249 = vmatprep.subr.mxu0 0.0
        %3250 = vmatpush1.msra.mxu0 0.0
        %3251 = vmatprep.subr.mxu0 0.0
        %3252 = vmatpush1.msra.mxu0 0.0
        %3253 = vmatprep.subr.mxu0 0.0
        %3254 = vmatpush1.msra.mxu0 0.0
        %3255 = vmatprep.subr.mxu0 0.0
        %3256 = vmatpush1.msra.mxu0 0.0
        %3257 = vmatprep.subr.mxu0 0.0
        %3258 = vmatpush1.msra.mxu0 0.0
        %3259 = vmatprep.subr.mxu0 0.0
        %3260 = vmatpush1.msra.mxu0 0.0
        %3261 = vmatprep.subr.mxu0 0.0
        %3262 = vmatpush1.msra.mxu0 0.0
        %3263 = vmatprep.subr.mxu0 0.0
        %3264 = vmatpush1.msra.mxu0 0.0
        %3265 = vmatprep.subr.mxu0 0.0
        %3266 = vmatpush1.msra.mxu0 0.0
        %3267 = vmatprep.mubr.f32.mxu0 0.0
        %3268 = vmatmul.mubr.f32.gmra.mrb[0].mxu0 %v2339
        %v3269 = vpop.f32.mrb[0].mxu0
        %v3270 = vadd.f32 %v3052, %v3269
        %v3271 = vpop.f32.mrb[0].mxu0
        %3272 = vmatprep.mubr.f32.mxu0 0.0
        %3273 = vmatmul.mubr.f32.gmra.mrb[0].mxu0 %v2414
        %v3274 = vpop.f32.mrb[0].mxu0
        %v3275 = vadd.f32 %v3057, %v3274
        %v3276 = vpop.f32.mrb[0].mxu0
        %3277 = vmatprep.mubr.f32.mxu0 0.0
        %3278 = vmatmul.mubr.f32.gmra.mrb[0].mxu0 %v2489
        %v3279 = vpop.f32.mrb[0].mxu0
        %v3280 = vadd.f32 %v3062, %v3279
        %v3281 = vpop.f32.mrb[0].mxu0
        %3282 = vmatprep.mubr.f32.mxu0 0.0
        %3283 = vmatmul.mubr.f32.gmra.mrb[0].mxu0 %v2564
        %v3284 = vpop.f32.mrb[0].mxu0
        %v3285 = vadd.f32 %v3067, %v3284
        %v3286 = vpop.f32.mrb[0].mxu0
        %3287 = vmatprep.mubr.f32.mxu0 0.0
        %3288 = vmatmul.mubr.f32.gmra.mrb[0].mxu0 %v2639
        %v3289 = vpop.f32.mrb[0].mxu0
        %v3290 = vadd.f32 %v3072, %v3289
        %v3291 = vpop.f32.mrb[0].mxu0
        %3292 = vmatprep.mubr.f32.mxu0 0.0
        %3293 = vmatmul.mubr.f32.gmra.mrb[0].mxu0 %v2714
        %v3294 = vpop.f32.mrb[0].mxu0
        %v3295 = vadd.f32 %v3077, %v3294
        %v3296 = vpop.f32.mrb[0].mxu0
        %3297 = vmatprep.mubr.f32.mxu0 0.0
        %3298 = vmatmul.mubr.f32.gmra.mrb[0].mxu0 %v2789
        %v3299 = vpop.f32.mrb[0].mxu0
        %v3300 = vadd.f32 %v3082, %v3299
        %v3301 = vpop.f32.mrb[0].mxu0
        %3302 = vmatprep.mubr.f32.mxu0 0.0
        %3303 = vmatmul.mubr.f32.gmra.mrb[0].mxu0 %v2864
        %v3304 = vpop.f32.mrb[0].mxu0
        %v3305 = vadd.f32 %v3087, %v3304
        %v3306 = vpop.f32.mrb[0].mxu0
        %3307 = vdwg.mxu0
        %v3308 = vadd.f32 %v3157, %v739
        %v3309 = vadd.f32 %v3159, %v740
        %v3310 = vadd.f32 %v3270, %v741
        %v3311 = vadd.f32 %v3163, %v742
        %v3312 = vadd.f32 %v3165, %v743
        %v3313 = vadd.f32 %v3275, %v744
        %v3314 = vadd.f32 %v3169, %v745
        %v3315 = vadd.f32 %v3171, %v746
        %v3316 = vadd.f32 %v3280, %v747
        %v3317 = vadd.f32 %v3175, %v748
        %v3318 = vadd.f32 %v3177, %v749
        %v3319 = vadd.f32 %v3285, %v750
        %v3320 = vadd.f32 %v3181, %v751
        %v3321 = vadd.f32 %v3183, %v752
        %v3322 = vadd.f32 %v3290, %v753
        %v3323 = vadd.f32 %v3187, %v754
        %v3324 = vadd.f32 %v3189, %v755
        %v3325 = vadd.f32 %v3295, %v756
        %v3326 = vadd.f32 %v3193, %v757
        %v3327 = vadd.f32 %v3195, %v758
        %v3328 = vadd.f32 %v3300, %v759
        %v3329 = vadd.f32 %v3199, %v760
        %v3330 = vadd.f32 %v3201, %v761
        %v3331 = vadd.f32 %v3305, %v762
        %3332 = vmatprep.subr.mxu0 %v520
        %3333 = vmatpush1.msra.mxu0 %v519
        %3334 = vmatprep.subr.mxu0 %v523
        %3335 = vmatpush1.msra.mxu0 %v522
        %3336 = vmatprep.subr.mxu0 %v526
        %3337 = vmatpush1.msra.mxu0 %v525
        %3338 = vmatprep.subr.mxu0 %v529
        %3339 = vmatpush1.msra.mxu0 %v528
        %3340 = vmatprep.subr.mxu0 %v532
        %3341 = vmatpush1.msra.mxu0 %v531
        %3342 = vmatprep.subr.mxu0 %v535
        %3343 = vmatpush1.msra.mxu0 %v534
        %3344 = vmatprep.subr.mxu0 %v538
        %3345 = vmatpush1.msra.mxu0 %v537
        %3346 = vmatprep.subr.mxu0 %v541
        %3347 = vmatpush1.msra.mxu0 %v540
        %3348 = vmatprep.subr.mxu0 %v544
        %3349 = vmatpush1.msra.mxu0 %v543
        %3350 = vmatprep.subr.mxu0 %v547
        %3351 = vmatpush1.msra.mxu0 %v546
        %3352 = vmatprep.subr.mxu0 %v550
        %3353 = vmatpush1.msra.mxu0 %v549
        %3354 = vmatprep.subr.mxu0 %v553
        %3355 = vmatpush1.msra.mxu0 %v552
        %3356 = vmatprep.subr.mxu0 %v556
        %3357 = vmatpush1.msra.mxu0 %v555
        %3358 = vmatprep.subr.mxu0 %v559
        %3359 = vmatpush1.msra.mxu0 %v558
        %3360 = vmatprep.subr.mxu0 %v562
        %3361 = vmatpush1.msra.mxu0 %v561
        %3362 = vmatprep.subr.mxu0 %v565
        %3363 = vmatpush1.msra.mxu0 %v564
        %3364 = vmatprep.subr.mxu0 0.0
        %3365 = vmatpush1.msra.mxu0 0.0
        %3366 = vmatprep.subr.mxu0 0.0
        %3367 = vmatpush1.msra.mxu0 0.0
        %3368 = vmatprep.subr.mxu0 0.0
        %3369 = vmatpush1.msra.mxu0 0.0
        %3370 = vmatprep.subr.mxu0 0.0
        %3371 = vmatpush1.msra.mxu0 0.0
        %3372 = vmatprep.subr.mxu0 0.0
        %3373 = vmatpush1.msra.mxu0 0.0
        %3374 = vmatprep.subr.mxu0 0.0
        %3375 = vmatpush1.msra.mxu0 0.0
        %3376 = vmatprep.subr.mxu0 0.0
        %3377 = vmatpush1.msra.mxu0 0.0
        %3378 = vmatprep.subr.mxu0 0.0
        %3379 = vmatpush1.msra.mxu0 0.0
        %3380 = vmatprep.subr.mxu0 0.0
        %3381 = vmatpush1.msra.mxu0 0.0
        %3382 = vmatprep.subr.mxu0 0.0
        %3383 = vmatpush1.msra.mxu0 0.0
        %3384 = vmatprep.subr.mxu0 0.0
        %3385 = vmatpush1.msra.mxu0 0.0
        %3386 = vmatprep.subr.mxu0 0.0
        %3387 = vmatpush1.msra.mxu0 0.0
        %3388 = vmatprep.subr.mxu0 0.0
        %3389 = vmatpush1.msra.mxu0 0.0
        %3390 = vmatprep.subr.mxu0 0.0
        %3391 = vmatpush1.msra.mxu0 0.0
        %3392 = vmatprep.subr.mxu0 0.0
        %3393 = vmatpush1.msra.mxu0 0.0
        %3394 = vmatprep.subr.mxu0 0.0
        %3395 = vmatpush1.msra.mxu0 0.0
        %3396 = vmatprep.mubr.f32.mxu0 0.0
        %3397 = vmatmul.mubr.f32.gmra.mrb[0].mxu0 %v2264
        %v3398 = vpop.f32.mrb[0].mxu0
        %v3399 = vadd.f32 0.0, %v3398
        %v3400 = vpop.f32.mrb[0].mxu0
        %v3401 = vadd.f32 0.0, %v3400
        %3402 = vmatprep.mubr.f32.mxu0 0.0
        %3403 = vmatmul.mubr.f32.gmra.mrb[0].mxu0 %v2265
        %v3404 = vpop.f32.mrb[0].mxu0
        %v3405 = vadd.f32 0.0, %v3404
        %v3406 = vpop.f32.mrb[0].mxu0
        %v3407 = vadd.f32 0.0, %v3406
        %3408 = vmatprep.mubr.f32.mxu0 0.0
        %3409 = vmatmul.mubr.f32.gmra.mrb[0].mxu0 %v2266
        %v3410 = vpop.f32.mrb[0].mxu0
        %v3411 = vadd.f32 0.0, %v3410
        %v3412 = vpop.f32.mrb[0].mxu0
        %v3413 = vadd.f32 0.0, %v3412
        %3414 = vmatprep.mubr.f32.mxu0 0.0
        %3415 = vmatmul.mubr.f32.gmra.mrb[0].mxu0 %v2267
        %v3416 = vpop.f32.mrb[0].mxu0
        %v3417 = vadd.f32 0.0, %v3416
        %v3418 = vpop.f32.mrb[0].mxu0
        %v3419 = vadd.f32 0.0, %v3418
        %3420 = vmatprep.mubr.f32.mxu0 0.0
        %3421 = vmatmul.mubr.f32.gmra.mrb[0].mxu0 %v2268
        %v3422 = vpop.f32.mrb[0].mxu0
        %v3423 = vadd.f32 0.0, %v3422
        %v3424 = vpop.f32.mrb[0].mxu0
        %v3425 = vadd.f32 0.0, %v3424
        %3426 = vmatprep.mubr.f32.mxu0 0.0
        %3427 = vmatmul.mubr.f32.gmra.mrb[0].mxu0 %v2269
        %v3428 = vpop.f32.mrb[0].mxu0
        %v3429 = vadd.f32 0.0, %v3428
        %v3430 = vpop.f32.mrb[0].mxu0
        %v3431 = vadd.f32 0.0, %v3430
        %3432 = vmatprep.mubr.f32.mxu0 0.0
        %3433 = vmatmul.mubr.f32.gmra.mrb[0].mxu0 %v2270
        %v3434 = vpop.f32.mrb[0].mxu0
        %v3435 = vadd.f32 0.0, %v3434
        %v3436 = vpop.f32.mrb[0].mxu0
        %v3437 = vadd.f32 0.0, %v3436
        %3438 = vmatprep.mubr.f32.mxu0 0.0
        %3439 = vmatmul.mubr.f32.gmra.mrb[0].mxu0 %v2271
        %v3440 = vpop.f32.mrb[0].mxu0
        %v3441 = vadd.f32 0.0, %v3440
        %v3442 = vpop.f32.mrb[0].mxu0
        %v3443 = vadd.f32 0.0, %v3442
        %3444 = vdwg.mxu0
        %3445 = vmatprep.subr.mxu0 0.0
        %3446 = vmatpush1.msra.mxu0 %v521
        %3447 = vmatprep.subr.mxu0 0.0
        %3448 = vmatpush1.msra.mxu0 %v524
        %3449 = vmatprep.subr.mxu0 0.0
        %3450 = vmatpush1.msra.mxu0 %v527
        %3451 = vmatprep.subr.mxu0 0.0
        %3452 = vmatpush1.msra.mxu0 %v530
        %3453 = vmatprep.subr.mxu0 0.0
        %3454 = vmatpush1.msra.mxu0 %v533
        %3455 = vmatprep.subr.mxu0 0.0
        %3456 = vmatpush1.msra.mxu0 %v536
        %3457 = vmatprep.subr.mxu0 0.0
        %3458 = vmatpush1.msra.mxu0 %v539
        %3459 = vmatprep.subr.mxu0 0.0
        %3460 = vmatpush1.msra.mxu0 %v542
        %3461 = vmatprep.subr.mxu0 0.0
        %3462 = vmatpush1.msra.mxu0 %v545
        %3463 = vmatprep.subr.mxu0 0.0
        %3464 = vmatpush1.msra.mxu0 %v548
        %3465 = vmatprep.subr.mxu0 0.0
        %3466 = vmatpush1.msra.mxu0 %v551
        %3467 = vmatprep.subr.mxu0 0.0
        %3468 = vmatpush1.msra.mxu0 %v554
        %3469 = vmatprep.subr.mxu0 0.0
        %3470 = vmatpush1.msra.mxu0 %v557
        %3471 = vmatprep.subr.mxu0 0.0
        %3472 = vmatpush1.msra.mxu0 %v560
        %3473 = vmatprep.subr.mxu0 0.0
        %3474 = vmatpush1.msra.mxu0 %v563
        %3475 = vmatprep.subr.mxu0 0.0
        %3476 = vmatpush1.msra.mxu0 %v566
        %3477 = vmatprep.subr.mxu0 0.0
        %3478 = vmatpush1.msra.mxu0 0.0
        %3479 = vmatprep.subr.mxu0 0.0
        %3480 = vmatpush1.msra.mxu0 0.0
        %3481 = vmatprep.subr.mxu0 0.0
        %3482 = vmatpush1.msra.mxu0 0.0
        %3483 = vmatprep.subr.mxu0 0.0
        %3484 = vmatpush1.msra.mxu0 0.0
        %3485 = vmatprep.subr.mxu0 0.0
        %3486 = vmatpush1.msra.mxu0 0.0
        %3487 = vmatprep.subr.mxu0 0.0
        %3488 = vmatpush1.msra.mxu0 0.0
        %3489 = vmatprep.subr.mxu0 0.0
        %3490 = vmatpush1.msra.mxu0 0.0
        %3491 = vmatprep.subr.mxu0 0.0
        %3492 = vmatpush1.msra.mxu0 0.0
        %3493 = vmatprep.subr.mxu0 0.0
        %3494 = vmatpush1.msra.mxu0 0.0
        %3495 = vmatprep.subr.mxu0 0.0
        %3496 = vmatpush1.msra.mxu0 0.0
        %3497 = vmatprep.subr.mxu0 0.0
        %3498 = vmatpush1.msra.mxu0 0.0
        %3499 = vmatprep.subr.mxu0 0.0
        %3500 = vmatpush1.msra.mxu0 0.0
        %3501 = vmatprep.subr.mxu0 0.0
        %3502 = vmatpush1.msra.mxu0 0.0
        %3503 = vmatprep.subr.mxu0 0.0
        %3504 = vmatpush1.msra.mxu0 0.0
        %3505 = vmatprep.subr.mxu0 0.0
        %3506 = vmatpush1.msra.mxu0 0.0
        %3507 = vmatprep.subr.mxu0 0.0
        %3508 = vmatpush1.msra.mxu0 0.0
        %3509 = vmatprep.mubr.f32.mxu0 0.0
        %3510 = vmatmul.mubr.f32.gmra.mrb[0].mxu0 %v2264
        %v3511 = vpop.f32.mrb[0].mxu0
        %v3512 = vadd.f32 0.0, %v3511
        %v3513 = vpop.f32.mrb[0].mxu0
        %3514 = vmatprep.mubr.f32.mxu0 0.0
        %3515 = vmatmul.mubr.f32.gmra.mrb[0].mxu0 %v2265
        %v3516 = vpop.f32.mrb[0].mxu0
        %v3517 = vadd.f32 0.0, %v3516
        %v3518 = vpop.f32.mrb[0].mxu0
        %3519 = vmatprep.mubr.f32.mxu0 0.0
        %3520 = vmatmul.mubr.f32.gmra.mrb[0].mxu0 %v2266
        %v3521 = vpop.f32.mrb[0].mxu0
        %v3522 = vadd.f32 0.0, %v3521
        %v3523 = vpop.f32.mrb[0].mxu0
        %3524 = vmatprep.mubr.f32.mxu0 0.0
        %3525 = vmatmul.mubr.f32.gmra.mrb[0].mxu0 %v2267
        %v3526 = vpop.f32.mrb[0].mxu0
        %v3527 = vadd.f32 0.0, %v3526
        %v3528 = vpop.f32.mrb[0].mxu0
        %3529 = vmatprep.mubr.f32.mxu0 0.0
        %3530 = vmatmul.mubr.f32.gmra.mrb[0].mxu0 %v2268
        %v3531 = vpop.f32.mrb[0].mxu0
        %v3532 = vadd.f32 0.0, %v3531
        %v3533 = vpop.f32.mrb[0].mxu0
        %3534 = vmatprep.mubr.f32.mxu0 0.0
        %3535 = vmatmul.mubr.f32.gmra.mrb[0].mxu0 %v2269
        %v3536 = vpop.f32.mrb[0].mxu0
        %v3537 = vadd.f32 0.0, %v3536
        %v3538 = vpop.f32.mrb[0].mxu0
        %3539 = vmatprep.mubr.f32.mxu0 0.0
        %3540 = vmatmul.mubr.f32.gmra.mrb[0].mxu0 %v2270
        %v3541 = vpop.f32.mrb[0].mxu0
        %v3542 = vadd.f32 0.0, %v3541
        %v3543 = vpop.f32.mrb[0].mxu0
        %3544 = vmatprep.mubr.f32.mxu0 0.0
        %3545 = vmatmul.mubr.f32.gmra.mrb[0].mxu0 %v2271
        %v3546 = vpop.f32.mrb[0].mxu0
        %v3547 = vadd.f32 0.0, %v3546
        %v3548 = vpop.f32.mrb[0].mxu0
        %3549 = vdwg.mxu0
        %v3550 = vadd.f32 %v3512, %v768
        %v3551 = vadd.f32 %v3517, %v768
        %v3552 = vadd.f32 %v3522, %v768
        %v3553 = vadd.f32 %v3527, %v768
        %v3554 = vadd.f32 %v3532, %v768
        %v3555 = vadd.f32 %v3537, %v768
        %v3556 = vadd.f32 %v3542, %v768
        %v3557 = vadd.f32 %v3547, %v768
        %v3558 = vadd.f32 %v3308, %v3399
        %v3559 = vadd.f32 %v3311, %v3405
        %v3560 = vadd.f32 %v3314, %v3411
        %v3561 = vadd.f32 %v3317, %v3417
        %v3562 = vadd.f32 %v3320, %v3423
        %v3563 = vadd.f32 %v3323, %v3429
        %v3564 = vadd.f32 %v3326, %v3435
        %v3565 = vadd.f32 %v3329, %v3441
        %v3566 = vxor.u32 %v3558, 2147483648
        %v3567 = vxor.u32 %v3559, 2147483648
        %v3568 = vxor.u32 %v3560, 2147483648
        %v3569 = vxor.u32 %v3561, 2147483648
        %v3570 = vxor.u32 %v3562, 2147483648
        %v3571 = vxor.u32 %v3563, 2147483648
        %v3572 = vxor.u32 %v3564, 2147483648
        %v3573 = vxor.u32 %v3565, 2147483648
        %v3574 = vmul.f32 %v3566, 1.442695
        %v3575 = vpow.pop %v3574
        %v3576 = vmul.f32 %v3567, 1.442695
        %v3577 = vpow.pop %v3576
        %v3578 = vmul.f32 %v3568, 1.442695
        %v3579 = vpow.pop %v3578
        %v3580 = vmul.f32 %v3569, 1.442695
        %v3581 = vpow.pop %v3580
        %v3582 = vmul.f32 %v3570, 1.442695
        %v3583 = vpow.pop %v3582
        %v3584 = vmul.f32 %v3571, 1.442695
        %v3585 = vpow.pop %v3584
        %v3586 = vmul.f32 %v3572, 1.442695
        %v3587 = vpow.pop %v3586
        %v3588 = vmul.f32 %v3573, 1.442695
        %v3589 = vpow.pop %v3588
        %v3590 = vadd.f32 %v3575, 1.0
        %v3591 = vadd.f32 %v3577, 1.0
        %v3592 = vadd.f32 %v3579, 1.0
        %v3593 = vadd.f32 %v3581, 1.0
        %v3594 = vadd.f32 %v3583, 1.0
        %v3595 = vadd.f32 %v3585, 1.0
        %v3596 = vadd.f32 %v3587, 1.0
        %v3597 = vadd.f32 %v3589, 1.0
        %v3598 = vrcp.pop %v3590
        %v3599 = vmul.f32 1.0, %v3598
        %v3600 = vrcp.pop %v3591
        %v3601 = vmul.f32 1.0, %v3600
        %v3602 = vrcp.pop %v3592
        %v3603 = vmul.f32 1.0, %v3602
        %v3604 = vrcp.pop %v3593
        %v3605 = vmul.f32 1.0, %v3604
        %v3606 = vrcp.pop %v3594
        %v3607 = vmul.f32 1.0, %v3606
        %v3608 = vrcp.pop %v3595
        %v3609 = vmul.f32 1.0, %v3608
        %v3610 = vrcp.pop %v3596
        %v3611 = vmul.f32 1.0, %v3610
        %v3612 = vrcp.pop %v3597
        %v3613 = vmul.f32 1.0, %v3612
        %v3614 = vadd.f32 %v3309, %v3401
        %v3615 = vadd.f32 %v3312, %v3407
        %v3616 = vadd.f32 %v3315, %v3413
        %v3617 = vadd.f32 %v3318, %v3419
        %v3618 = vadd.f32 %v3321, %v3425
        %v3619 = vadd.f32 %v3324, %v3431
        %v3620 = vadd.f32 %v3327, %v3437
        %v3621 = vadd.f32 %v3330, %v3443
        %v3622 = vxor.u32 %v3614, 2147483648
        %v3623 = vxor.u32 %v3615, 2147483648
        %v3624 = vxor.u32 %v3616, 2147483648
        %v3625 = vxor.u32 %v3617, 2147483648
        %v3626 = vxor.u32 %v3618, 2147483648
        %v3627 = vxor.u32 %v3619, 2147483648
        %v3628 = vxor.u32 %v3620, 2147483648
        %v3629 = vxor.u32 %v3621, 2147483648
        %v3630 = vmul.f32 %v3622, 1.442695
        %v3631 = vpow.pop %v3630
        %v3632 = vmul.f32 %v3623, 1.442695
        %v3633 = vpow.pop %v3632
        %v3634 = vmul.f32 %v3624, 1.442695
        %v3635 = vpow.pop %v3634
        %v3636 = vmul.f32 %v3625, 1.442695
        %v3637 = vpow.pop %v3636
        %v3638 = vmul.f32 %v3626, 1.442695
        %v3639 = vpow.pop %v3638
        %v3640 = vmul.f32 %v3627, 1.442695
        %v3641 = vpow.pop %v3640
        %v3642 = vmul.f32 %v3628, 1.442695
        %v3643 = vpow.pop %v3642
        %v3644 = vmul.f32 %v3629, 1.442695
        %v3645 = vpow.pop %v3644
        %v3646 = vadd.f32 %v3631, 1.0
        %v3647 = vadd.f32 %v3633, 1.0
        %v3648 = vadd.f32 %v3635, 1.0
        %v3649 = vadd.f32 %v3637, 1.0
        %v3650 = vadd.f32 %v3639, 1.0
        %v3651 = vadd.f32 %v3641, 1.0
        %v3652 = vadd.f32 %v3643, 1.0
        %v3653 = vadd.f32 %v3645, 1.0
        %v3654 = vrcp.pop %v3646
        %v3655 = vmul.f32 1.0, %v3654
        %v3656 = vrcp.pop %v3647
        %v3657 = vmul.f32 1.0, %v3656
        %v3658 = vrcp.pop %v3648
        %v3659 = vmul.f32 1.0, %v3658
        %v3660 = vrcp.pop %v3649
        %v3661 = vmul.f32 1.0, %v3660
        %v3662 = vrcp.pop %v3650
        %v3663 = vmul.f32 1.0, %v3662
        %v3664 = vrcp.pop %v3651
        %v3665 = vmul.f32 1.0, %v3664
        %v3666 = vrcp.pop %v3652
        %v3667 = vmul.f32 1.0, %v3666
        %v3668 = vrcp.pop %v3653
        %v3669 = vmul.f32 1.0, %v3668
        %v3670 = vmul.f32 %v3599, %v3550
        %v3671 = vmul.f32 %v3601, %v3551
        %v3672 = vmul.f32 %v3603, %v3552
        %v3673 = vmul.f32 %v3605, %v3553
        %v3674 = vmul.f32 %v3607, %v3554
        %v3675 = vmul.f32 %v3609, %v3555
        %v3676 = vmul.f32 %v3611, %v3556
        %v3677 = vmul.f32 %v3613, %v3557
        %v3678 = vadd.f32 %v3310, %v3670
        %v3679 = vadd.f32 %v3313, %v3671
        %v3680 = vadd.f32 %v3316, %v3672
        %v3681 = vadd.f32 %v3319, %v3673
        %v3682 = vadd.f32 %v3322, %v3674
        %v3683 = vadd.f32 %v3325, %v3675
        %v3684 = vadd.f32 %v3328, %v3676
        %v3685 = vadd.f32 %v3331, %v3677
        %v3686 = vtanh.pop %v3678
        %v3687 = vtanh.pop %v3679
        %v3688 = vtanh.pop %v3680
        %v3689 = vtanh.pop %v3681
        %v3690 = vtanh.pop %v3682
        %v3691 = vtanh.pop %v3683
        %v3692 = vtanh.pop %v3684
        %v3693 = vtanh.pop %v3685
        %v3694 = vsub.f32 %v2264, %v3686
        %v3695 = vsub.f32 %v2265, %v3687
        %v3696 = vsub.f32 %v2266, %v3688
        %v3697 = vsub.f32 %v2267, %v3689
        %v3698 = vsub.f32 %v2268, %v3690
        %v3699 = vsub.f32 %v2269, %v3691
        %v3700 = vsub.f32 %v2270, %v3692
        %v3701 = vsub.f32 %v2271, %v3693
        %v3702 = vmul.f32 %v3655, %v3694
        %v3703 = vmul.f32 %v3657, %v3695
        %v3704 = vmul.f32 %v3659, %v3696
        %v3705 = vmul.f32 %v3661, %v3697
        %v3706 = vmul.f32 %v3663, %v3698
        %v3707 = vmul.f32 %v3665, %v3699
        %v3708 = vmul.f32 %v3667, %v3700
        %v3709 = vmul.f32 %v3669, %v3701
        %v3710 = vadd.f32 %v3686, %v3702
        %v3711 = vadd.f32 %v3687, %v3703
        %v3712 = vadd.f32 %v3688, %v3704
        %v3713 = vadd.f32 %v3689, %v3705
        %v3714 = vadd.f32 %v3690, %v3706
        %v3715 = vadd.f32 %v3691, %v3707
        %v3716 = vadd.f32 %v3692, %v3708
        %v3717 = vadd.f32 %v3693, %v3709
        %3718 = vst [vmem:[%s397] sm:$0xff] %v3710
        %3719 = vst [vmem:[%s397 + $0x8] sm:$0xff] %v3711
        %3720 = vst [vmem:[%s397 + $0x10] sm:$0xff] %v3712
        %3721 = vst [vmem:[%s397 + $0x18] sm:$0xff] %v3713
        %3722 = vst [vmem:[%s397 + $0x20] sm:$0xff] %v3714
        %3723 = vst [vmem:[%s397 + $0x28] sm:$0xff] %v3715
        %3724 = vst [vmem:[%s397 + $0x30] sm:$0xff] %v3716
        %3725 = vst [vmem:[%s397 + $0x38] sm:$0xff] %v3717
        %s3726 = sand.u32 %s234, 1
        %s3727 = scalar_lea.sflag [#allocation4], %s3726
        %s3728 = sand.u32 %s234, 1
        %s3729 = smul.addr %s3728, 64
        %s3730 = scalar_lea.vmem [#allocation8], %s3729
        // Predicated region
        $region69: #{tpu_custom_call.1} parent=55 // pred_check
          %p3731 = pneg %p244
        $region70: #{tpu_custom_call.1} parent=55 // pred_check_branch
          %3733 = sbr.rel (%p3731) target = $region72
        $region71: #{tpu_custom_call.1} parent=55 // pred_region
          %s3734 = smul.u32 8, %s27
          %s3736 = ssub.s32 1024, 1024
          %3737 = vsyncadd %s3727, %s3736
          %s3738 = smul.addr %s3734, 128
          %s3739 = scalar_lea.hbm %s9, %s3738
          %s3740 = sshll.u32 %s3730, 4
          %s3741 = int_to_ptr.vmem [resolvable:$true] %s3740
          %3746 = dma.vmem_to_hbm [thread:$0]  %s3741, 1024, %s3739, %s3727, 128, 128, 8
        $region72: #{tpu_custom_call.1} parent=55 // pred_fallthru
          _
      $region56: #{tpu_custom_call.1} parent=5 // pred_fallthru
        _
      %p3747 = scmp.le.s32.totalorder 2, %s22
      // Predicated region
      $region73: #{tpu_custom_call.1} parent=5 // pred_check
        %p3748 = pneg %p3747
      $region74: #{tpu_custom_call.1} parent=5 // pred_check_branch
        %3750 = sbr.rel (%p3748) target = $region76
      $region75: #{tpu_custom_call.1} parent=5 // pred_region
        %s3751 = ssub.s32 %s22, 2
        // Predicated region
        $region77: #{tpu_custom_call.1} parent=75 // pred_check
          %p3752 = pneg %p250
        $region78: #{tpu_custom_call.1} parent=75 // pred_check_branch
          %3754 = sbr.rel (%p3752) target = $region80
        $region79: #{tpu_custom_call.1} parent=75 // pred_region
          %s3755 = sand.u32 %s235, 1
          %s3756 = scalar_lea.sflag [#allocation4], %s3755
          %s3757 = sand.u32 %s235, 1
          %s3758 = smul.addr %s3757, 64
          %s3759 = scalar_lea.vmem [#allocation8], %s3758
          %3760 = dma.done %s3756, 1024
        $region80: #{tpu_custom_call.1} parent=75 // pred_fallthru
          _
      $region76: #{tpu_custom_call.1} parent=5 // pred_fallthru
        _
    $region6: #{tpu_custom_call.1} parent=1 // loop_footer
      %s26 = sadd.s32 1, %s22
    $region7: #{tpu_custom_call.1} parent=1 // loop_footer_branch
      %21 = sbr.rel target = $region3
    $region8: #{tpu_custom_call.1} parent=1 // loop_exit
      _
    %3761 = vsyncpa [#allocation3], 1
    %s3762 = scalar_lea.sflag [#allocation3], 1
    %3763 = vsyncpa %s3762, 1
    %3764 = vsyncpa [#allocation6], 1
    %3765 = vsyncpa [#allocation4], 1
    %s3766 = scalar_lea.sflag [#allocation4], 1
    %3767 = vsyncpa %s3766, 1

</llo_original>
